<compile_context>
chip_gen: v7x
topology: tpu7x:2x2x1
jax: 0.10.0
libtpu: 0.0.40
codegen_flags: <defaults>
</compile_context>

<pallas_src>
import jax
import jax.numpy as jnp
from jax.experimental import pallas as pl
from jax.experimental.pallas import tpu as pltpu


def _round_up(x, m):
    return ((x + m - 1) // m) * m


# ---------------------------------------------------------------------------
# Pallas kernels
# ---------------------------------------------------------------------------
def _mm_bias_relu_kernel(x_ref, w_ref, b_ref, o_ref, acc_ref):
    # (TM, TK) @ (TK, TN) on the MXU, accumulated in fp32 VMEM scratch over the K grid axis.
    @pl.when(pl.program_id(2) == 0)
    def _():
        acc_ref[...] = jnp.zeros_like(acc_ref)

    acc_ref[...] += jnp.dot(x_ref[...], w_ref[...],
                            preferred_element_type=jnp.float32)

    @pl.when(pl.program_id(2) == pl.num_programs(2) - 1)
    def _():
        o_ref[...] = jnp.maximum(acc_ref[...] + b_ref[...], 0.0)


def _mm_bias_relu_res_kernel(x_ref, w_ref, b_ref, r_ref, o_ref, acc_ref):
    @pl.when(pl.program_id(2) == 0)
    def _():
        acc_ref[...] = jnp.zeros_like(acc_ref)

    acc_ref[...] += jnp.dot(x_ref[...], w_ref[...],
                            preferred_element_type=jnp.float32)

    @pl.when(pl.program_id(2) == pl.num_programs(2) - 1)
    def _():
        # relu(conv) + identity shortcut (ordering kept from prior implementation).
        o_ref[...] = jnp.maximum(acc_ref[...] + b_ref[...], 0.0) + r_ref[...]


_MM_CACHE = {}


def _get_matmul_call(Pp, Kp, Cp, TM, TN, TK, with_res):
    key = (Pp, Kp, Cp, TM, TN, TK, with_res)
    if key in _MM_CACHE:
        return _MM_CACHE[key]

    in_specs = [
        pl.BlockSpec((TM, TK), lambda i, j, k: (i, k)),   # patches (bf16)
        pl.BlockSpec((TK, TN), lambda i, j, k: (k, j)),   # folded weights (bf16)
        pl.BlockSpec((1, TN), lambda i, j, k: (0, j)),    # bn bias (fp32)
    ]
    kernel = _mm_bias_relu_kernel
    if with_res:
        in_specs.append(pl.BlockSpec((TM, TN), lambda i, j, k: (i, j)))  # residual (fp32)
        kernel = _mm_bias_relu_res_kernel

    fn = pl.pallas_call(
        kernel,
        out_shape=jax.ShapeDtypeStruct((Pp, Cp), jnp.float32),
        grid=(Pp // TM, Cp // TN, Kp // TK),
        in_specs=in_specs,
        out_specs=pl.BlockSpec((TM, TN), lambda i, j, k: (i, j)),
        scratch_shapes=[pltpu.VMEM((TM, TN), jnp.float32)],
        compiler_params=pltpu.CompilerParams(
            dimension_semantics=("parallel", "parallel", "arbitrary"),
            vmem_limit_bytes=32 * 1024 * 1024),
    )
    _MM_CACHE[key] = fn
    return fn


def _maxpool_kernel(t_ref, o_ref):
    # t_ref: (9, TP, Cp) window taps; reduce max over the 9 taps for this row tile.
    o_ref[...] = jnp.max(t_ref[...], axis=0)


_POOL_CACHE = {}


def _get_maxpool_call(Pp, Cp, TP):
    key = (Pp, Cp, TP)
    if key in _POOL_CACHE:
        return _POOL_CACHE[key]
    fn = pl.pallas_call(
        _maxpool_kernel,
        out_shape=jax.ShapeDtypeStruct((Pp, Cp), jnp.float32),
        grid=(Pp // TP,),
        in_specs=[pl.BlockSpec((9, TP, Cp), lambda i: (0, i, 0))],
        out_specs=pl.BlockSpec((TP, Cp), lambda i: (i, 0)),
        compiler_params=pltpu.CompilerParams(
            dimension_semantics=("parallel",),
            vmem_limit_bytes=32 * 1024 * 1024),
    )
    _POOL_CACHE[key] = fn
    return fn


# ---------------------------------------------------------------------------
# Conv / pool wrappers (im2col glue in plain JAX inside the whole-forward jit)
# ---------------------------------------------------------------------------
def _im2col(x, kh, kw, stride, ph, pw):
    N, H, W, C = x.shape
    xp = jnp.pad(x, ((0, 0), (ph, ph), (pw, pw), (0, 0)))
    Ho = (H + 2 * ph - kh) // stride + 1
    Wo = (W + 2 * pw - kw) // stride + 1
    cols = []
    for i in range(kh):
        for j in range(kw):
            cols.append(xp[:, i:i + stride * Ho:stride, j:j + stride * Wo:stride, :])
    patches = jnp.stack(cols, axis=3)              # (N, Ho, Wo, kh*kw, C)
    return patches.reshape(N * Ho * Wo, kh * kw * C), (N, Ho, Wo)


def conv_bn_relu(x, p, stride, residual=None):
    kh, kw = p["kh"], p["kw"]
    Cout = p["W"].shape[1]
    N, H, W, _ = x.shape

    if kh == 1 and kw == 1 and stride == 1:
        # Fast path: 1x1 conv is a plain matmul over channels, no im2col.
        Ho, Wo = H, W
        patches = x.reshape(N * H * W, -1)
    else:
        patches, (N, Ho, Wo) = _im2col(x, kh, kw, stride, kh // 2, kw // 2)
    P, K = patches.shape

    # --- tile sizes (fit comfortably in v5e 16MiB / v7x 32MiB scoped VMEM) ---
    Pp = _round_up(P, 16)
    TM = 256 if Pp >= 256 else Pp
    Pp = _round_up(P, TM)
    Cp = _round_up(Cout, 128)
    TN = 256 if Cp % 256 == 0 else 128
    if K <= 1024:
        Kp = _round_up(K, 16)          # single full-extent K block; no 128-padding waste
        TK = Kp
    else:
        TK = 512
        Kp = _round_up(K, TK)

    xm = jnp.pad(patches.astype(jnp.bfloat16), ((0, Pp - P), (0, Kp - K)))
    wm = jnp.pad(p["W"].astype(jnp.bfloat16), ((0, Kp - K), (0, Cp - Cout)))
    bs = jnp.pad(p["bias"].reshape(1, Cout), ((0, 0), (0, Cp - Cout)))

    args = [xm, wm, bs]
    with_res = residual is not None
    if with_res:
        rflat = residual.reshape(N * Ho * Wo, Cout).astype(jnp.float32)
        args.append(jnp.pad(rflat, ((0, Pp - P), (0, Cp - Cout))))

    out = _get_matmul_call(Pp, Kp, Cp, TM, TN, TK, with_res)(*args)
    return out[:P, :Cout].reshape(N, Ho, Wo, Cout)


def maxpool_3x3_s2_p1(x):
    N, H, W, C = x.shape
    neg = jnp.float32(-3.0e38)                     # MaxPool padding acts like -inf
    xp = jnp.pad(x, ((0, 0), (1, 1), (1, 1), (0, 0)), constant_values=neg)
    Ho = (H + 2 - 3) // 2 + 1
    Wo = (W + 2 - 3) // 2 + 1
    cols = [xp[:, i:i + 2 * Ho:2, j:j + 2 * Wo:2, :]
            for i in range(3) for j in range(3)]
    taps = jnp.stack(cols, axis=0).reshape(9, N * Ho * Wo, C)

    P = N * Ho * Wo
    Pp = _round_up(P, 8)
    TP = 512 if Pp >= 512 else Pp
    Pp = _round_up(P, TP)
    Cp = _round_up(C, 128)
    tm = jnp.pad(taps, ((0, 0), (0, Pp - P), (0, Cp - C)), constant_values=neg)

    out = _get_maxpool_call(Pp, Cp, TP)(tm)
    return out[:P, :C].reshape(N, Ho, Wo, C)


# ---------------------------------------------------------------------------
# Deterministic parameter construction (synthetic, mirrors module __init__ shapes)
# ---------------------------------------------------------------------------
def _make_conv(key, cin, cout, kh, kw):
    k1, k2, k3 = jax.random.split(key, 3)
    fan_in = kh * kw * cin
    W = jax.random.normal(k1, (fan_in, cout), jnp.float32) * jnp.sqrt(2.0 / fan_in)
    gamma = 1.0 + 0.1 * jax.random.normal(k2, (cout,), jnp.float32)
    beta = 0.05 * jax.random.normal(k3, (cout,), jnp.float32)
    mean = jnp.zeros((cout,), jnp.float32)
    var = jnp.ones((cout,), jnp.float32)
    scale = gamma / jnp.sqrt(var + 1e-5)           # folded eval-mode BatchNorm
    bias = beta - mean * scale
    # Fold BN scale straight into the conv weights: kernel only needs the bias add.
    return {"W": W * scale[None, :], "bias": bias, "kh": kh, "kw": kw}


def _make_block(key, ch):
    mid, quarter = ch // 2, ch // 4
    ks = jax.random.split(key, 5)
    return [
        _make_conv(ks[0], ch, mid, 1, 1),
        _make_conv(ks[1], mid, quarter, 1, 1),
        _make_conv(ks[2], quarter, mid, 1, 3),
        _make_conv(ks[3], mid, mid, 3, 1),
        _make_conv(ks[4], mid, ch, 1, 1),
    ]


def _make_stage(key, ch, n):
    return [_make_block(k, ch) for k in jax.random.split(key, n)]


def init_squeezenext(key, width_mul=1):
    chns = [3, 64, 32 * width_mul, 64 * width_mul, 128 * width_mul, 256 * width_mul]
    cfg = [None, None, 2, 4, 14, 1]
    keys = jax.random.split(key, 9)
    return {
        "stem":      _make_conv(keys[0], chns[0], chns[1], 5, 5),
        "s3_trans":  _make_conv(keys[1], chns[1], chns[2], 1, 1),
        "s3_blocks": _make_stage(keys[2], chns[2], cfg[2]),
        "s4_trans":  _make_conv(keys[3], chns[2], chns[3], 3, 3),
        "s4_blocks": _make_stage(keys[4], chns[3], cfg[3]),
        "s5_trans":  _make_conv(keys[5], chns[3], chns[4], 3, 3),
        "s5_blocks": _make_stage(keys[6], chns[4], cfg[4]),
        "s6_trans":  _make_conv(keys[7], chns[4], chns[5], 3, 3),
        "s6_blocks": _make_stage(keys[8], chns[5], cfg[5]),
    }


# ---------------------------------------------------------------------------
# Forward pass (mirrors Squeezenext.forward: returns [stage6, stage5, stage4])
# ---------------------------------------------------------------------------
def _run_block(x, blk):
    y = conv_bn_relu(x, blk[0], 1)
    y = conv_bn_relu(y, blk[1], 1)
    y = conv_bn_relu(y, blk[2], 1)
    y = conv_bn_relu(y, blk[3], 1)
    return conv_bn_relu(y, blk[4], 1, residual=x)  # identity shortcut (fused in-kernel)


def _run_stage(x, blocks):
    for blk in blocks:
        x = _run_block(x, blk)
    return x


def squeezenext_forward(params, x_nchw):
    x = jnp.transpose(x_nchw, (0, 2, 3, 1)).astype(jnp.float32)   # NCHW -> NHWC
    # layers[0]: stage1/downsample, stage3/downsample, stage3/trans, stage3/squeeze
    x = conv_bn_relu(x, params["stem"], 2)
    x = maxpool_3x3_s2_p1(x)
    x = conv_bn_relu(x, params["s3_trans"], 1)
    stem = _run_stage(x, params["s3_blocks"])
    # layers[1]
    x = conv_bn_relu(stem, params["s4_trans"], 2)
    stage4 = _run_stage(x, params["s4_blocks"])
    # layers[2]
    x = conv_bn_relu(stage4, params["s5_trans"], 2)
    stage5 = _run_stage(x, params["s5_blocks"])
    # layers[3]
    x = conv_bn_relu(stage5, params["s6_trans"], 2)
    stage6 = _run_stage(x, params["s6_blocks"])

    to_nchw = lambda t: jnp.transpose(t, (0, 3, 1, 2))            # back to PyTorch NCHW
    return [to_nchw(stage6), to_nchw(stage5), to_nchw(stage4)]


if __name__ == "__main__":
    key = jax.random.PRNGKey(0)
    pkey, xkey = jax.random.split(key)
    params = init_squeezenext(pkey, width_mul=1)
    x = jax.random.normal(xkey, (2, 3, 16, 16), jnp.float32)

    # jit the whole forward so all padding / im2col / slicing glue fuses into one program.
    fwd = jax.jit(lambda inp: squeezenext_forward(params, inp))
    feats = fwd(x)
    for f in feats:
        jax.block_until_ready(f)

    assert feats[0].shape == (2, 256, 1, 1)   # stage6
    assert feats[1].shape == (2, 128, 1, 1)   # stage5
    assert feats[2].shape == (2, 64, 2, 2)    # stage4
    assert all(bool(jnp.all(jnp.isfinite(f))) for f in feats)
    print("KERNEL_OK")
</pallas_src>

<mosaic_0001>
module attributes {stable_mosaic.version = 11 : i64} {
  func.func @_mm_bias_relu_kernel(%arg0: i32, %arg1: i32, %arg2: i32, %arg3: memref<128x80xbf16, #tpu.memory_space<vmem>>, %arg4: memref<80x128xbf16, #tpu.memory_space<vmem>>, %arg5: memref<1x128xf32, #tpu.memory_space<vmem>>, %arg6: memref<128x128xf32, #tpu.memory_space<vmem>>, %arg7: memref<128x128xf32, #tpu.memory_space<vmem>>) attributes {dimension_semantics = [#tpu.dimension_semantics<parallel>, #tpu.dimension_semantics<parallel>, #tpu.dimension_semantics<arbitrary>], iteration_bounds = array<i64: 1, 1, 1>, scalar_prefetch = 0 : i64, scratch_operands = 1 : i64, tpu.core_type = #tpu.core_type<tc>, window_params = [{transform_indices = @transform_0, window_bounds = array<i64: 128, 80>}, {transform_indices = @transform_1, window_bounds = array<i64: 80, 128>}, {transform_indices = @transform_2, window_bounds = array<i64: 1, 128>}, {transform_indices = @transform_3, window_bounds = array<i64: 128, 128>}]} {
    %c0_i32 = arith.constant 0 : i32
    %0 = arith.cmpi eq, %arg2, %c0_i32 : i32
    %1 = arith.extui %0 : i1 to i32
    %c0_i32_0 = arith.constant 0 : i32
    %2 = arith.cmpi ne, %1, %c0_i32_0 : i32
    scf.if %2 {
      %cst_10 = arith.constant 0.000000e+00 : f32
      %12 = vector.broadcast %cst_10 : f32 to vector<128x128xf32>
      %c0_11 = arith.constant 0 : index
      %c0_12 = arith.constant 0 : index
      %13 = vector.load %arg7[%c0_11, %c0_12] : memref<128x128xf32, #tpu.memory_space<vmem>>, vector<128x128xf32>
      tpu.vector_store %arg7[%c0_11, %c0_12], %12 {strides = array<i32>} : memref<128x128xf32, #tpu.memory_space<vmem>>, vector<128x128xf32>,
    } else {
    }
    %c0 = arith.constant 0 : index
    %c0_1 = arith.constant 0 : index
    %3 = vector.load %arg7[%c0, %c0_1] : memref<128x128xf32, #tpu.memory_space<vmem>>, vector<128x128xf32>
    %c0_2 = arith.constant 0 : index
    %c0_3 = arith.constant 0 : index
    %4 = vector.load %arg3[%c0_2, %c0_3] : memref<128x80xbf16, #tpu.memory_space<vmem>>, vector<128x80xbf16>
    %c0_4 = arith.constant 0 : index
    %c0_5 = arith.constant 0 : index
    %5 = vector.load %arg4[%c0_4, %c0_5] : memref<80x128xbf16, #tpu.memory_space<vmem>>, vector<80x128xbf16>
    %cst = arith.constant dense<0.000000e+00> : vector<128x128xf32>
    %6 = tpu.matmul %4, %5, %cst {dimension_numbers = #tpu.dot_dimension_numbers<[1], [0], [0], [1], [0, 0, 1, 1], [], []>} : vector<128x80xbf16>, vector<80x128xbf16>, vector<128x128xf32> -> vector<128x128xf32>
    %7 = arith.addf %3, %6 : vector<128x128xf32>
    %c0_6 = arith.constant 0 : index
    %c0_7 = arith.constant 0 : index
    %8 = vector.load %arg7[%c0_6, %c0_7] : memref<128x128xf32, #tpu.memory_space<vmem>>, vector<128x128xf32>
    tpu.vector_store %arg7[%c0_6, %c0_7], %7 {strides = array<i32>} : memref<128x128xf32, #tpu.memory_space<vmem>>, vector<128x128xf32>,
    %c0_i32_8 = arith.constant 0 : i32
    %9 = arith.cmpi eq, %arg2, %c0_i32_8 : i32
    %10 = arith.extui %9 : i1 to i32
    %c0_i32_9 = arith.constant 0 : i32
    %11 = arith.cmpi ne, %10, %c0_i32_9 : i32
    scf.if %11 {
      %c0_10 = arith.constant 0 : index
      %c0_11 = arith.constant 0 : index
      %12 = vector.load %arg7[%c0_10, %c0_11] : memref<128x128xf32, #tpu.memory_space<vmem>>, vector<128x128xf32>
      %c0_12 = arith.constant 0 : index
      %c0_13 = arith.constant 0 : index
      %13 = vector.load %arg5[%c0_12, %c0_13] : memref<1x128xf32, #tpu.memory_space<vmem>>, vector<1x128xf32>
      %14 = vector.broadcast %13 : vector<1x128xf32> to vector<128x128xf32>
      %15 = arith.addf %12, %14 : vector<128x128xf32>
      %cst_14 = arith.constant 0.000000e+00 : f32
      %16 = vector.broadcast %cst_14 : f32 to vector<128x128xf32>
      %17 = arith.maximumf %15, %16 : vector<128x128xf32>
      %c0_15 = arith.constant 0 : index
      %c0_16 = arith.constant 0 : index
      %18 = vector.load %arg6[%c0_15, %c0_16] : memref<128x128xf32, #tpu.memory_space<vmem>>, vector<128x128xf32>
      tpu.vector_store %arg6[%c0_15, %c0_16], %17 {strides = array<i32>} : memref<128x128xf32, #tpu.memory_space<vmem>>, vector<128x128xf32>,
    } else {
    }
    return
  }
  func.func @transform_0(%arg0: i32, %arg1: i32, %arg2: i32) -> (i32, i32) {
    %c0_i32 = arith.constant 0 : i32
    return %arg0, %arg2 : i32, i32
  }
  func.func @transform_1(%arg0: i32, %arg1: i32, %arg2: i32) -> (i32, i32) {
    %c0_i32 = arith.constant 0 : i32
    return %arg2, %arg1 : i32, i32
  }
  func.func @transform_2(%arg0: i32, %arg1: i32, %arg2: i32) -> (i32, i32) {
    %c0_i32 = arith.constant 0 : i32
    %c0_i32_0 = arith.constant 0 : i32
    return %c0_i32, %arg1 : i32, i32
  }
  func.func @transform_3(%arg0: i32, %arg1: i32, %arg2: i32) -> (i32, i32) {
    %c0_i32 = arith.constant 0 : i32
    return %arg0, %arg1 : i32, i32
  }
}

module attributes {stable_mosaic.version = 11 : i64} {
  func.func @_mm_bias_relu_kernel(%arg0: i32, %arg1: i32, %arg2: i32, %arg3: memref<32x64xbf16, #tpu.memory_space<vmem>>, %arg4: memref<64x128xbf16, #tpu.memory_space<vmem>>, %arg5: memref<1x128xf32, #tpu.memory_space<vmem>>, %arg6: memref<32x128xf32, #tpu.memory_space<vmem>>, %arg7: memref<32x128xf32, #tpu.memory_space<vmem>>) attributes {dimension_semantics = [#tpu.dimension_semantics<parallel>, #tpu.dimension_semantics<parallel>, #tpu.dimension_semantics<arbitrary>], iteration_bounds = array<i64: 1, 1, 1>, scalar_prefetch = 0 : i64, scratch_operands = 1 : i64, tpu.core_type = #tpu.core_type<tc>, window_params = [{transform_indices = @transform_0, window_bounds = array<i64: 32, 64>}, {transform_indices = @transform_1, window_bounds = array<i64: 64, 128>}, {transform_indices = @transform_2, window_bounds = array<i64: 1, 128>}, {transform_indices = @transform_3, window_bounds = array<i64: 32, 128>}]} {
    %c0_i32 = arith.constant 0 : i32
    %0 = arith.cmpi eq, %arg2, %c0_i32 : i32
    %1 = arith.extui %0 : i1 to i32
    %c0_i32_0 = arith.constant 0 : i32
    %2 = arith.cmpi ne, %1, %c0_i32_0 : i32
    scf.if %2 {
      %cst_10 = arith.constant 0.000000e+00 : f32
      %12 = vector.broadcast %cst_10 : f32 to vector<32x128xf32>
      %c0_11 = arith.constant 0 : index
      %c0_12 = arith.constant 0 : index
      %13 = vector.load %arg7[%c0_11, %c0_12] : memref<32x128xf32, #tpu.memory_space<vmem>>, vector<32x128xf32>
      tpu.vector_store %arg7[%c0_11, %c0_12], %12 {strides = array<i32>} : memref<32x128xf32, #tpu.memory_space<vmem>>, vector<32x128xf32>,
    } else {
    }
    %c0 = arith.constant 0 : index
    %c0_1 = arith.constant 0 : index
    %3 = vector.load %arg7[%c0, %c0_1] : memref<32x128xf32, #tpu.memory_space<vmem>>, vector<32x128xf32>
    %c0_2 = arith.constant 0 : index
    %c0_3 = arith.constant 0 : index
    %4 = vector.load %arg3[%c0_2, %c0_3] : memref<32x64xbf16, #tpu.memory_space<vmem>>, vector<32x64xbf16>
    %c0_4 = arith.constant 0 : index
    %c0_5 = arith.constant 0 : index
    %5 = vector.load %arg4[%c0_4, %c0_5] : memref<64x128xbf16, #tpu.memory_space<vmem>>, vector<64x128xbf16>
    %cst = arith.constant dense<0.000000e+00> : vector<32x128xf32>
    %6 = tpu.matmul %4, %5, %cst {dimension_numbers = #tpu.dot_dimension_numbers<[1], [0], [0], [1], [0, 0, 1, 1], [], []>} : vector<32x64xbf16>, vector<64x128xbf16>, vector<32x128xf32> -> vector<32x128xf32>
    %7 = arith.addf %3, %6 : vector<32x128xf32>
    %c0_6 = arith.constant 0 : index
    %c0_7 = arith.constant 0 : index
    %8 = vector.load %arg7[%c0_6, %c0_7] : memref<32x128xf32, #tpu.memory_space<vmem>>, vector<32x128xf32>
    tpu.vector_store %arg7[%c0_6, %c0_7], %7 {strides = array<i32>} : memref<32x128xf32, #tpu.memory_space<vmem>>, vector<32x128xf32>,
    %c0_i32_8 = arith.constant 0 : i32
    %9 = arith.cmpi eq, %arg2, %c0_i32_8 : i32
    %10 = arith.extui %9 : i1 to i32
    %c0_i32_9 = arith.constant 0 : i32
    %11 = arith.cmpi ne, %10, %c0_i32_9 : i32
    scf.if %11 {
      %c0_10 = arith.constant 0 : index
      %c0_11 = arith.constant 0 : index
      %12 = vector.load %arg7[%c0_10, %c0_11] : memref<32x128xf32, #tpu.memory_space<vmem>>, vector<32x128xf32>
      %c0_12 = arith.constant 0 : index
      %c0_13 = arith.constant 0 : index
      %13 = vector.load %arg5[%c0_12, %c0_13] : memref<1x128xf32, #tpu.memory_space<vmem>>, vector<1x128xf32>
      %14 = vector.broadcast %13 : vector<1x128xf32> to vector<32x128xf32>
      %15 = arith.addf %12, %14 : vector<32x128xf32>
      %cst_14 = arith.constant 0.000000e+00 : f32
      %16 = vector.broadcast %cst_14 : f32 to vector<32x128xf32>
      %17 = arith.maximumf %15, %16 : vector<32x128xf32>
      %c0_15 = arith.constant 0 : index
      %c0_16 = arith.constant 0 : index
      %18 = vector.load %arg6[%c0_15, %c0_16] : memref<32x128xf32, #tpu.memory_space<vmem>>, vector<32x128xf32>
      tpu.vector_store %arg6[%c0_15, %c0_16], %17 {strides = array<i32>} : memref<32x128xf32, #tpu.memory_space<vmem>>, vector<32x128xf32>,
    } else {
    }
    return
  }
  func.func @transform_0(%arg0: i32, %arg1: i32, %arg2: i32) -> (i32, i32) {
    %c0_i32 = arith.constant 0 : i32
    return %arg0, %arg2 : i32, i32
  }
  func.func @transform_1(%arg0: i32, %arg1: i32, %arg2: i32) -> (i32, i32) {
    %c0_i32 = arith.constant 0 : i32
    return %arg2, %arg1 : i32, i32
  }
  func.func @transform_2(%arg0: i32, %arg1: i32, %arg2: i32) -> (i32, i32) {
    %c0_i32 = arith.constant 0 : i32
    %c0_i32_0 = arith.constant 0 : i32
    return %c0_i32, %arg1 : i32, i32
  }
  func.func @transform_3(%arg0: i32, %arg1: i32, %arg2: i32) -> (i32, i32) {
    %c0_i32 = arith.constant 0 : i32
    return %arg0, %arg1 : i32, i32
  }
}

module attributes {stable_mosaic.version = 11 : i64} {
  func.func @_maxpool_kernel(%arg0: i32, %arg1: memref<9x32x128xf32, #tpu.memory_space<vmem>>, %arg2: memref<32x128xf32, #tpu.memory_space<vmem>>) attributes {dimension_semantics = [#tpu.dimension_semantics<parallel>], iteration_bounds = array<i64: 1>, scalar_prefetch = 0 : i64, scratch_operands = 0 : i64, tpu.core_type = #tpu.core_type<tc>, window_params = [{transform_indices = @transform_0, window_bounds = array<i64: 9, 32, 128>}, {transform_indices = @transform_1, window_bounds = array<i64: 32, 128>}]} {
    %c0 = arith.constant 0 : index
    %c0_0 = arith.constant 0 : index
    %c0_1 = arith.constant 0 : index
    %0 = vector.load %arg1[%c0, %c0_0, %c0_1] : memref<9x32x128xf32, #tpu.memory_space<vmem>>, vector<9x32x128xf32>
    %cst = arith.constant dense<0xFF800000> : vector<32x128xf32>
    %1 = vector.multi_reduction <maximumf>, %0, %cst [0] : vector<9x32x128xf32> to vector<32x128xf32>
    %c0_2 = arith.constant 0 : index
    %c0_3 = arith.constant 0 : index
    %2 = vector.load %arg2[%c0_2, %c0_3] : memref<32x128xf32, #tpu.memory_space<vmem>>, vector<32x128xf32>
    tpu.vector_store %arg2[%c0_2, %c0_3], %1 {strides = array<i32>} : memref<32x128xf32, #tpu.memory_space<vmem>>, vector<32x128xf32>,
    return
  }
  func.func @transform_0(%arg0: i32) -> (i32, i32, i32) {
    %c0_i32 = arith.constant 0 : i32
    %c0_i32_0 = arith.constant 0 : i32
    %c0_i32_1 = arith.constant 0 : i32
    return %c0_i32, %arg0, %c0_i32_0 : i32, i32, i32
  }
  func.func @transform_1(%arg0: i32) -> (i32, i32) {
    %c0_i32 = arith.constant 0 : i32
    %c0_i32_0 = arith.constant 0 : i32
    return %arg0, %c0_i32 : i32, i32
  }
}

module attributes {stable_mosaic.version = 11 : i64} {
  func.func @_mm_bias_relu_kernel(%arg0: i32, %arg1: i32, %arg2: i32, %arg3: memref<32x16xbf16, #tpu.memory_space<vmem>>, %arg4: memref<16x128xbf16, #tpu.memory_space<vmem>>, %arg5: memref<1x128xf32, #tpu.memory_space<vmem>>, %arg6: memref<32x128xf32, #tpu.memory_space<vmem>>, %arg7: memref<32x128xf32, #tpu.memory_space<vmem>>) attributes {dimension_semantics = [#tpu.dimension_semantics<parallel>, #tpu.dimension_semantics<parallel>, #tpu.dimension_semantics<arbitrary>], iteration_bounds = array<i64: 1, 1, 1>, scalar_prefetch = 0 : i64, scratch_operands = 1 : i64, tpu.core_type = #tpu.core_type<tc>, window_params = [{transform_indices = @transform_0, window_bounds = array<i64: 32, 16>}, {transform_indices = @transform_1, window_bounds = array<i64: 16, 128>}, {transform_indices = @transform_2, window_bounds = array<i64: 1, 128>}, {transform_indices = @transform_3, window_bounds = array<i64: 32, 128>}]} {
    %c0_i32 = arith.constant 0 : i32
    %0 = arith.cmpi eq, %arg2, %c0_i32 : i32
    %1 = arith.extui %0 : i1 to i32
    %c0_i32_0 = arith.constant 0 : i32
    %2 = arith.cmpi ne, %1, %c0_i32_0 : i32
    scf.if %2 {
      %cst_10 = arith.constant 0.000000e+00 : f32
      %12 = vector.broadcast %cst_10 : f32 to vector<32x128xf32>
      %c0_11 = arith.constant 0 : index
      %c0_12 = arith.constant 0 : index
      %13 = vector.load %arg7[%c0_11, %c0_12] : memref<32x128xf32, #tpu.memory_space<vmem>>, vector<32x128xf32>
      tpu.vector_store %arg7[%c0_11, %c0_12], %12 {strides = array<i32>} : memref<32x128xf32, #tpu.memory_space<vmem>>, vector<32x128xf32>,
    } else {
    }
    %c0 = arith.constant 0 : index
    %c0_1 = arith.constant 0 : index
    %3 = vector.load %arg7[%c0, %c0_1] : memref<32x128xf32, #tpu.memory_space<vmem>>, vector<32x128xf32>
    %c0_2 = arith.constant 0 : index
    %c0_3 = arith.constant 0 : index
    %4 = vector.load %arg3[%c0_2, %c0_3] : memref<32x16xbf16, #tpu.memory_space<vmem>>, vector<32x16xbf16>
    %c0_4 = arith.constant 0 : index
    %c0_5 = arith.constant 0 : index
    %5 = vector.load %arg4[%c0_4, %c0_5] : memref<16x128xbf16, #tpu.memory_space<vmem>>, vector<16x128xbf16>
    %cst = arith.constant dense<0.000000e+00> : vector<32x128xf32>
    %6 = tpu.matmul %4, %5, %cst {dimension_numbers = #tpu.dot_dimension_numbers<[1], [0], [0], [1], [0, 0, 1, 1], [], []>} : vector<32x16xbf16>, vector<16x128xbf16>, vector<32x128xf32> -> vector<32x128xf32>
    %7 = arith.addf %3, %6 : vector<32x128xf32>
    %c0_6 = arith.constant 0 : index
    %c0_7 = arith.constant 0 : index
    %8 = vector.load %arg7[%c0_6, %c0_7] : memref<32x128xf32, #tpu.memory_space<vmem>>, vector<32x128xf32>
    tpu.vector_store %arg7[%c0_6, %c0_7], %7 {strides = array<i32>} : memref<32x128xf32, #tpu.memory_space<vmem>>, vector<32x128xf32>,
    %c0_i32_8 = arith.constant 0 : i32
    %9 = arith.cmpi eq, %arg2, %c0_i32_8 : i32
    %10 = arith.extui %9 : i1 to i32
    %c0_i32_9 = arith.constant 0 : i32
    %11 = arith.cmpi ne, %10, %c0_i32_9 : i32
    scf.if %11 {
      %c0_10 = arith.constant 0 : index
      %c0_11 = arith.constant 0 : index
      %12 = vector.load %arg7[%c0_10, %c0_11] : memref<32x128xf32, #tpu.memory_space<vmem>>, vector<32x128xf32>
      %c0_12 = arith.constant 0 : index
      %c0_13 = arith.constant 0 : index
      %13 = vector.load %arg5[%c0_12, %c0_13] : memref<1x128xf32, #tpu.memory_space<vmem>>, vector<1x128xf32>
      %14 = vector.broadcast %13 : vector<1x128xf32> to vector<32x128xf32>
      %15 = arith.addf %12, %14 : vector<32x128xf32>
      %cst_14 = arith.constant 0.000000e+00 : f32
      %16 = vector.broadcast %cst_14 : f32 to vector<32x128xf32>
      %17 = arith.maximumf %15, %16 : vector<32x128xf32>
      %c0_15 = arith.constant 0 : index
      %c0_16 = arith.constant 0 : index
      %18 = vector.load %arg6[%c0_15, %c0_16] : memref<32x128xf32, #tpu.memory_space<vmem>>, vector<32x128xf32>
      tpu.vector_store %arg6[%c0_15, %c0_16], %17 {strides = array<i32>} : memref<32x128xf32, #tpu.memory_space<vmem>>, vector<32x128xf32>,
    } else {
    }
    return
  }
  func.func @transform_0(%arg0: i32, %arg1: i32, %arg2: i32) -> (i32, i32) {
    %c0_i32 = arith.constant 0 : i32
    return %arg0, %arg2 : i32, i32
  }
  func.func @transform_1(%arg0: i32, %arg1: i32, %arg2: i32) -> (i32, i32) {
    %c0_i32 = arith.constant 0 : i32
    return %arg2, %arg1 : i32, i32
  }
  func.func @transform_2(%arg0: i32, %arg1: i32, %arg2: i32) -> (i32, i32) {
    %c0_i32 = arith.constant 0 : i32
    %c0_i32_0 = arith.constant 0 : i32
    return %c0_i32, %arg1 : i32, i32
  }
  func.func @transform_3(%arg0: i32, %arg1: i32, %arg2: i32) -> (i32, i32) {
    %c0_i32 = arith.constant 0 : i32
    return %arg0, %arg1 : i32, i32
  }
}

module attributes {stable_mosaic.version = 11 : i64} {
  func.func @_mm_bias_relu_kernel(%arg0: i32, %arg1: i32, %arg2: i32, %arg3: memref<32x32xbf16, #tpu.memory_space<vmem>>, %arg4: memref<32x128xbf16, #tpu.memory_space<vmem>>, %arg5: memref<1x128xf32, #tpu.memory_space<vmem>>, %arg6: memref<32x128xf32, #tpu.memory_space<vmem>>, %arg7: memref<32x128xf32, #tpu.memory_space<vmem>>) attributes {dimension_semantics = [#tpu.dimension_semantics<parallel>, #tpu.dimension_semantics<parallel>, #tpu.dimension_semantics<arbitrary>], iteration_bounds = array<i64: 1, 1, 1>, scalar_prefetch = 0 : i64, scratch_operands = 1 : i64, tpu.core_type = #tpu.core_type<tc>, window_params = [{transform_indices = @transform_0, window_bounds = array<i64: 32, 32>}, {transform_indices = @transform_1, window_bounds = array<i64: 32, 128>}, {transform_indices = @transform_2, window_bounds = array<i64: 1, 128>}, {transform_indices = @transform_3, window_bounds = array<i64: 32, 128>}]} {
    %c0_i32 = arith.constant 0 : i32
    %0 = arith.cmpi eq, %arg2, %c0_i32 : i32
    %1 = arith.extui %0 : i1 to i32
    %c0_i32_0 = arith.constant 0 : i32
    %2 = arith.cmpi ne, %1, %c0_i32_0 : i32
    scf.if %2 {
      %cst_10 = arith.constant 0.000000e+00 : f32
      %12 = vector.broadcast %cst_10 : f32 to vector<32x128xf32>
      %c0_11 = arith.constant 0 : index
      %c0_12 = arith.constant 0 : index
      %13 = vector.load %arg7[%c0_11, %c0_12] : memref<32x128xf32, #tpu.memory_space<vmem>>, vector<32x128xf32>
      tpu.vector_store %arg7[%c0_11, %c0_12], %12 {strides = array<i32>} : memref<32x128xf32, #tpu.memory_space<vmem>>, vector<32x128xf32>,
    } else {
    }
    %c0 = arith.constant 0 : index
    %c0_1 = arith.constant 0 : index
    %3 = vector.load %arg7[%c0, %c0_1] : memref<32x128xf32, #tpu.memory_space<vmem>>, vector<32x128xf32>
    %c0_2 = arith.constant 0 : index
    %c0_3 = arith.constant 0 : index
    %4 = vector.load %arg3[%c0_2, %c0_3] : memref<32x32xbf16, #tpu.memory_space<vmem>>, vector<32x32xbf16>
    %c0_4 = arith.constant 0 : index
    %c0_5 = arith.constant 0 : index
    %5 = vector.load %arg4[%c0_4, %c0_5] : memref<32x128xbf16, #tpu.memory_space<vmem>>, vector<32x128xbf16>
    %cst = arith.constant dense<0.000000e+00> : vector<32x128xf32>
    %6 = tpu.matmul %4, %5, %cst {dimension_numbers = #tpu.dot_dimension_numbers<[1], [0], [0], [1], [0, 0, 1, 1], [], []>} : vector<32x32xbf16>, vector<32x128xbf16>, vector<32x128xf32> -> vector<32x128xf32>
    %7 = arith.addf %3, %6 : vector<32x128xf32>
    %c0_6 = arith.constant 0 : index
    %c0_7 = arith.constant 0 : index
    %8 = vector.load %arg7[%c0_6, %c0_7] : memref<32x128xf32, #tpu.memory_space<vmem>>, vector<32x128xf32>
    tpu.vector_store %arg7[%c0_6, %c0_7], %7 {strides = array<i32>} : memref<32x128xf32, #tpu.memory_space<vmem>>, vector<32x128xf32>,
    %c0_i32_8 = arith.constant 0 : i32
    %9 = arith.cmpi eq, %arg2, %c0_i32_8 : i32
    %10 = arith.extui %9 : i1 to i32
    %c0_i32_9 = arith.constant 0 : i32
    %11 = arith.cmpi ne, %10, %c0_i32_9 : i32
    scf.if %11 {
      %c0_10 = arith.constant 0 : index
      %c0_11 = arith.constant 0 : index
      %12 = vector.load %arg7[%c0_10, %c0_11] : memref<32x128xf32, #tpu.memory_space<vmem>>, vector<32x128xf32>
      %c0_12 = arith.constant 0 : index
      %c0_13 = arith.constant 0 : index
      %13 = vector.load %arg5[%c0_12, %c0_13] : memref<1x128xf32, #tpu.memory_space<vmem>>, vector<1x128xf32>
      %14 = vector.broadcast %13 : vector<1x128xf32> to vector<32x128xf32>
      %15 = arith.addf %12, %14 : vector<32x128xf32>
      %cst_14 = arith.constant 0.000000e+00 : f32
      %16 = vector.broadcast %cst_14 : f32 to vector<32x128xf32>
      %17 = arith.maximumf %15, %16 : vector<32x128xf32>
      %c0_15 = arith.constant 0 : index
      %c0_16 = arith.constant 0 : index
      %18 = vector.load %arg6[%c0_15, %c0_16] : memref<32x128xf32, #tpu.memory_space<vmem>>, vector<32x128xf32>
      tpu.vector_store %arg6[%c0_15, %c0_16], %17 {strides = array<i32>} : memref<32x128xf32, #tpu.memory_space<vmem>>, vector<32x128xf32>,
    } else {
    }
    return
  }
  func.func @transform_0(%arg0: i32, %arg1: i32, %arg2: i32) -> (i32, i32) {
    %c0_i32 = arith.constant 0 : i32
    return %arg0, %arg2 : i32, i32
  }
  func.func @transform_1(%arg0: i32, %arg1: i32, %arg2: i32) -> (i32, i32) {
    %c0_i32 = arith.constant 0 : i32
    return %arg2, %arg1 : i32, i32
  }
  func.func @transform_2(%arg0: i32, %arg1: i32, %arg2: i32) -> (i32, i32) {
    %c0_i32 = arith.constant 0 : i32
    %c0_i32_0 = arith.constant 0 : i32
    return %c0_i32, %arg1 : i32, i32
  }
  func.func @transform_3(%arg0: i32, %arg1: i32, %arg2: i32) -> (i32, i32) {
    %c0_i32 = arith.constant 0 : i32
    return %arg0, %arg1 : i32, i32
  }
}

module attributes {stable_mosaic.version = 11 : i64} {
  func.func @_mm_bias_relu_kernel(%arg0: i32, %arg1: i32, %arg2: i32, %arg3: memref<32x48xbf16, #tpu.memory_space<vmem>>, %arg4: memref<48x128xbf16, #tpu.memory_space<vmem>>, %arg5: memref<1x128xf32, #tpu.memory_space<vmem>>, %arg6: memref<32x128xf32, #tpu.memory_space<vmem>>, %arg7: memref<32x128xf32, #tpu.memory_space<vmem>>) attributes {dimension_semantics = [#tpu.dimension_semantics<parallel>, #tpu.dimension_semantics<parallel>, #tpu.dimension_semantics<arbitrary>], iteration_bounds = array<i64: 1, 1, 1>, scalar_prefetch = 0 : i64, scratch_operands = 1 : i64, tpu.core_type = #tpu.core_type<tc>, window_params = [{transform_indices = @transform_0, window_bounds = array<i64: 32, 48>}, {transform_indices = @transform_1, window_bounds = array<i64: 48, 128>}, {transform_indices = @transform_2, window_bounds = array<i64: 1, 128>}, {transform_indices = @transform_3, window_bounds = array<i64: 32, 128>}]} {
    %c0_i32 = arith.constant 0 : i32
    %0 = arith.cmpi eq, %arg2, %c0_i32 : i32
    %1 = arith.extui %0 : i1 to i32
    %c0_i32_0 = arith.constant 0 : i32
    %2 = arith.cmpi ne, %1, %c0_i32_0 : i32
    scf.if %2 {
      %cst_10 = arith.constant 0.000000e+00 : f32
      %12 = vector.broadcast %cst_10 : f32 to vector<32x128xf32>
      %c0_11 = arith.constant 0 : index
      %c0_12 = arith.constant 0 : index
      %13 = vector.load %arg7[%c0_11, %c0_12] : memref<32x128xf32, #tpu.memory_space<vmem>>, vector<32x128xf32>
      tpu.vector_store %arg7[%c0_11, %c0_12], %12 {strides = array<i32>} : memref<32x128xf32, #tpu.memory_space<vmem>>, vector<32x128xf32>,
    } else {
    }
    %c0 = arith.constant 0 : index
    %c0_1 = arith.constant 0 : index
    %3 = vector.load %arg7[%c0, %c0_1] : memref<32x128xf32, #tpu.memory_space<vmem>>, vector<32x128xf32>
    %c0_2 = arith.constant 0 : index
    %c0_3 = arith.constant 0 : index
    %4 = vector.load %arg3[%c0_2, %c0_3] : memref<32x48xbf16, #tpu.memory_space<vmem>>, vector<32x48xbf16>
    %c0_4 = arith.constant 0 : index
    %c0_5 = arith.constant 0 : index
    %5 = vector.load %arg4[%c0_4, %c0_5] : memref<48x128xbf16, #tpu.memory_space<vmem>>, vector<48x128xbf16>
    %cst = arith.constant dense<0.000000e+00> : vector<32x128xf32>
    %6 = tpu.matmul %4, %5, %cst {dimension_numbers = #tpu.dot_dimension_numbers<[1], [0], [0], [1], [0, 0, 1, 1], [], []>} : vector<32x48xbf16>, vector<48x128xbf16>, vector<32x128xf32> -> vector<32x128xf32>
    %7 = arith.addf %3, %6 : vector<32x128xf32>
    %c0_6 = arith.constant 0 : index
    %c0_7 = arith.constant 0 : index
    %8 = vector.load %arg7[%c0_6, %c0_7] : memref<32x128xf32, #tpu.memory_space<vmem>>, vector<32x128xf32>
    tpu.vector_store %arg7[%c0_6, %c0_7], %7 {strides = array<i32>} : memref<32x128xf32, #tpu.memory_space<vmem>>, vector<32x128xf32>,
    %c0_i32_8 = arith.constant 0 : i32
    %9 = arith.cmpi eq, %arg2, %c0_i32_8 : i32
    %10 = arith.extui %9 : i1 to i32
    %c0_i32_9 = arith.constant 0 : i32
    %11 = arith.cmpi ne, %10, %c0_i32_9 : i32
    scf.if %11 {
      %c0_10 = arith.constant 0 : index
      %c0_11 = arith.constant 0 : index
      %12 = vector.load %arg7[%c0_10, %c0_11] : memref<32x128xf32, #tpu.memory_space<vmem>>, vector<32x128xf32>
      %c0_12 = arith.constant 0 : index
      %c0_13 = arith.constant 0 : index
      %13 = vector.load %arg5[%c0_12, %c0_13] : memref<1x128xf32, #tpu.memory_space<vmem>>, vector<1x128xf32>
      %14 = vector.broadcast %13 : vector<1x128xf32> to vector<32x128xf32>
      %15 = arith.addf %12, %14 : vector<32x128xf32>
      %cst_14 = arith.constant 0.000000e+00 : f32
      %16 = vector.broadcast %cst_14 : f32 to vector<32x128xf32>
      %17 = arith.maximumf %15, %16 : vector<32x128xf32>
      %c0_15 = arith.constant 0 : index
      %c0_16 = arith.constant 0 : index
      %18 = vector.load %arg6[%c0_15, %c0_16] : memref<32x128xf32, #tpu.memory_space<vmem>>, vector<32x128xf32>
      tpu.vector_store %arg6[%c0_15, %c0_16], %17 {strides = array<i32>} : memref<32x128xf32, #tpu.memory_space<vmem>>, vector<32x128xf32>,
    } else {
    }
    return
  }
  func.func @transform_0(%arg0: i32, %arg1: i32, %arg2: i32) -> (i32, i32) {
    %c0_i32 = arith.constant 0 : i32
    return %arg0, %arg2 : i32, i32
  }
  func.func @transform_1(%arg0: i32, %arg1: i32, %arg2: i32) -> (i32, i32) {
    %c0_i32 = arith.constant 0 : i32
    return %arg2, %arg1 : i32, i32
  }
  func.func @transform_2(%arg0: i32, %arg1: i32, %arg2: i32) -> (i32, i32) {
    %c0_i32 = arith.constant 0 : i32
    %c0_i32_0 = arith.constant 0 : i32
    return %c0_i32, %arg1 : i32, i32
  }
  func.func @transform_3(%arg0: i32, %arg1: i32, %arg2: i32) -> (i32, i32) {
    %c0_i32 = arith.constant 0 : i32
    return %arg0, %arg1 : i32, i32
  }
}

module attributes {stable_mosaic.version = 11 : i64} {
  func.func @_mm_bias_relu_kernel(%arg0: i32, %arg1: i32, %arg2: i32, %arg3: memref<16x32xbf16, #tpu.memory_space<vmem>>, %arg4: memref<32x128xbf16, #tpu.memory_space<vmem>>, %arg5: memref<1x128xf32, #tpu.memory_space<vmem>>, %arg6: memref<16x128xf32, #tpu.memory_space<vmem>>, %arg7: memref<16x128xf32, #tpu.memory_space<vmem>>) attributes {dimension_semantics = [#tpu.dimension_semantics<parallel>, #tpu.dimension_semantics<parallel>, #tpu.dimension_semantics<arbitrary>], iteration_bounds = array<i64: 1, 1, 1>, scalar_prefetch = 0 : i64, scratch_operands = 1 : i64, tpu.core_type = #tpu.core_type<tc>, window_params = [{transform_indices = @transform_0, window_bounds = array<i64: 16, 32>}, {transform_indices = @transform_1, window_bounds = array<i64: 32, 128>}, {transform_indices = @transform_2, window_bounds = array<i64: 1, 128>}, {transform_indices = @transform_3, window_bounds = array<i64: 16, 128>}]} {
    %c0_i32 = arith.constant 0 : i32
    %0 = arith.cmpi eq, %arg2, %c0_i32 : i32
    %1 = arith.extui %0 : i1 to i32
    %c0_i32_0 = arith.constant 0 : i32
    %2 = arith.cmpi ne, %1, %c0_i32_0 : i32
    scf.if %2 {
      %cst_10 = arith.constant 0.000000e+00 : f32
      %12 = vector.broadcast %cst_10 : f32 to vector<16x128xf32>
      %c0_11 = arith.constant 0 : index
      %c0_12 = arith.constant 0 : index
      %13 = vector.load %arg7[%c0_11, %c0_12] : memref<16x128xf32, #tpu.memory_space<vmem>>, vector<16x128xf32>
      tpu.vector_store %arg7[%c0_11, %c0_12], %12 {strides = array<i32>} : memref<16x128xf32, #tpu.memory_space<vmem>>, vector<16x128xf32>,
    } else {
    }
    %c0 = arith.constant 0 : index
    %c0_1 = arith.constant 0 : index
    %3 = vector.load %arg7[%c0, %c0_1] : memref<16x128xf32, #tpu.memory_space<vmem>>, vector<16x128xf32>
    %c0_2 = arith.constant 0 : index
    %c0_3 = arith.constant 0 : index
    %4 = vector.load %arg3[%c0_2, %c0_3] : memref<16x32xbf16, #tpu.memory_space<vmem>>, vector<16x32xbf16>
    %c0_4 = arith.constant 0 : index
    %c0_5 = arith.constant 0 : index
    %5 = vector.load %arg4[%c0_4, %c0_5] : memref<32x128xbf16, #tpu.memory_space<vmem>>, vector<32x128xbf16>
    %cst = arith.constant dense<0.000000e+00> : vector<16x128xf32>
    %6 = tpu.matmul %4, %5, %cst {dimension_numbers = #tpu.dot_dimension_numbers<[1], [0], [0], [1], [0, 0, 1, 1], [], []>} : vector<16x32xbf16>, vector<32x128xbf16>, vector<16x128xf32> -> vector<16x128xf32>
    %7 = arith.addf %3, %6 : vector<16x128xf32>
    %c0_6 = arith.constant 0 : index
    %c0_7 = arith.constant 0 : index
    %8 = vector.load %arg7[%c0_6, %c0_7] : memref<16x128xf32, #tpu.memory_space<vmem>>, vector<16x128xf32>
    tpu.vector_store %arg7[%c0_6, %c0_7], %7 {strides = array<i32>} : memref<16x128xf32, #tpu.memory_space<vmem>>, vector<16x128xf32>,
    %c0_i32_8 = arith.constant 0 : i32
    %9 = arith.cmpi eq, %arg2, %c0_i32_8 : i32
    %10 = arith.extui %9 : i1 to i32
    %c0_i32_9 = arith.constant 0 : i32
    %11 = arith.cmpi ne, %10, %c0_i32_9 : i32
    scf.if %11 {
      %c0_10 = arith.constant 0 : index
      %c0_11 = arith.constant 0 : index
      %12 = vector.load %arg7[%c0_10, %c0_11] : memref<16x128xf32, #tpu.memory_space<vmem>>, vector<16x128xf32>
      %c0_12 = arith.constant 0 : index
      %c0_13 = arith.constant 0 : index
      %13 = vector.load %arg5[%c0_12, %c0_13] : memref<1x128xf32, #tpu.memory_space<vmem>>, vector<1x128xf32>
      %14 = vector.broadcast %13 : vector<1x128xf32> to vector<16x128xf32>
      %15 = arith.addf %12, %14 : vector<16x128xf32>
      %cst_14 = arith.constant 0.000000e+00 : f32
      %16 = vector.broadcast %cst_14 : f32 to vector<16x128xf32>
      %17 = arith.maximumf %15, %16 : vector<16x128xf32>
      %c0_15 = arith.constant 0 : index
      %c0_16 = arith.constant 0 : index
      %18 = vector.load %arg6[%c0_15, %c0_16] : memref<16x128xf32, #tpu.memory_space<vmem>>, vector<16x128xf32>
      tpu.vector_store %arg6[%c0_15, %c0_16], %17 {strides = array<i32>} : memref<16x128xf32, #tpu.memory_space<vmem>>, vector<16x128xf32>,
    } else {
    }
    return
  }
  func.func @transform_0(%arg0: i32, %arg1: i32, %arg2: i32) -> (i32, i32) {
    %c0_i32 = arith.constant 0 : i32
    return %arg0, %arg2 : i32, i32
  }
  func.func @transform_1(%arg0: i32, %arg1: i32, %arg2: i32) -> (i32, i32) {
    %c0_i32 = arith.constant 0 : i32
    return %arg2, %arg1 : i32, i32
  }
  func.func @transform_2(%arg0: i32, %arg1: i32, %arg2: i32) -> (i32, i32) {
    %c0_i32 = arith.constant 0 : i32
    %c0_i32_0 = arith.constant 0 : i32
    return %c0_i32, %arg1 : i32, i32
  }
  func.func @transform_3(%arg0: i32, %arg1: i32, %arg2: i32) -> (i32, i32) {
    %c0_i32 = arith.constant 0 : i32
    return %arg0, %arg1 : i32, i32
  }
}

module attributes {stable_mosaic.version = 11 : i64} {
  func.func @_mm_bias_relu_res_kernel(%arg0: i32, %arg1: i32, %arg2: i32, %arg3: memref<32x16xbf16, #tpu.memory_space<vmem>>, %arg4: memref<16x128xbf16, #tpu.memory_space<vmem>>, %arg5: memref<1x128xf32, #tpu.memory_space<vmem>>, %arg6: memref<32x128xf32, #tpu.memory_space<vmem>>, %arg7: memref<32x128xf32, #tpu.memory_space<vmem>>, %arg8: memref<32x128xf32, #tpu.memory_space<vmem>>) attributes {dimension_semantics = [#tpu.dimension_semantics<parallel>, #tpu.dimension_semantics<parallel>, #tpu.dimension_semantics<arbitrary>], iteration_bounds = array<i64: 1, 1, 1>, scalar_prefetch = 0 : i64, scratch_operands = 1 : i64, tpu.core_type = #tpu.core_type<tc>, window_params = [{transform_indices = @transform_0, window_bounds = array<i64: 32, 16>}, {transform_indices = @transform_1, window_bounds = array<i64: 16, 128>}, {transform_indices = @transform_2, window_bounds = array<i64: 1, 128>}, {transform_indices = @transform_3, window_bounds = array<i64: 32, 128>}, {transform_indices = @transform_4, window_bounds = array<i64: 32, 128>}]} {
    %c0_i32 = arith.constant 0 : i32
    %0 = arith.cmpi eq, %arg2, %c0_i32 : i32
    %1 = arith.extui %0 : i1 to i32
    %c0_i32_0 = arith.constant 0 : i32
    %2 = arith.cmpi ne, %1, %c0_i32_0 : i32
    scf.if %2 {
      %cst_10 = arith.constant 0.000000e+00 : f32
      %12 = vector.broadcast %cst_10 : f32 to vector<32x128xf32>
      %c0_11 = arith.constant 0 : index
      %c0_12 = arith.constant 0 : index
      %13 = vector.load %arg8[%c0_11, %c0_12] : memref<32x128xf32, #tpu.memory_space<vmem>>, vector<32x128xf32>
      tpu.vector_store %arg8[%c0_11, %c0_12], %12 {strides = array<i32>} : memref<32x128xf32, #tpu.memory_space<vmem>>, vector<32x128xf32>,
    } else {
    }
    %c0 = arith.constant 0 : index
    %c0_1 = arith.constant 0 : index
    %3 = vector.load %arg8[%c0, %c0_1] : memref<32x128xf32, #tpu.memory_space<vmem>>, vector<32x128xf32>
    %c0_2 = arith.constant 0 : index
    %c0_3 = arith.constant 0 : index
    %4 = vector.load %arg3[%c0_2, %c0_3] : memref<32x16xbf16, #tpu.memory_space<vmem>>, vector<32x16xbf16>
    %c0_4 = arith.constant 0 : index
    %c0_5 = arith.constant 0 : index
    %5 = vector.load %arg4[%c0_4, %c0_5] : memref<16x128xbf16, #tpu.memory_space<vmem>>, vector<16x128xbf16>
    %cst = arith.constant dense<0.000000e+00> : vector<32x128xf32>
    %6 = tpu.matmul %4, %5, %cst {dimension_numbers = #tpu.dot_dimension_numbers<[1], [0], [0], [1], [0, 0, 1, 1], [], []>} : vector<32x16xbf16>, vector<16x128xbf16>, vector<32x128xf32> -> vector<32x128xf32>
    %7 = arith.addf %3, %6 : vector<32x128xf32>
    %c0_6 = arith.constant 0 : index
    %c0_7 = arith.constant 0 : index
    %8 = vector.load %arg8[%c0_6, %c0_7] : memref<32x128xf32, #tpu.memory_space<vmem>>, vector<32x128xf32>
    tpu.vector_store %arg8[%c0_6, %c0_7], %7 {strides = array<i32>} : memref<32x128xf32, #tpu.memory_space<vmem>>, vector<32x128xf32>,
    %c0_i32_8 = arith.constant 0 : i32
    %9 = arith.cmpi eq, %arg2, %c0_i32_8 : i32
    %10 = arith.extui %9 : i1 to i32
    %c0_i32_9 = arith.constant 0 : i32
    %11 = arith.cmpi ne, %10, %c0_i32_9 : i32
    scf.if %11 {
      %c0_10 = arith.constant 0 : index
      %c0_11 = arith.constant 0 : index
      %12 = vector.load %arg8[%c0_10, %c0_11] : memref<32x128xf32, #tpu.memory_space<vmem>>, vector<32x128xf32>
      %c0_12 = arith.constant 0 : index
      %c0_13 = arith.constant 0 : index
      %13 = vector.load %arg5[%c0_12, %c0_13] : memref<1x128xf32, #tpu.memory_space<vmem>>, vector<1x128xf32>
      %14 = vector.broadcast %13 : vector<1x128xf32> to vector<32x128xf32>
      %15 = arith.addf %12, %14 : vector<32x128xf32>
      %cst_14 = arith.constant 0.000000e+00 : f32
      %16 = vector.broadcast %cst_14 : f32 to vector<32x128xf32>
      %17 = arith.maximumf %15, %16 : vector<32x128xf32>
      %c0_15 = arith.constant 0 : index
      %c0_16 = arith.constant 0 : index
      %18 = vector.load %arg6[%c0_15, %c0_16] : memref<32x128xf32, #tpu.memory_space<vmem>>, vector<32x128xf32>
      %19 = arith.addf %17, %18 : vector<32x128xf32>
      %c0_17 = arith.constant 0 : index
      %c0_18 = arith.constant 0 : index
      %20 = vector.load %arg7[%c0_17, %c0_18] : memref<32x128xf32, #tpu.memory_space<vmem>>, vector<32x128xf32>
      tpu.vector_store %arg7[%c0_17, %c0_18], %19 {strides = array<i32>} : memref<32x128xf32, #tpu.memory_space<vmem>>, vector<32x128xf32>,
    } else {
    }
    return
  }
  func.func @transform_0(%arg0: i32, %arg1: i32, %arg2: i32) -> (i32, i32) {
    %c0_i32 = arith.constant 0 : i32
    return %arg0, %arg2 : i32, i32
  }
  func.func @transform_1(%arg0: i32, %arg1: i32, %arg2: i32) -> (i32, i32) {
    %c0_i32 = arith.constant 0 : i32
    return %arg2, %arg1 : i32, i32
  }
  func.func @transform_2(%arg0: i32, %arg1: i32, %arg2: i32) -> (i32, i32) {
    %c0_i32 = arith.constant 0 : i32
    %c0_i32_0 = arith.constant 0 : i32
    return %c0_i32, %arg1 : i32, i32
  }
  func.func @transform_3(%arg0: i32, %arg1: i32, %arg2: i32) -> (i32, i32) {
    %c0_i32 = arith.constant 0 : i32
    return %arg0, %arg1 : i32, i32
  }
  func.func @transform_4(%arg0: i32, %arg1: i32, %arg2: i32) -> (i32, i32) {
    %c0_i32 = arith.constant 0 : i32
    return %arg0, %arg1 : i32, i32
  }
}

module attributes {stable_mosaic.version = 11 : i64} {
  func.func @_mm_bias_relu_kernel(%arg0: i32, %arg1: i32, %arg2: i32, %arg3: memref<16x288xbf16, #tpu.memory_space<vmem>>, %arg4: memref<288x128xbf16, #tpu.memory_space<vmem>>, %arg5: memref<1x128xf32, #tpu.memory_space<vmem>>, %arg6: memref<16x128xf32, #tpu.memory_space<vmem>>, %arg7: memref<16x128xf32, #tpu.memory_space<vmem>>) attributes {dimension_semantics = [#tpu.dimension_semantics<parallel>, #tpu.dimension_semantics<parallel>, #tpu.dimension_semantics<arbitrary>], iteration_bounds = array<i64: 1, 1, 1>, scalar_prefetch = 0 : i64, scratch_operands = 1 : i64, tpu.core_type = #tpu.core_type<tc>, window_params = [{transform_indices = @transform_0, window_bounds = array<i64: 16, 288>}, {transform_indices = @transform_1, window_bounds = array<i64: 288, 128>}, {transform_indices = @transform_2, window_bounds = array<i64: 1, 128>}, {transform_indices = @transform_3, window_bounds = array<i64: 16, 128>}]} {
    %c0_i32 = arith.constant 0 : i32
    %0 = arith.cmpi eq, %arg2, %c0_i32 : i32
    %1 = arith.extui %0 : i1 to i32
    %c0_i32_0 = arith.constant 0 : i32
    %2 = arith.cmpi ne, %1, %c0_i32_0 : i32
    scf.if %2 {
      %cst_10 = arith.constant 0.000000e+00 : f32
      %12 = vector.broadcast %cst_10 : f32 to vector<16x128xf32>
      %c0_11 = arith.constant 0 : index
      %c0_12 = arith.constant 0 : index
      %13 = vector.load %arg7[%c0_11, %c0_12] : memref<16x128xf32, #tpu.memory_space<vmem>>, vector<16x128xf32>
      tpu.vector_store %arg7[%c0_11, %c0_12], %12 {strides = array<i32>} : memref<16x128xf32, #tpu.memory_space<vmem>>, vector<16x128xf32>,
    } else {
    }
    %c0 = arith.constant 0 : index
    %c0_1 = arith.constant 0 : index
    %3 = vector.load %arg7[%c0, %c0_1] : memref<16x128xf32, #tpu.memory_space<vmem>>, vector<16x128xf32>
    %c0_2 = arith.constant 0 : index
    %c0_3 = arith.constant 0 : index
    %4 = vector.load %arg3[%c0_2, %c0_3] : memref<16x288xbf16, #tpu.memory_space<vmem>>, vector<16x288xbf16>
    %c0_4 = arith.constant 0 : index
    %c0_5 = arith.constant 0 : index
    %5 = vector.load %arg4[%c0_4, %c0_5] : memref<288x128xbf16, #tpu.memory_space<vmem>>, vector<288x128xbf16>
    %cst = arith.constant dense<0.000000e+00> : vector<16x128xf32>
    %6 = tpu.matmul %4, %5, %cst {dimension_numbers = #tpu.dot_dimension_numbers<[1], [0], [0], [1], [0, 0, 1, 1], [], []>} : vector<16x288xbf16>, vector<288x128xbf16>, vector<16x128xf32> -> vector<16x128xf32>
    %7 = arith.addf %3, %6 : vector<16x128xf32>
    %c0_6 = arith.constant 0 : index
    %c0_7 = arith.constant 0 : index
    %8 = vector.load %arg7[%c0_6, %c0_7] : memref<16x128xf32, #tpu.memory_space<vmem>>, vector<16x128xf32>
    tpu.vector_store %arg7[%c0_6, %c0_7], %7 {strides = array<i32>} : memref<16x128xf32, #tpu.memory_space<vmem>>, vector<16x128xf32>,
    %c0_i32_8 = arith.constant 0 : i32
    %9 = arith.cmpi eq, %arg2, %c0_i32_8 : i32
    %10 = arith.extui %9 : i1 to i32
    %c0_i32_9 = arith.constant 0 : i32
    %11 = arith.cmpi ne, %10, %c0_i32_9 : i32
    scf.if %11 {
      %c0_10 = arith.constant 0 : index
      %c0_11 = arith.constant 0 : index
      %12 = vector.load %arg7[%c0_10, %c0_11] : memref<16x128xf32, #tpu.memory_space<vmem>>, vector<16x128xf32>
      %c0_12 = arith.constant 0 : index
      %c0_13 = arith.constant 0 : index
      %13 = vector.load %arg5[%c0_12, %c0_13] : memref<1x128xf32, #tpu.memory_space<vmem>>, vector<1x128xf32>
      %14 = vector.broadcast %13 : vector<1x128xf32> to vector<16x128xf32>
      %15 = arith.addf %12, %14 : vector<16x128xf32>
      %cst_14 = arith.constant 0.000000e+00 : f32
      %16 = vector.broadcast %cst_14 : f32 to vector<16x128xf32>
      %17 = arith.maximumf %15, %16 : vector<16x128xf32>
      %c0_15 = arith.constant 0 : index
      %c0_16 = arith.constant 0 : index
      %18 = vector.load %arg6[%c0_15, %c0_16] : memref<16x128xf32, #tpu.memory_space<vmem>>, vector<16x128xf32>
      tpu.vector_store %arg6[%c0_15, %c0_16], %17 {strides = array<i32>} : memref<16x128xf32, #tpu.memory_space<vmem>>, vector<16x128xf32>,
    } else {
    }
    return
  }
  func.func @transform_0(%arg0: i32, %arg1: i32, %arg2: i32) -> (i32, i32) {
    %c0_i32 = arith.constant 0 : i32
    return %arg0, %arg2 : i32, i32
  }
  func.func @transform_1(%arg0: i32, %arg1: i32, %arg2: i32) -> (i32, i32) {
    %c0_i32 = arith.constant 0 : i32
    return %arg2, %arg1 : i32, i32
  }
  func.func @transform_2(%arg0: i32, %arg1: i32, %arg2: i32) -> (i32, i32) {
    %c0_i32 = arith.constant 0 : i32
    %c0_i32_0 = arith.constant 0 : i32
    return %c0_i32, %arg1 : i32, i32
  }
  func.func @transform_3(%arg0: i32, %arg1: i32, %arg2: i32) -> (i32, i32) {
    %c0_i32 = arith.constant 0 : i32
    return %arg0, %arg1 : i32, i32
  }
}

module attributes {stable_mosaic.version = 11 : i64} {
  func.func @_mm_bias_relu_kernel(%arg0: i32, %arg1: i32, %arg2: i32, %arg3: memref<16x64xbf16, #tpu.memory_space<vmem>>, %arg4: memref<64x128xbf16, #tpu.memory_space<vmem>>, %arg5: memref<1x128xf32, #tpu.memory_space<vmem>>, %arg6: memref<16x128xf32, #tpu.memory_space<vmem>>, %arg7: memref<16x128xf32, #tpu.memory_space<vmem>>) attributes {dimension_semantics = [#tpu.dimension_semantics<parallel>, #tpu.dimension_semantics<parallel>, #tpu.dimension_semantics<arbitrary>], iteration_bounds = array<i64: 1, 1, 1>, scalar_prefetch = 0 : i64, scratch_operands = 1 : i64, tpu.core_type = #tpu.core_type<tc>, window_params = [{transform_indices = @transform_0, window_bounds = array<i64: 16, 64>}, {transform_indices = @transform_1, window_bounds = array<i64: 64, 128>}, {transform_indices = @transform_2, window_bounds = array<i64: 1, 128>}, {transform_indices = @transform_3, window_bounds = array<i64: 16, 128>}]} {
    %c0_i32 = arith.constant 0 : i32
    %0 = arith.cmpi eq, %arg2, %c0_i32 : i32
    %1 = arith.extui %0 : i1 to i32
    %c0_i32_0 = arith.constant 0 : i32
    %2 = arith.cmpi ne, %1, %c0_i32_0 : i32
    scf.if %2 {
      %cst_10 = arith.constant 0.000000e+00 : f32
      %12 = vector.broadcast %cst_10 : f32 to vector<16x128xf32>
      %c0_11 = arith.constant 0 : index
      %c0_12 = arith.constant 0 : index
      %13 = vector.load %arg7[%c0_11, %c0_12] : memref<16x128xf32, #tpu.memory_space<vmem>>, vector<16x128xf32>
      tpu.vector_store %arg7[%c0_11, %c0_12], %12 {strides = array<i32>} : memref<16x128xf32, #tpu.memory_space<vmem>>, vector<16x128xf32>,
    } else {
    }
    %c0 = arith.constant 0 : index
    %c0_1 = arith.constant 0 : index
    %3 = vector.load %arg7[%c0, %c0_1] : memref<16x128xf32, #tpu.memory_space<vmem>>, vector<16x128xf32>
    %c0_2 = arith.constant 0 : index
    %c0_3 = arith.constant 0 : index
    %4 = vector.load %arg3[%c0_2, %c0_3] : memref<16x64xbf16, #tpu.memory_space<vmem>>, vector<16x64xbf16>
    %c0_4 = arith.constant 0 : index
    %c0_5 = arith.constant 0 : index
    %5 = vector.load %arg4[%c0_4, %c0_5] : memref<64x128xbf16, #tpu.memory_space<vmem>>, vector<64x128xbf16>
    %cst = arith.constant dense<0.000000e+00> : vector<16x128xf32>
    %6 = tpu.matmul %4, %5, %cst {dimension_numbers = #tpu.dot_dimension_numbers<[1], [0], [0], [1], [0, 0, 1, 1], [], []>} : vector<16x64xbf16>, vector<64x128xbf16>, vector<16x128xf32> -> vector<16x128xf32>
    %7 = arith.addf %3, %6 : vector<16x128xf32>
    %c0_6 = arith.constant 0 : index
    %c0_7 = arith.constant 0 : index
    %8 = vector.load %arg7[%c0_6, %c0_7] : memref<16x128xf32, #tpu.memory_space<vmem>>, vector<16x128xf32>
    tpu.vector_store %arg7[%c0_6, %c0_7], %7 {strides = array<i32>} : memref<16x128xf32, #tpu.memory_space<vmem>>, vector<16x128xf32>,
    %c0_i32_8 = arith.constant 0 : i32
    %9 = arith.cmpi eq, %arg2, %c0_i32_8 : i32
    %10 = arith.extui %9 : i1 to i32
    %c0_i32_9 = arith.constant 0 : i32
    %11 = arith.cmpi ne, %10, %c0_i32_9 : i32
    scf.if %11 {
      %c0_10 = arith.constant 0 : index
      %c0_11 = arith.constant 0 : index
      %12 = vector.load %arg7[%c0_10, %c0_11] : memref<16x128xf32, #tpu.memory_space<vmem>>, vector<16x128xf32>
      %c0_12 = arith.constant 0 : index
      %c0_13 = arith.constant 0 : index
      %13 = vector.load %arg5[%c0_12, %c0_13] : memref<1x128xf32, #tpu.memory_space<vmem>>, vector<1x128xf32>
      %14 = vector.broadcast %13 : vector<1x128xf32> to vector<16x128xf32>
      %15 = arith.addf %12, %14 : vector<16x128xf32>
      %cst_14 = arith.constant 0.000000e+00 : f32
      %16 = vector.broadcast %cst_14 : f32 to vector<16x128xf32>
      %17 = arith.maximumf %15, %16 : vector<16x128xf32>
      %c0_15 = arith.constant 0 : index
      %c0_16 = arith.constant 0 : index
      %18 = vector.load %arg6[%c0_15, %c0_16] : memref<16x128xf32, #tpu.memory_space<vmem>>, vector<16x128xf32>
      tpu.vector_store %arg6[%c0_15, %c0_16], %17 {strides = array<i32>} : memref<16x128xf32, #tpu.memory_space<vmem>>, vector<16x128xf32>,
    } else {
    }
    return
  }
  func.func @transform_0(%arg0: i32, %arg1: i32, %arg2: i32) -> (i32, i32) {
    %c0_i32 = arith.constant 0 : i32
    return %arg0, %arg2 : i32, i32
  }
  func.func @transform_1(%arg0: i32, %arg1: i32, %arg2: i32) -> (i32, i32) {
    %c0_i32 = arith.constant 0 : i32
    return %arg2, %arg1 : i32, i32
  }
  func.func @transform_2(%arg0: i32, %arg1: i32, %arg2: i32) -> (i32, i32) {
    %c0_i32 = arith.constant 0 : i32
    %c0_i32_0 = arith.constant 0 : i32
    return %c0_i32, %arg1 : i32, i32
  }
  func.func @transform_3(%arg0: i32, %arg1: i32, %arg2: i32) -> (i32, i32) {
    %c0_i32 = arith.constant 0 : i32
    return %arg0, %arg1 : i32, i32
  }
}

module attributes {stable_mosaic.version = 11 : i64} {
  func.func @_mm_bias_relu_kernel(%arg0: i32, %arg1: i32, %arg2: i32, %arg3: memref<16x48xbf16, #tpu.memory_space<vmem>>, %arg4: memref<48x128xbf16, #tpu.memory_space<vmem>>, %arg5: memref<1x128xf32, #tpu.memory_space<vmem>>, %arg6: memref<16x128xf32, #tpu.memory_space<vmem>>, %arg7: memref<16x128xf32, #tpu.memory_space<vmem>>) attributes {dimension_semantics = [#tpu.dimension_semantics<parallel>, #tpu.dimension_semantics<parallel>, #tpu.dimension_semantics<arbitrary>], iteration_bounds = array<i64: 1, 1, 1>, scalar_prefetch = 0 : i64, scratch_operands = 1 : i64, tpu.core_type = #tpu.core_type<tc>, window_params = [{transform_indices = @transform_0, window_bounds = array<i64: 16, 48>}, {transform_indices = @transform_1, window_bounds = array<i64: 48, 128>}, {transform_indices = @transform_2, window_bounds = array<i64: 1, 128>}, {transform_indices = @transform_3, window_bounds = array<i64: 16, 128>}]} {
    %c0_i32 = arith.constant 0 : i32
    %0 = arith.cmpi eq, %arg2, %c0_i32 : i32
    %1 = arith.extui %0 : i1 to i32
    %c0_i32_0 = arith.constant 0 : i32
    %2 = arith.cmpi ne, %1, %c0_i32_0 : i32
    scf.if %2 {
      %cst_10 = arith.constant 0.000000e+00 : f32
      %12 = vector.broadcast %cst_10 : f32 to vector<16x128xf32>
      %c0_11 = arith.constant 0 : index
      %c0_12 = arith.constant 0 : index
      %13 = vector.load %arg7[%c0_11, %c0_12] : memref<16x128xf32, #tpu.memory_space<vmem>>, vector<16x128xf32>
      tpu.vector_store %arg7[%c0_11, %c0_12], %12 {strides = array<i32>} : memref<16x128xf32, #tpu.memory_space<vmem>>, vector<16x128xf32>,
    } else {
    }
    %c0 = arith.constant 0 : index
    %c0_1 = arith.constant 0 : index
    %3 = vector.load %arg7[%c0, %c0_1] : memref<16x128xf32, #tpu.memory_space<vmem>>, vector<16x128xf32>
    %c0_2 = arith.constant 0 : index
    %c0_3 = arith.constant 0 : index
    %4 = vector.load %arg3[%c0_2, %c0_3] : memref<16x48xbf16, #tpu.memory_space<vmem>>, vector<16x48xbf16>
    %c0_4 = arith.constant 0 : index
    %c0_5 = arith.constant 0 : index
    %5 = vector.load %arg4[%c0_4, %c0_5] : memref<48x128xbf16, #tpu.memory_space<vmem>>, vector<48x128xbf16>
    %cst = arith.constant dense<0.000000e+00> : vector<16x128xf32>
    %6 = tpu.matmul %4, %5, %cst {dimension_numbers = #tpu.dot_dimension_numbers<[1], [0], [0], [1], [0, 0, 1, 1], [], []>} : vector<16x48xbf16>, vector<48x128xbf16>, vector<16x128xf32> -> vector<16x128xf32>
    %7 = arith.addf %3, %6 : vector<16x128xf32>
    %c0_6 = arith.constant 0 : index
    %c0_7 = arith.constant 0 : index
    %8 = vector.load %arg7[%c0_6, %c0_7] : memref<16x128xf32, #tpu.memory_space<vmem>>, vector<16x128xf32>
    tpu.vector_store %arg7[%c0_6, %c0_7], %7 {strides = array<i32>} : memref<16x128xf32, #tpu.memory_space<vmem>>, vector<16x128xf32>,
    %c0_i32_8 = arith.constant 0 : i32
    %9 = arith.cmpi eq, %arg2, %c0_i32_8 : i32
    %10 = arith.extui %9 : i1 to i32
    %c0_i32_9 = arith.constant 0 : i32
    %11 = arith.cmpi ne, %10, %c0_i32_9 : i32
    scf.if %11 {
      %c0_10 = arith.constant 0 : index
      %c0_11 = arith.constant 0 : index
      %12 = vector.load %arg7[%c0_10, %c0_11] : memref<16x128xf32, #tpu.memory_space<vmem>>, vector<16x128xf32>
      %c0_12 = arith.constant 0 : index
      %c0_13 = arith.constant 0 : index
      %13 = vector.load %arg5[%c0_12, %c0_13] : memref<1x128xf32, #tpu.memory_space<vmem>>, vector<1x128xf32>
      %14 = vector.broadcast %13 : vector<1x128xf32> to vector<16x128xf32>
      %15 = arith.addf %12, %14 : vector<16x128xf32>
      %cst_14 = arith.constant 0.000000e+00 : f32
      %16 = vector.broadcast %cst_14 : f32 to vector<16x128xf32>
      %17 = arith.maximumf %15, %16 : vector<16x128xf32>
      %c0_15 = arith.constant 0 : index
      %c0_16 = arith.constant 0 : index
      %18 = vector.load %arg6[%c0_15, %c0_16] : memref<16x128xf32, #tpu.memory_space<vmem>>, vector<16x128xf32>
      tpu.vector_store %arg6[%c0_15, %c0_16], %17 {strides = array<i32>} : memref<16x128xf32, #tpu.memory_space<vmem>>, vector<16x128xf32>,
    } else {
    }
    return
  }
  func.func @transform_0(%arg0: i32, %arg1: i32, %arg2: i32) -> (i32, i32) {
    %c0_i32 = arith.constant 0 : i32
    return %arg0, %arg2 : i32, i32
  }
  func.func @transform_1(%arg0: i32, %arg1: i32, %arg2: i32) -> (i32, i32) {
    %c0_i32 = arith.constant 0 : i32
    return %arg2, %arg1 : i32, i32
  }
  func.func @transform_2(%arg0: i32, %arg1: i32, %arg2: i32) -> (i32, i32) {
    %c0_i32 = arith.constant 0 : i32
    %c0_i32_0 = arith.constant 0 : i32
    return %c0_i32, %arg1 : i32, i32
  }
  func.func @transform_3(%arg0: i32, %arg1: i32, %arg2: i32) -> (i32, i32) {
    %c0_i32 = arith.constant 0 : i32
    return %arg0, %arg1 : i32, i32
  }
}

module attributes {stable_mosaic.version = 11 : i64} {
  func.func @_mm_bias_relu_kernel(%arg0: i32, %arg1: i32, %arg2: i32, %arg3: memref<16x96xbf16, #tpu.memory_space<vmem>>, %arg4: memref<96x128xbf16, #tpu.memory_space<vmem>>, %arg5: memref<1x128xf32, #tpu.memory_space<vmem>>, %arg6: memref<16x128xf32, #tpu.memory_space<vmem>>, %arg7: memref<16x128xf32, #tpu.memory_space<vmem>>) attributes {dimension_semantics = [#tpu.dimension_semantics<parallel>, #tpu.dimension_semantics<parallel>, #tpu.dimension_semantics<arbitrary>], iteration_bounds = array<i64: 1, 1, 1>, scalar_prefetch = 0 : i64, scratch_operands = 1 : i64, tpu.core_type = #tpu.core_type<tc>, window_params = [{transform_indices = @transform_0, window_bounds = array<i64: 16, 96>}, {transform_indices = @transform_1, window_bounds = array<i64: 96, 128>}, {transform_indices = @transform_2, window_bounds = array<i64: 1, 128>}, {transform_indices = @transform_3, window_bounds = array<i64: 16, 128>}]} {
    %c0_i32 = arith.constant 0 : i32
    %0 = arith.cmpi eq, %arg2, %c0_i32 : i32
    %1 = arith.extui %0 : i1 to i32
    %c0_i32_0 = arith.constant 0 : i32
    %2 = arith.cmpi ne, %1, %c0_i32_0 : i32
    scf.if %2 {
      %cst_10 = arith.constant 0.000000e+00 : f32
      %12 = vector.broadcast %cst_10 : f32 to vector<16x128xf32>
      %c0_11 = arith.constant 0 : index
      %c0_12 = arith.constant 0 : index
      %13 = vector.load %arg7[%c0_11, %c0_12] : memref<16x128xf32, #tpu.memory_space<vmem>>, vector<16x128xf32>
      tpu.vector_store %arg7[%c0_11, %c0_12], %12 {strides = array<i32>} : memref<16x128xf32, #tpu.memory_space<vmem>>, vector<16x128xf32>,
    } else {
    }
    %c0 = arith.constant 0 : index
    %c0_1 = arith.constant 0 : index
    %3 = vector.load %arg7[%c0, %c0_1] : memref<16x128xf32, #tpu.memory_space<vmem>>, vector<16x128xf32>
    %c0_2 = arith.constant 0 : index
    %c0_3 = arith.constant 0 : index
    %4 = vector.load %arg3[%c0_2, %c0_3] : memref<16x96xbf16, #tpu.memory_space<vmem>>, vector<16x96xbf16>
    %c0_4 = arith.constant 0 : index
    %c0_5 = arith.constant 0 : index
    %5 = vector.load %arg4[%c0_4, %c0_5] : memref<96x128xbf16, #tpu.memory_space<vmem>>, vector<96x128xbf16>
    %cst = arith.constant dense<0.000000e+00> : vector<16x128xf32>
    %6 = tpu.matmul %4, %5, %cst {dimension_numbers = #tpu.dot_dimension_numbers<[1], [0], [0], [1], [0, 0, 1, 1], [], []>} : vector<16x96xbf16>, vector<96x128xbf16>, vector<16x128xf32> -> vector<16x128xf32>
    %7 = arith.addf %3, %6 : vector<16x128xf32>
    %c0_6 = arith.constant 0 : index
    %c0_7 = arith.constant 0 : index
    %8 = vector.load %arg7[%c0_6, %c0_7] : memref<16x128xf32, #tpu.memory_space<vmem>>, vector<16x128xf32>
    tpu.vector_store %arg7[%c0_6, %c0_7], %7 {strides = array<i32>} : memref<16x128xf32, #tpu.memory_space<vmem>>, vector<16x128xf32>,
    %c0_i32_8 = arith.constant 0 : i32
    %9 = arith.cmpi eq, %arg2, %c0_i32_8 : i32
    %10 = arith.extui %9 : i1 to i32
    %c0_i32_9 = arith.constant 0 : i32
    %11 = arith.cmpi ne, %10, %c0_i32_9 : i32
    scf.if %11 {
      %c0_10 = arith.constant 0 : index
      %c0_11 = arith.constant 0 : index
      %12 = vector.load %arg7[%c0_10, %c0_11] : memref<16x128xf32, #tpu.memory_space<vmem>>, vector<16x128xf32>
      %c0_12 = arith.constant 0 : index
      %c0_13 = arith.constant 0 : index
      %13 = vector.load %arg5[%c0_12, %c0_13] : memref<1x128xf32, #tpu.memory_space<vmem>>, vector<1x128xf32>
      %14 = vector.broadcast %13 : vector<1x128xf32> to vector<16x128xf32>
      %15 = arith.addf %12, %14 : vector<16x128xf32>
      %cst_14 = arith.constant 0.000000e+00 : f32
      %16 = vector.broadcast %cst_14 : f32 to vector<16x128xf32>
      %17 = arith.maximumf %15, %16 : vector<16x128xf32>
      %c0_15 = arith.constant 0 : index
      %c0_16 = arith.constant 0 : index
      %18 = vector.load %arg6[%c0_15, %c0_16] : memref<16x128xf32, #tpu.memory_space<vmem>>, vector<16x128xf32>
      tpu.vector_store %arg6[%c0_15, %c0_16], %17 {strides = array<i32>} : memref<16x128xf32, #tpu.memory_space<vmem>>, vector<16x128xf32>,
    } else {
    }
    return
  }
  func.func @transform_0(%arg0: i32, %arg1: i32, %arg2: i32) -> (i32, i32) {
    %c0_i32 = arith.constant 0 : i32
    return %arg0, %arg2 : i32, i32
  }
  func.func @transform_1(%arg0: i32, %arg1: i32, %arg2: i32) -> (i32, i32) {
    %c0_i32 = arith.constant 0 : i32
    return %arg2, %arg1 : i32, i32
  }
  func.func @transform_2(%arg0: i32, %arg1: i32, %arg2: i32) -> (i32, i32) {
    %c0_i32 = arith.constant 0 : i32
    %c0_i32_0 = arith.constant 0 : i32
    return %c0_i32, %arg1 : i32, i32
  }
  func.func @transform_3(%arg0: i32, %arg1: i32, %arg2: i32) -> (i32, i32) {
    %c0_i32 = arith.constant 0 : i32
    return %arg0, %arg1 : i32, i32
  }
}

module attributes {stable_mosaic.version = 11 : i64} {
  func.func @_mm_bias_relu_res_kernel(%arg0: i32, %arg1: i32, %arg2: i32, %arg3: memref<16x32xbf16, #tpu.memory_space<vmem>>, %arg4: memref<32x128xbf16, #tpu.memory_space<vmem>>, %arg5: memref<1x128xf32, #tpu.memory_space<vmem>>, %arg6: memref<16x128xf32, #tpu.memory_space<vmem>>, %arg7: memref<16x128xf32, #tpu.memory_space<vmem>>, %arg8: memref<16x128xf32, #tpu.memory_space<vmem>>) attributes {dimension_semantics = [#tpu.dimension_semantics<parallel>, #tpu.dimension_semantics<parallel>, #tpu.dimension_semantics<arbitrary>], iteration_bounds = array<i64: 1, 1, 1>, scalar_prefetch = 0 : i64, scratch_operands = 1 : i64, tpu.core_type = #tpu.core_type<tc>, window_params = [{transform_indices = @transform_0, window_bounds = array<i64: 16, 32>}, {transform_indices = @transform_1, window_bounds = array<i64: 32, 128>}, {transform_indices = @transform_2, window_bounds = array<i64: 1, 128>}, {transform_indices = @transform_3, window_bounds = array<i64: 16, 128>}, {transform_indices = @transform_4, window_bounds = array<i64: 16, 128>}]} {
    %c0_i32 = arith.constant 0 : i32
    %0 = arith.cmpi eq, %arg2, %c0_i32 : i32
    %1 = arith.extui %0 : i1 to i32
    %c0_i32_0 = arith.constant 0 : i32
    %2 = arith.cmpi ne, %1, %c0_i32_0 : i32
    scf.if %2 {
      %cst_10 = arith.constant 0.000000e+00 : f32
      %12 = vector.broadcast %cst_10 : f32 to vector<16x128xf32>
      %c0_11 = arith.constant 0 : index
      %c0_12 = arith.constant 0 : index
      %13 = vector.load %arg8[%c0_11, %c0_12] : memref<16x128xf32, #tpu.memory_space<vmem>>, vector<16x128xf32>
      tpu.vector_store %arg8[%c0_11, %c0_12], %12 {strides = array<i32>} : memref<16x128xf32, #tpu.memory_space<vmem>>, vector<16x128xf32>,
    } else {
    }
    %c0 = arith.constant 0 : index
    %c0_1 = arith.constant 0 : index
    %3 = vector.load %arg8[%c0, %c0_1] : memref<16x128xf32, #tpu.memory_space<vmem>>, vector<16x128xf32>
    %c0_2 = arith.constant 0 : index
    %c0_3 = arith.constant 0 : index
    %4 = vector.load %arg3[%c0_2, %c0_3] : memref<16x32xbf16, #tpu.memory_space<vmem>>, vector<16x32xbf16>
    %c0_4 = arith.constant 0 : index
    %c0_5 = arith.constant 0 : index
    %5 = vector.load %arg4[%c0_4, %c0_5] : memref<32x128xbf16, #tpu.memory_space<vmem>>, vector<32x128xbf16>
    %cst = arith.constant dense<0.000000e+00> : vector<16x128xf32>
    %6 = tpu.matmul %4, %5, %cst {dimension_numbers = #tpu.dot_dimension_numbers<[1], [0], [0], [1], [0, 0, 1, 1], [], []>} : vector<16x32xbf16>, vector<32x128xbf16>, vector<16x128xf32> -> vector<16x128xf32>
    %7 = arith.addf %3, %6 : vector<16x128xf32>
    %c0_6 = arith.constant 0 : index
    %c0_7 = arith.constant 0 : index
    %8 = vector.load %arg8[%c0_6, %c0_7] : memref<16x128xf32, #tpu.memory_space<vmem>>, vector<16x128xf32>
    tpu.vector_store %arg8[%c0_6, %c0_7], %7 {strides = array<i32>} : memref<16x128xf32, #tpu.memory_space<vmem>>, vector<16x128xf32>,
    %c0_i32_8 = arith.constant 0 : i32
    %9 = arith.cmpi eq, %arg2, %c0_i32_8 : i32
    %10 = arith.extui %9 : i1 to i32
    %c0_i32_9 = arith.constant 0 : i32
    %11 = arith.cmpi ne, %10, %c0_i32_9 : i32
    scf.if %11 {
      %c0_10 = arith.constant 0 : index
      %c0_11 = arith.constant 0 : index
      %12 = vector.load %arg8[%c0_10, %c0_11] : memref<16x128xf32, #tpu.memory_space<vmem>>, vector<16x128xf32>
      %c0_12 = arith.constant 0 : index
      %c0_13 = arith.constant 0 : index
      %13 = vector.load %arg5[%c0_12, %c0_13] : memref<1x128xf32, #tpu.memory_space<vmem>>, vector<1x128xf32>
      %14 = vector.broadcast %13 : vector<1x128xf32> to vector<16x128xf32>
      %15 = arith.addf %12, %14 : vector<16x128xf32>
      %cst_14 = arith.constant 0.000000e+00 : f32
      %16 = vector.broadcast %cst_14 : f32 to vector<16x128xf32>
      %17 = arith.maximumf %15, %16 : vector<16x128xf32>
      %c0_15 = arith.constant 0 : index
      %c0_16 = arith.constant 0 : index
      %18 = vector.load %arg6[%c0_15, %c0_16] : memref<16x128xf32, #tpu.memory_space<vmem>>, vector<16x128xf32>
      %19 = arith.addf %17, %18 : vector<16x128xf32>
      %c0_17 = arith.constant 0 : index
      %c0_18 = arith.constant 0 : index
      %20 = vector.load %arg7[%c0_17, %c0_18] : memref<16x128xf32, #tpu.memory_space<vmem>>, vector<16x128xf32>
      tpu.vector_store %arg7[%c0_17, %c0_18], %19 {strides = array<i32>} : memref<16x128xf32, #tpu.memory_space<vmem>>, vector<16x128xf32>,
    } else {
    }
    return
  }
  func.func @transform_0(%arg0: i32, %arg1: i32, %arg2: i32) -> (i32, i32) {
    %c0_i32 = arith.constant 0 : i32
    return %arg0, %arg2 : i32, i32
  }
  func.func @transform_1(%arg0: i32, %arg1: i32, %arg2: i32) -> (i32, i32) {
    %c0_i32 = arith.constant 0 : i32
    return %arg2, %arg1 : i32, i32
  }
  func.func @transform_2(%arg0: i32, %arg1: i32, %arg2: i32) -> (i32, i32) {
    %c0_i32 = arith.constant 0 : i32
    %c0_i32_0 = arith.constant 0 : i32
    return %c0_i32, %arg1 : i32, i32
  }
  func.func @transform_3(%arg0: i32, %arg1: i32, %arg2: i32) -> (i32, i32) {
    %c0_i32 = arith.constant 0 : i32
    return %arg0, %arg1 : i32, i32
  }
  func.func @transform_4(%arg0: i32, %arg1: i32, %arg2: i32) -> (i32, i32) {
    %c0_i32 = arith.constant 0 : i32
    return %arg0, %arg1 : i32, i32
  }
}

module attributes {stable_mosaic.version = 11 : i64} {
  func.func @_mm_bias_relu_kernel(%arg0: i32, %arg1: i32, %arg2: i32, %arg3: memref<16x576xbf16, #tpu.memory_space<vmem>>, %arg4: memref<576x128xbf16, #tpu.memory_space<vmem>>, %arg5: memref<1x128xf32, #tpu.memory_space<vmem>>, %arg6: memref<16x128xf32, #tpu.memory_space<vmem>>, %arg7: memref<16x128xf32, #tpu.memory_space<vmem>>) attributes {dimension_semantics = [#tpu.dimension_semantics<parallel>, #tpu.dimension_semantics<parallel>, #tpu.dimension_semantics<arbitrary>], iteration_bounds = array<i64: 1, 1, 1>, scalar_prefetch = 0 : i64, scratch_operands = 1 : i64, tpu.core_type = #tpu.core_type<tc>, window_params = [{transform_indices = @transform_0, window_bounds = array<i64: 16, 576>}, {transform_indices = @transform_1, window_bounds = array<i64: 576, 128>}, {transform_indices = @transform_2, window_bounds = array<i64: 1, 128>}, {transform_indices = @transform_3, window_bounds = array<i64: 16, 128>}]} {
    %c0_i32 = arith.constant 0 : i32
    %0 = arith.cmpi eq, %arg2, %c0_i32 : i32
    %1 = arith.extui %0 : i1 to i32
    %c0_i32_0 = arith.constant 0 : i32
    %2 = arith.cmpi ne, %1, %c0_i32_0 : i32
    scf.if %2 {
      %cst_10 = arith.constant 0.000000e+00 : f32
      %12 = vector.broadcast %cst_10 : f32 to vector<16x128xf32>
      %c0_11 = arith.constant 0 : index
      %c0_12 = arith.constant 0 : index
      %13 = vector.load %arg7[%c0_11, %c0_12] : memref<16x128xf32, #tpu.memory_space<vmem>>, vector<16x128xf32>
      tpu.vector_store %arg7[%c0_11, %c0_12], %12 {strides = array<i32>} : memref<16x128xf32, #tpu.memory_space<vmem>>, vector<16x128xf32>,
    } else {
    }
    %c0 = arith.constant 0 : index
    %c0_1 = arith.constant 0 : index
    %3 = vector.load %arg7[%c0, %c0_1] : memref<16x128xf32, #tpu.memory_space<vmem>>, vector<16x128xf32>
    %c0_2 = arith.constant 0 : index
    %c0_3 = arith.constant 0 : index
    %4 = vector.load %arg3[%c0_2, %c0_3] : memref<16x576xbf16, #tpu.memory_space<vmem>>, vector<16x576xbf16>
    %c0_4 = arith.constant 0 : index
    %c0_5 = arith.constant 0 : index
    %5 = vector.load %arg4[%c0_4, %c0_5] : memref<576x128xbf16, #tpu.memory_space<vmem>>, vector<576x128xbf16>
    %cst = arith.constant dense<0.000000e+00> : vector<16x128xf32>
    %6 = tpu.matmul %4, %5, %cst {dimension_numbers = #tpu.dot_dimension_numbers<[1], [0], [0], [1], [0, 0, 1, 1], [], []>} : vector<16x576xbf16>, vector<576x128xbf16>, vector<16x128xf32> -> vector<16x128xf32>
    %7 = arith.addf %3, %6 : vector<16x128xf32>
    %c0_6 = arith.constant 0 : index
    %c0_7 = arith.constant 0 : index
    %8 = vector.load %arg7[%c0_6, %c0_7] : memref<16x128xf32, #tpu.memory_space<vmem>>, vector<16x128xf32>
    tpu.vector_store %arg7[%c0_6, %c0_7], %7 {strides = array<i32>} : memref<16x128xf32, #tpu.memory_space<vmem>>, vector<16x128xf32>,
    %c0_i32_8 = arith.constant 0 : i32
    %9 = arith.cmpi eq, %arg2, %c0_i32_8 : i32
    %10 = arith.extui %9 : i1 to i32
    %c0_i32_9 = arith.constant 0 : i32
    %11 = arith.cmpi ne, %10, %c0_i32_9 : i32
    scf.if %11 {
      %c0_10 = arith.constant 0 : index
      %c0_11 = arith.constant 0 : index
      %12 = vector.load %arg7[%c0_10, %c0_11] : memref<16x128xf32, #tpu.memory_space<vmem>>, vector<16x128xf32>
      %c0_12 = arith.constant 0 : index
      %c0_13 = arith.constant 0 : index
      %13 = vector.load %arg5[%c0_12, %c0_13] : memref<1x128xf32, #tpu.memory_space<vmem>>, vector<1x128xf32>
      %14 = vector.broadcast %13 : vector<1x128xf32> to vector<16x128xf32>
      %15 = arith.addf %12, %14 : vector<16x128xf32>
      %cst_14 = arith.constant 0.000000e+00 : f32
      %16 = vector.broadcast %cst_14 : f32 to vector<16x128xf32>
      %17 = arith.maximumf %15, %16 : vector<16x128xf32>
      %c0_15 = arith.constant 0 : index
      %c0_16 = arith.constant 0 : index
      %18 = vector.load %arg6[%c0_15, %c0_16] : memref<16x128xf32, #tpu.memory_space<vmem>>, vector<16x128xf32>
      tpu.vector_store %arg6[%c0_15, %c0_16], %17 {strides = array<i32>} : memref<16x128xf32, #tpu.memory_space<vmem>>, vector<16x128xf32>,
    } else {
    }
    return
  }
  func.func @transform_0(%arg0: i32, %arg1: i32, %arg2: i32) -> (i32, i32) {
    %c0_i32 = arith.constant 0 : i32
    return %arg0, %arg2 : i32, i32
  }
  func.func @transform_1(%arg0: i32, %arg1: i32, %arg2: i32) -> (i32, i32) {
    %c0_i32 = arith.constant 0 : i32
    return %arg2, %arg1 : i32, i32
  }
  func.func @transform_2(%arg0: i32, %arg1: i32, %arg2: i32) -> (i32, i32) {
    %c0_i32 = arith.constant 0 : i32
    %c0_i32_0 = arith.constant 0 : i32
    return %c0_i32, %arg1 : i32, i32
  }
  func.func @transform_3(%arg0: i32, %arg1: i32, %arg2: i32) -> (i32, i32) {
    %c0_i32 = arith.constant 0 : i32
    return %arg0, %arg1 : i32, i32
  }
}

module attributes {stable_mosaic.version = 11 : i64} {
  func.func @_mm_bias_relu_kernel(%arg0: i32, %arg1: i32, %arg2: i32, %arg3: memref<16x128xbf16, #tpu.memory_space<vmem>>, %arg4: memref<128x128xbf16, #tpu.memory_space<vmem>>, %arg5: memref<1x128xf32, #tpu.memory_space<vmem>>, %arg6: memref<16x128xf32, #tpu.memory_space<vmem>>, %arg7: memref<16x128xf32, #tpu.memory_space<vmem>>) attributes {dimension_semantics = [#tpu.dimension_semantics<parallel>, #tpu.dimension_semantics<parallel>, #tpu.dimension_semantics<arbitrary>], iteration_bounds = array<i64: 1, 1, 1>, scalar_prefetch = 0 : i64, scratch_operands = 1 : i64, tpu.core_type = #tpu.core_type<tc>, window_params = [{transform_indices = @transform_0, window_bounds = array<i64: 16, 128>}, {transform_indices = @transform_1, window_bounds = array<i64: 128, 128>}, {transform_indices = @transform_2, window_bounds = array<i64: 1, 128>}, {transform_indices = @transform_3, window_bounds = array<i64: 16, 128>}]} {
    %c0_i32 = arith.constant 0 : i32
    %0 = arith.cmpi eq, %arg2, %c0_i32 : i32
    %1 = arith.extui %0 : i1 to i32
    %c0_i32_0 = arith.constant 0 : i32
    %2 = arith.cmpi ne, %1, %c0_i32_0 : i32
    scf.if %2 {
      %cst_10 = arith.constant 0.000000e+00 : f32
      %12 = vector.broadcast %cst_10 : f32 to vector<16x128xf32>
      %c0_11 = arith.constant 0 : index
      %c0_12 = arith.constant 0 : index
      %13 = vector.load %arg7[%c0_11, %c0_12] : memref<16x128xf32, #tpu.memory_space<vmem>>, vector<16x128xf32>
      tpu.vector_store %arg7[%c0_11, %c0_12], %12 {strides = array<i32>} : memref<16x128xf32, #tpu.memory_space<vmem>>, vector<16x128xf32>,
    } else {
    }
    %c0 = arith.constant 0 : index
    %c0_1 = arith.constant 0 : index
    %3 = vector.load %arg7[%c0, %c0_1] : memref<16x128xf32, #tpu.memory_space<vmem>>, vector<16x128xf32>
    %c0_2 = arith.constant 0 : index
    %c0_3 = arith.constant 0 : index
    %4 = vector.load %arg3[%c0_2, %c0_3] : memref<16x128xbf16, #tpu.memory_space<vmem>>, vector<16x128xbf16>
    %c0_4 = arith.constant 0 : index
    %c0_5 = arith.constant 0 : index
    %5 = vector.load %arg4[%c0_4, %c0_5] : memref<128x128xbf16, #tpu.memory_space<vmem>>, vector<128x128xbf16>
    %cst = arith.constant dense<0.000000e+00> : vector<16x128xf32>
    %6 = tpu.matmul %4, %5, %cst {dimension_numbers = #tpu.dot_dimension_numbers<[1], [0], [0], [1], [0, 0, 1, 1], [], []>} : vector<16x128xbf16>, vector<128x128xbf16>, vector<16x128xf32> -> vector<16x128xf32>
    %7 = arith.addf %3, %6 : vector<16x128xf32>
    %c0_6 = arith.constant 0 : index
    %c0_7 = arith.constant 0 : index
    %8 = vector.load %arg7[%c0_6, %c0_7] : memref<16x128xf32, #tpu.memory_space<vmem>>, vector<16x128xf32>
    tpu.vector_store %arg7[%c0_6, %c0_7], %7 {strides = array<i32>} : memref<16x128xf32, #tpu.memory_space<vmem>>, vector<16x128xf32>,
    %c0_i32_8 = arith.constant 0 : i32
    %9 = arith.cmpi eq, %arg2, %c0_i32_8 : i32
    %10 = arith.extui %9 : i1 to i32
    %c0_i32_9 = arith.constant 0 : i32
    %11 = arith.cmpi ne, %10, %c0_i32_9 : i32
    scf.if %11 {
      %c0_10 = arith.constant 0 : index
      %c0_11 = arith.constant 0 : index
      %12 = vector.load %arg7[%c0_10, %c0_11] : memref<16x128xf32, #tpu.memory_space<vmem>>, vector<16x128xf32>
      %c0_12 = arith.constant 0 : index
      %c0_13 = arith.constant 0 : index
      %13 = vector.load %arg5[%c0_12, %c0_13] : memref<1x128xf32, #tpu.memory_space<vmem>>, vector<1x128xf32>
      %14 = vector.broadcast %13 : vector<1x128xf32> to vector<16x128xf32>
      %15 = arith.addf %12, %14 : vector<16x128xf32>
      %cst_14 = arith.constant 0.000000e+00 : f32
      %16 = vector.broadcast %cst_14 : f32 to vector<16x128xf32>
      %17 = arith.maximumf %15, %16 : vector<16x128xf32>
      %c0_15 = arith.constant 0 : index
      %c0_16 = arith.constant 0 : index
      %18 = vector.load %arg6[%c0_15, %c0_16] : memref<16x128xf32, #tpu.memory_space<vmem>>, vector<16x128xf32>
      tpu.vector_store %arg6[%c0_15, %c0_16], %17 {strides = array<i32>} : memref<16x128xf32, #tpu.memory_space<vmem>>, vector<16x128xf32>,
    } else {
    }
    return
  }
  func.func @transform_0(%arg0: i32, %arg1: i32, %arg2: i32) -> (i32, i32) {
    %c0_i32 = arith.constant 0 : i32
    return %arg0, %arg2 : i32, i32
  }
  func.func @transform_1(%arg0: i32, %arg1: i32, %arg2: i32) -> (i32, i32) {
    %c0_i32 = arith.constant 0 : i32
    return %arg2, %arg1 : i32, i32
  }
  func.func @transform_2(%arg0: i32, %arg1: i32, %arg2: i32) -> (i32, i32) {
    %c0_i32 = arith.constant 0 : i32
    %c0_i32_0 = arith.constant 0 : i32
    return %c0_i32, %arg1 : i32, i32
  }
  func.func @transform_3(%arg0: i32, %arg1: i32, %arg2: i32) -> (i32, i32) {
    %c0_i32 = arith.constant 0 : i32
    return %arg0, %arg1 : i32, i32
  }
}

module attributes {stable_mosaic.version = 11 : i64} {
  func.func @_mm_bias_relu_kernel(%arg0: i32, %arg1: i32, %arg2: i32, %arg3: memref<16x192xbf16, #tpu.memory_space<vmem>>, %arg4: memref<192x128xbf16, #tpu.memory_space<vmem>>, %arg5: memref<1x128xf32, #tpu.memory_space<vmem>>, %arg6: memref<16x128xf32, #tpu.memory_space<vmem>>, %arg7: memref<16x128xf32, #tpu.memory_space<vmem>>) attributes {dimension_semantics = [#tpu.dimension_semantics<parallel>, #tpu.dimension_semantics<parallel>, #tpu.dimension_semantics<arbitrary>], iteration_bounds = array<i64: 1, 1, 1>, scalar_prefetch = 0 : i64, scratch_operands = 1 : i64, tpu.core_type = #tpu.core_type<tc>, window_params = [{transform_indices = @transform_0, window_bounds = array<i64: 16, 192>}, {transform_indices = @transform_1, window_bounds = array<i64: 192, 128>}, {transform_indices = @transform_2, window_bounds = array<i64: 1, 128>}, {transform_indices = @transform_3, window_bounds = array<i64: 16, 128>}]} {
    %c0_i32 = arith.constant 0 : i32
    %0 = arith.cmpi eq, %arg2, %c0_i32 : i32
    %1 = arith.extui %0 : i1 to i32
    %c0_i32_0 = arith.constant 0 : i32
    %2 = arith.cmpi ne, %1, %c0_i32_0 : i32
    scf.if %2 {
      %cst_10 = arith.constant 0.000000e+00 : f32
      %12 = vector.broadcast %cst_10 : f32 to vector<16x128xf32>
      %c0_11 = arith.constant 0 : index
      %c0_12 = arith.constant 0 : index
      %13 = vector.load %arg7[%c0_11, %c0_12] : memref<16x128xf32, #tpu.memory_space<vmem>>, vector<16x128xf32>
      tpu.vector_store %arg7[%c0_11, %c0_12], %12 {strides = array<i32>} : memref<16x128xf32, #tpu.memory_space<vmem>>, vector<16x128xf32>,
    } else {
    }
    %c0 = arith.constant 0 : index
    %c0_1 = arith.constant 0 : index
    %3 = vector.load %arg7[%c0, %c0_1] : memref<16x128xf32, #tpu.memory_space<vmem>>, vector<16x128xf32>
    %c0_2 = arith.constant 0 : index
    %c0_3 = arith.constant 0 : index
    %4 = vector.load %arg3[%c0_2, %c0_3] : memref<16x192xbf16, #tpu.memory_space<vmem>>, vector<16x192xbf16>
    %c0_4 = arith.constant 0 : index
    %c0_5 = arith.constant 0 : index
    %5 = vector.load %arg4[%c0_4, %c0_5] : memref<192x128xbf16, #tpu.memory_space<vmem>>, vector<192x128xbf16>
    %cst = arith.constant dense<0.000000e+00> : vector<16x128xf32>
    %6 = tpu.matmul %4, %5, %cst {dimension_numbers = #tpu.dot_dimension_numbers<[1], [0], [0], [1], [0, 0, 1, 1], [], []>} : vector<16x192xbf16>, vector<192x128xbf16>, vector<16x128xf32> -> vector<16x128xf32>
    %7 = arith.addf %3, %6 : vector<16x128xf32>
    %c0_6 = arith.constant 0 : index
    %c0_7 = arith.constant 0 : index
    %8 = vector.load %arg7[%c0_6, %c0_7] : memref<16x128xf32, #tpu.memory_space<vmem>>, vector<16x128xf32>
    tpu.vector_store %arg7[%c0_6, %c0_7], %7 {strides = array<i32>} : memref<16x128xf32, #tpu.memory_space<vmem>>, vector<16x128xf32>,
    %c0_i32_8 = arith.constant 0 : i32
    %9 = arith.cmpi eq, %arg2, %c0_i32_8 : i32
    %10 = arith.extui %9 : i1 to i32
    %c0_i32_9 = arith.constant 0 : i32
    %11 = arith.cmpi ne, %10, %c0_i32_9 : i32
    scf.if %11 {
      %c0_10 = arith.constant 0 : index
      %c0_11 = arith.constant 0 : index
      %12 = vector.load %arg7[%c0_10, %c0_11] : memref<16x128xf32, #tpu.memory_space<vmem>>, vector<16x128xf32>
      %c0_12 = arith.constant 0 : index
      %c0_13 = arith.constant 0 : index
      %13 = vector.load %arg5[%c0_12, %c0_13] : memref<1x128xf32, #tpu.memory_space<vmem>>, vector<1x128xf32>
      %14 = vector.broadcast %13 : vector<1x128xf32> to vector<16x128xf32>
      %15 = arith.addf %12, %14 : vector<16x128xf32>
      %cst_14 = arith.constant 0.000000e+00 : f32
      %16 = vector.broadcast %cst_14 : f32 to vector<16x128xf32>
      %17 = arith.maximumf %15, %16 : vector<16x128xf32>
      %c0_15 = arith.constant 0 : index
      %c0_16 = arith.constant 0 : index
      %18 = vector.load %arg6[%c0_15, %c0_16] : memref<16x128xf32, #tpu.memory_space<vmem>>, vector<16x128xf32>
      tpu.vector_store %arg6[%c0_15, %c0_16], %17 {strides = array<i32>} : memref<16x128xf32, #tpu.memory_space<vmem>>, vector<16x128xf32>,
    } else {
    }
    return
  }
  func.func @transform_0(%arg0: i32, %arg1: i32, %arg2: i32) -> (i32, i32) {
    %c0_i32 = arith.constant 0 : i32
    return %arg0, %arg2 : i32, i32
  }
  func.func @transform_1(%arg0: i32, %arg1: i32, %arg2: i32) -> (i32, i32) {
    %c0_i32 = arith.constant 0 : i32
    return %arg2, %arg1 : i32, i32
  }
  func.func @transform_2(%arg0: i32, %arg1: i32, %arg2: i32) -> (i32, i32) {
    %c0_i32 = arith.constant 0 : i32
    %c0_i32_0 = arith.constant 0 : i32
    return %c0_i32, %arg1 : i32, i32
  }
  func.func @transform_3(%arg0: i32, %arg1: i32, %arg2: i32) -> (i32, i32) {
    %c0_i32 = arith.constant 0 : i32
    return %arg0, %arg1 : i32, i32
  }
}

module attributes {stable_mosaic.version = 11 : i64} {
  func.func @_mm_bias_relu_res_kernel(%arg0: i32, %arg1: i32, %arg2: i32, %arg3: memref<16x64xbf16, #tpu.memory_space<vmem>>, %arg4: memref<64x128xbf16, #tpu.memory_space<vmem>>, %arg5: memref<1x128xf32, #tpu.memory_space<vmem>>, %arg6: memref<16x128xf32, #tpu.memory_space<vmem>>, %arg7: memref<16x128xf32, #tpu.memory_space<vmem>>, %arg8: memref<16x128xf32, #tpu.memory_space<vmem>>) attributes {dimension_semantics = [#tpu.dimension_semantics<parallel>, #tpu.dimension_semantics<parallel>, #tpu.dimension_semantics<arbitrary>], iteration_bounds = array<i64: 1, 1, 1>, scalar_prefetch = 0 : i64, scratch_operands = 1 : i64, tpu.core_type = #tpu.core_type<tc>, window_params = [{transform_indices = @transform_0, window_bounds = array<i64: 16, 64>}, {transform_indices = @transform_1, window_bounds = array<i64: 64, 128>}, {transform_indices = @transform_2, window_bounds = array<i64: 1, 128>}, {transform_indices = @transform_3, window_bounds = array<i64: 16, 128>}, {transform_indices = @transform_4, window_bounds = array<i64: 16, 128>}]} {
    %c0_i32 = arith.constant 0 : i32
    %0 = arith.cmpi eq, %arg2, %c0_i32 : i32
    %1 = arith.extui %0 : i1 to i32
    %c0_i32_0 = arith.constant 0 : i32
    %2 = arith.cmpi ne, %1, %c0_i32_0 : i32
    scf.if %2 {
      %cst_10 = arith.constant 0.000000e+00 : f32
      %12 = vector.broadcast %cst_10 : f32 to vector<16x128xf32>
      %c0_11 = arith.constant 0 : index
      %c0_12 = arith.constant 0 : index
      %13 = vector.load %arg8[%c0_11, %c0_12] : memref<16x128xf32, #tpu.memory_space<vmem>>, vector<16x128xf32>
      tpu.vector_store %arg8[%c0_11, %c0_12], %12 {strides = array<i32>} : memref<16x128xf32, #tpu.memory_space<vmem>>, vector<16x128xf32>,
    } else {
    }
    %c0 = arith.constant 0 : index
    %c0_1 = arith.constant 0 : index
    %3 = vector.load %arg8[%c0, %c0_1] : memref<16x128xf32, #tpu.memory_space<vmem>>, vector<16x128xf32>
    %c0_2 = arith.constant 0 : index
    %c0_3 = arith.constant 0 : index
    %4 = vector.load %arg3[%c0_2, %c0_3] : memref<16x64xbf16, #tpu.memory_space<vmem>>, vector<16x64xbf16>
    %c0_4 = arith.constant 0 : index
    %c0_5 = arith.constant 0 : index
    %5 = vector.load %arg4[%c0_4, %c0_5] : memref<64x128xbf16, #tpu.memory_space<vmem>>, vector<64x128xbf16>
    %cst = arith.constant dense<0.000000e+00> : vector<16x128xf32>
    %6 = tpu.matmul %4, %5, %cst {dimension_numbers = #tpu.dot_dimension_numbers<[1], [0], [0], [1], [0, 0, 1, 1], [], []>} : vector<16x64xbf16>, vector<64x128xbf16>, vector<16x128xf32> -> vector<16x128xf32>
    %7 = arith.addf %3, %6 : vector<16x128xf32>
    %c0_6 = arith.constant 0 : index
    %c0_7 = arith.constant 0 : index
    %8 = vector.load %arg8[%c0_6, %c0_7] : memref<16x128xf32, #tpu.memory_space<vmem>>, vector<16x128xf32>
    tpu.vector_store %arg8[%c0_6, %c0_7], %7 {strides = array<i32>} : memref<16x128xf32, #tpu.memory_space<vmem>>, vector<16x128xf32>,
    %c0_i32_8 = arith.constant 0 : i32
    %9 = arith.cmpi eq, %arg2, %c0_i32_8 : i32
    %10 = arith.extui %9 : i1 to i32
    %c0_i32_9 = arith.constant 0 : i32
    %11 = arith.cmpi ne, %10, %c0_i32_9 : i32
    scf.if %11 {
      %c0_10 = arith.constant 0 : index
      %c0_11 = arith.constant 0 : index
      %12 = vector.load %arg8[%c0_10, %c0_11] : memref<16x128xf32, #tpu.memory_space<vmem>>, vector<16x128xf32>
      %c0_12 = arith.constant 0 : index
      %c0_13 = arith.constant 0 : index
      %13 = vector.load %arg5[%c0_12, %c0_13] : memref<1x128xf32, #tpu.memory_space<vmem>>, vector<1x128xf32>
      %14 = vector.broadcast %13 : vector<1x128xf32> to vector<16x128xf32>
      %15 = arith.addf %12, %14 : vector<16x128xf32>
      %cst_14 = arith.constant 0.000000e+00 : f32
      %16 = vector.broadcast %cst_14 : f32 to vector<16x128xf32>
      %17 = arith.maximumf %15, %16 : vector<16x128xf32>
      %c0_15 = arith.constant 0 : index
      %c0_16 = arith.constant 0 : index
      %18 = vector.load %arg6[%c0_15, %c0_16] : memref<16x128xf32, #tpu.memory_space<vmem>>, vector<16x128xf32>
      %19 = arith.addf %17, %18 : vector<16x128xf32>
      %c0_17 = arith.constant 0 : index
      %c0_18 = arith.constant 0 : index
      %20 = vector.load %arg7[%c0_17, %c0_18] : memref<16x128xf32, #tpu.memory_space<vmem>>, vector<16x128xf32>
      tpu.vector_store %arg7[%c0_17, %c0_18], %19 {strides = array<i32>} : memref<16x128xf32, #tpu.memory_space<vmem>>, vector<16x128xf32>,
    } else {
    }
    return
  }
  func.func @transform_0(%arg0: i32, %arg1: i32, %arg2: i32) -> (i32, i32) {
    %c0_i32 = arith.constant 0 : i32
    return %arg0, %arg2 : i32, i32
  }
  func.func @transform_1(%arg0: i32, %arg1: i32, %arg2: i32) -> (i32, i32) {
    %c0_i32 = arith.constant 0 : i32
    return %arg2, %arg1 : i32, i32
  }
  func.func @transform_2(%arg0: i32, %arg1: i32, %arg2: i32) -> (i32, i32) {
    %c0_i32 = arith.constant 0 : i32
    %c0_i32_0 = arith.constant 0 : i32
    return %c0_i32, %arg1 : i32, i32
  }
  func.func @transform_3(%arg0: i32, %arg1: i32, %arg2: i32) -> (i32, i32) {
    %c0_i32 = arith.constant 0 : i32
    return %arg0, %arg1 : i32, i32
  }
  func.func @transform_4(%arg0: i32, %arg1: i32, %arg2: i32) -> (i32, i32) {
    %c0_i32 = arith.constant 0 : i32
    return %arg0, %arg1 : i32, i32
  }
}

module attributes {stable_mosaic.version = 11 : i64} {
  func.func @_mm_bias_relu_kernel(%arg0: i32, %arg1: i32, %arg2: i32, %arg3: memref<16x512xbf16, #tpu.memory_space<vmem>>, %arg4: memref<512x256xbf16, #tpu.memory_space<vmem>>, %arg5: memref<1x256xf32, #tpu.memory_space<vmem>>, %arg6: memref<16x256xf32, #tpu.memory_space<vmem>>, %arg7: memref<16x256xf32, #tpu.memory_space<vmem>>) attributes {dimension_semantics = [#tpu.dimension_semantics<parallel>, #tpu.dimension_semantics<parallel>, #tpu.dimension_semantics<arbitrary>], iteration_bounds = array<i64: 1, 1, 3>, scalar_prefetch = 0 : i64, scratch_operands = 1 : i64, tpu.core_type = #tpu.core_type<tc>, window_params = [{transform_indices = @transform_0, window_bounds = array<i64: 16, 512>}, {transform_indices = @transform_1, window_bounds = array<i64: 512, 256>}, {transform_indices = @transform_2, window_bounds = array<i64: 1, 256>}, {transform_indices = @transform_3, window_bounds = array<i64: 16, 256>}]} {
    %c0_i32 = arith.constant 0 : i32
    %0 = arith.cmpi eq, %arg2, %c0_i32 : i32
    %1 = arith.extui %0 : i1 to i32
    %c0_i32_0 = arith.constant 0 : i32
    %2 = arith.cmpi ne, %1, %c0_i32_0 : i32
    scf.if %2 {
      %cst_9 = arith.constant 0.000000e+00 : f32
      %12 = vector.broadcast %cst_9 : f32 to vector<16x256xf32>
      %c0_10 = arith.constant 0 : index
      %c0_11 = arith.constant 0 : index
      %13 = vector.load %arg7[%c0_10, %c0_11] : memref<16x256xf32, #tpu.memory_space<vmem>>, vector<16x256xf32>
      tpu.vector_store %arg7[%c0_10, %c0_11], %12 {strides = array<i32>} : memref<16x256xf32, #tpu.memory_space<vmem>>, vector<16x256xf32>,
    } else {
    }
    %c0 = arith.constant 0 : index
    %c0_1 = arith.constant 0 : index
    %3 = vector.load %arg7[%c0, %c0_1] : memref<16x256xf32, #tpu.memory_space<vmem>>, vector<16x256xf32>
    %c0_2 = arith.constant 0 : index
    %c0_3 = arith.constant 0 : index
    %4 = vector.load %arg3[%c0_2, %c0_3] : memref<16x512xbf16, #tpu.memory_space<vmem>>, vector<16x512xbf16>
    %c0_4 = arith.constant 0 : index
    %c0_5 = arith.constant 0 : index
    %5 = vector.load %arg4[%c0_4, %c0_5] : memref<512x256xbf16, #tpu.memory_space<vmem>>, vector<512x256xbf16>
    %cst = arith.constant dense<0.000000e+00> : vector<16x256xf32>
    %6 = tpu.matmul %4, %5, %cst {dimension_numbers = #tpu.dot_dimension_numbers<[1], [0], [0], [1], [0, 0, 1, 1], [], []>} : vector<16x512xbf16>, vector<512x256xbf16>, vector<16x256xf32> -> vector<16x256xf32>
    %7 = arith.addf %3, %6 : vector<16x256xf32>
    %c0_6 = arith.constant 0 : index
    %c0_7 = arith.constant 0 : index
    %8 = vector.load %arg7[%c0_6, %c0_7] : memref<16x256xf32, #tpu.memory_space<vmem>>, vector<16x256xf32>
    tpu.vector_store %arg7[%c0_6, %c0_7], %7 {strides = array<i32>} : memref<16x256xf32, #tpu.memory_space<vmem>>, vector<16x256xf32>,
    %c2_i32 = arith.constant 2 : i32
    %9 = arith.cmpi eq, %arg2, %c2_i32 : i32
    %10 = arith.extui %9 : i1 to i32
    %c0_i32_8 = arith.constant 0 : i32
    %11 = arith.cmpi ne, %10, %c0_i32_8 : i32
    scf.if %11 {
      %c0_9 = arith.constant 0 : index
      %c0_10 = arith.constant 0 : index
      %12 = vector.load %arg7[%c0_9, %c0_10] : memref<16x256xf32, #tpu.memory_space<vmem>>, vector<16x256xf32>
      %c0_11 = arith.constant 0 : index
      %c0_12 = arith.constant 0 : index
      %13 = vector.load %arg5[%c0_11, %c0_12] : memref<1x256xf32, #tpu.memory_space<vmem>>, vector<1x256xf32>
      %14 = vector.broadcast %13 : vector<1x256xf32> to vector<16x256xf32>
      %15 = arith.addf %12, %14 : vector<16x256xf32>
      %cst_13 = arith.constant 0.000000e+00 : f32
      %16 = vector.broadcast %cst_13 : f32 to vector<16x256xf32>
      %17 = arith.maximumf %15, %16 : vector<16x256xf32>
      %c0_14 = arith.constant 0 : index
      %c0_15 = arith.constant 0 : index
      %18 = vector.load %arg6[%c0_14, %c0_15] : memref<16x256xf32, #tpu.memory_space<vmem>>, vector<16x256xf32>
      tpu.vector_store %arg6[%c0_14, %c0_15], %17 {strides = array<i32>} : memref<16x256xf32, #tpu.memory_space<vmem>>, vector<16x256xf32>,
    } else {
    }
    return
  }
  func.func @transform_0(%arg0: i32, %arg1: i32, %arg2: i32) -> (i32, i32) {
    %c0_i32 = arith.constant 0 : i32
    return %arg0, %arg2 : i32, i32
  }
  func.func @transform_1(%arg0: i32, %arg1: i32, %arg2: i32) -> (i32, i32) {
    %c0_i32 = arith.constant 0 : i32
    return %arg2, %arg1 : i32, i32
  }
  func.func @transform_2(%arg0: i32, %arg1: i32, %arg2: i32) -> (i32, i32) {
    %c0_i32 = arith.constant 0 : i32
    %c0_i32_0 = arith.constant 0 : i32
    return %c0_i32, %arg1 : i32, i32
  }
  func.func @transform_3(%arg0: i32, %arg1: i32, %arg2: i32) -> (i32, i32) {
    %c0_i32 = arith.constant 0 : i32
    return %arg0, %arg1 : i32, i32
  }
}

module attributes {stable_mosaic.version = 11 : i64} {
  func.func @_mm_bias_relu_res_kernel(%arg0: i32, %arg1: i32, %arg2: i32, %arg3: memref<16x128xbf16, #tpu.memory_space<vmem>>, %arg4: memref<128x256xbf16, #tpu.memory_space<vmem>>, %arg5: memref<1x256xf32, #tpu.memory_space<vmem>>, %arg6: memref<16x256xf32, #tpu.memory_space<vmem>>, %arg7: memref<16x256xf32, #tpu.memory_space<vmem>>, %arg8: memref<16x256xf32, #tpu.memory_space<vmem>>) attributes {dimension_semantics = [#tpu.dimension_semantics<parallel>, #tpu.dimension_semantics<parallel>, #tpu.dimension_semantics<arbitrary>], iteration_bounds = array<i64: 1, 1, 1>, scalar_prefetch = 0 : i64, scratch_operands = 1 : i64, tpu.core_type = #tpu.core_type<tc>, window_params = [{transform_indices = @transform_0, window_bounds = array<i64: 16, 128>}, {transform_indices = @transform_1, window_bounds = array<i64: 128, 256>}, {transform_indices = @transform_2, window_bounds = array<i64: 1, 256>}, {transform_indices = @transform_3, window_bounds = array<i64: 16, 256>}, {transform_indices = @transform_4, window_bounds = array<i64: 16, 256>}]} {
    %c0_i32 = arith.constant 0 : i32
    %0 = arith.cmpi eq, %arg2, %c0_i32 : i32
    %1 = arith.extui %0 : i1 to i32
    %c0_i32_0 = arith.constant 0 : i32
    %2 = arith.cmpi ne, %1, %c0_i32_0 : i32
    scf.if %2 {
      %cst_10 = arith.constant 0.000000e+00 : f32
      %12 = vector.broadcast %cst_10 : f32 to vector<16x256xf32>
      %c0_11 = arith.constant 0 : index
      %c0_12 = arith.constant 0 : index
      %13 = vector.load %arg8[%c0_11, %c0_12] : memref<16x256xf32, #tpu.memory_space<vmem>>, vector<16x256xf32>
      tpu.vector_store %arg8[%c0_11, %c0_12], %12 {strides = array<i32>} : memref<16x256xf32, #tpu.memory_space<vmem>>, vector<16x256xf32>,
    } else {
    }
    %c0 = arith.constant 0 : index
    %c0_1 = arith.constant 0 : index
    %3 = vector.load %arg8[%c0, %c0_1] : memref<16x256xf32, #tpu.memory_space<vmem>>, vector<16x256xf32>
    %c0_2 = arith.constant 0 : index
    %c0_3 = arith.constant 0 : index
    %4 = vector.load %arg3[%c0_2, %c0_3] : memref<16x128xbf16, #tpu.memory_space<vmem>>, vector<16x128xbf16>
    %c0_4 = arith.constant 0 : index
    %c0_5 = arith.constant 0 : index
    %5 = vector.load %arg4[%c0_4, %c0_5] : memref<128x256xbf16, #tpu.memory_space<vmem>>, vector<128x256xbf16>
    %cst = arith.constant dense<0.000000e+00> : vector<16x256xf32>
    %6 = tpu.matmul %4, %5, %cst {dimension_numbers = #tpu.dot_dimension_numbers<[1], [0], [0], [1], [0, 0, 1, 1], [], []>} : vector<16x128xbf16>, vector<128x256xbf16>, vector<16x256xf32> -> vector<16x256xf32>
    %7 = arith.addf %3, %6 : vector<16x256xf32>
    %c0_6 = arith.constant 0 : index
    %c0_7 = arith.constant 0 : index
    %8 = vector.load %arg8[%c0_6, %c0_7] : memref<16x256xf32, #tpu.memory_space<vmem>>, vector<16x256xf32>
    tpu.vector_store %arg8[%c0_6, %c0_7], %7 {strides = array<i32>} : memref<16x256xf32, #tpu.memory_space<vmem>>, vector<16x256xf32>,
    %c0_i32_8 = arith.constant 0 : i32
    %9 = arith.cmpi eq, %arg2, %c0_i32_8 : i32
    %10 = arith.extui %9 : i1 to i32
    %c0_i32_9 = arith.constant 0 : i32
    %11 = arith.cmpi ne, %10, %c0_i32_9 : i32
    scf.if %11 {
      %c0_10 = arith.constant 0 : index
      %c0_11 = arith.constant 0 : index
      %12 = vector.load %arg8[%c0_10, %c0_11] : memref<16x256xf32, #tpu.memory_space<vmem>>, vector<16x256xf32>
      %c0_12 = arith.constant 0 : index
      %c0_13 = arith.constant 0 : index
      %13 = vector.load %arg5[%c0_12, %c0_13] : memref<1x256xf32, #tpu.memory_space<vmem>>, vector<1x256xf32>
      %14 = vector.broadcast %13 : vector<1x256xf32> to vector<16x256xf32>
      %15 = arith.addf %12, %14 : vector<16x256xf32>
      %cst_14 = arith.constant 0.000000e+00 : f32
      %16 = vector.broadcast %cst_14 : f32 to vector<16x256xf32>
      %17 = arith.maximumf %15, %16 : vector<16x256xf32>
      %c0_15 = arith.constant 0 : index
      %c0_16 = arith.constant 0 : index
      %18 = vector.load %arg6[%c0_15, %c0_16] : memref<16x256xf32, #tpu.memory_space<vmem>>, vector<16x256xf32>
      %19 = arith.addf %17, %18 : vector<16x256xf32>
      %c0_17 = arith.constant 0 : index
      %c0_18 = arith.constant 0 : index
      %20 = vector.load %arg7[%c0_17, %c0_18] : memref<16x256xf32, #tpu.memory_space<vmem>>, vector<16x256xf32>
      tpu.vector_store %arg7[%c0_17, %c0_18], %19 {strides = array<i32>} : memref<16x256xf32, #tpu.memory_space<vmem>>, vector<16x256xf32>,
    } else {
    }
    return
  }
  func.func @transform_0(%arg0: i32, %arg1: i32, %arg2: i32) -> (i32, i32) {
    %c0_i32 = arith.constant 0 : i32
    return %arg0, %arg2 : i32, i32
  }
  func.func @transform_1(%arg0: i32, %arg1: i32, %arg2: i32) -> (i32, i32) {
    %c0_i32 = arith.constant 0 : i32
    return %arg2, %arg1 : i32, i32
  }
  func.func @transform_2(%arg0: i32, %arg1: i32, %arg2: i32) -> (i32, i32) {
    %c0_i32 = arith.constant 0 : i32
    %c0_i32_0 = arith.constant 0 : i32
    return %c0_i32, %arg1 : i32, i32
  }
  func.func @transform_3(%arg0: i32, %arg1: i32, %arg2: i32) -> (i32, i32) {
    %c0_i32 = arith.constant 0 : i32
    return %arg0, %arg1 : i32, i32
  }
  func.func @transform_4(%arg0: i32, %arg1: i32, %arg2: i32) -> (i32, i32) {
    %c0_i32 = arith.constant 0 : i32
    return %arg0, %arg1 : i32, i32
  }
}

module attributes {stable_mosaic.version = 11 : i64} {
  func.func @_mm_bias_relu_kernel(%arg0: i32, %arg1: i32, %arg2: i32, %arg3: memref<16x256xbf16, #tpu.memory_space<vmem>>, %arg4: memref<256x128xbf16, #tpu.memory_space<vmem>>, %arg5: memref<1x128xf32, #tpu.memory_space<vmem>>, %arg6: memref<16x128xf32, #tpu.memory_space<vmem>>, %arg7: memref<16x128xf32, #tpu.memory_space<vmem>>) attributes {dimension_semantics = [#tpu.dimension_semantics<parallel>, #tpu.dimension_semantics<parallel>, #tpu.dimension_semantics<arbitrary>], iteration_bounds = array<i64: 1, 1, 1>, scalar_prefetch = 0 : i64, scratch_operands = 1 : i64, tpu.core_type = #tpu.core_type<tc>, window_params = [{transform_indices = @transform_0, window_bounds = array<i64: 16, 256>}, {transform_indices = @transform_1, window_bounds = array<i64: 256, 128>}, {transform_indices = @transform_2, window_bounds = array<i64: 1, 128>}, {transform_indices = @transform_3, window_bounds = array<i64: 16, 128>}]} {
    %c0_i32 = arith.constant 0 : i32
    %0 = arith.cmpi eq, %arg2, %c0_i32 : i32
    %1 = arith.extui %0 : i1 to i32
    %c0_i32_0 = arith.constant 0 : i32
    %2 = arith.cmpi ne, %1, %c0_i32_0 : i32
    scf.if %2 {
      %cst_10 = arith.constant 0.000000e+00 : f32
      %12 = vector.broadcast %cst_10 : f32 to vector<16x128xf32>
      %c0_11 = arith.constant 0 : index
      %c0_12 = arith.constant 0 : index
      %13 = vector.load %arg7[%c0_11, %c0_12] : memref<16x128xf32, #tpu.memory_space<vmem>>, vector<16x128xf32>
      tpu.vector_store %arg7[%c0_11, %c0_12], %12 {strides = array<i32>} : memref<16x128xf32, #tpu.memory_space<vmem>>, vector<16x128xf32>,
    } else {
    }
    %c0 = arith.constant 0 : index
    %c0_1 = arith.constant 0 : index
    %3 = vector.load %arg7[%c0, %c0_1] : memref<16x128xf32, #tpu.memory_space<vmem>>, vector<16x128xf32>
    %c0_2 = arith.constant 0 : index
    %c0_3 = arith.constant 0 : index
    %4 = vector.load %arg3[%c0_2, %c0_3] : memref<16x256xbf16, #tpu.memory_space<vmem>>, vector<16x256xbf16>
    %c0_4 = arith.constant 0 : index
    %c0_5 = arith.constant 0 : index
    %5 = vector.load %arg4[%c0_4, %c0_5] : memref<256x128xbf16, #tpu.memory_space<vmem>>, vector<256x128xbf16>
    %cst = arith.constant dense<0.000000e+00> : vector<16x128xf32>
    %6 = tpu.matmul %4, %5, %cst {dimension_numbers = #tpu.dot_dimension_numbers<[1], [0], [0], [1], [0, 0, 1, 1], [], []>} : vector<16x256xbf16>, vector<256x128xbf16>, vector<16x128xf32> -> vector<16x128xf32>
    %7 = arith.addf %3, %6 : vector<16x128xf32>
    %c0_6 = arith.constant 0 : index
    %c0_7 = arith.constant 0 : index
    %8 = vector.load %arg7[%c0_6, %c0_7] : memref<16x128xf32, #tpu.memory_space<vmem>>, vector<16x128xf32>
    tpu.vector_store %arg7[%c0_6, %c0_7], %7 {strides = array<i32>} : memref<16x128xf32, #tpu.memory_space<vmem>>, vector<16x128xf32>,
    %c0_i32_8 = arith.constant 0 : i32
    %9 = arith.cmpi eq, %arg2, %c0_i32_8 : i32
    %10 = arith.extui %9 : i1 to i32
    %c0_i32_9 = arith.constant 0 : i32
    %11 = arith.cmpi ne, %10, %c0_i32_9 : i32
    scf.if %11 {
      %c0_10 = arith.constant 0 : index
      %c0_11 = arith.constant 0 : index
      %12 = vector.load %arg7[%c0_10, %c0_11] : memref<16x128xf32, #tpu.memory_space<vmem>>, vector<16x128xf32>
      %c0_12 = arith.constant 0 : index
      %c0_13 = arith.constant 0 : index
      %13 = vector.load %arg5[%c0_12, %c0_13] : memref<1x128xf32, #tpu.memory_space<vmem>>, vector<1x128xf32>
      %14 = vector.broadcast %13 : vector<1x128xf32> to vector<16x128xf32>
      %15 = arith.addf %12, %14 : vector<16x128xf32>
      %cst_14 = arith.constant 0.000000e+00 : f32
      %16 = vector.broadcast %cst_14 : f32 to vector<16x128xf32>
      %17 = arith.maximumf %15, %16 : vector<16x128xf32>
      %c0_15 = arith.constant 0 : index
      %c0_16 = arith.constant 0 : index
      %18 = vector.load %arg6[%c0_15, %c0_16] : memref<16x128xf32, #tpu.memory_space<vmem>>, vector<16x128xf32>
      tpu.vector_store %arg6[%c0_15, %c0_16], %17 {strides = array<i32>} : memref<16x128xf32, #tpu.memory_space<vmem>>, vector<16x128xf32>,
    } else {
    }
    return
  }
  func.func @transform_0(%arg0: i32, %arg1: i32, %arg2: i32) -> (i32, i32) {
    %c0_i32 = arith.constant 0 : i32
    return %arg0, %arg2 : i32, i32
  }
  func.func @transform_1(%arg0: i32, %arg1: i32, %arg2: i32) -> (i32, i32) {
    %c0_i32 = arith.constant 0 : i32
    return %arg2, %arg1 : i32, i32
  }
  func.func @transform_2(%arg0: i32, %arg1: i32, %arg2: i32) -> (i32, i32) {
    %c0_i32 = arith.constant 0 : i32
    %c0_i32_0 = arith.constant 0 : i32
    return %c0_i32, %arg1 : i32, i32
  }
  func.func @transform_3(%arg0: i32, %arg1: i32, %arg2: i32) -> (i32, i32) {
    %c0_i32 = arith.constant 0 : i32
    return %arg0, %arg1 : i32, i32
  }
}

module attributes {stable_mosaic.version = 11 : i64} {
  func.func @_mm_bias_relu_kernel(%arg0: i32, %arg1: i32, %arg2: i32, %arg3: memref<16x384xbf16, #tpu.memory_space<vmem>>, %arg4: memref<384x128xbf16, #tpu.memory_space<vmem>>, %arg5: memref<1x128xf32, #tpu.memory_space<vmem>>, %arg6: memref<16x128xf32, #tpu.memory_space<vmem>>, %arg7: memref<16x128xf32, #tpu.memory_space<vmem>>) attributes {dimension_semantics = [#tpu.dimension_semantics<parallel>, #tpu.dimension_semantics<parallel>, #tpu.dimension_semantics<arbitrary>], iteration_bounds = array<i64: 1, 1, 1>, scalar_prefetch = 0 : i64, scratch_operands = 1 : i64, tpu.core_type = #tpu.core_type<tc>, window_params = [{transform_indices = @transform_0, window_bounds = array<i64: 16, 384>}, {transform_indices = @transform_1, window_bounds = array<i64: 384, 128>}, {transform_indices = @transform_2, window_bounds = array<i64: 1, 128>}, {transform_indices = @transform_3, window_bounds = array<i64: 16, 128>}]} {
    %c0_i32 = arith.constant 0 : i32
    %0 = arith.cmpi eq, %arg2, %c0_i32 : i32
    %1 = arith.extui %0 : i1 to i32
    %c0_i32_0 = arith.constant 0 : i32
    %2 = arith.cmpi ne, %1, %c0_i32_0 : i32
    scf.if %2 {
      %cst_10 = arith.constant 0.000000e+00 : f32
      %12 = vector.broadcast %cst_10 : f32 to vector<16x128xf32>
      %c0_11 = arith.constant 0 : index
      %c0_12 = arith.constant 0 : index
      %13 = vector.load %arg7[%c0_11, %c0_12] : memref<16x128xf32, #tpu.memory_space<vmem>>, vector<16x128xf32>
      tpu.vector_store %arg7[%c0_11, %c0_12], %12 {strides = array<i32>} : memref<16x128xf32, #tpu.memory_space<vmem>>, vector<16x128xf32>,
    } else {
    }
    %c0 = arith.constant 0 : index
    %c0_1 = arith.constant 0 : index
    %3 = vector.load %arg7[%c0, %c0_1] : memref<16x128xf32, #tpu.memory_space<vmem>>, vector<16x128xf32>
    %c0_2 = arith.constant 0 : index
    %c0_3 = arith.constant 0 : index
    %4 = vector.load %arg3[%c0_2, %c0_3] : memref<16x384xbf16, #tpu.memory_space<vmem>>, vector<16x384xbf16>
    %c0_4 = arith.constant 0 : index
    %c0_5 = arith.constant 0 : index
    %5 = vector.load %arg4[%c0_4, %c0_5] : memref<384x128xbf16, #tpu.memory_space<vmem>>, vector<384x128xbf16>
    %cst = arith.constant dense<0.000000e+00> : vector<16x128xf32>
    %6 = tpu.matmul %4, %5, %cst {dimension_numbers = #tpu.dot_dimension_numbers<[1], [0], [0], [1], [0, 0, 1, 1], [], []>} : vector<16x384xbf16>, vector<384x128xbf16>, vector<16x128xf32> -> vector<16x128xf32>
    %7 = arith.addf %3, %6 : vector<16x128xf32>
    %c0_6 = arith.constant 0 : index
    %c0_7 = arith.constant 0 : index
    %8 = vector.load %arg7[%c0_6, %c0_7] : memref<16x128xf32, #tpu.memory_space<vmem>>, vector<16x128xf32>
    tpu.vector_store %arg7[%c0_6, %c0_7], %7 {strides = array<i32>} : memref<16x128xf32, #tpu.memory_space<vmem>>, vector<16x128xf32>,
    %c0_i32_8 = arith.constant 0 : i32
    %9 = arith.cmpi eq, %arg2, %c0_i32_8 : i32
    %10 = arith.extui %9 : i1 to i32
    %c0_i32_9 = arith.constant 0 : i32
    %11 = arith.cmpi ne, %10, %c0_i32_9 : i32
    scf.if %11 {
      %c0_10 = arith.constant 0 : index
      %c0_11 = arith.constant 0 : index
      %12 = vector.load %arg7[%c0_10, %c0_11] : memref<16x128xf32, #tpu.memory_space<vmem>>, vector<16x128xf32>
      %c0_12 = arith.constant 0 : index
      %c0_13 = arith.constant 0 : index
      %13 = vector.load %arg5[%c0_12, %c0_13] : memref<1x128xf32, #tpu.memory_space<vmem>>, vector<1x128xf32>
      %14 = vector.broadcast %13 : vector<1x128xf32> to vector<16x128xf32>
      %15 = arith.addf %12, %14 : vector<16x128xf32>
      %cst_14 = arith.constant 0.000000e+00 : f32
      %16 = vector.broadcast %cst_14 : f32 to vector<16x128xf32>
      %17 = arith.maximumf %15, %16 : vector<16x128xf32>
      %c0_15 = arith.constant 0 : index
      %c0_16 = arith.constant 0 : index
      %18 = vector.load %arg6[%c0_15, %c0_16] : memref<16x128xf32, #tpu.memory_space<vmem>>, vector<16x128xf32>
      tpu.vector_store %arg6[%c0_15, %c0_16], %17 {strides = array<i32>} : memref<16x128xf32, #tpu.memory_space<vmem>>, vector<16x128xf32>,
    } else {
    }
    return
  }
  func.func @transform_0(%arg0: i32, %arg1: i32, %arg2: i32) -> (i32, i32) {
    %c0_i32 = arith.constant 0 : i32
    return %arg0, %arg2 : i32, i32
  }
  func.func @transform_1(%arg0: i32, %arg1: i32, %arg2: i32) -> (i32, i32) {
    %c0_i32 = arith.constant 0 : i32
    return %arg2, %arg1 : i32, i32
  }
  func.func @transform_2(%arg0: i32, %arg1: i32, %arg2: i32) -> (i32, i32) {
    %c0_i32 = arith.constant 0 : i32
    %c0_i32_0 = arith.constant 0 : i32
    return %c0_i32, %arg1 : i32, i32
  }
  func.func @transform_3(%arg0: i32, %arg1: i32, %arg2: i32) -> (i32, i32) {
    %c0_i32 = arith.constant 0 : i32
    return %arg0, %arg1 : i32, i32
  }
}

</mosaic_0001>

<llo_original>
// kernel: _lambda_.112
$region0: #{_lambda_.112}
  #allocation0 [shape = 'u32[]', space=smem, size = 0x4, offset = 0x4, fixed_abs, tag = 'smem constant byte address 0x4 - core index']
  #allocation1 [shape = 'u32[144,128]{1,0:T(1,128)}', space=vmem, size = 0x12000, scoped, tag = 'internal scratch']
  %s0 = inlined_call_operand.vmem [shape: f32[9,32,128], index: 0, kind: input, shape index: {}]
  %s1 = inlined_call_operand.vmem [shape: f32[32,128], index: 1, kind: output, shape index: {}]
  %s2 = sld [smem:[#allocation0]]
  $region14: #{_lambda_.112} parent=0
    _
  %s4 = ssub.s32 1, %s2
  %s5 = scalar_select 0, %s4, %s2
  // Predicated region
  $region2: #{_lambda_.112} parent=0 // pred_check
    _
  $region3: #{_lambda_.112} parent=0 // pred_check_branch
    %7 = sbr.rel (0) target = $region5
  $region4: #{_lambda_.112} parent=0 // pred_region
    _
  $region5: #{_lambda_.112} parent=0 // pred_fallthru
    _
  %v8 = vld [vmem:[%s0] sm:$0xff]
  %v9 = vld [vmem:[%s0 + $0x8] sm:$0xff]
  %v10 = vld [vmem:[%s0 + $0x10] sm:$0xff]
  %v11 = vld [vmem:[%s0 + $0x18] sm:$0xff]
  %v12 = vld [vmem:[%s0 + $0x20] sm:$0xff]
  %v13 = vld [vmem:[%s0 + $0x28] sm:$0xff]
  %v14 = vld [vmem:[%s0 + $0x30] sm:$0xff]
  %v15 = vld [vmem:[%s0 + $0x38] sm:$0xff]
  %v16 = vld [vmem:[%s0 + $0x40] sm:$0xff]
  %v17 = vld [vmem:[%s0 + $0x48] sm:$0xff]
  %v18 = vld [vmem:[%s0 + $0x50] sm:$0xff]
  %v19 = vld [vmem:[%s0 + $0x58] sm:$0xff]
  %v20 = vld [vmem:[%s0 + $0x60] sm:$0xff]
  %v21 = vld [vmem:[%s0 + $0x68] sm:$0xff]
  %v22 = vld [vmem:[%s0 + $0x70] sm:$0xff]
  %v23 = vld [vmem:[%s0 + $0x78] sm:$0xff]
  %v24 = vld [vmem:[%s0 + $0x80] sm:$0xff]
  %v25 = vld [vmem:[%s0 + $0x88] sm:$0xff]
  %v26 = vld [vmem:[%s0 + $0x90] sm:$0xff]
  %v27 = vld [vmem:[%s0 + $0x98] sm:$0xff]
  %v28 = vld [vmem:[%s0 + $0xa0] sm:$0xff]
  %v29 = vld [vmem:[%s0 + $0xa8] sm:$0xff]
  %v30 = vld [vmem:[%s0 + $0xb0] sm:$0xff]
  %v31 = vld [vmem:[%s0 + $0xb8] sm:$0xff]
  %v32 = vld [vmem:[%s0 + $0xc0] sm:$0xff]
  %v33 = vld [vmem:[%s0 + $0xc8] sm:$0xff]
  %v34 = vld [vmem:[%s0 + $0xd0] sm:$0xff]
  %v35 = vld [vmem:[%s0 + $0xd8] sm:$0xff]
  %v36 = vld [vmem:[%s0 + $0xe0] sm:$0xff]
  %v37 = vld [vmem:[%s0 + $0xe8] sm:$0xff]
  %v38 = vld [vmem:[%s0 + $0xf0] sm:$0xff]
  %v39 = vld [vmem:[%s0 + $0xf8] sm:$0xff]
  %v40 = vld [vmem:[%s0 + $0x100] sm:$0xff]
  %v41 = vld [vmem:[%s0 + $0x108] sm:$0xff]
  %v42 = vld [vmem:[%s0 + $0x110] sm:$0xff]
  %v43 = vld [vmem:[%s0 + $0x118] sm:$0xff]
  %v44 = vmax.f32 %v8, %v12
  %v45 = vmax.f32 %v44, %v16
  %v46 = vmax.f32 %v45, %v20
  %v47 = vmax.f32 %v46, %v24
  %v48 = vmax.f32 %v47, %v28
  %v49 = vmax.f32 %v48, %v32
  %v50 = vmax.f32 %v49, %v36
  %v51 = vmax.f32 %v50, %v40
  %v52 = vmax.f32 %v9, %v13
  %v53 = vmax.f32 %v52, %v17
  %v54 = vmax.f32 %v53, %v21
  %v55 = vmax.f32 %v54, %v25
  %v56 = vmax.f32 %v55, %v29
  %v57 = vmax.f32 %v56, %v33
  %v58 = vmax.f32 %v57, %v37
  %v59 = vmax.f32 %v58, %v41
  %v60 = vmax.f32 %v10, %v14
  %v61 = vmax.f32 %v60, %v18
  %v62 = vmax.f32 %v61, %v22
  %v63 = vmax.f32 %v62, %v26
  %v64 = vmax.f32 %v63, %v30
  %v65 = vmax.f32 %v64, %v34
  %v66 = vmax.f32 %v65, %v38
  %v67 = vmax.f32 %v66, %v42
  %v68 = vmax.f32 %v11, %v15
  %v69 = vmax.f32 %v68, %v19
  %v70 = vmax.f32 %v69, %v23
  %v71 = vmax.f32 %v70, %v27
  %v72 = vmax.f32 %v71, %v31
  %v73 = vmax.f32 %v72, %v35
  %v74 = vmax.f32 %v73, %v39
  %v75 = vmax.f32 %v74, %v43
  %76 = vst [vmem:[%s1] sm:$0xff] %v51
  %77 = vst [vmem:[%s1 + $0x8] sm:$0xff] %v59
  %78 = vst [vmem:[%s1 + $0x10] sm:$0xff] %v67
  %79 = vst [vmem:[%s1 + $0x18] sm:$0xff] %v75
  // Predicated region
  $region6: #{_lambda_.112} parent=0 // pred_check
    _
  $region7: #{_lambda_.112} parent=0 // pred_check_branch
    %81 = sbr.rel (0) target = $region9
  $region8: #{_lambda_.112} parent=0 // pred_region
    _
  $region9: #{_lambda_.112} parent=0 // pred_fallthru
    _
  // Predicated region
  $region10: #{_lambda_.112} parent=0 // pred_check
    _
  $region11: #{_lambda_.112} parent=0 // pred_check_branch
    %83 = sbr.rel (0) target = $region13
  $region12: #{_lambda_.112} parent=0 // pred_region
    _
  $region13: #{_lambda_.112} parent=0 // pred_fallthru
    _

// kernel: _lambda_.113
$region0: #{_lambda_.113}
  #allocation0 [shape = 'u32[]', space=smem, size = 0x4, offset = 0x4, fixed_abs, tag = 'smem constant byte address 0x4 - core index']
  #allocation1 [shape = 'u32[144,128]{1,0:T(1,128)}', space=vmem, size = 0x12000, scoped, tag = 'internal scratch']
  #allocation2 [shape = 'f32[32,128]{1,0:T(8,128)}', space=vmem, size = 0x4000, scoped, tag = 'scratch operand']
  %s0 = inlined_call_operand.vmem [shape: bf16[32,64], index: 0, kind: input, shape index: {}]
  %s1 = inlined_call_operand.vmem [shape: bf16[64,128], index: 1, kind: input, shape index: {}]
  %s2 = inlined_call_operand.vmem [shape: f32[1,128], index: 2, kind: input, shape index: {}]
  %s3 = inlined_call_operand.vmem [shape: f32[32,128], index: 3, kind: output, shape index: {}]
  %s4 = sld [smem:[#allocation0]]
  $region30: #{_lambda_.113} parent=0
    _
  %s6 = ssub.s32 1, %s4
  %s7 = scalar_select 0, %s6, %s4
  // Predicated region
  $region2: #{_lambda_.113} parent=0 // pred_check
    _
  $region3: #{_lambda_.113} parent=0 // pred_check_branch
    %9 = sbr.rel (0) target = $region5
  $region4: #{_lambda_.113} parent=0 // pred_region
    _
  $region5: #{_lambda_.113} parent=0 // pred_fallthru
    _
  // Predicated region
  $region6: #{_lambda_.113} parent=0 // pred_check
    _
  $region7: #{_lambda_.113} parent=0 // pred_check_branch
    %11 = sbr.rel (0) target = $region9
  $region8: #{_lambda_.113} parent=0 // pred_region
    _
  $region9: #{_lambda_.113} parent=0 // pred_fallthru
    _
  // Predicated region
  $region10: #{_lambda_.113} parent=0 // pred_check
    _
  $region11: #{_lambda_.113} parent=0 // pred_check_branch
    %13 = sbr.rel (0) target = $region13
  $region12: #{_lambda_.113} parent=0 // pred_region
    _
  $region13: #{_lambda_.113} parent=0 // pred_fallthru
    _
  %p15 = scmp.eq.s32.totalorder 0, 0
  // Predicated region
  $region14: #{_lambda_.113} parent=0 // pred_check
    %p16 = pneg %p15
  $region15: #{_lambda_.113} parent=0 // pred_check_branch
    %18 = sbr.rel (%p16) target = $region17
  $region16: #{_lambda_.113} parent=0 // pred_region
    %19 = vst [vmem:[#allocation2] sm:$0xff] 0.0
    %20 = vst [vmem:[#allocation2 + $0x8] sm:$0xff] 0.0
    %21 = vst [vmem:[#allocation2 + $0x10] sm:$0xff] 0.0
    %22 = vst [vmem:[#allocation2 + $0x18] sm:$0xff] 0.0
  $region17: #{_lambda_.113} parent=0 // pred_fallthru
    _
  %v23 = vld [vmem:[#allocation2] sm:$0xff]
  %v24 = vld [vmem:[#allocation2 + $0x8] sm:$0xff]
  %v25 = vld [vmem:[#allocation2 + $0x10] sm:$0xff]
  %v26 = vld [vmem:[#allocation2 + $0x18] sm:$0xff]
  %v27 = vld [vmem:[%s0] sm:$0xf]
  %v28 = vld [vmem:[%s0 + $0x4] sm:$0xf]
  %v29 = vld [vmem:[%s0 + $0x8] sm:$0xf]
  %v30 = vld [vmem:[%s0 + $0xc] sm:$0xf]
  %v31 = vld [vmem:[%s1] sm:$0xf]
  %v32 = vld [vmem:[%s1 + $0x4] sm:$0xf]
  %v33 = vld [vmem:[%s1 + $0x8] sm:$0xf]
  %v34 = vld [vmem:[%s1 + $0xc] sm:$0xf]
  %v35 = vld [vmem:[%s1 + $0x10] sm:$0xf]
  %v36 = vld [vmem:[%s1 + $0x14] sm:$0xf]
  %v37 = vld [vmem:[%s1 + $0x18] sm:$0xf]
  %v38 = vld [vmem:[%s1 + $0x1c] sm:$0xf]
  %v43 = vunpack.c.l.b16 %v27
  %v44 = vunpack.c.l.b16 %v28
  %v45 = vunpack.c.l.b16 %v29
  %v46 = vunpack.c.l.b16 %v30
  %v47 = vpack.c.b16 %v44, %v43
  %v48 = vpack.c.b16 %v46, %v45
  %v57 = vunpack.c.l.b16 %v31
  %v58 = vunpack.c.l.b16 %v32
  %v59 = vunpack.c.l.b16 %v33
  %v60 = vunpack.c.l.b16 %v34
  %v61 = vunpack.c.l.b16 %v35
  %v62 = vunpack.c.l.b16 %v36
  %v63 = vunpack.c.l.b16 %v37
  %v64 = vunpack.c.l.b16 %v38
  %v65 = vpack.c.b16 %v58, %v57
  %v66 = vpack.c.b16 %v60, %v59
  %v67 = vpack.c.b16 %v62, %v61
  %v68 = vpack.c.b16 %v64, %v63
  %vm73 = vcmask 523264
  %v75 = vsel %vm73, %v47, 0
  %v78 = vsel %vm73, %v48, 0
  %80 = vmatprep.subr.bf16.mxu0 0
  %81 = vmatpush1.bf16.msra.mxu0 %v65
  %82 = vmatprep.subr.bf16.mxu0 0
  %83 = vmatpush1.bf16.msra.mxu0 %v66
  %84 = vmatprep.subr.bf16.mxu0 0
  %85 = vmatpush1.bf16.msra.mxu0 %v67
  %86 = vmatprep.subr.bf16.mxu0 0
  %87 = vmatpush1.bf16.msra.mxu0 %v68
  %88 = vmatprep.subr.bf16.mxu0 0
  %89 = vmatpush1.bf16.msra.mxu0 0
  %90 = vmatprep.subr.bf16.mxu0 0
  %91 = vmatpush1.bf16.msra.mxu0 0
  %92 = vmatprep.subr.bf16.mxu0 0
  %93 = vmatpush1.bf16.msra.mxu0 0
  %94 = vmatprep.subr.bf16.mxu0 0
  %95 = vmatpush1.bf16.msra.mxu0 0
  %96 = vmatprep.subr.bf16.mxu0 0
  %97 = vmatpush1.bf16.msra.mxu0 0
  %98 = vmatprep.subr.bf16.mxu0 0
  %99 = vmatpush1.bf16.msra.mxu0 0
  %100 = vmatprep.subr.bf16.mxu0 0
  %101 = vmatpush1.bf16.msra.mxu0 0
  %102 = vmatprep.subr.bf16.mxu0 0
  %103 = vmatpush1.bf16.msra.mxu0 0
  %104 = vmatprep.subr.bf16.mxu0 0
  %105 = vmatpush1.bf16.msra.mxu0 0
  %106 = vmatprep.subr.bf16.mxu0 0
  %107 = vmatpush1.bf16.msra.mxu0 0
  %108 = vmatprep.subr.bf16.mxu0 0
  %109 = vmatpush1.bf16.msra.mxu0 0
  %110 = vmatprep.subr.bf16.mxu0 0
  %111 = vmatpush1.bf16.msra.mxu0 0
  %112 = vmatprep.mubr.bf16.mxu0 0
  %113 = vmatmul.mubr.bf16.gmra.mrb[0].mxu0 %v75
  %v114 = vpop.f32.mrb[0].mxu0
  %v115 = vadd.f32 0.0, %v114
  %v116 = vpop.f32.mrb[0].mxu0
  %v117 = vpop.f32.mrb[0].mxu0
  %v118 = vadd.f32 0.0, %v117
  %v119 = vpop.f32.mrb[0].mxu0
  %120 = vmatprep.mubr.bf16.mxu0 0
  %121 = vmatmul.mubr.bf16.gmra.mrb[0].mxu0 %v78
  %v122 = vpop.f32.mrb[0].mxu0
  %v123 = vadd.f32 0.0, %v122
  %v124 = vpop.f32.mrb[0].mxu0
  %v125 = vpop.f32.mrb[0].mxu0
  %v126 = vadd.f32 0.0, %v125
  %v127 = vpop.f32.mrb[0].mxu0
  %128 = vdwg.mxu0
  %v129 = vadd.f32 %v23, %v115
  %v130 = vadd.f32 %v24, %v118
  %v131 = vadd.f32 %v25, %v123
  %v132 = vadd.f32 %v26, %v126
  %133 = vst [vmem:[#allocation2] sm:$0xff] %v129
  %134 = vst [vmem:[#allocation2 + $0x8] sm:$0xff] %v130
  %135 = vst [vmem:[#allocation2 + $0x10] sm:$0xff] %v131
  %136 = vst [vmem:[#allocation2 + $0x18] sm:$0xff] %v132
  // Predicated region
  $region18: #{_lambda_.113} parent=0 // pred_check
    %p137 = pneg %p15
  $region19: #{_lambda_.113} parent=0 // pred_check_branch
    %139 = sbr.rel (%p137) target = $region21
  $region20: #{_lambda_.113} parent=0 // pred_region
    %v140 = vld [vmem:[#allocation2] sm:$0xff]
    %v141 = vld [vmem:[#allocation2 + $0x8] sm:$0xff]
    %v142 = vld [vmem:[#allocation2 + $0x10] sm:$0xff]
    %v143 = vld [vmem:[#allocation2 + $0x18] sm:$0xff]
    %v144 = vld [vmem:[%s2] sm:$0x1]
    %v146 = vlaneseq
    %v147 = vshrl.u32 %v146, 7
    %v148 = vsub.s32 0, %v147
    %v149 = vrot.slane %v144, %v148
    %v151 = vadd.f32 %v140, %v149
    %v152 = vadd.f32 %v141, %v149
    %v153 = vadd.f32 %v142, %v149
    %v154 = vadd.f32 %v143, %v149
    %v155 = vmax.f32 %v151, 0.0
    %v156 = vmax.f32 %v152, 0.0
    %v157 = vmax.f32 %v153, 0.0
    %v158 = vmax.f32 %v154, 0.0
    %159 = vst [vmem:[%s3] sm:$0xff] %v155
    %160 = vst [vmem:[%s3 + $0x8] sm:$0xff] %v156
    %161 = vst [vmem:[%s3 + $0x10] sm:$0xff] %v157
    %162 = vst [vmem:[%s3 + $0x18] sm:$0xff] %v158
  $region21: #{_lambda_.113} parent=0 // pred_fallthru
    _
  // Predicated region
  $region22: #{_lambda_.113} parent=0 // pred_check
    _
  $region23: #{_lambda_.113} parent=0 // pred_check_branch
    %164 = sbr.rel (0) target = $region25
  $region24: #{_lambda_.113} parent=0 // pred_region
    _
  $region25: #{_lambda_.113} parent=0 // pred_fallthru
    _
  // Predicated region
  $region26: #{_lambda_.113} parent=0 // pred_check
    _
  $region27: #{_lambda_.113} parent=0 // pred_check_branch
    %166 = sbr.rel (0) target = $region29
  $region28: #{_lambda_.113} parent=0 // pred_region
    _
  $region29: #{_lambda_.113} parent=0 // pred_fallthru
    _

// kernel: _lambda_.111
$region0: #{_lambda_.111}
  #allocation0 [shape = 'u32[]', space=smem, size = 0x4, offset = 0x4, fixed_abs, tag = 'smem constant byte address 0x4 - core index']
  #allocation1 [shape = 'u32[144,128]{1,0:T(1,128)}', space=vmem, size = 0x12000, scoped, tag = 'internal scratch']
  #allocation2 [shape = 'f32[128,128]{1,0:T(8,128)}', space=vmem, size = 0x10000, scoped, tag = 'scratch operand']
  %s0 = inlined_call_operand.vmem [shape: bf16[128,80], index: 0, kind: input, shape index: {}]
  %s1 = inlined_call_operand.vmem [shape: bf16[80,128], index: 1, kind: input, shape index: {}]
  %s2 = inlined_call_operand.vmem [shape: f32[1,128], index: 2, kind: input, shape index: {}]
  %s3 = inlined_call_operand.vmem [shape: f32[128,128], index: 3, kind: output, shape index: {}]
  %s4 = sld [smem:[#allocation0]]
  $region30: #{_lambda_.111} parent=0
    _
  %s6 = ssub.s32 1, %s4
  %s7 = scalar_select 0, %s6, %s4
  // Predicated region
  $region2: #{_lambda_.111} parent=0 // pred_check
    _
  $region3: #{_lambda_.111} parent=0 // pred_check_branch
    %9 = sbr.rel (0) target = $region5
  $region4: #{_lambda_.111} parent=0 // pred_region
    _
  $region5: #{_lambda_.111} parent=0 // pred_fallthru
    _
  // Predicated region
  $region6: #{_lambda_.111} parent=0 // pred_check
    _
  $region7: #{_lambda_.111} parent=0 // pred_check_branch
    %11 = sbr.rel (0) target = $region9
  $region8: #{_lambda_.111} parent=0 // pred_region
    _
  $region9: #{_lambda_.111} parent=0 // pred_fallthru
    _
  // Predicated region
  $region10: #{_lambda_.111} parent=0 // pred_check
    _
  $region11: #{_lambda_.111} parent=0 // pred_check_branch
    %13 = sbr.rel (0) target = $region13
  $region12: #{_lambda_.111} parent=0 // pred_region
    _
  $region13: #{_lambda_.111} parent=0 // pred_fallthru
    _
  %p15 = scmp.eq.s32.totalorder 0, 0
  // Predicated region
  $region14: #{_lambda_.111} parent=0 // pred_check
    %p16 = pneg %p15
  $region15: #{_lambda_.111} parent=0 // pred_check_branch
    %18 = sbr.rel (%p16) target = $region17
  $region16: #{_lambda_.111} parent=0 // pred_region
    %19 = vst [vmem:[#allocation2] sm:$0xff] 0.0
    %20 = vst [vmem:[#allocation2 + $0x8] sm:$0xff] 0.0
    %21 = vst [vmem:[#allocation2 + $0x10] sm:$0xff] 0.0
    %22 = vst [vmem:[#allocation2 + $0x18] sm:$0xff] 0.0
    %23 = vst [vmem:[#allocation2 + $0x20] sm:$0xff] 0.0
    %24 = vst [vmem:[#allocation2 + $0x28] sm:$0xff] 0.0
    %25 = vst [vmem:[#allocation2 + $0x30] sm:$0xff] 0.0
    %26 = vst [vmem:[#allocation2 + $0x38] sm:$0xff] 0.0
    %27 = vst [vmem:[#allocation2 + $0x40] sm:$0xff] 0.0
    %28 = vst [vmem:[#allocation2 + $0x48] sm:$0xff] 0.0
    %29 = vst [vmem:[#allocation2 + $0x50] sm:$0xff] 0.0
    %30 = vst [vmem:[#allocation2 + $0x58] sm:$0xff] 0.0
    %31 = vst [vmem:[#allocation2 + $0x60] sm:$0xff] 0.0
    %32 = vst [vmem:[#allocation2 + $0x68] sm:$0xff] 0.0
    %33 = vst [vmem:[#allocation2 + $0x70] sm:$0xff] 0.0
    %34 = vst [vmem:[#allocation2 + $0x78] sm:$0xff] 0.0
  $region17: #{_lambda_.111} parent=0 // pred_fallthru
    _
  %v35 = vld [vmem:[#allocation2] sm:$0xff]
  %v36 = vld [vmem:[#allocation2 + $0x8] sm:$0xff]
  %v37 = vld [vmem:[#allocation2 + $0x10] sm:$0xff]
  %v38 = vld [vmem:[#allocation2 + $0x18] sm:$0xff]
  %v39 = vld [vmem:[#allocation2 + $0x20] sm:$0xff]
  %v40 = vld [vmem:[#allocation2 + $0x28] sm:$0xff]
  %v41 = vld [vmem:[#allocation2 + $0x30] sm:$0xff]
  %v42 = vld [vmem:[#allocation2 + $0x38] sm:$0xff]
  %v43 = vld [vmem:[#allocation2 + $0x40] sm:$0xff]
  %v44 = vld [vmem:[#allocation2 + $0x48] sm:$0xff]
  %v45 = vld [vmem:[#allocation2 + $0x50] sm:$0xff]
  %v46 = vld [vmem:[#allocation2 + $0x58] sm:$0xff]
  %v47 = vld [vmem:[#allocation2 + $0x60] sm:$0xff]
  %v48 = vld [vmem:[#allocation2 + $0x68] sm:$0xff]
  %v49 = vld [vmem:[#allocation2 + $0x70] sm:$0xff]
  %v50 = vld [vmem:[#allocation2 + $0x78] sm:$0xff]
  %v51 = vld [vmem:[%s0] sm:$0xf]
  %v52 = vld [vmem:[%s0 + $0x4] sm:$0xf]
  %v53 = vld [vmem:[%s0 + $0x8] sm:$0xf]
  %v54 = vld [vmem:[%s0 + $0xc] sm:$0xf]
  %v55 = vld [vmem:[%s0 + $0x10] sm:$0xf]
  %v56 = vld [vmem:[%s0 + $0x14] sm:$0xf]
  %v57 = vld [vmem:[%s0 + $0x18] sm:$0xf]
  %v58 = vld [vmem:[%s0 + $0x1c] sm:$0xf]
  %v59 = vld [vmem:[%s0 + $0x20] sm:$0xf]
  %v60 = vld [vmem:[%s0 + $0x24] sm:$0xf]
  %v61 = vld [vmem:[%s0 + $0x28] sm:$0xf]
  %v62 = vld [vmem:[%s0 + $0x2c] sm:$0xf]
  %v63 = vld [vmem:[%s0 + $0x30] sm:$0xf]
  %v64 = vld [vmem:[%s0 + $0x34] sm:$0xf]
  %v65 = vld [vmem:[%s0 + $0x38] sm:$0xf]
  %v66 = vld [vmem:[%s0 + $0x3c] sm:$0xf]
  %v67 = vld [vmem:[%s1] sm:$0xf]
  %v68 = vld [vmem:[%s1 + $0x4] sm:$0xf]
  %v69 = vld [vmem:[%s1 + $0x8] sm:$0xf]
  %v70 = vld [vmem:[%s1 + $0xc] sm:$0xf]
  %v71 = vld [vmem:[%s1 + $0x10] sm:$0xf]
  %v72 = vld [vmem:[%s1 + $0x14] sm:$0xf]
  %v73 = vld [vmem:[%s1 + $0x18] sm:$0xf]
  %v74 = vld [vmem:[%s1 + $0x1c] sm:$0xf]
  %v75 = vld [vmem:[%s1 + $0x20] sm:$0xf]
  %v76 = vld [vmem:[%s1 + $0x24] sm:$0xf]
  %v93 = vunpack.c.l.b16 %v51
  %v94 = vunpack.c.l.b16 %v52
  %v95 = vunpack.c.l.b16 %v53
  %v96 = vunpack.c.l.b16 %v54
  %v97 = vunpack.c.l.b16 %v55
  %v98 = vunpack.c.l.b16 %v56
  %v99 = vunpack.c.l.b16 %v57
  %v100 = vunpack.c.l.b16 %v58
  %v101 = vunpack.c.l.b16 %v59
  %v102 = vunpack.c.l.b16 %v60
  %v103 = vunpack.c.l.b16 %v61
  %v104 = vunpack.c.l.b16 %v62
  %v105 = vunpack.c.l.b16 %v63
  %v106 = vunpack.c.l.b16 %v64
  %v107 = vunpack.c.l.b16 %v65
  %v108 = vunpack.c.l.b16 %v66
  %v109 = vpack.c.b16 %v94, %v93
  %v110 = vpack.c.b16 %v96, %v95
  %v111 = vpack.c.b16 %v98, %v97
  %v112 = vpack.c.b16 %v100, %v99
  %v113 = vpack.c.b16 %v102, %v101
  %v114 = vpack.c.b16 %v104, %v103
  %v115 = vpack.c.b16 %v106, %v105
  %v116 = vpack.c.b16 %v108, %v107
  %v127 = vunpack.c.l.b16 %v67
  %v128 = vunpack.c.l.b16 %v68
  %v129 = vunpack.c.l.b16 %v69
  %v130 = vunpack.c.l.b16 %v70
  %v131 = vunpack.c.l.b16 %v71
  %v132 = vunpack.c.l.b16 %v72
  %v133 = vunpack.c.l.b16 %v73
  %v134 = vunpack.c.l.b16 %v74
  %v135 = vunpack.c.l.b16 %v75
  %v136 = vunpack.c.l.b16 %v76
  %v137 = vpack.c.b16 %v128, %v127
  %v138 = vpack.c.b16 %v130, %v129
  %v139 = vpack.c.b16 %v132, %v131
  %v140 = vpack.c.b16 %v134, %v133
  %v141 = vpack.c.b16 %v136, %v135
  %vm147 = vcmask 654336
  %v149 = vsel %vm147, %v109, 0
  %v152 = vsel %vm147, %v110, 0
  %v155 = vsel %vm147, %v111, 0
  %v158 = vsel %vm147, %v112, 0
  %v161 = vsel %vm147, %v113, 0
  %v164 = vsel %vm147, %v114, 0
  %v167 = vsel %vm147, %v115, 0
  %v170 = vsel %vm147, %v116, 0
  %172 = vmatprep.subr.bf16.mxu0 0
  %173 = vmatpush1.bf16.msra.mxu0 %v137
  %174 = vmatprep.subr.bf16.mxu0 0
  %175 = vmatpush1.bf16.msra.mxu0 %v138
  %176 = vmatprep.subr.bf16.mxu0 0
  %177 = vmatpush1.bf16.msra.mxu0 %v139
  %178 = vmatprep.subr.bf16.mxu0 0
  %179 = vmatpush1.bf16.msra.mxu0 %v140
  %180 = vmatprep.subr.bf16.mxu0 0
  %181 = vmatpush1.bf16.msra.mxu0 %v141
  %182 = vmatprep.subr.bf16.mxu0 0
  %183 = vmatpush1.bf16.msra.mxu0 0
  %184 = vmatprep.subr.bf16.mxu0 0
  %185 = vmatpush1.bf16.msra.mxu0 0
  %186 = vmatprep.subr.bf16.mxu0 0
  %187 = vmatpush1.bf16.msra.mxu0 0
  %188 = vmatprep.subr.bf16.mxu0 0
  %189 = vmatpush1.bf16.msra.mxu0 0
  %190 = vmatprep.subr.bf16.mxu0 0
  %191 = vmatpush1.bf16.msra.mxu0 0
  %192 = vmatprep.subr.bf16.mxu0 0
  %193 = vmatpush1.bf16.msra.mxu0 0
  %194 = vmatprep.subr.bf16.mxu0 0
  %195 = vmatpush1.bf16.msra.mxu0 0
  %196 = vmatprep.subr.bf16.mxu0 0
  %197 = vmatpush1.bf16.msra.mxu0 0
  %198 = vmatprep.subr.bf16.mxu0 0
  %199 = vmatpush1.bf16.msra.mxu0 0
  %200 = vmatprep.subr.bf16.mxu0 0
  %201 = vmatpush1.bf16.msra.mxu0 0
  %202 = vmatprep.subr.bf16.mxu0 0
  %203 = vmatpush1.bf16.msra.mxu0 0
  %204 = vmatprep.mubr.bf16.mxu0 0
  %205 = vmatmul.mubr.bf16.gmra.mrb[0].mxu0 %v149
  %v206 = vpop.f32.mrb[0].mxu0
  %v207 = vadd.f32 0.0, %v206
  %v208 = vpop.f32.mrb[0].mxu0
  %v209 = vpop.f32.mrb[0].mxu0
  %v210 = vadd.f32 0.0, %v209
  %v211 = vpop.f32.mrb[0].mxu0
  %212 = vmatprep.mubr.bf16.mxu0 0
  %213 = vmatmul.mubr.bf16.gmra.mrb[0].mxu0 %v152
  %v214 = vpop.f32.mrb[0].mxu0
  %v215 = vadd.f32 0.0, %v214
  %v216 = vpop.f32.mrb[0].mxu0
  %v217 = vpop.f32.mrb[0].mxu0
  %v218 = vadd.f32 0.0, %v217
  %v219 = vpop.f32.mrb[0].mxu0
  %220 = vmatprep.mubr.bf16.mxu0 0
  %221 = vmatmul.mubr.bf16.gmra.mrb[0].mxu0 %v155
  %v222 = vpop.f32.mrb[0].mxu0
  %v223 = vadd.f32 0.0, %v222
  %v224 = vpop.f32.mrb[0].mxu0
  %v225 = vpop.f32.mrb[0].mxu0
  %v226 = vadd.f32 0.0, %v225
  %v227 = vpop.f32.mrb[0].mxu0
  %228 = vmatprep.mubr.bf16.mxu0 0
  %229 = vmatmul.mubr.bf16.gmra.mrb[0].mxu0 %v158
  %v230 = vpop.f32.mrb[0].mxu0
  %v231 = vadd.f32 0.0, %v230
  %v232 = vpop.f32.mrb[0].mxu0
  %v233 = vpop.f32.mrb[0].mxu0
  %v234 = vadd.f32 0.0, %v233
  %v235 = vpop.f32.mrb[0].mxu0
  %236 = vmatprep.mubr.bf16.mxu0 0
  %237 = vmatmul.mubr.bf16.gmra.mrb[0].mxu0 %v161
  %v238 = vpop.f32.mrb[0].mxu0
  %v239 = vadd.f32 0.0, %v238
  %v240 = vpop.f32.mrb[0].mxu0
  %v241 = vpop.f32.mrb[0].mxu0
  %v242 = vadd.f32 0.0, %v241
  %v243 = vpop.f32.mrb[0].mxu0
  %244 = vmatprep.mubr.bf16.mxu0 0
  %245 = vmatmul.mubr.bf16.gmra.mrb[0].mxu0 %v164
  %v246 = vpop.f32.mrb[0].mxu0
  %v247 = vadd.f32 0.0, %v246
  %v248 = vpop.f32.mrb[0].mxu0
  %v249 = vpop.f32.mrb[0].mxu0
  %v250 = vadd.f32 0.0, %v249
  %v251 = vpop.f32.mrb[0].mxu0
  %252 = vmatprep.mubr.bf16.mxu0 0
  %253 = vmatmul.mubr.bf16.gmra.mrb[0].mxu0 %v167
  %v254 = vpop.f32.mrb[0].mxu0
  %v255 = vadd.f32 0.0, %v254
  %v256 = vpop.f32.mrb[0].mxu0
  %v257 = vpop.f32.mrb[0].mxu0
  %v258 = vadd.f32 0.0, %v257
  %v259 = vpop.f32.mrb[0].mxu0
  %260 = vmatprep.mubr.bf16.mxu0 0
  %261 = vmatmul.mubr.bf16.gmra.mrb[0].mxu0 %v170
  %v262 = vpop.f32.mrb[0].mxu0
  %v263 = vadd.f32 0.0, %v262
  %v264 = vpop.f32.mrb[0].mxu0
  %v265 = vpop.f32.mrb[0].mxu0
  %v266 = vadd.f32 0.0, %v265
  %v267 = vpop.f32.mrb[0].mxu0
  %268 = vdwg.mxu0
  %v269 = vadd.f32 %v35, %v207
  %v270 = vadd.f32 %v36, %v210
  %v271 = vadd.f32 %v37, %v215
  %v272 = vadd.f32 %v38, %v218
  %v273 = vadd.f32 %v39, %v223
  %v274 = vadd.f32 %v40, %v226
  %v275 = vadd.f32 %v41, %v231
  %v276 = vadd.f32 %v42, %v234
  %v277 = vadd.f32 %v43, %v239
  %v278 = vadd.f32 %v44, %v242
  %v279 = vadd.f32 %v45, %v247
  %v280 = vadd.f32 %v46, %v250
  %v281 = vadd.f32 %v47, %v255
  %v282 = vadd.f32 %v48, %v258
  %v283 = vadd.f32 %v49, %v263
  %v284 = vadd.f32 %v50, %v266
  %285 = vst [vmem:[#allocation2] sm:$0xff] %v269
  %286 = vst [vmem:[#allocation2 + $0x8] sm:$0xff] %v270
  %287 = vst [vmem:[#allocation2 + $0x10] sm:$0xff] %v271
  %288 = vst [vmem:[#allocation2 + $0x18] sm:$0xff] %v272
  %289 = vst [vmem:[#allocation2 + $0x20] sm:$0xff] %v273
  %290 = vst [vmem:[#allocation2 + $0x28] sm:$0xff] %v274
  %291 = vst [vmem:[#allocation2 + $0x30] sm:$0xff] %v275
  %292 = vst [vmem:[#allocation2 + $0x38] sm:$0xff] %v276
  %293 = vst [vmem:[#allocation2 + $0x40] sm:$0xff] %v277
  %294 = vst [vmem:[#allocation2 + $0x48] sm:$0xff] %v278
  %295 = vst [vmem:[#allocation2 + $0x50] sm:$0xff] %v279
  %296 = vst [vmem:[#allocation2 + $0x58] sm:$0xff] %v280
  %297 = vst [vmem:[#allocation2 + $0x60] sm:$0xff] %v281
  %298 = vst [vmem:[#allocation2 + $0x68] sm:$0xff] %v282
  %299 = vst [vmem:[#allocation2 + $0x70] sm:$0xff] %v283
  %300 = vst [vmem:[#allocation2 + $0x78] sm:$0xff] %v284
  // Predicated region
  $region18: #{_lambda_.111} parent=0 // pred_check
    %p301 = pneg %p15
  $region19: #{_lambda_.111} parent=0 // pred_check_branch
    %303 = sbr.rel (%p301) target = $region21
  $region20: #{_lambda_.111} parent=0 // pred_region
    %v304 = vld [vmem:[#allocation2] sm:$0xff]
    %v305 = vld [vmem:[#allocation2 + $0x8] sm:$0xff]
    %v306 = vld [vmem:[#allocation2 + $0x10] sm:$0xff]
    %v307 = vld [vmem:[#allocation2 + $0x18] sm:$0xff]
    %v308 = vld [vmem:[#allocation2 + $0x20] sm:$0xff]
    %v309 = vld [vmem:[#allocation2 + $0x28] sm:$0xff]
    %v310 = vld [vmem:[#allocation2 + $0x30] sm:$0xff]
    %v311 = vld [vmem:[#allocation2 + $0x38] sm:$0xff]
    %v312 = vld [vmem:[#allocation2 + $0x40] sm:$0xff]
    %v313 = vld [vmem:[#allocation2 + $0x48] sm:$0xff]
    %v314 = vld [vmem:[#allocation2 + $0x50] sm:$0xff]
    %v315 = vld [vmem:[#allocation2 + $0x58] sm:$0xff]
    %v316 = vld [vmem:[#allocation2 + $0x60] sm:$0xff]
    %v317 = vld [vmem:[#allocation2 + $0x68] sm:$0xff]
    %v318 = vld [vmem:[#allocation2 + $0x70] sm:$0xff]
    %v319 = vld [vmem:[#allocation2 + $0x78] sm:$0xff]
    %v320 = vld [vmem:[%s2] sm:$0x1]
    %v322 = vlaneseq
    %v323 = vshrl.u32 %v322, 7
    %v324 = vsub.s32 0, %v323
    %v325 = vrot.slane %v320, %v324
    %v327 = vadd.f32 %v304, %v325
    %v328 = vadd.f32 %v305, %v325
    %v329 = vadd.f32 %v306, %v325
    %v330 = vadd.f32 %v307, %v325
    %v331 = vadd.f32 %v308, %v325
    %v332 = vadd.f32 %v309, %v325
    %v333 = vadd.f32 %v310, %v325
    %v334 = vadd.f32 %v311, %v325
    %v335 = vadd.f32 %v312, %v325
    %v336 = vadd.f32 %v313, %v325
    %v337 = vadd.f32 %v314, %v325
    %v338 = vadd.f32 %v315, %v325
    %v339 = vadd.f32 %v316, %v325
    %v340 = vadd.f32 %v317, %v325
    %v341 = vadd.f32 %v318, %v325
    %v342 = vadd.f32 %v319, %v325
    %v343 = vmax.f32 %v327, 0.0
    %v344 = vmax.f32 %v328, 0.0
    %v345 = vmax.f32 %v329, 0.0
    %v346 = vmax.f32 %v330, 0.0
    %v347 = vmax.f32 %v331, 0.0
    %v348 = vmax.f32 %v332, 0.0
    %v349 = vmax.f32 %v333, 0.0
    %v350 = vmax.f32 %v334, 0.0
    %v351 = vmax.f32 %v335, 0.0
    %v352 = vmax.f32 %v336, 0.0
    %v353 = vmax.f32 %v337, 0.0
    %v354 = vmax.f32 %v338, 0.0
    %v355 = vmax.f32 %v339, 0.0
    %v356 = vmax.f32 %v340, 0.0
    %v357 = vmax.f32 %v341, 0.0
    %v358 = vmax.f32 %v342, 0.0
    %359 = vst [vmem:[%s3] sm:$0xff] %v343
    %360 = vst [vmem:[%s3 + $0x8] sm:$0xff] %v344
    %361 = vst [vmem:[%s3 + $0x10] sm:$0xff] %v345
    %362 = vst [vmem:[%s3 + $0x18] sm:$0xff] %v346
    %363 = vst [vmem:[%s3 + $0x20] sm:$0xff] %v347
    %364 = vst [vmem:[%s3 + $0x28] sm:$0xff] %v348
    %365 = vst [vmem:[%s3 + $0x30] sm:$0xff] %v349
    %366 = vst [vmem:[%s3 + $0x38] sm:$0xff] %v350
    %367 = vst [vmem:[%s3 + $0x40] sm:$0xff] %v351
    %368 = vst [vmem:[%s3 + $0x48] sm:$0xff] %v352
    %369 = vst [vmem:[%s3 + $0x50] sm:$0xff] %v353
    %370 = vst [vmem:[%s3 + $0x58] sm:$0xff] %v354
    %371 = vst [vmem:[%s3 + $0x60] sm:$0xff] %v355
    %372 = vst [vmem:[%s3 + $0x68] sm:$0xff] %v356
    %373 = vst [vmem:[%s3 + $0x70] sm:$0xff] %v357
    %374 = vst [vmem:[%s3 + $0x78] sm:$0xff] %v358
  $region21: #{_lambda_.111} parent=0 // pred_fallthru
    _
  // Predicated region
  $region22: #{_lambda_.111} parent=0 // pred_check
    _
  $region23: #{_lambda_.111} parent=0 // pred_check_branch
    %376 = sbr.rel (0) target = $region25
  $region24: #{_lambda_.111} parent=0 // pred_region
    _
  $region25: #{_lambda_.111} parent=0 // pred_fallthru
    _
  // Predicated region
  $region26: #{_lambda_.111} parent=0 // pred_check
    _
  $region27: #{_lambda_.111} parent=0 // pred_check_branch
    %378 = sbr.rel (0) target = $region29
  $region28: #{_lambda_.111} parent=0 // pred_region
    _
  $region29: #{_lambda_.111} parent=0 // pred_fallthru
    _

// kernel: _lambda_.115
$region0: #{_lambda_.115}
  #allocation0 [shape = 'u32[]', space=smem, size = 0x4, offset = 0x4, fixed_abs, tag = 'smem constant byte address 0x4 - core index']
  #allocation1 [shape = 'u32[144,128]{1,0:T(1,128)}', space=vmem, size = 0x12000, scoped, tag = 'internal scratch']
  #allocation2 [shape = 'f32[32,128]{1,0:T(8,128)}', space=vmem, size = 0x4000, scoped, tag = 'scratch operand']
  %s0 = inlined_call_operand.vmem [shape: bf16[32,16], index: 0, kind: input, shape index: {}]
  %s1 = inlined_call_operand.vmem [shape: bf16[16,128], index: 1, kind: input, shape index: {}]
  %s2 = inlined_call_operand.vmem [shape: f32[1,128], index: 2, kind: input, shape index: {}]
  %s3 = inlined_call_operand.vmem [shape: f32[32,128], index: 3, kind: output, shape index: {}]
  %s4 = sld [smem:[#allocation0]]
  $region30: #{_lambda_.115} parent=0
    _
  %s6 = ssub.s32 1, %s4
  %s7 = scalar_select 0, %s6, %s4
  // Predicated region
  $region2: #{_lambda_.115} parent=0 // pred_check
    _
  $region3: #{_lambda_.115} parent=0 // pred_check_branch
    %9 = sbr.rel (0) target = $region5
  $region4: #{_lambda_.115} parent=0 // pred_region
    _
  $region5: #{_lambda_.115} parent=0 // pred_fallthru
    _
  // Predicated region
  $region6: #{_lambda_.115} parent=0 // pred_check
    _
  $region7: #{_lambda_.115} parent=0 // pred_check_branch
    %11 = sbr.rel (0) target = $region9
  $region8: #{_lambda_.115} parent=0 // pred_region
    _
  $region9: #{_lambda_.115} parent=0 // pred_fallthru
    _
  // Predicated region
  $region10: #{_lambda_.115} parent=0 // pred_check
    _
  $region11: #{_lambda_.115} parent=0 // pred_check_branch
    %13 = sbr.rel (0) target = $region13
  $region12: #{_lambda_.115} parent=0 // pred_region
    _
  $region13: #{_lambda_.115} parent=0 // pred_fallthru
    _
  %p15 = scmp.eq.s32.totalorder 0, 0
  // Predicated region
  $region14: #{_lambda_.115} parent=0 // pred_check
    %p16 = pneg %p15
  $region15: #{_lambda_.115} parent=0 // pred_check_branch
    %18 = sbr.rel (%p16) target = $region17
  $region16: #{_lambda_.115} parent=0 // pred_region
    %19 = vst [vmem:[#allocation2] sm:$0xff] 0.0
    %20 = vst [vmem:[#allocation2 + $0x8] sm:$0xff] 0.0
    %21 = vst [vmem:[#allocation2 + $0x10] sm:$0xff] 0.0
    %22 = vst [vmem:[#allocation2 + $0x18] sm:$0xff] 0.0
  $region17: #{_lambda_.115} parent=0 // pred_fallthru
    _
  %v23 = vld [vmem:[#allocation2] sm:$0xff]
  %v24 = vld [vmem:[#allocation2 + $0x8] sm:$0xff]
  %v25 = vld [vmem:[#allocation2 + $0x10] sm:$0xff]
  %v26 = vld [vmem:[#allocation2 + $0x18] sm:$0xff]
  %v27 = vld [vmem:[%s0] sm:$0xf]
  %v28 = vld [vmem:[%s0 + $0x4] sm:$0xf]
  %v29 = vld [vmem:[%s0 + $0x8] sm:$0xf]
  %v30 = vld [vmem:[%s0 + $0xc] sm:$0xf]
  %v31 = vld [vmem:[%s1] sm:$0xf]
  %v32 = vld [vmem:[%s1 + $0x4] sm:$0xf]
  %v37 = vunpack.c.l.b16 %v27
  %v38 = vunpack.c.l.b16 %v28
  %v39 = vunpack.c.l.b16 %v29
  %v40 = vunpack.c.l.b16 %v30
  %v41 = vpack.c.b16 %v38, %v37
  %v42 = vpack.c.b16 %v40, %v39
  %v45 = vunpack.c.l.b16 %v31
  %v46 = vunpack.c.l.b16 %v32
  %v47 = vpack.c.b16 %v46, %v45
  %vm49 = vcmask 130048
  %v51 = vsel %vm49, %v41, 0
  %v54 = vsel %vm49, %v42, 0
  %56 = vmatprep.subr.bf16.mxu0 0
  %57 = vmatpush1.bf16.msra.mxu0 %v47
  %58 = vmatprep.subr.bf16.mxu0 0
  %59 = vmatpush1.bf16.msra.mxu0 0
  %60 = vmatprep.subr.bf16.mxu0 0
  %61 = vmatpush1.bf16.msra.mxu0 0
  %62 = vmatprep.subr.bf16.mxu0 0
  %63 = vmatpush1.bf16.msra.mxu0 0
  %64 = vmatprep.subr.bf16.mxu0 0
  %65 = vmatpush1.bf16.msra.mxu0 0
  %66 = vmatprep.subr.bf16.mxu0 0
  %67 = vmatpush1.bf16.msra.mxu0 0
  %68 = vmatprep.subr.bf16.mxu0 0
  %69 = vmatpush1.bf16.msra.mxu0 0
  %70 = vmatprep.subr.bf16.mxu0 0
  %71 = vmatpush1.bf16.msra.mxu0 0
  %72 = vmatprep.subr.bf16.mxu0 0
  %73 = vmatpush1.bf16.msra.mxu0 0
  %74 = vmatprep.subr.bf16.mxu0 0
  %75 = vmatpush1.bf16.msra.mxu0 0
  %76 = vmatprep.subr.bf16.mxu0 0
  %77 = vmatpush1.bf16.msra.mxu0 0
  %78 = vmatprep.subr.bf16.mxu0 0
  %79 = vmatpush1.bf16.msra.mxu0 0
  %80 = vmatprep.subr.bf16.mxu0 0
  %81 = vmatpush1.bf16.msra.mxu0 0
  %82 = vmatprep.subr.bf16.mxu0 0
  %83 = vmatpush1.bf16.msra.mxu0 0
  %84 = vmatprep.subr.bf16.mxu0 0
  %85 = vmatpush1.bf16.msra.mxu0 0
  %86 = vmatprep.subr.bf16.mxu0 0
  %87 = vmatpush1.bf16.msra.mxu0 0
  %88 = vmatprep.mubr.bf16.mxu0 0
  %89 = vmatmul.mubr.bf16.gmra.mrb[0].mxu0 %v51
  %v90 = vpop.f32.mrb[0].mxu0
  %v91 = vadd.f32 0.0, %v90
  %v92 = vpop.f32.mrb[0].mxu0
  %v93 = vpop.f32.mrb[0].mxu0
  %v94 = vadd.f32 0.0, %v93
  %v95 = vpop.f32.mrb[0].mxu0
  %96 = vmatprep.mubr.bf16.mxu0 0
  %97 = vmatmul.mubr.bf16.gmra.mrb[0].mxu0 %v54
  %v98 = vpop.f32.mrb[0].mxu0
  %v99 = vadd.f32 0.0, %v98
  %v100 = vpop.f32.mrb[0].mxu0
  %v101 = vpop.f32.mrb[0].mxu0
  %v102 = vadd.f32 0.0, %v101
  %v103 = vpop.f32.mrb[0].mxu0
  %104 = vdwg.mxu0
  %v105 = vadd.f32 %v23, %v91
  %v106 = vadd.f32 %v24, %v94
  %v107 = vadd.f32 %v25, %v99
  %v108 = vadd.f32 %v26, %v102
  %109 = vst [vmem:[#allocation2] sm:$0xff] %v105
  %110 = vst [vmem:[#allocation2 + $0x8] sm:$0xff] %v106
  %111 = vst [vmem:[#allocation2 + $0x10] sm:$0xff] %v107
  %112 = vst [vmem:[#allocation2 + $0x18] sm:$0xff] %v108
  // Predicated region
  $region18: #{_lambda_.115} parent=0 // pred_check
    %p113 = pneg %p15
  $region19: #{_lambda_.115} parent=0 // pred_check_branch
    %115 = sbr.rel (%p113) target = $region21
  $region20: #{_lambda_.115} parent=0 // pred_region
    %v116 = vld [vmem:[#allocation2] sm:$0xff]
    %v117 = vld [vmem:[#allocation2 + $0x8] sm:$0xff]
    %v118 = vld [vmem:[#allocation2 + $0x10] sm:$0xff]
    %v119 = vld [vmem:[#allocation2 + $0x18] sm:$0xff]
    %v120 = vld [vmem:[%s2] sm:$0x1]
    %v122 = vlaneseq
    %v123 = vshrl.u32 %v122, 7
    %v124 = vsub.s32 0, %v123
    %v125 = vrot.slane %v120, %v124
    %v127 = vadd.f32 %v116, %v125
    %v128 = vadd.f32 %v117, %v125
    %v129 = vadd.f32 %v118, %v125
    %v130 = vadd.f32 %v119, %v125
    %v131 = vmax.f32 %v127, 0.0
    %v132 = vmax.f32 %v128, 0.0
    %v133 = vmax.f32 %v129, 0.0
    %v134 = vmax.f32 %v130, 0.0
    %135 = vst [vmem:[%s3] sm:$0xff] %v131
    %136 = vst [vmem:[%s3 + $0x8] sm:$0xff] %v132
    %137 = vst [vmem:[%s3 + $0x10] sm:$0xff] %v133
    %138 = vst [vmem:[%s3 + $0x18] sm:$0xff] %v134
  $region21: #{_lambda_.115} parent=0 // pred_fallthru
    _
  // Predicated region
  $region22: #{_lambda_.115} parent=0 // pred_check
    _
  $region23: #{_lambda_.115} parent=0 // pred_check_branch
    %140 = sbr.rel (0) target = $region25
  $region24: #{_lambda_.115} parent=0 // pred_region
    _
  $region25: #{_lambda_.115} parent=0 // pred_fallthru
    _
  // Predicated region
  $region26: #{_lambda_.115} parent=0 // pred_check
    _
  $region27: #{_lambda_.115} parent=0 // pred_check_branch
    %142 = sbr.rel (0) target = $region29
  $region28: #{_lambda_.115} parent=0 // pred_region
    _
  $region29: #{_lambda_.115} parent=0 // pred_fallthru
    _

// kernel: _lambda_.114
$region0: #{_lambda_.114}
  #allocation0 [shape = 'u32[]', space=smem, size = 0x4, offset = 0x4, fixed_abs, tag = 'smem constant byte address 0x4 - core index']
  #allocation1 [shape = 'u32[144,128]{1,0:T(1,128)}', space=vmem, size = 0x12000, scoped, tag = 'internal scratch']
  #allocation2 [shape = 'f32[32,128]{1,0:T(8,128)}', space=vmem, size = 0x4000, scoped, tag = 'scratch operand']
  %s0 = inlined_call_operand.vmem [shape: bf16[32,32], index: 0, kind: input, shape index: {}]
  %s1 = inlined_call_operand.vmem [shape: bf16[32,128], index: 1, kind: input, shape index: {}]
  %s2 = inlined_call_operand.vmem [shape: f32[1,128], index: 2, kind: input, shape index: {}]
  %s3 = inlined_call_operand.vmem [shape: f32[32,128], index: 3, kind: output, shape index: {}]
  %s4 = sld [smem:[#allocation0]]
  $region30: #{_lambda_.114} parent=0
    _
  %s6 = ssub.s32 1, %s4
  %s7 = scalar_select 0, %s6, %s4
  // Predicated region
  $region2: #{_lambda_.114} parent=0 // pred_check
    _
  $region3: #{_lambda_.114} parent=0 // pred_check_branch
    %9 = sbr.rel (0) target = $region5
  $region4: #{_lambda_.114} parent=0 // pred_region
    _
  $region5: #{_lambda_.114} parent=0 // pred_fallthru
    _
  // Predicated region
  $region6: #{_lambda_.114} parent=0 // pred_check
    _
  $region7: #{_lambda_.114} parent=0 // pred_check_branch
    %11 = sbr.rel (0) target = $region9
  $region8: #{_lambda_.114} parent=0 // pred_region
    _
  $region9: #{_lambda_.114} parent=0 // pred_fallthru
    _
  // Predicated region
  $region10: #{_lambda_.114} parent=0 // pred_check
    _
  $region11: #{_lambda_.114} parent=0 // pred_check_branch
    %13 = sbr.rel (0) target = $region13
  $region12: #{_lambda_.114} parent=0 // pred_region
    _
  $region13: #{_lambda_.114} parent=0 // pred_fallthru
    _
  %p15 = scmp.eq.s32.totalorder 0, 0
  // Predicated region
  $region14: #{_lambda_.114} parent=0 // pred_check
    %p16 = pneg %p15
  $region15: #{_lambda_.114} parent=0 // pred_check_branch
    %18 = sbr.rel (%p16) target = $region17
  $region16: #{_lambda_.114} parent=0 // pred_region
    %19 = vst [vmem:[#allocation2] sm:$0xff] 0.0
    %20 = vst [vmem:[#allocation2 + $0x8] sm:$0xff] 0.0
    %21 = vst [vmem:[#allocation2 + $0x10] sm:$0xff] 0.0
    %22 = vst [vmem:[#allocation2 + $0x18] sm:$0xff] 0.0
  $region17: #{_lambda_.114} parent=0 // pred_fallthru
    _
  %v23 = vld [vmem:[#allocation2] sm:$0xff]
  %v24 = vld [vmem:[#allocation2 + $0x8] sm:$0xff]
  %v25 = vld [vmem:[#allocation2 + $0x10] sm:$0xff]
  %v26 = vld [vmem:[#allocation2 + $0x18] sm:$0xff]
  %v27 = vld [vmem:[%s0] sm:$0xf]
  %v28 = vld [vmem:[%s0 + $0x4] sm:$0xf]
  %v29 = vld [vmem:[%s0 + $0x8] sm:$0xf]
  %v30 = vld [vmem:[%s0 + $0xc] sm:$0xf]
  %v31 = vld [vmem:[%s1] sm:$0xf]
  %v32 = vld [vmem:[%s1 + $0x4] sm:$0xf]
  %v33 = vld [vmem:[%s1 + $0x8] sm:$0xf]
  %v34 = vld [vmem:[%s1 + $0xc] sm:$0xf]
  %v39 = vunpack.c.l.b16 %v27
  %v40 = vunpack.c.l.b16 %v28
  %v41 = vunpack.c.l.b16 %v29
  %v42 = vunpack.c.l.b16 %v30
  %v43 = vpack.c.b16 %v40, %v39
  %v44 = vpack.c.b16 %v42, %v41
  %v49 = vunpack.c.l.b16 %v31
  %v50 = vunpack.c.l.b16 %v32
  %v51 = vunpack.c.l.b16 %v33
  %v52 = vunpack.c.l.b16 %v34
  %v53 = vpack.c.b16 %v50, %v49
  %v54 = vpack.c.b16 %v52, %v51
  %vm57 = vcmask 261120
  %v59 = vsel %vm57, %v43, 0
  %v62 = vsel %vm57, %v44, 0
  %64 = vmatprep.subr.bf16.mxu0 0
  %65 = vmatpush1.bf16.msra.mxu0 %v53
  %66 = vmatprep.subr.bf16.mxu0 0
  %67 = vmatpush1.bf16.msra.mxu0 %v54
  %68 = vmatprep.subr.bf16.mxu0 0
  %69 = vmatpush1.bf16.msra.mxu0 0
  %70 = vmatprep.subr.bf16.mxu0 0
  %71 = vmatpush1.bf16.msra.mxu0 0
  %72 = vmatprep.subr.bf16.mxu0 0
  %73 = vmatpush1.bf16.msra.mxu0 0
  %74 = vmatprep.subr.bf16.mxu0 0
  %75 = vmatpush1.bf16.msra.mxu0 0
  %76 = vmatprep.subr.bf16.mxu0 0
  %77 = vmatpush1.bf16.msra.mxu0 0
  %78 = vmatprep.subr.bf16.mxu0 0
  %79 = vmatpush1.bf16.msra.mxu0 0
  %80 = vmatprep.subr.bf16.mxu0 0
  %81 = vmatpush1.bf16.msra.mxu0 0
  %82 = vmatprep.subr.bf16.mxu0 0
  %83 = vmatpush1.bf16.msra.mxu0 0
  %84 = vmatprep.subr.bf16.mxu0 0
  %85 = vmatpush1.bf16.msra.mxu0 0
  %86 = vmatprep.subr.bf16.mxu0 0
  %87 = vmatpush1.bf16.msra.mxu0 0
  %88 = vmatprep.subr.bf16.mxu0 0
  %89 = vmatpush1.bf16.msra.mxu0 0
  %90 = vmatprep.subr.bf16.mxu0 0
  %91 = vmatpush1.bf16.msra.mxu0 0
  %92 = vmatprep.subr.bf16.mxu0 0
  %93 = vmatpush1.bf16.msra.mxu0 0
  %94 = vmatprep.subr.bf16.mxu0 0
  %95 = vmatpush1.bf16.msra.mxu0 0
  %96 = vmatprep.mubr.bf16.mxu0 0
  %97 = vmatmul.mubr.bf16.gmra.mrb[0].mxu0 %v59
  %v98 = vpop.f32.mrb[0].mxu0
  %v99 = vadd.f32 0.0, %v98
  %v100 = vpop.f32.mrb[0].mxu0
  %v101 = vpop.f32.mrb[0].mxu0
  %v102 = vadd.f32 0.0, %v101
  %v103 = vpop.f32.mrb[0].mxu0
  %104 = vmatprep.mubr.bf16.mxu0 0
  %105 = vmatmul.mubr.bf16.gmra.mrb[0].mxu0 %v62
  %v106 = vpop.f32.mrb[0].mxu0
  %v107 = vadd.f32 0.0, %v106
  %v108 = vpop.f32.mrb[0].mxu0
  %v109 = vpop.f32.mrb[0].mxu0
  %v110 = vadd.f32 0.0, %v109
  %v111 = vpop.f32.mrb[0].mxu0
  %112 = vdwg.mxu0
  %v113 = vadd.f32 %v23, %v99
  %v114 = vadd.f32 %v24, %v102
  %v115 = vadd.f32 %v25, %v107
  %v116 = vadd.f32 %v26, %v110
  %117 = vst [vmem:[#allocation2] sm:$0xff] %v113
  %118 = vst [vmem:[#allocation2 + $0x8] sm:$0xff] %v114
  %119 = vst [vmem:[#allocation2 + $0x10] sm:$0xff] %v115
  %120 = vst [vmem:[#allocation2 + $0x18] sm:$0xff] %v116
  // Predicated region
  $region18: #{_lambda_.114} parent=0 // pred_check
    %p121 = pneg %p15
  $region19: #{_lambda_.114} parent=0 // pred_check_branch
    %123 = sbr.rel (%p121) target = $region21
  $region20: #{_lambda_.114} parent=0 // pred_region
    %v124 = vld [vmem:[#allocation2] sm:$0xff]
    %v125 = vld [vmem:[#allocation2 + $0x8] sm:$0xff]
    %v126 = vld [vmem:[#allocation2 + $0x10] sm:$0xff]
    %v127 = vld [vmem:[#allocation2 + $0x18] sm:$0xff]
    %v128 = vld [vmem:[%s2] sm:$0x1]
    %v130 = vlaneseq
    %v131 = vshrl.u32 %v130, 7
    %v132 = vsub.s32 0, %v131
    %v133 = vrot.slane %v128, %v132
    %v135 = vadd.f32 %v124, %v133
    %v136 = vadd.f32 %v125, %v133
    %v137 = vadd.f32 %v126, %v133
    %v138 = vadd.f32 %v127, %v133
    %v139 = vmax.f32 %v135, 0.0
    %v140 = vmax.f32 %v136, 0.0
    %v141 = vmax.f32 %v137, 0.0
    %v142 = vmax.f32 %v138, 0.0
    %143 = vst [vmem:[%s3] sm:$0xff] %v139
    %144 = vst [vmem:[%s3 + $0x8] sm:$0xff] %v140
    %145 = vst [vmem:[%s3 + $0x10] sm:$0xff] %v141
    %146 = vst [vmem:[%s3 + $0x18] sm:$0xff] %v142
  $region21: #{_lambda_.114} parent=0 // pred_fallthru
    _
  // Predicated region
  $region22: #{_lambda_.114} parent=0 // pred_check
    _
  $region23: #{_lambda_.114} parent=0 // pred_check_branch
    %148 = sbr.rel (0) target = $region25
  $region24: #{_lambda_.114} parent=0 // pred_region
    _
  $region25: #{_lambda_.114} parent=0 // pred_fallthru
    _
  // Predicated region
  $region26: #{_lambda_.114} parent=0 // pred_check
    _
  $region27: #{_lambda_.114} parent=0 // pred_check_branch
    %150 = sbr.rel (0) target = $region29
  $region28: #{_lambda_.114} parent=0 // pred_region
    _
  $region29: #{_lambda_.114} parent=0 // pred_fallthru
    _

// kernel: _lambda_.117
$region0: #{_lambda_.117}
  #allocation0 [shape = 'u32[]', space=smem, size = 0x4, offset = 0x4, fixed_abs, tag = 'smem constant byte address 0x4 - core index']
  #allocation1 [shape = 'u32[144,128]{1,0:T(1,128)}', space=vmem, size = 0x12000, scoped, tag = 'internal scratch']
  #allocation2 [shape = 'f32[32,128]{1,0:T(8,128)}', space=vmem, size = 0x4000, scoped, tag = 'scratch operand']
  %s0 = inlined_call_operand.vmem [shape: bf16[32,48], index: 0, kind: input, shape index: {}]
  %s1 = inlined_call_operand.vmem [shape: bf16[48,128], index: 1, kind: input, shape index: {}]
  %s2 = inlined_call_operand.vmem [shape: f32[1,128], index: 2, kind: input, shape index: {}]
  %s3 = inlined_call_operand.vmem [shape: f32[32,128], index: 3, kind: output, shape index: {}]
  %s4 = sld [smem:[#allocation0]]
  $region30: #{_lambda_.117} parent=0
    _
  %s6 = ssub.s32 1, %s4
  %s7 = scalar_select 0, %s6, %s4
  // Predicated region
  $region2: #{_lambda_.117} parent=0 // pred_check
    _
  $region3: #{_lambda_.117} parent=0 // pred_check_branch
    %9 = sbr.rel (0) target = $region5
  $region4: #{_lambda_.117} parent=0 // pred_region
    _
  $region5: #{_lambda_.117} parent=0 // pred_fallthru
    _
  // Predicated region
  $region6: #{_lambda_.117} parent=0 // pred_check
    _
  $region7: #{_lambda_.117} parent=0 // pred_check_branch
    %11 = sbr.rel (0) target = $region9
  $region8: #{_lambda_.117} parent=0 // pred_region
    _
  $region9: #{_lambda_.117} parent=0 // pred_fallthru
    _
  // Predicated region
  $region10: #{_lambda_.117} parent=0 // pred_check
    _
  $region11: #{_lambda_.117} parent=0 // pred_check_branch
    %13 = sbr.rel (0) target = $region13
  $region12: #{_lambda_.117} parent=0 // pred_region
    _
  $region13: #{_lambda_.117} parent=0 // pred_fallthru
    _
  %p15 = scmp.eq.s32.totalorder 0, 0
  // Predicated region
  $region14: #{_lambda_.117} parent=0 // pred_check
    %p16 = pneg %p15
  $region15: #{_lambda_.117} parent=0 // pred_check_branch
    %18 = sbr.rel (%p16) target = $region17
  $region16: #{_lambda_.117} parent=0 // pred_region
    %19 = vst [vmem:[#allocation2] sm:$0xff] 0.0
    %20 = vst [vmem:[#allocation2 + $0x8] sm:$0xff] 0.0
    %21 = vst [vmem:[#allocation2 + $0x10] sm:$0xff] 0.0
    %22 = vst [vmem:[#allocation2 + $0x18] sm:$0xff] 0.0
  $region17: #{_lambda_.117} parent=0 // pred_fallthru
    _
  %v23 = vld [vmem:[#allocation2] sm:$0xff]
  %v24 = vld [vmem:[#allocation2 + $0x8] sm:$0xff]
  %v25 = vld [vmem:[#allocation2 + $0x10] sm:$0xff]
  %v26 = vld [vmem:[#allocation2 + $0x18] sm:$0xff]
  %v27 = vld [vmem:[%s0] sm:$0xf]
  %v28 = vld [vmem:[%s0 + $0x4] sm:$0xf]
  %v29 = vld [vmem:[%s0 + $0x8] sm:$0xf]
  %v30 = vld [vmem:[%s0 + $0xc] sm:$0xf]
  %v31 = vld [vmem:[%s1] sm:$0xf]
  %v32 = vld [vmem:[%s1 + $0x4] sm:$0xf]
  %v33 = vld [vmem:[%s1 + $0x8] sm:$0xf]
  %v34 = vld [vmem:[%s1 + $0xc] sm:$0xf]
  %v35 = vld [vmem:[%s1 + $0x10] sm:$0xf]
  %v36 = vld [vmem:[%s1 + $0x14] sm:$0xf]
  %v41 = vunpack.c.l.b16 %v27
  %v42 = vunpack.c.l.b16 %v28
  %v43 = vunpack.c.l.b16 %v29
  %v44 = vunpack.c.l.b16 %v30
  %v45 = vpack.c.b16 %v42, %v41
  %v46 = vpack.c.b16 %v44, %v43
  %v53 = vunpack.c.l.b16 %v31
  %v54 = vunpack.c.l.b16 %v32
  %v55 = vunpack.c.l.b16 %v33
  %v56 = vunpack.c.l.b16 %v34
  %v57 = vunpack.c.l.b16 %v35
  %v58 = vunpack.c.l.b16 %v36
  %v59 = vpack.c.b16 %v54, %v53
  %v60 = vpack.c.b16 %v56, %v55
  %v61 = vpack.c.b16 %v58, %v57
  %vm65 = vcmask 392192
  %v67 = vsel %vm65, %v45, 0
  %v70 = vsel %vm65, %v46, 0
  %72 = vmatprep.subr.bf16.mxu0 0
  %73 = vmatpush1.bf16.msra.mxu0 %v59
  %74 = vmatprep.subr.bf16.mxu0 0
  %75 = vmatpush1.bf16.msra.mxu0 %v60
  %76 = vmatprep.subr.bf16.mxu0 0
  %77 = vmatpush1.bf16.msra.mxu0 %v61
  %78 = vmatprep.subr.bf16.mxu0 0
  %79 = vmatpush1.bf16.msra.mxu0 0
  %80 = vmatprep.subr.bf16.mxu0 0
  %81 = vmatpush1.bf16.msra.mxu0 0
  %82 = vmatprep.subr.bf16.mxu0 0
  %83 = vmatpush1.bf16.msra.mxu0 0
  %84 = vmatprep.subr.bf16.mxu0 0
  %85 = vmatpush1.bf16.msra.mxu0 0
  %86 = vmatprep.subr.bf16.mxu0 0
  %87 = vmatpush1.bf16.msra.mxu0 0
  %88 = vmatprep.subr.bf16.mxu0 0
  %89 = vmatpush1.bf16.msra.mxu0 0
  %90 = vmatprep.subr.bf16.mxu0 0
  %91 = vmatpush1.bf16.msra.mxu0 0
  %92 = vmatprep.subr.bf16.mxu0 0
  %93 = vmatpush1.bf16.msra.mxu0 0
  %94 = vmatprep.subr.bf16.mxu0 0
  %95 = vmatpush1.bf16.msra.mxu0 0
  %96 = vmatprep.subr.bf16.mxu0 0
  %97 = vmatpush1.bf16.msra.mxu0 0
  %98 = vmatprep.subr.bf16.mxu0 0
  %99 = vmatpush1.bf16.msra.mxu0 0
  %100 = vmatprep.subr.bf16.mxu0 0
  %101 = vmatpush1.bf16.msra.mxu0 0
  %102 = vmatprep.subr.bf16.mxu0 0
  %103 = vmatpush1.bf16.msra.mxu0 0
  %104 = vmatprep.mubr.bf16.mxu0 0
  %105 = vmatmul.mubr.bf16.gmra.mrb[0].mxu0 %v67
  %v106 = vpop.f32.mrb[0].mxu0
  %v107 = vadd.f32 0.0, %v106
  %v108 = vpop.f32.mrb[0].mxu0
  %v109 = vpop.f32.mrb[0].mxu0
  %v110 = vadd.f32 0.0, %v109
  %v111 = vpop.f32.mrb[0].mxu0
  %112 = vmatprep.mubr.bf16.mxu0 0
  %113 = vmatmul.mubr.bf16.gmra.mrb[0].mxu0 %v70
  %v114 = vpop.f32.mrb[0].mxu0
  %v115 = vadd.f32 0.0, %v114
  %v116 = vpop.f32.mrb[0].mxu0
  %v117 = vpop.f32.mrb[0].mxu0
  %v118 = vadd.f32 0.0, %v117
  %v119 = vpop.f32.mrb[0].mxu0
  %120 = vdwg.mxu0
  %v121 = vadd.f32 %v23, %v107
  %v122 = vadd.f32 %v24, %v110
  %v123 = vadd.f32 %v25, %v115
  %v124 = vadd.f32 %v26, %v118
  %125 = vst [vmem:[#allocation2] sm:$0xff] %v121
  %126 = vst [vmem:[#allocation2 + $0x8] sm:$0xff] %v122
  %127 = vst [vmem:[#allocation2 + $0x10] sm:$0xff] %v123
  %128 = vst [vmem:[#allocation2 + $0x18] sm:$0xff] %v124
  // Predicated region
  $region18: #{_lambda_.117} parent=0 // pred_check
    %p129 = pneg %p15
  $region19: #{_lambda_.117} parent=0 // pred_check_branch
    %131 = sbr.rel (%p129) target = $region21
  $region20: #{_lambda_.117} parent=0 // pred_region
    %v132 = vld [vmem:[#allocation2] sm:$0xff]
    %v133 = vld [vmem:[#allocation2 + $0x8] sm:$0xff]
    %v134 = vld [vmem:[#allocation2 + $0x10] sm:$0xff]
    %v135 = vld [vmem:[#allocation2 + $0x18] sm:$0xff]
    %v136 = vld [vmem:[%s2] sm:$0x1]
    %v138 = vlaneseq
    %v139 = vshrl.u32 %v138, 7
    %v140 = vsub.s32 0, %v139
    %v141 = vrot.slane %v136, %v140
    %v143 = vadd.f32 %v132, %v141
    %v144 = vadd.f32 %v133, %v141
    %v145 = vadd.f32 %v134, %v141
    %v146 = vadd.f32 %v135, %v141
    %v147 = vmax.f32 %v143, 0.0
    %v148 = vmax.f32 %v144, 0.0
    %v149 = vmax.f32 %v145, 0.0
    %v150 = vmax.f32 %v146, 0.0
    %151 = vst [vmem:[%s3] sm:$0xff] %v147
    %152 = vst [vmem:[%s3 + $0x8] sm:$0xff] %v148
    %153 = vst [vmem:[%s3 + $0x10] sm:$0xff] %v149
    %154 = vst [vmem:[%s3 + $0x18] sm:$0xff] %v150
  $region21: #{_lambda_.117} parent=0 // pred_fallthru
    _
  // Predicated region
  $region22: #{_lambda_.117} parent=0 // pred_check
    _
  $region23: #{_lambda_.117} parent=0 // pred_check_branch
    %156 = sbr.rel (0) target = $region25
  $region24: #{_lambda_.117} parent=0 // pred_region
    _
  $region25: #{_lambda_.117} parent=0 // pred_fallthru
    _
  // Predicated region
  $region26: #{_lambda_.117} parent=0 // pred_check
    _
  $region27: #{_lambda_.117} parent=0 // pred_check_branch
    %158 = sbr.rel (0) target = $region29
  $region28: #{_lambda_.117} parent=0 // pred_region
    _
  $region29: #{_lambda_.117} parent=0 // pred_fallthru
    _

// kernel: _lambda_.126
$region0: #{_lambda_.126}
  #allocation0 [shape = 'u32[]', space=smem, size = 0x4, offset = 0x4, fixed_abs, tag = 'smem constant byte address 0x4 - core index']
  #allocation1 [shape = 'u32[144,128]{1,0:T(1,128)}', space=vmem, size = 0x12000, scoped, tag = 'internal scratch']
  #allocation2 [shape = 'f32[16,128]{1,0:T(8,128)}', space=vmem, size = 0x2000, scoped, tag = 'scratch operand']
  %s0 = inlined_call_operand.vmem [shape: bf16[16,32], index: 0, kind: input, shape index: {}]
  %s1 = inlined_call_operand.vmem [shape: bf16[32,128], index: 1, kind: input, shape index: {}]
  %s2 = inlined_call_operand.vmem [shape: f32[1,128], index: 2, kind: input, shape index: {}]
  %s3 = inlined_call_operand.vmem [shape: f32[16,128], index: 3, kind: output, shape index: {}]
  %s4 = sld [smem:[#allocation0]]
  $region30: #{_lambda_.126} parent=0
    _
  %s6 = ssub.s32 1, %s4
  %s7 = scalar_select 0, %s6, %s4
  // Predicated region
  $region2: #{_lambda_.126} parent=0 // pred_check
    _
  $region3: #{_lambda_.126} parent=0 // pred_check_branch
    %9 = sbr.rel (0) target = $region5
  $region4: #{_lambda_.126} parent=0 // pred_region
    _
  $region5: #{_lambda_.126} parent=0 // pred_fallthru
    _
  // Predicated region
  $region6: #{_lambda_.126} parent=0 // pred_check
    _
  $region7: #{_lambda_.126} parent=0 // pred_check_branch
    %11 = sbr.rel (0) target = $region9
  $region8: #{_lambda_.126} parent=0 // pred_region
    _
  $region9: #{_lambda_.126} parent=0 // pred_fallthru
    _
  // Predicated region
  $region10: #{_lambda_.126} parent=0 // pred_check
    _
  $region11: #{_lambda_.126} parent=0 // pred_check_branch
    %13 = sbr.rel (0) target = $region13
  $region12: #{_lambda_.126} parent=0 // pred_region
    _
  $region13: #{_lambda_.126} parent=0 // pred_fallthru
    _
  %p15 = scmp.eq.s32.totalorder 0, 0
  // Predicated region
  $region14: #{_lambda_.126} parent=0 // pred_check
    %p16 = pneg %p15
  $region15: #{_lambda_.126} parent=0 // pred_check_branch
    %18 = sbr.rel (%p16) target = $region17
  $region16: #{_lambda_.126} parent=0 // pred_region
    %19 = vst [vmem:[#allocation2] sm:$0xff] 0.0
    %20 = vst [vmem:[#allocation2 + $0x8] sm:$0xff] 0.0
  $region17: #{_lambda_.126} parent=0 // pred_fallthru
    _
  %v21 = vld [vmem:[#allocation2] sm:$0xff]
  %v22 = vld [vmem:[#allocation2 + $0x8] sm:$0xff]
  %v23 = vld [vmem:[%s0] sm:$0xf]
  %v24 = vld [vmem:[%s0 + $0x4] sm:$0xf]
  %v25 = vld [vmem:[%s1] sm:$0xf]
  %v26 = vld [vmem:[%s1 + $0x4] sm:$0xf]
  %v27 = vld [vmem:[%s1 + $0x8] sm:$0xf]
  %v28 = vld [vmem:[%s1 + $0xc] sm:$0xf]
  %v31 = vunpack.c.l.b16 %v23
  %v32 = vunpack.c.l.b16 %v24
  %v33 = vpack.c.b16 %v32, %v31
  %v38 = vunpack.c.l.b16 %v25
  %v39 = vunpack.c.l.b16 %v26
  %v40 = vunpack.c.l.b16 %v27
  %v41 = vunpack.c.l.b16 %v28
  %v42 = vpack.c.b16 %v39, %v38
  %v43 = vpack.c.b16 %v41, %v40
  %vm46 = vcmask 261120
  %v48 = vsel %vm46, %v33, 0
  %50 = vmatprep.subr.bf16.mxu0 0
  %51 = vmatpush1.bf16.msra.mxu0 %v42
  %52 = vmatprep.subr.bf16.mxu0 0
  %53 = vmatpush1.bf16.msra.mxu0 %v43
  %54 = vmatprep.subr.bf16.mxu0 0
  %55 = vmatpush1.bf16.msra.mxu0 0
  %56 = vmatprep.subr.bf16.mxu0 0
  %57 = vmatpush1.bf16.msra.mxu0 0
  %58 = vmatprep.subr.bf16.mxu0 0
  %59 = vmatpush1.bf16.msra.mxu0 0
  %60 = vmatprep.subr.bf16.mxu0 0
  %61 = vmatpush1.bf16.msra.mxu0 0
  %62 = vmatprep.subr.bf16.mxu0 0
  %63 = vmatpush1.bf16.msra.mxu0 0
  %64 = vmatprep.subr.bf16.mxu0 0
  %65 = vmatpush1.bf16.msra.mxu0 0
  %66 = vmatprep.subr.bf16.mxu0 0
  %67 = vmatpush1.bf16.msra.mxu0 0
  %68 = vmatprep.subr.bf16.mxu0 0
  %69 = vmatpush1.bf16.msra.mxu0 0
  %70 = vmatprep.subr.bf16.mxu0 0
  %71 = vmatpush1.bf16.msra.mxu0 0
  %72 = vmatprep.subr.bf16.mxu0 0
  %73 = vmatpush1.bf16.msra.mxu0 0
  %74 = vmatprep.subr.bf16.mxu0 0
  %75 = vmatpush1.bf16.msra.mxu0 0
  %76 = vmatprep.subr.bf16.mxu0 0
  %77 = vmatpush1.bf16.msra.mxu0 0
  %78 = vmatprep.subr.bf16.mxu0 0
  %79 = vmatpush1.bf16.msra.mxu0 0
  %80 = vmatprep.subr.bf16.mxu0 0
  %81 = vmatpush1.bf16.msra.mxu0 0
  %82 = vmatprep.mubr.bf16.mxu0 0
  %83 = vmatmul.mubr.bf16.gmra.mrb[0].mxu0 %v48
  %v84 = vpop.f32.mrb[0].mxu0
  %v85 = vadd.f32 0.0, %v84
  %v86 = vpop.f32.mrb[0].mxu0
  %v87 = vpop.f32.mrb[0].mxu0
  %v88 = vadd.f32 0.0, %v87
  %v89 = vpop.f32.mrb[0].mxu0
  %90 = vdwg.mxu0
  %v91 = vadd.f32 %v21, %v85
  %v92 = vadd.f32 %v22, %v88
  %93 = vst [vmem:[#allocation2] sm:$0xff] %v91
  %94 = vst [vmem:[#allocation2 + $0x8] sm:$0xff] %v92
  // Predicated region
  $region18: #{_lambda_.126} parent=0 // pred_check
    %p95 = pneg %p15
  $region19: #{_lambda_.126} parent=0 // pred_check_branch
    %97 = sbr.rel (%p95) target = $region21
  $region20: #{_lambda_.126} parent=0 // pred_region
    %v98 = vld [vmem:[#allocation2] sm:$0xff]
    %v99 = vld [vmem:[#allocation2 + $0x8] sm:$0xff]
    %v100 = vld [vmem:[%s2] sm:$0x1]
    %v102 = vlaneseq
    %v103 = vshrl.u32 %v102, 7
    %v104 = vsub.s32 0, %v103
    %v105 = vrot.slane %v100, %v104
    %v107 = vadd.f32 %v98, %v105
    %v108 = vadd.f32 %v99, %v105
    %v109 = vmax.f32 %v107, 0.0
    %v110 = vmax.f32 %v108, 0.0
    %111 = vst [vmem:[%s3] sm:$0xff] %v109
    %112 = vst [vmem:[%s3 + $0x8] sm:$0xff] %v110
  $region21: #{_lambda_.126} parent=0 // pred_fallthru
    _
  // Predicated region
  $region22: #{_lambda_.126} parent=0 // pred_check
    _
  $region23: #{_lambda_.126} parent=0 // pred_check_branch
    %114 = sbr.rel (0) target = $region25
  $region24: #{_lambda_.126} parent=0 // pred_region
    _
  $region25: #{_lambda_.126} parent=0 // pred_fallthru
    _
  // Predicated region
  $region26: #{_lambda_.126} parent=0 // pred_check
    _
  $region27: #{_lambda_.126} parent=0 // pred_check_branch
    %116 = sbr.rel (0) target = $region29
  $region28: #{_lambda_.126} parent=0 // pred_region
    _
  $region29: #{_lambda_.126} parent=0 // pred_fallthru
    _

// kernel: _lambda_.118
$region0: #{_lambda_.118}
  #allocation0 [shape = 'u32[]', space=smem, size = 0x4, offset = 0x4, fixed_abs, tag = 'smem constant byte address 0x4 - core index']
  #allocation1 [shape = 'u32[144,128]{1,0:T(1,128)}', space=vmem, size = 0x12000, scoped, tag = 'internal scratch']
  #allocation2 [shape = 'f32[32,128]{1,0:T(8,128)}', space=vmem, size = 0x4000, scoped, tag = 'scratch operand']
  %s0 = inlined_call_operand.vmem [shape: bf16[32,16], index: 0, kind: input, shape index: {}]
  %s1 = inlined_call_operand.vmem [shape: bf16[16,128], index: 1, kind: input, shape index: {}]
  %s2 = inlined_call_operand.vmem [shape: f32[1,128], index: 2, kind: input, shape index: {}]
  %s3 = inlined_call_operand.vmem [shape: f32[32,128], index: 3, kind: input, shape index: {}]
  %s4 = inlined_call_operand.vmem [shape: f32[32,128], index: 4, kind: output, shape index: {}]
  %s5 = sld [smem:[#allocation0]]
  $region34: #{_lambda_.118} parent=0
    _
  %s7 = ssub.s32 1, %s5
  %s8 = scalar_select 0, %s7, %s5
  // Predicated region
  $region2: #{_lambda_.118} parent=0 // pred_check
    _
  $region3: #{_lambda_.118} parent=0 // pred_check_branch
    %10 = sbr.rel (0) target = $region5
  $region4: #{_lambda_.118} parent=0 // pred_region
    _
  $region5: #{_lambda_.118} parent=0 // pred_fallthru
    _
  // Predicated region
  $region6: #{_lambda_.118} parent=0 // pred_check
    _
  $region7: #{_lambda_.118} parent=0 // pred_check_branch
    %12 = sbr.rel (0) target = $region9
  $region8: #{_lambda_.118} parent=0 // pred_region
    _
  $region9: #{_lambda_.118} parent=0 // pred_fallthru
    _
  // Predicated region
  $region10: #{_lambda_.118} parent=0 // pred_check
    _
  $region11: #{_lambda_.118} parent=0 // pred_check_branch
    %14 = sbr.rel (0) target = $region13
  $region12: #{_lambda_.118} parent=0 // pred_region
    _
  $region13: #{_lambda_.118} parent=0 // pred_fallthru
    _
  // Predicated region
  $region14: #{_lambda_.118} parent=0 // pred_check
    _
  $region15: #{_lambda_.118} parent=0 // pred_check_branch
    %16 = sbr.rel (0) target = $region17
  $region16: #{_lambda_.118} parent=0 // pred_region
    _
  $region17: #{_lambda_.118} parent=0 // pred_fallthru
    _
  %p18 = scmp.eq.s32.totalorder 0, 0
  // Predicated region
  $region18: #{_lambda_.118} parent=0 // pred_check
    %p19 = pneg %p18
  $region19: #{_lambda_.118} parent=0 // pred_check_branch
    %21 = sbr.rel (%p19) target = $region21
  $region20: #{_lambda_.118} parent=0 // pred_region
    %22 = vst [vmem:[#allocation2] sm:$0xff] 0.0
    %23 = vst [vmem:[#allocation2 + $0x8] sm:$0xff] 0.0
    %24 = vst [vmem:[#allocation2 + $0x10] sm:$0xff] 0.0
    %25 = vst [vmem:[#allocation2 + $0x18] sm:$0xff] 0.0
  $region21: #{_lambda_.118} parent=0 // pred_fallthru
    _
  %v26 = vld [vmem:[#allocation2] sm:$0xff]
  %v27 = vld [vmem:[#allocation2 + $0x8] sm:$0xff]
  %v28 = vld [vmem:[#allocation2 + $0x10] sm:$0xff]
  %v29 = vld [vmem:[#allocation2 + $0x18] sm:$0xff]
  %v30 = vld [vmem:[%s0] sm:$0xf]
  %v31 = vld [vmem:[%s0 + $0x4] sm:$0xf]
  %v32 = vld [vmem:[%s0 + $0x8] sm:$0xf]
  %v33 = vld [vmem:[%s0 + $0xc] sm:$0xf]
  %v34 = vld [vmem:[%s1] sm:$0xf]
  %v35 = vld [vmem:[%s1 + $0x4] sm:$0xf]
  %v40 = vunpack.c.l.b16 %v30
  %v41 = vunpack.c.l.b16 %v31
  %v42 = vunpack.c.l.b16 %v32
  %v43 = vunpack.c.l.b16 %v33
  %v44 = vpack.c.b16 %v41, %v40
  %v45 = vpack.c.b16 %v43, %v42
  %v48 = vunpack.c.l.b16 %v34
  %v49 = vunpack.c.l.b16 %v35
  %v50 = vpack.c.b16 %v49, %v48
  %vm52 = vcmask 130048
  %v54 = vsel %vm52, %v44, 0
  %v57 = vsel %vm52, %v45, 0
  %59 = vmatprep.subr.bf16.mxu0 0
  %60 = vmatpush1.bf16.msra.mxu0 %v50
  %61 = vmatprep.subr.bf16.mxu0 0
  %62 = vmatpush1.bf16.msra.mxu0 0
  %63 = vmatprep.subr.bf16.mxu0 0
  %64 = vmatpush1.bf16.msra.mxu0 0
  %65 = vmatprep.subr.bf16.mxu0 0
  %66 = vmatpush1.bf16.msra.mxu0 0
  %67 = vmatprep.subr.bf16.mxu0 0
  %68 = vmatpush1.bf16.msra.mxu0 0
  %69 = vmatprep.subr.bf16.mxu0 0
  %70 = vmatpush1.bf16.msra.mxu0 0
  %71 = vmatprep.subr.bf16.mxu0 0
  %72 = vmatpush1.bf16.msra.mxu0 0
  %73 = vmatprep.subr.bf16.mxu0 0
  %74 = vmatpush1.bf16.msra.mxu0 0
  %75 = vmatprep.subr.bf16.mxu0 0
  %76 = vmatpush1.bf16.msra.mxu0 0
  %77 = vmatprep.subr.bf16.mxu0 0
  %78 = vmatpush1.bf16.msra.mxu0 0
  %79 = vmatprep.subr.bf16.mxu0 0
  %80 = vmatpush1.bf16.msra.mxu0 0
  %81 = vmatprep.subr.bf16.mxu0 0
  %82 = vmatpush1.bf16.msra.mxu0 0
  %83 = vmatprep.subr.bf16.mxu0 0
  %84 = vmatpush1.bf16.msra.mxu0 0
  %85 = vmatprep.subr.bf16.mxu0 0
  %86 = vmatpush1.bf16.msra.mxu0 0
  %87 = vmatprep.subr.bf16.mxu0 0
  %88 = vmatpush1.bf16.msra.mxu0 0
  %89 = vmatprep.subr.bf16.mxu0 0
  %90 = vmatpush1.bf16.msra.mxu0 0
  %91 = vmatprep.mubr.bf16.mxu0 0
  %92 = vmatmul.mubr.bf16.gmra.mrb[0].mxu0 %v54
  %v93 = vpop.f32.mrb[0].mxu0
  %v94 = vadd.f32 0.0, %v93
  %v95 = vpop.f32.mrb[0].mxu0
  %v96 = vpop.f32.mrb[0].mxu0
  %v97 = vadd.f32 0.0, %v96
  %v98 = vpop.f32.mrb[0].mxu0
  %99 = vmatprep.mubr.bf16.mxu0 0
  %100 = vmatmul.mubr.bf16.gmra.mrb[0].mxu0 %v57
  %v101 = vpop.f32.mrb[0].mxu0
  %v102 = vadd.f32 0.0, %v101
  %v103 = vpop.f32.mrb[0].mxu0
  %v104 = vpop.f32.mrb[0].mxu0
  %v105 = vadd.f32 0.0, %v104
  %v106 = vpop.f32.mrb[0].mxu0
  %107 = vdwg.mxu0
  %v108 = vadd.f32 %v26, %v94
  %v109 = vadd.f32 %v27, %v97
  %v110 = vadd.f32 %v28, %v102
  %v111 = vadd.f32 %v29, %v105
  %112 = vst [vmem:[#allocation2] sm:$0xff] %v108
  %113 = vst [vmem:[#allocation2 + $0x8] sm:$0xff] %v109
  %114 = vst [vmem:[#allocation2 + $0x10] sm:$0xff] %v110
  %115 = vst [vmem:[#allocation2 + $0x18] sm:$0xff] %v111
  // Predicated region
  $region22: #{_lambda_.118} parent=0 // pred_check
    %p116 = pneg %p18
  $region23: #{_lambda_.118} parent=0 // pred_check_branch
    %118 = sbr.rel (%p116) target = $region25
  $region24: #{_lambda_.118} parent=0 // pred_region
    %v119 = vld [vmem:[#allocation2] sm:$0xff]
    %v120 = vld [vmem:[#allocation2 + $0x8] sm:$0xff]
    %v121 = vld [vmem:[#allocation2 + $0x10] sm:$0xff]
    %v122 = vld [vmem:[#allocation2 + $0x18] sm:$0xff]
    %v123 = vld [vmem:[%s2] sm:$0x1]
    %v125 = vlaneseq
    %v126 = vshrl.u32 %v125, 7
    %v127 = vsub.s32 0, %v126
    %v128 = vrot.slane %v123, %v127
    %v130 = vadd.f32 %v119, %v128
    %v131 = vadd.f32 %v120, %v128
    %v132 = vadd.f32 %v121, %v128
    %v133 = vadd.f32 %v122, %v128
    %v134 = vmax.f32 %v130, 0.0
    %v135 = vmax.f32 %v131, 0.0
    %v136 = vmax.f32 %v132, 0.0
    %v137 = vmax.f32 %v133, 0.0
    %v138 = vld [vmem:[%s3] sm:$0xff]
    %v139 = vld [vmem:[%s3 + $0x8] sm:$0xff]
    %v140 = vld [vmem:[%s3 + $0x10] sm:$0xff]
    %v141 = vld [vmem:[%s3 + $0x18] sm:$0xff]
    %v142 = vadd.f32 %v134, %v138
    %v143 = vadd.f32 %v135, %v139
    %v144 = vadd.f32 %v136, %v140
    %v145 = vadd.f32 %v137, %v141
    %146 = vst [vmem:[%s4] sm:$0xff] %v142
    %147 = vst [vmem:[%s4 + $0x8] sm:$0xff] %v143
    %148 = vst [vmem:[%s4 + $0x10] sm:$0xff] %v144
    %149 = vst [vmem:[%s4 + $0x18] sm:$0xff] %v145
  $region25: #{_lambda_.118} parent=0 // pred_fallthru
    _
  // Predicated region
  $region26: #{_lambda_.118} parent=0 // pred_check
    _
  $region27: #{_lambda_.118} parent=0 // pred_check_branch
    %151 = sbr.rel (0) target = $region29
  $region28: #{_lambda_.118} parent=0 // pred_region
    _
  $region29: #{_lambda_.118} parent=0 // pred_fallthru
    _
  // Predicated region
  $region30: #{_lambda_.118} parent=0 // pred_check
    _
  $region31: #{_lambda_.118} parent=0 // pred_check_branch
    %153 = sbr.rel (0) target = $region33
  $region32: #{_lambda_.118} parent=0 // pred_region
    _
  $region33: #{_lambda_.118} parent=0 // pred_fallthru
    _

// kernel: _lambda_.124
$region0: #{_lambda_.124}
  #allocation0 [shape = 'u32[]', space=smem, size = 0x4, offset = 0x4, fixed_abs, tag = 'smem constant byte address 0x4 - core index']
  #allocation1 [shape = 'u32[144,128]{1,0:T(1,128)}', space=vmem, size = 0x12000, scoped, tag = 'internal scratch']
  #allocation2 [shape = 'f32[16,128]{1,0:T(8,128)}', space=vmem, size = 0x2000, scoped, tag = 'scratch operand']
  %s0 = inlined_call_operand.vmem [shape: bf16[16,288], index: 0, kind: input, shape index: {}]
  %s1 = inlined_call_operand.vmem [shape: bf16[288,128], index: 1, kind: input, shape index: {}]
  %s2 = inlined_call_operand.vmem [shape: f32[1,128], index: 2, kind: input, shape index: {}]
  %s3 = inlined_call_operand.vmem [shape: f32[16,128], index: 3, kind: output, shape index: {}]
  %s4 = sld [smem:[#allocation0]]
  $region30: #{_lambda_.124} parent=0
    _
  %s6 = ssub.s32 1, %s4
  %s7 = scalar_select 0, %s6, %s4
  // Predicated region
  $region2: #{_lambda_.124} parent=0 // pred_check
    _
  $region3: #{_lambda_.124} parent=0 // pred_check_branch
    %9 = sbr.rel (0) target = $region5
  $region4: #{_lambda_.124} parent=0 // pred_region
    _
  $region5: #{_lambda_.124} parent=0 // pred_fallthru
    _
  // Predicated region
  $region6: #{_lambda_.124} parent=0 // pred_check
    _
  $region7: #{_lambda_.124} parent=0 // pred_check_branch
    %11 = sbr.rel (0) target = $region9
  $region8: #{_lambda_.124} parent=0 // pred_region
    _
  $region9: #{_lambda_.124} parent=0 // pred_fallthru
    _
  // Predicated region
  $region10: #{_lambda_.124} parent=0 // pred_check
    _
  $region11: #{_lambda_.124} parent=0 // pred_check_branch
    %13 = sbr.rel (0) target = $region13
  $region12: #{_lambda_.124} parent=0 // pred_region
    _
  $region13: #{_lambda_.124} parent=0 // pred_fallthru
    _
  %p15 = scmp.eq.s32.totalorder 0, 0
  // Predicated region
  $region14: #{_lambda_.124} parent=0 // pred_check
    %p16 = pneg %p15
  $region15: #{_lambda_.124} parent=0 // pred_check_branch
    %18 = sbr.rel (%p16) target = $region17
  $region16: #{_lambda_.124} parent=0 // pred_region
    %19 = vst [vmem:[#allocation2] sm:$0xff] 0.0
    %20 = vst [vmem:[#allocation2 + $0x8] sm:$0xff] 0.0
  $region17: #{_lambda_.124} parent=0 // pred_fallthru
    _
  %v21 = vld [vmem:[#allocation2] sm:$0xff]
  %v22 = vld [vmem:[#allocation2 + $0x8] sm:$0xff]
  %v23 = vld [vmem:[%s0] sm:$0xff]
  %v24 = vld [vmem:[%s0 + $0x8] sm:$0xf]
  %v25 = vld [vmem:[%s0 + $0xc] sm:$0xff]
  %v26 = vld [vmem:[%s0 + $0x14] sm:$0xf]
  %v27 = vld [vmem:[%s1] sm:$0xf]
  %v28 = vld [vmem:[%s1 + $0x4] sm:$0xf]
  %v29 = vld [vmem:[%s1 + $0x8] sm:$0xf]
  %v30 = vld [vmem:[%s1 + $0xc] sm:$0xf]
  %v31 = vld [vmem:[%s1 + $0x10] sm:$0xf]
  %v32 = vld [vmem:[%s1 + $0x14] sm:$0xf]
  %v33 = vld [vmem:[%s1 + $0x18] sm:$0xf]
  %v34 = vld [vmem:[%s1 + $0x1c] sm:$0xf]
  %v35 = vld [vmem:[%s1 + $0x20] sm:$0xf]
  %v36 = vld [vmem:[%s1 + $0x24] sm:$0xf]
  %v37 = vld [vmem:[%s1 + $0x28] sm:$0xf]
  %v38 = vld [vmem:[%s1 + $0x2c] sm:$0xf]
  %v39 = vld [vmem:[%s1 + $0x30] sm:$0xf]
  %v40 = vld [vmem:[%s1 + $0x34] sm:$0xf]
  %v41 = vld [vmem:[%s1 + $0x38] sm:$0xf]
  %v42 = vld [vmem:[%s1 + $0x3c] sm:$0xf]
  %v43 = vld [vmem:[%s1 + $0x40] sm:$0xf]
  %v44 = vld [vmem:[%s1 + $0x44] sm:$0xf]
  %v45 = vld [vmem:[%s1 + $0x48] sm:$0xf]
  %v46 = vld [vmem:[%s1 + $0x4c] sm:$0xf]
  %v47 = vld [vmem:[%s1 + $0x50] sm:$0xf]
  %v48 = vld [vmem:[%s1 + $0x54] sm:$0xf]
  %v49 = vld [vmem:[%s1 + $0x58] sm:$0xf]
  %v50 = vld [vmem:[%s1 + $0x5c] sm:$0xf]
  %v51 = vld [vmem:[%s1 + $0x60] sm:$0xf]
  %v52 = vld [vmem:[%s1 + $0x64] sm:$0xf]
  %v53 = vld [vmem:[%s1 + $0x68] sm:$0xf]
  %v54 = vld [vmem:[%s1 + $0x6c] sm:$0xf]
  %v55 = vld [vmem:[%s1 + $0x70] sm:$0xf]
  %v56 = vld [vmem:[%s1 + $0x74] sm:$0xf]
  %v57 = vld [vmem:[%s1 + $0x78] sm:$0xf]
  %v58 = vld [vmem:[%s1 + $0x7c] sm:$0xf]
  %v59 = vld [vmem:[%s1 + $0x80] sm:$0xf]
  %v60 = vld [vmem:[%s1 + $0x84] sm:$0xf]
  %v61 = vld [vmem:[%s1 + $0x88] sm:$0xf]
  %v62 = vld [vmem:[%s1 + $0x8c] sm:$0xf]
  %v67 = vunpack.c.l.b16 %v23
  %v68 = vunpack.c.h.b16 %v23
  %v69 = vunpack.c.l.b16 %v24
  %v70 = vunpack.c.l.b16 %v25
  %v71 = vunpack.c.h.b16 %v25
  %v72 = vunpack.c.l.b16 %v26
  %v73 = vpack.c.b16 %v70, %v67
  %v74 = vpack.c.b16 %v71, %v68
  %v75 = vpack.c.b16 %v72, %v69
  %v114 = vunpack.c.l.b16 %v27
  %v115 = vunpack.c.l.b16 %v28
  %v116 = vunpack.c.l.b16 %v29
  %v117 = vunpack.c.l.b16 %v30
  %v118 = vunpack.c.l.b16 %v31
  %v119 = vunpack.c.l.b16 %v32
  %v120 = vunpack.c.l.b16 %v33
  %v121 = vunpack.c.l.b16 %v34
  %v122 = vunpack.c.l.b16 %v35
  %v123 = vunpack.c.l.b16 %v36
  %v124 = vunpack.c.l.b16 %v37
  %v125 = vunpack.c.l.b16 %v38
  %v126 = vunpack.c.l.b16 %v39
  %v127 = vunpack.c.l.b16 %v40
  %v128 = vunpack.c.l.b16 %v41
  %v129 = vunpack.c.l.b16 %v42
  %v130 = vunpack.c.l.b16 %v43
  %v131 = vunpack.c.l.b16 %v44
  %v132 = vunpack.c.l.b16 %v45
  %v133 = vunpack.c.l.b16 %v46
  %v134 = vunpack.c.l.b16 %v47
  %v135 = vunpack.c.l.b16 %v48
  %v136 = vunpack.c.l.b16 %v49
  %v137 = vunpack.c.l.b16 %v50
  %v138 = vunpack.c.l.b16 %v51
  %v139 = vunpack.c.l.b16 %v52
  %v140 = vunpack.c.l.b16 %v53
  %v141 = vunpack.c.l.b16 %v54
  %v142 = vunpack.c.l.b16 %v55
  %v143 = vunpack.c.l.b16 %v56
  %v144 = vunpack.c.l.b16 %v57
  %v145 = vunpack.c.l.b16 %v58
  %v146 = vunpack.c.l.b16 %v59
  %v147 = vunpack.c.l.b16 %v60
  %v148 = vunpack.c.l.b16 %v61
  %v149 = vunpack.c.l.b16 %v62
  %v150 = vpack.c.b16 %v115, %v114
  %v151 = vpack.c.b16 %v117, %v116
  %v152 = vpack.c.b16 %v119, %v118
  %v153 = vpack.c.b16 %v121, %v120
  %v154 = vpack.c.b16 %v123, %v122
  %v155 = vpack.c.b16 %v125, %v124
  %v156 = vpack.c.b16 %v127, %v126
  %v157 = vpack.c.b16 %v129, %v128
  %v158 = vpack.c.b16 %v131, %v130
  %v159 = vpack.c.b16 %v133, %v132
  %v160 = vpack.c.b16 %v135, %v134
  %v161 = vpack.c.b16 %v137, %v136
  %v162 = vpack.c.b16 %v139, %v138
  %v163 = vpack.c.b16 %v141, %v140
  %v164 = vpack.c.b16 %v143, %v142
  %v165 = vpack.c.b16 %v145, %v144
  %v166 = vpack.c.b16 %v147, %v146
  %v167 = vpack.c.b16 %v149, %v148
  %vm186 = vcmask 261120
  %v188 = vsel %vm186, %v75, 0
  %190 = vmatprep.subr.bf16.mxu0 0
  %191 = vmatpush1.bf16.msra.mxu0 %v150
  %192 = vmatprep.subr.bf16.mxu0 0
  %193 = vmatpush1.bf16.msra.mxu0 %v151
  %194 = vmatprep.subr.bf16.mxu0 0
  %195 = vmatpush1.bf16.msra.mxu0 %v152
  %196 = vmatprep.subr.bf16.mxu0 0
  %197 = vmatpush1.bf16.msra.mxu0 %v153
  %198 = vmatprep.subr.bf16.mxu0 0
  %199 = vmatpush1.bf16.msra.mxu0 %v154
  %200 = vmatprep.subr.bf16.mxu0 0
  %201 = vmatpush1.bf16.msra.mxu0 %v155
  %202 = vmatprep.subr.bf16.mxu0 0
  %203 = vmatpush1.bf16.msra.mxu0 %v156
  %204 = vmatprep.subr.bf16.mxu0 0
  %205 = vmatpush1.bf16.msra.mxu0 %v157
  %206 = vmatprep.subr.bf16.mxu0 0
  %207 = vmatpush1.bf16.msra.mxu0 %v158
  %208 = vmatprep.subr.bf16.mxu0 0
  %209 = vmatpush1.bf16.msra.mxu0 %v159
  %210 = vmatprep.subr.bf16.mxu0 0
  %211 = vmatpush1.bf16.msra.mxu0 %v160
  %212 = vmatprep.subr.bf16.mxu0 0
  %213 = vmatpush1.bf16.msra.mxu0 %v161
  %214 = vmatprep.subr.bf16.mxu0 0
  %215 = vmatpush1.bf16.msra.mxu0 %v162
  %216 = vmatprep.subr.bf16.mxu0 0
  %217 = vmatpush1.bf16.msra.mxu0 %v163
  %218 = vmatprep.subr.bf16.mxu0 0
  %219 = vmatpush1.bf16.msra.mxu0 %v164
  %220 = vmatprep.subr.bf16.mxu0 0
  %221 = vmatpush1.bf16.msra.mxu0 %v165
  %222 = vmatprep.mubr.bf16.mxu0 %v74
  %223 = vmatmul.mubr.bf16.gmra.mrb[0].mxu0 %v73
  %v224 = vpop.f32.mrb[0].mxu0
  %v225 = vadd.f32 0.0, %v224
  %v226 = vpop.f32.mrb[0].mxu0
  %v227 = vpop.f32.mrb[0].mxu0
  %v228 = vadd.f32 0.0, %v227
  %v229 = vpop.f32.mrb[0].mxu0
  %230 = vdwg.mxu0
  %231 = vmatprep.subr.bf16.mxu0 0
  %232 = vmatpush1.bf16.msra.mxu0 %v166
  %233 = vmatprep.subr.bf16.mxu0 0
  %234 = vmatpush1.bf16.msra.mxu0 %v167
  %235 = vmatprep.subr.bf16.mxu0 0
  %236 = vmatpush1.bf16.msra.mxu0 0
  %237 = vmatprep.subr.bf16.mxu0 0
  %238 = vmatpush1.bf16.msra.mxu0 0
  %239 = vmatprep.subr.bf16.mxu0 0
  %240 = vmatpush1.bf16.msra.mxu0 0
  %241 = vmatprep.subr.bf16.mxu0 0
  %242 = vmatpush1.bf16.msra.mxu0 0
  %243 = vmatprep.subr.bf16.mxu0 0
  %244 = vmatpush1.bf16.msra.mxu0 0
  %245 = vmatprep.subr.bf16.mxu0 0
  %246 = vmatpush1.bf16.msra.mxu0 0
  %247 = vmatprep.subr.bf16.mxu0 0
  %248 = vmatpush1.bf16.msra.mxu0 0
  %249 = vmatprep.subr.bf16.mxu0 0
  %250 = vmatpush1.bf16.msra.mxu0 0
  %251 = vmatprep.subr.bf16.mxu0 0
  %252 = vmatpush1.bf16.msra.mxu0 0
  %253 = vmatprep.subr.bf16.mxu0 0
  %254 = vmatpush1.bf16.msra.mxu0 0
  %255 = vmatprep.subr.bf16.mxu0 0
  %256 = vmatpush1.bf16.msra.mxu0 0
  %257 = vmatprep.subr.bf16.mxu0 0
  %258 = vmatpush1.bf16.msra.mxu0 0
  %259 = vmatprep.subr.bf16.mxu0 0
  %260 = vmatpush1.bf16.msra.mxu0 0
  %261 = vmatprep.subr.bf16.mxu0 0
  %262 = vmatpush1.bf16.msra.mxu0 0
  %263 = vmatprep.mubr.bf16.mxu0 0
  %264 = vmatmul.mubr.bf16.gmra.mrb[0].mxu0 %v188
  %v265 = vpop.f32.mrb[0].mxu0
  %v266 = vadd.f32 %v225, %v265
  %v267 = vpop.f32.mrb[0].mxu0
  %v268 = vpop.f32.mrb[0].mxu0
  %v269 = vadd.f32 %v228, %v268
  %v270 = vpop.f32.mrb[0].mxu0
  %271 = vdwg.mxu0
  %v272 = vadd.f32 %v21, %v266
  %v273 = vadd.f32 %v22, %v269
  %274 = vst [vmem:[#allocation2] sm:$0xff] %v272
  %275 = vst [vmem:[#allocation2 + $0x8] sm:$0xff] %v273
  // Predicated region
  $region18: #{_lambda_.124} parent=0 // pred_check
    %p276 = pneg %p15
  $region19: #{_lambda_.124} parent=0 // pred_check_branch
    %278 = sbr.rel (%p276) target = $region21
  $region20: #{_lambda_.124} parent=0 // pred_region
    %v279 = vld [vmem:[#allocation2] sm:$0xff]
    %v280 = vld [vmem:[#allocation2 + $0x8] sm:$0xff]
    %v281 = vld [vmem:[%s2] sm:$0x1]
    %v283 = vlaneseq
    %v284 = vshrl.u32 %v283, 7
    %v285 = vsub.s32 0, %v284
    %v286 = vrot.slane %v281, %v285
    %v288 = vadd.f32 %v279, %v286
    %v289 = vadd.f32 %v280, %v286
    %v290 = vmax.f32 %v288, 0.0
    %v291 = vmax.f32 %v289, 0.0
    %292 = vst [vmem:[%s3] sm:$0xff] %v290
    %293 = vst [vmem:[%s3 + $0x8] sm:$0xff] %v291
  $region21: #{_lambda_.124} parent=0 // pred_fallthru
    _
  // Predicated region
  $region22: #{_lambda_.124} parent=0 // pred_check
    _
  $region23: #{_lambda_.124} parent=0 // pred_check_branch
    %295 = sbr.rel (0) target = $region25
  $region24: #{_lambda_.124} parent=0 // pred_region
    _
  $region25: #{_lambda_.124} parent=0 // pred_fallthru
    _
  // Predicated region
  $region26: #{_lambda_.124} parent=0 // pred_check
    _
  $region27: #{_lambda_.124} parent=0 // pred_check_branch
    %297 = sbr.rel (0) target = $region29
  $region28: #{_lambda_.124} parent=0 // pred_region
    _
  $region29: #{_lambda_.124} parent=0 // pred_fallthru
    _

// kernel: _lambda_.125
$region0: #{_lambda_.125}
  #allocation0 [shape = 'u32[]', space=smem, size = 0x4, offset = 0x4, fixed_abs, tag = 'smem constant byte address 0x4 - core index']
  #allocation1 [shape = 'u32[144,128]{1,0:T(1,128)}', space=vmem, size = 0x12000, scoped, tag = 'internal scratch']
  #allocation2 [shape = 'f32[16,128]{1,0:T(8,128)}', space=vmem, size = 0x2000, scoped, tag = 'scratch operand']
  %s0 = inlined_call_operand.vmem [shape: bf16[16,64], index: 0, kind: input, shape index: {}]
  %s1 = inlined_call_operand.vmem [shape: bf16[64,128], index: 1, kind: input, shape index: {}]
  %s2 = inlined_call_operand.vmem [shape: f32[1,128], index: 2, kind: input, shape index: {}]
  %s3 = inlined_call_operand.vmem [shape: f32[16,128], index: 3, kind: output, shape index: {}]
  %s4 = sld [smem:[#allocation0]]
  $region30: #{_lambda_.125} parent=0
    _
  %s6 = ssub.s32 1, %s4
  %s7 = scalar_select 0, %s6, %s4
  // Predicated region
  $region2: #{_lambda_.125} parent=0 // pred_check
    _
  $region3: #{_lambda_.125} parent=0 // pred_check_branch
    %9 = sbr.rel (0) target = $region5
  $region4: #{_lambda_.125} parent=0 // pred_region
    _
  $region5: #{_lambda_.125} parent=0 // pred_fallthru
    _
  // Predicated region
  $region6: #{_lambda_.125} parent=0 // pred_check
    _
  $region7: #{_lambda_.125} parent=0 // pred_check_branch
    %11 = sbr.rel (0) target = $region9
  $region8: #{_lambda_.125} parent=0 // pred_region
    _
  $region9: #{_lambda_.125} parent=0 // pred_fallthru
    _
  // Predicated region
  $region10: #{_lambda_.125} parent=0 // pred_check
    _
  $region11: #{_lambda_.125} parent=0 // pred_check_branch
    %13 = sbr.rel (0) target = $region13
  $region12: #{_lambda_.125} parent=0 // pred_region
    _
  $region13: #{_lambda_.125} parent=0 // pred_fallthru
    _
  %p15 = scmp.eq.s32.totalorder 0, 0
  // Predicated region
  $region14: #{_lambda_.125} parent=0 // pred_check
    %p16 = pneg %p15
  $region15: #{_lambda_.125} parent=0 // pred_check_branch
    %18 = sbr.rel (%p16) target = $region17
  $region16: #{_lambda_.125} parent=0 // pred_region
    %19 = vst [vmem:[#allocation2] sm:$0xff] 0.0
    %20 = vst [vmem:[#allocation2 + $0x8] sm:$0xff] 0.0
  $region17: #{_lambda_.125} parent=0 // pred_fallthru
    _
  %v21 = vld [vmem:[#allocation2] sm:$0xff]
  %v22 = vld [vmem:[#allocation2 + $0x8] sm:$0xff]
  %v23 = vld [vmem:[%s0] sm:$0xf]
  %v24 = vld [vmem:[%s0 + $0x4] sm:$0xf]
  %v25 = vld [vmem:[%s1] sm:$0xf]
  %v26 = vld [vmem:[%s1 + $0x4] sm:$0xf]
  %v27 = vld [vmem:[%s1 + $0x8] sm:$0xf]
  %v28 = vld [vmem:[%s1 + $0xc] sm:$0xf]
  %v29 = vld [vmem:[%s1 + $0x10] sm:$0xf]
  %v30 = vld [vmem:[%s1 + $0x14] sm:$0xf]
  %v31 = vld [vmem:[%s1 + $0x18] sm:$0xf]
  %v32 = vld [vmem:[%s1 + $0x1c] sm:$0xf]
  %v35 = vunpack.c.l.b16 %v23
  %v36 = vunpack.c.l.b16 %v24
  %v37 = vpack.c.b16 %v36, %v35
  %v46 = vunpack.c.l.b16 %v25
  %v47 = vunpack.c.l.b16 %v26
  %v48 = vunpack.c.l.b16 %v27
  %v49 = vunpack.c.l.b16 %v28
  %v50 = vunpack.c.l.b16 %v29
  %v51 = vunpack.c.l.b16 %v30
  %v52 = vunpack.c.l.b16 %v31
  %v53 = vunpack.c.l.b16 %v32
  %v54 = vpack.c.b16 %v47, %v46
  %v55 = vpack.c.b16 %v49, %v48
  %v56 = vpack.c.b16 %v51, %v50
  %v57 = vpack.c.b16 %v53, %v52
  %vm62 = vcmask 523264
  %v64 = vsel %vm62, %v37, 0
  %66 = vmatprep.subr.bf16.mxu0 0
  %67 = vmatpush1.bf16.msra.mxu0 %v54
  %68 = vmatprep.subr.bf16.mxu0 0
  %69 = vmatpush1.bf16.msra.mxu0 %v55
  %70 = vmatprep.subr.bf16.mxu0 0
  %71 = vmatpush1.bf16.msra.mxu0 %v56
  %72 = vmatprep.subr.bf16.mxu0 0
  %73 = vmatpush1.bf16.msra.mxu0 %v57
  %74 = vmatprep.subr.bf16.mxu0 0
  %75 = vmatpush1.bf16.msra.mxu0 0
  %76 = vmatprep.subr.bf16.mxu0 0
  %77 = vmatpush1.bf16.msra.mxu0 0
  %78 = vmatprep.subr.bf16.mxu0 0
  %79 = vmatpush1.bf16.msra.mxu0 0
  %80 = vmatprep.subr.bf16.mxu0 0
  %81 = vmatpush1.bf16.msra.mxu0 0
  %82 = vmatprep.subr.bf16.mxu0 0
  %83 = vmatpush1.bf16.msra.mxu0 0
  %84 = vmatprep.subr.bf16.mxu0 0
  %85 = vmatpush1.bf16.msra.mxu0 0
  %86 = vmatprep.subr.bf16.mxu0 0
  %87 = vmatpush1.bf16.msra.mxu0 0
  %88 = vmatprep.subr.bf16.mxu0 0
  %89 = vmatpush1.bf16.msra.mxu0 0
  %90 = vmatprep.subr.bf16.mxu0 0
  %91 = vmatpush1.bf16.msra.mxu0 0
  %92 = vmatprep.subr.bf16.mxu0 0
  %93 = vmatpush1.bf16.msra.mxu0 0
  %94 = vmatprep.subr.bf16.mxu0 0
  %95 = vmatpush1.bf16.msra.mxu0 0
  %96 = vmatprep.subr.bf16.mxu0 0
  %97 = vmatpush1.bf16.msra.mxu0 0
  %98 = vmatprep.mubr.bf16.mxu0 0
  %99 = vmatmul.mubr.bf16.gmra.mrb[0].mxu0 %v64
  %v100 = vpop.f32.mrb[0].mxu0
  %v101 = vadd.f32 0.0, %v100
  %v102 = vpop.f32.mrb[0].mxu0
  %v103 = vpop.f32.mrb[0].mxu0
  %v104 = vadd.f32 0.0, %v103
  %v105 = vpop.f32.mrb[0].mxu0
  %106 = vdwg.mxu0
  %v107 = vadd.f32 %v21, %v101
  %v108 = vadd.f32 %v22, %v104
  %109 = vst [vmem:[#allocation2] sm:$0xff] %v107
  %110 = vst [vmem:[#allocation2 + $0x8] sm:$0xff] %v108
  // Predicated region
  $region18: #{_lambda_.125} parent=0 // pred_check
    %p111 = pneg %p15
  $region19: #{_lambda_.125} parent=0 // pred_check_branch
    %113 = sbr.rel (%p111) target = $region21
  $region20: #{_lambda_.125} parent=0 // pred_region
    %v114 = vld [vmem:[#allocation2] sm:$0xff]
    %v115 = vld [vmem:[#allocation2 + $0x8] sm:$0xff]
    %v116 = vld [vmem:[%s2] sm:$0x1]
    %v118 = vlaneseq
    %v119 = vshrl.u32 %v118, 7
    %v120 = vsub.s32 0, %v119
    %v121 = vrot.slane %v116, %v120
    %v123 = vadd.f32 %v114, %v121
    %v124 = vadd.f32 %v115, %v121
    %v125 = vmax.f32 %v123, 0.0
    %v126 = vmax.f32 %v124, 0.0
    %127 = vst [vmem:[%s3] sm:$0xff] %v125
    %128 = vst [vmem:[%s3 + $0x8] sm:$0xff] %v126
  $region21: #{_lambda_.125} parent=0 // pred_fallthru
    _
  // Predicated region
  $region22: #{_lambda_.125} parent=0 // pred_check
    _
  $region23: #{_lambda_.125} parent=0 // pred_check_branch
    %130 = sbr.rel (0) target = $region25
  $region24: #{_lambda_.125} parent=0 // pred_region
    _
  $region25: #{_lambda_.125} parent=0 // pred_fallthru
    _
  // Predicated region
  $region26: #{_lambda_.125} parent=0 // pred_check
    _
  $region27: #{_lambda_.125} parent=0 // pred_check_branch
    %132 = sbr.rel (0) target = $region29
  $region28: #{_lambda_.125} parent=0 // pred_region
    _
  $region29: #{_lambda_.125} parent=0 // pred_fallthru
    _

// kernel: _lambda_.127
$region0: #{_lambda_.127}
  #allocation0 [shape = 'u32[]', space=smem, size = 0x4, offset = 0x4, fixed_abs, tag = 'smem constant byte address 0x4 - core index']
  #allocation1 [shape = 'u32[144,128]{1,0:T(1,128)}', space=vmem, size = 0x12000, scoped, tag = 'internal scratch']
  #allocation2 [shape = 'f32[16,128]{1,0:T(8,128)}', space=vmem, size = 0x2000, scoped, tag = 'scratch operand']
  %s0 = inlined_call_operand.vmem [shape: bf16[16,48], index: 0, kind: input, shape index: {}]
  %s1 = inlined_call_operand.vmem [shape: bf16[48,128], index: 1, kind: input, shape index: {}]
  %s2 = inlined_call_operand.vmem [shape: f32[1,128], index: 2, kind: input, shape index: {}]
  %s3 = inlined_call_operand.vmem [shape: f32[16,128], index: 3, kind: output, shape index: {}]
  %s4 = sld [smem:[#allocation0]]
  $region30: #{_lambda_.127} parent=0
    _
  %s6 = ssub.s32 1, %s4
  %s7 = scalar_select 0, %s6, %s4
  // Predicated region
  $region2: #{_lambda_.127} parent=0 // pred_check
    _
  $region3: #{_lambda_.127} parent=0 // pred_check_branch
    %9 = sbr.rel (0) target = $region5
  $region4: #{_lambda_.127} parent=0 // pred_region
    _
  $region5: #{_lambda_.127} parent=0 // pred_fallthru
    _
  // Predicated region
  $region6: #{_lambda_.127} parent=0 // pred_check
    _
  $region7: #{_lambda_.127} parent=0 // pred_check_branch
    %11 = sbr.rel (0) target = $region9
  $region8: #{_lambda_.127} parent=0 // pred_region
    _
  $region9: #{_lambda_.127} parent=0 // pred_fallthru
    _
  // Predicated region
  $region10: #{_lambda_.127} parent=0 // pred_check
    _
  $region11: #{_lambda_.127} parent=0 // pred_check_branch
    %13 = sbr.rel (0) target = $region13
  $region12: #{_lambda_.127} parent=0 // pred_region
    _
  $region13: #{_lambda_.127} parent=0 // pred_fallthru
    _
  %p15 = scmp.eq.s32.totalorder 0, 0
  // Predicated region
  $region14: #{_lambda_.127} parent=0 // pred_check
    %p16 = pneg %p15
  $region15: #{_lambda_.127} parent=0 // pred_check_branch
    %18 = sbr.rel (%p16) target = $region17
  $region16: #{_lambda_.127} parent=0 // pred_region
    %19 = vst [vmem:[#allocation2] sm:$0xff] 0.0
    %20 = vst [vmem:[#allocation2 + $0x8] sm:$0xff] 0.0
  $region17: #{_lambda_.127} parent=0 // pred_fallthru
    _
  %v21 = vld [vmem:[#allocation2] sm:$0xff]
  %v22 = vld [vmem:[#allocation2 + $0x8] sm:$0xff]
  %v23 = vld [vmem:[%s0] sm:$0xf]
  %v24 = vld [vmem:[%s0 + $0x4] sm:$0xf]
  %v25 = vld [vmem:[%s1] sm:$0xf]
  %v26 = vld [vmem:[%s1 + $0x4] sm:$0xf]
  %v27 = vld [vmem:[%s1 + $0x8] sm:$0xf]
  %v28 = vld [vmem:[%s1 + $0xc] sm:$0xf]
  %v29 = vld [vmem:[%s1 + $0x10] sm:$0xf]
  %v30 = vld [vmem:[%s1 + $0x14] sm:$0xf]
  %v33 = vunpack.c.l.b16 %v23
  %v34 = vunpack.c.l.b16 %v24
  %v35 = vpack.c.b16 %v34, %v33
  %v42 = vunpack.c.l.b16 %v25
  %v43 = vunpack.c.l.b16 %v26
  %v44 = vunpack.c.l.b16 %v27
  %v45 = vunpack.c.l.b16 %v28
  %v46 = vunpack.c.l.b16 %v29
  %v47 = vunpack.c.l.b16 %v30
  %v48 = vpack.c.b16 %v43, %v42
  %v49 = vpack.c.b16 %v45, %v44
  %v50 = vpack.c.b16 %v47, %v46
  %vm54 = vcmask 392192
  %v56 = vsel %vm54, %v35, 0
  %58 = vmatprep.subr.bf16.mxu0 0
  %59 = vmatpush1.bf16.msra.mxu0 %v48
  %60 = vmatprep.subr.bf16.mxu0 0
  %61 = vmatpush1.bf16.msra.mxu0 %v49
  %62 = vmatprep.subr.bf16.mxu0 0
  %63 = vmatpush1.bf16.msra.mxu0 %v50
  %64 = vmatprep.subr.bf16.mxu0 0
  %65 = vmatpush1.bf16.msra.mxu0 0
  %66 = vmatprep.subr.bf16.mxu0 0
  %67 = vmatpush1.bf16.msra.mxu0 0
  %68 = vmatprep.subr.bf16.mxu0 0
  %69 = vmatpush1.bf16.msra.mxu0 0
  %70 = vmatprep.subr.bf16.mxu0 0
  %71 = vmatpush1.bf16.msra.mxu0 0
  %72 = vmatprep.subr.bf16.mxu0 0
  %73 = vmatpush1.bf16.msra.mxu0 0
  %74 = vmatprep.subr.bf16.mxu0 0
  %75 = vmatpush1.bf16.msra.mxu0 0
  %76 = vmatprep.subr.bf16.mxu0 0
  %77 = vmatpush1.bf16.msra.mxu0 0
  %78 = vmatprep.subr.bf16.mxu0 0
  %79 = vmatpush1.bf16.msra.mxu0 0
  %80 = vmatprep.subr.bf16.mxu0 0
  %81 = vmatpush1.bf16.msra.mxu0 0
  %82 = vmatprep.subr.bf16.mxu0 0
  %83 = vmatpush1.bf16.msra.mxu0 0
  %84 = vmatprep.subr.bf16.mxu0 0
  %85 = vmatpush1.bf16.msra.mxu0 0
  %86 = vmatprep.subr.bf16.mxu0 0
  %87 = vmatpush1.bf16.msra.mxu0 0
  %88 = vmatprep.subr.bf16.mxu0 0
  %89 = vmatpush1.bf16.msra.mxu0 0
  %90 = vmatprep.mubr.bf16.mxu0 0
  %91 = vmatmul.mubr.bf16.gmra.mrb[0].mxu0 %v56
  %v92 = vpop.f32.mrb[0].mxu0
  %v93 = vadd.f32 0.0, %v92
  %v94 = vpop.f32.mrb[0].mxu0
  %v95 = vpop.f32.mrb[0].mxu0
  %v96 = vadd.f32 0.0, %v95
  %v97 = vpop.f32.mrb[0].mxu0
  %98 = vdwg.mxu0
  %v99 = vadd.f32 %v21, %v93
  %v100 = vadd.f32 %v22, %v96
  %101 = vst [vmem:[#allocation2] sm:$0xff] %v99
  %102 = vst [vmem:[#allocation2 + $0x8] sm:$0xff] %v100
  // Predicated region
  $region18: #{_lambda_.127} parent=0 // pred_check
    %p103 = pneg %p15
  $region19: #{_lambda_.127} parent=0 // pred_check_branch
    %105 = sbr.rel (%p103) target = $region21
  $region20: #{_lambda_.127} parent=0 // pred_region
    %v106 = vld [vmem:[#allocation2] sm:$0xff]
    %v107 = vld [vmem:[#allocation2 + $0x8] sm:$0xff]
    %v108 = vld [vmem:[%s2] sm:$0x1]
    %v110 = vlaneseq
    %v111 = vshrl.u32 %v110, 7
    %v112 = vsub.s32 0, %v111
    %v113 = vrot.slane %v108, %v112
    %v115 = vadd.f32 %v106, %v113
    %v116 = vadd.f32 %v107, %v113
    %v117 = vmax.f32 %v115, 0.0
    %v118 = vmax.f32 %v116, 0.0
    %119 = vst [vmem:[%s3] sm:$0xff] %v117
    %120 = vst [vmem:[%s3 + $0x8] sm:$0xff] %v118
  $region21: #{_lambda_.127} parent=0 // pred_fallthru
    _
  // Predicated region
  $region22: #{_lambda_.127} parent=0 // pred_check
    _
  $region23: #{_lambda_.127} parent=0 // pred_check_branch
    %122 = sbr.rel (0) target = $region25
  $region24: #{_lambda_.127} parent=0 // pred_region
    _
  $region25: #{_lambda_.127} parent=0 // pred_fallthru
    _
  // Predicated region
  $region26: #{_lambda_.127} parent=0 // pred_check
    _
  $region27: #{_lambda_.127} parent=0 // pred_check_branch
    %124 = sbr.rel (0) target = $region29
  $region28: #{_lambda_.127} parent=0 // pred_region
    _
  $region29: #{_lambda_.127} parent=0 // pred_fallthru
    _

// kernel: _lambda_.128
$region0: #{_lambda_.128}
  #allocation0 [shape = 'u32[]', space=smem, size = 0x4, offset = 0x4, fixed_abs, tag = 'smem constant byte address 0x4 - core index']
  #allocation1 [shape = 'u32[144,128]{1,0:T(1,128)}', space=vmem, size = 0x12000, scoped, tag = 'internal scratch']
  #allocation2 [shape = 'f32[16,128]{1,0:T(8,128)}', space=vmem, size = 0x2000, scoped, tag = 'scratch operand']
  %s0 = inlined_call_operand.vmem [shape: bf16[16,96], index: 0, kind: input, shape index: {}]
  %s1 = inlined_call_operand.vmem [shape: bf16[96,128], index: 1, kind: input, shape index: {}]
  %s2 = inlined_call_operand.vmem [shape: f32[1,128], index: 2, kind: input, shape index: {}]
  %s3 = inlined_call_operand.vmem [shape: f32[16,128], index: 3, kind: output, shape index: {}]
  %s4 = sld [smem:[#allocation0]]
  $region30: #{_lambda_.128} parent=0
    _
  %s6 = ssub.s32 1, %s4
  %s7 = scalar_select 0, %s6, %s4
  // Predicated region
  $region2: #{_lambda_.128} parent=0 // pred_check
    _
  $region3: #{_lambda_.128} parent=0 // pred_check_branch
    %9 = sbr.rel (0) target = $region5
  $region4: #{_lambda_.128} parent=0 // pred_region
    _
  $region5: #{_lambda_.128} parent=0 // pred_fallthru
    _
  // Predicated region
  $region6: #{_lambda_.128} parent=0 // pred_check
    _
  $region7: #{_lambda_.128} parent=0 // pred_check_branch
    %11 = sbr.rel (0) target = $region9
  $region8: #{_lambda_.128} parent=0 // pred_region
    _
  $region9: #{_lambda_.128} parent=0 // pred_fallthru
    _
  // Predicated region
  $region10: #{_lambda_.128} parent=0 // pred_check
    _
  $region11: #{_lambda_.128} parent=0 // pred_check_branch
    %13 = sbr.rel (0) target = $region13
  $region12: #{_lambda_.128} parent=0 // pred_region
    _
  $region13: #{_lambda_.128} parent=0 // pred_fallthru
    _
  %p15 = scmp.eq.s32.totalorder 0, 0
  // Predicated region
  $region14: #{_lambda_.128} parent=0 // pred_check
    %p16 = pneg %p15
  $region15: #{_lambda_.128} parent=0 // pred_check_branch
    %18 = sbr.rel (%p16) target = $region17
  $region16: #{_lambda_.128} parent=0 // pred_region
    %19 = vst [vmem:[#allocation2] sm:$0xff] 0.0
    %20 = vst [vmem:[#allocation2 + $0x8] sm:$0xff] 0.0
  $region17: #{_lambda_.128} parent=0 // pred_fallthru
    _
  %v21 = vld [vmem:[#allocation2] sm:$0xff]
  %v22 = vld [vmem:[#allocation2 + $0x8] sm:$0xff]
  %v23 = vld [vmem:[%s0] sm:$0xf]
  %v24 = vld [vmem:[%s0 + $0x4] sm:$0xf]
  %v25 = vld [vmem:[%s1] sm:$0xf]
  %v26 = vld [vmem:[%s1 + $0x4] sm:$0xf]
  %v27 = vld [vmem:[%s1 + $0x8] sm:$0xf]
  %v28 = vld [vmem:[%s1 + $0xc] sm:$0xf]
  %v29 = vld [vmem:[%s1 + $0x10] sm:$0xf]
  %v30 = vld [vmem:[%s1 + $0x14] sm:$0xf]
  %v31 = vld [vmem:[%s1 + $0x18] sm:$0xf]
  %v32 = vld [vmem:[%s1 + $0x1c] sm:$0xf]
  %v33 = vld [vmem:[%s1 + $0x20] sm:$0xf]
  %v34 = vld [vmem:[%s1 + $0x24] sm:$0xf]
  %v35 = vld [vmem:[%s1 + $0x28] sm:$0xf]
  %v36 = vld [vmem:[%s1 + $0x2c] sm:$0xf]
  %v39 = vunpack.c.l.b16 %v23
  %v40 = vunpack.c.l.b16 %v24
  %v41 = vpack.c.b16 %v40, %v39
  %v54 = vunpack.c.l.b16 %v25
  %v55 = vunpack.c.l.b16 %v26
  %v56 = vunpack.c.l.b16 %v27
  %v57 = vunpack.c.l.b16 %v28
  %v58 = vunpack.c.l.b16 %v29
  %v59 = vunpack.c.l.b16 %v30
  %v60 = vunpack.c.l.b16 %v31
  %v61 = vunpack.c.l.b16 %v32
  %v62 = vunpack.c.l.b16 %v33
  %v63 = vunpack.c.l.b16 %v34
  %v64 = vunpack.c.l.b16 %v35
  %v65 = vunpack.c.l.b16 %v36
  %v66 = vpack.c.b16 %v55, %v54
  %v67 = vpack.c.b16 %v57, %v56
  %v68 = vpack.c.b16 %v59, %v58
  %v69 = vpack.c.b16 %v61, %v60
  %v70 = vpack.c.b16 %v63, %v62
  %v71 = vpack.c.b16 %v65, %v64
  %vm78 = vcmask 785408
  %v80 = vsel %vm78, %v41, 0
  %82 = vmatprep.subr.bf16.mxu0 0
  %83 = vmatpush1.bf16.msra.mxu0 %v66
  %84 = vmatprep.subr.bf16.mxu0 0
  %85 = vmatpush1.bf16.msra.mxu0 %v67
  %86 = vmatprep.subr.bf16.mxu0 0
  %87 = vmatpush1.bf16.msra.mxu0 %v68
  %88 = vmatprep.subr.bf16.mxu0 0
  %89 = vmatpush1.bf16.msra.mxu0 %v69
  %90 = vmatprep.subr.bf16.mxu0 0
  %91 = vmatpush1.bf16.msra.mxu0 %v70
  %92 = vmatprep.subr.bf16.mxu0 0
  %93 = vmatpush1.bf16.msra.mxu0 %v71
  %94 = vmatprep.subr.bf16.mxu0 0
  %95 = vmatpush1.bf16.msra.mxu0 0
  %96 = vmatprep.subr.bf16.mxu0 0
  %97 = vmatpush1.bf16.msra.mxu0 0
  %98 = vmatprep.subr.bf16.mxu0 0
  %99 = vmatpush1.bf16.msra.mxu0 0
  %100 = vmatprep.subr.bf16.mxu0 0
  %101 = vmatpush1.bf16.msra.mxu0 0
  %102 = vmatprep.subr.bf16.mxu0 0
  %103 = vmatpush1.bf16.msra.mxu0 0
  %104 = vmatprep.subr.bf16.mxu0 0
  %105 = vmatpush1.bf16.msra.mxu0 0
  %106 = vmatprep.subr.bf16.mxu0 0
  %107 = vmatpush1.bf16.msra.mxu0 0
  %108 = vmatprep.subr.bf16.mxu0 0
  %109 = vmatpush1.bf16.msra.mxu0 0
  %110 = vmatprep.subr.bf16.mxu0 0
  %111 = vmatpush1.bf16.msra.mxu0 0
  %112 = vmatprep.subr.bf16.mxu0 0
  %113 = vmatpush1.bf16.msra.mxu0 0
  %114 = vmatprep.mubr.bf16.mxu0 0
  %115 = vmatmul.mubr.bf16.gmra.mrb[0].mxu0 %v80
  %v116 = vpop.f32.mrb[0].mxu0
  %v117 = vadd.f32 0.0, %v116
  %v118 = vpop.f32.mrb[0].mxu0
  %v119 = vpop.f32.mrb[0].mxu0
  %v120 = vadd.f32 0.0, %v119
  %v121 = vpop.f32.mrb[0].mxu0
  %122 = vdwg.mxu0
  %v123 = vadd.f32 %v21, %v117
  %v124 = vadd.f32 %v22, %v120
  %125 = vst [vmem:[#allocation2] sm:$0xff] %v123
  %126 = vst [vmem:[#allocation2 + $0x8] sm:$0xff] %v124
  // Predicated region
  $region18: #{_lambda_.128} parent=0 // pred_check
    %p127 = pneg %p15
  $region19: #{_lambda_.128} parent=0 // pred_check_branch
    %129 = sbr.rel (%p127) target = $region21
  $region20: #{_lambda_.128} parent=0 // pred_region
    %v130 = vld [vmem:[#allocation2] sm:$0xff]
    %v131 = vld [vmem:[#allocation2 + $0x8] sm:$0xff]
    %v132 = vld [vmem:[%s2] sm:$0x1]
    %v134 = vlaneseq
    %v135 = vshrl.u32 %v134, 7
    %v136 = vsub.s32 0, %v135
    %v137 = vrot.slane %v132, %v136
    %v139 = vadd.f32 %v130, %v137
    %v140 = vadd.f32 %v131, %v137
    %v141 = vmax.f32 %v139, 0.0
    %v142 = vmax.f32 %v140, 0.0
    %143 = vst [vmem:[%s3] sm:$0xff] %v141
    %144 = vst [vmem:[%s3 + $0x8] sm:$0xff] %v142
  $region21: #{_lambda_.128} parent=0 // pred_fallthru
    _
  // Predicated region
  $region22: #{_lambda_.128} parent=0 // pred_check
    _
  $region23: #{_lambda_.128} parent=0 // pred_check_branch
    %146 = sbr.rel (0) target = $region25
  $region24: #{_lambda_.128} parent=0 // pred_region
    _
  $region25: #{_lambda_.128} parent=0 // pred_fallthru
    _
  // Predicated region
  $region26: #{_lambda_.128} parent=0 // pred_check
    _
  $region27: #{_lambda_.128} parent=0 // pred_check_branch
    %148 = sbr.rel (0) target = $region29
  $region28: #{_lambda_.128} parent=0 // pred_region
    _
  $region29: #{_lambda_.128} parent=0 // pred_fallthru
    _

// kernel: _lambda_.129
$region0: #{_lambda_.129}
  #allocation0 [shape = 'u32[]', space=smem, size = 0x4, offset = 0x4, fixed_abs, tag = 'smem constant byte address 0x4 - core index']
  #allocation1 [shape = 'u32[144,128]{1,0:T(1,128)}', space=vmem, size = 0x12000, scoped, tag = 'internal scratch']
  #allocation2 [shape = 'f32[16,128]{1,0:T(8,128)}', space=vmem, size = 0x2000, scoped, tag = 'scratch operand']
  %s0 = inlined_call_operand.vmem [shape: bf16[16,32], index: 0, kind: input, shape index: {}]
  %s1 = inlined_call_operand.vmem [shape: bf16[32,128], index: 1, kind: input, shape index: {}]
  %s2 = inlined_call_operand.vmem [shape: f32[1,128], index: 2, kind: input, shape index: {}]
  %s3 = inlined_call_operand.vmem [shape: f32[16,128], index: 3, kind: input, shape index: {}]
  %s4 = inlined_call_operand.vmem [shape: f32[16,128], index: 4, kind: output, shape index: {}]
  %s5 = sld [smem:[#allocation0]]
  $region34: #{_lambda_.129} parent=0
    _
  %s7 = ssub.s32 1, %s5
  %s8 = scalar_select 0, %s7, %s5
  // Predicated region
  $region2: #{_lambda_.129} parent=0 // pred_check
    _
  $region3: #{_lambda_.129} parent=0 // pred_check_branch
    %10 = sbr.rel (0) target = $region5
  $region4: #{_lambda_.129} parent=0 // pred_region
    _
  $region5: #{_lambda_.129} parent=0 // pred_fallthru
    _
  // Predicated region
  $region6: #{_lambda_.129} parent=0 // pred_check
    _
  $region7: #{_lambda_.129} parent=0 // pred_check_branch
    %12 = sbr.rel (0) target = $region9
  $region8: #{_lambda_.129} parent=0 // pred_region
    _
  $region9: #{_lambda_.129} parent=0 // pred_fallthru
    _
  // Predicated region
  $region10: #{_lambda_.129} parent=0 // pred_check
    _
  $region11: #{_lambda_.129} parent=0 // pred_check_branch
    %14 = sbr.rel (0) target = $region13
  $region12: #{_lambda_.129} parent=0 // pred_region
    _
  $region13: #{_lambda_.129} parent=0 // pred_fallthru
    _
  // Predicated region
  $region14: #{_lambda_.129} parent=0 // pred_check
    _
  $region15: #{_lambda_.129} parent=0 // pred_check_branch
    %16 = sbr.rel (0) target = $region17
  $region16: #{_lambda_.129} parent=0 // pred_region
    _
  $region17: #{_lambda_.129} parent=0 // pred_fallthru
    _
  %p18 = scmp.eq.s32.totalorder 0, 0
  // Predicated region
  $region18: #{_lambda_.129} parent=0 // pred_check
    %p19 = pneg %p18
  $region19: #{_lambda_.129} parent=0 // pred_check_branch
    %21 = sbr.rel (%p19) target = $region21
  $region20: #{_lambda_.129} parent=0 // pred_region
    %22 = vst [vmem:[#allocation2] sm:$0xff] 0.0
    %23 = vst [vmem:[#allocation2 + $0x8] sm:$0xff] 0.0
  $region21: #{_lambda_.129} parent=0 // pred_fallthru
    _
  %v24 = vld [vmem:[#allocation2] sm:$0xff]
  %v25 = vld [vmem:[#allocation2 + $0x8] sm:$0xff]
  %v26 = vld [vmem:[%s0] sm:$0xf]
  %v27 = vld [vmem:[%s0 + $0x4] sm:$0xf]
  %v28 = vld [vmem:[%s1] sm:$0xf]
  %v29 = vld [vmem:[%s1 + $0x4] sm:$0xf]
  %v30 = vld [vmem:[%s1 + $0x8] sm:$0xf]
  %v31 = vld [vmem:[%s1 + $0xc] sm:$0xf]
  %v34 = vunpack.c.l.b16 %v26
  %v35 = vunpack.c.l.b16 %v27
  %v36 = vpack.c.b16 %v35, %v34
  %v41 = vunpack.c.l.b16 %v28
  %v42 = vunpack.c.l.b16 %v29
  %v43 = vunpack.c.l.b16 %v30
  %v44 = vunpack.c.l.b16 %v31
  %v45 = vpack.c.b16 %v42, %v41
  %v46 = vpack.c.b16 %v44, %v43
  %vm49 = vcmask 261120
  %v51 = vsel %vm49, %v36, 0
  %53 = vmatprep.subr.bf16.mxu0 0
  %54 = vmatpush1.bf16.msra.mxu0 %v45
  %55 = vmatprep.subr.bf16.mxu0 0
  %56 = vmatpush1.bf16.msra.mxu0 %v46
  %57 = vmatprep.subr.bf16.mxu0 0
  %58 = vmatpush1.bf16.msra.mxu0 0
  %59 = vmatprep.subr.bf16.mxu0 0
  %60 = vmatpush1.bf16.msra.mxu0 0
  %61 = vmatprep.subr.bf16.mxu0 0
  %62 = vmatpush1.bf16.msra.mxu0 0
  %63 = vmatprep.subr.bf16.mxu0 0
  %64 = vmatpush1.bf16.msra.mxu0 0
  %65 = vmatprep.subr.bf16.mxu0 0
  %66 = vmatpush1.bf16.msra.mxu0 0
  %67 = vmatprep.subr.bf16.mxu0 0
  %68 = vmatpush1.bf16.msra.mxu0 0
  %69 = vmatprep.subr.bf16.mxu0 0
  %70 = vmatpush1.bf16.msra.mxu0 0
  %71 = vmatprep.subr.bf16.mxu0 0
  %72 = vmatpush1.bf16.msra.mxu0 0
  %73 = vmatprep.subr.bf16.mxu0 0
  %74 = vmatpush1.bf16.msra.mxu0 0
  %75 = vmatprep.subr.bf16.mxu0 0
  %76 = vmatpush1.bf16.msra.mxu0 0
  %77 = vmatprep.subr.bf16.mxu0 0
  %78 = vmatpush1.bf16.msra.mxu0 0
  %79 = vmatprep.subr.bf16.mxu0 0
  %80 = vmatpush1.bf16.msra.mxu0 0
  %81 = vmatprep.subr.bf16.mxu0 0
  %82 = vmatpush1.bf16.msra.mxu0 0
  %83 = vmatprep.subr.bf16.mxu0 0
  %84 = vmatpush1.bf16.msra.mxu0 0
  %85 = vmatprep.mubr.bf16.mxu0 0
  %86 = vmatmul.mubr.bf16.gmra.mrb[0].mxu0 %v51
  %v87 = vpop.f32.mrb[0].mxu0
  %v88 = vadd.f32 0.0, %v87
  %v89 = vpop.f32.mrb[0].mxu0
  %v90 = vpop.f32.mrb[0].mxu0
  %v91 = vadd.f32 0.0, %v90
  %v92 = vpop.f32.mrb[0].mxu0
  %93 = vdwg.mxu0
  %v94 = vadd.f32 %v24, %v88
  %v95 = vadd.f32 %v25, %v91
  %96 = vst [vmem:[#allocation2] sm:$0xff] %v94
  %97 = vst [vmem:[#allocation2 + $0x8] sm:$0xff] %v95
  // Predicated region
  $region22: #{_lambda_.129} parent=0 // pred_check
    %p98 = pneg %p18
  $region23: #{_lambda_.129} parent=0 // pred_check_branch
    %100 = sbr.rel (%p98) target = $region25
  $region24: #{_lambda_.129} parent=0 // pred_region
    %v101 = vld [vmem:[#allocation2] sm:$0xff]
    %v102 = vld [vmem:[#allocation2 + $0x8] sm:$0xff]
    %v103 = vld [vmem:[%s2] sm:$0x1]
    %v105 = vlaneseq
    %v106 = vshrl.u32 %v105, 7
    %v107 = vsub.s32 0, %v106
    %v108 = vrot.slane %v103, %v107
    %v110 = vadd.f32 %v101, %v108
    %v111 = vadd.f32 %v102, %v108
    %v112 = vmax.f32 %v110, 0.0
    %v113 = vmax.f32 %v111, 0.0
    %v114 = vld [vmem:[%s3] sm:$0xff]
    %v115 = vld [vmem:[%s3 + $0x8] sm:$0xff]
    %v116 = vadd.f32 %v112, %v114
    %v117 = vadd.f32 %v113, %v115
    %118 = vst [vmem:[%s4] sm:$0xff] %v116
    %119 = vst [vmem:[%s4 + $0x8] sm:$0xff] %v117
  $region25: #{_lambda_.129} parent=0 // pred_fallthru
    _
  // Predicated region
  $region26: #{_lambda_.129} parent=0 // pred_check
    _
  $region27: #{_lambda_.129} parent=0 // pred_check_branch
    %121 = sbr.rel (0) target = $region29
  $region28: #{_lambda_.129} parent=0 // pred_region
    _
  $region29: #{_lambda_.129} parent=0 // pred_fallthru
    _
  // Predicated region
  $region30: #{_lambda_.129} parent=0 // pred_check
    _
  $region31: #{_lambda_.129} parent=0 // pred_check_branch
    %123 = sbr.rel (0) target = $region33
  $region32: #{_lambda_.129} parent=0 // pred_region
    _
  $region33: #{_lambda_.129} parent=0 // pred_fallthru
    _

// kernel: _lambda_.145
$region0: #{_lambda_.145}
  #allocation0 [shape = 'u32[]', space=smem, size = 0x4, offset = 0x4, fixed_abs, tag = 'smem constant byte address 0x4 - core index']
  #allocation1 [shape = 'u32[144,128]{1,0:T(1,128)}', space=vmem, size = 0x12000, scoped, tag = 'internal scratch']
  #allocation2 [shape = 'f32[16,128]{1,0:T(8,128)}', space=vmem, size = 0x2000, scoped, tag = 'scratch operand']
  %s0 = inlined_call_operand.vmem [shape: bf16[16,576], index: 0, kind: input, shape index: {}]
  %s1 = inlined_call_operand.vmem [shape: bf16[576,128], index: 1, kind: input, shape index: {}]
  %s2 = inlined_call_operand.vmem [shape: f32[1,128], index: 2, kind: input, shape index: {}]
  %s3 = inlined_call_operand.vmem [shape: f32[16,128], index: 3, kind: output, shape index: {}]
  %s4 = sld [smem:[#allocation0]]
  $region30: #{_lambda_.145} parent=0
    _
  %s6 = ssub.s32 1, %s4
  %s7 = scalar_select 0, %s6, %s4
  // Predicated region
  $region2: #{_lambda_.145} parent=0 // pred_check
    _
  $region3: #{_lambda_.145} parent=0 // pred_check_branch
    %9 = sbr.rel (0) target = $region5
  $region4: #{_lambda_.145} parent=0 // pred_region
    _
  $region5: #{_lambda_.145} parent=0 // pred_fallthru
    _
  // Predicated region
  $region6: #{_lambda_.145} parent=0 // pred_check
    _
  $region7: #{_lambda_.145} parent=0 // pred_check_branch
    %11 = sbr.rel (0) target = $region9
  $region8: #{_lambda_.145} parent=0 // pred_region
    _
  $region9: #{_lambda_.145} parent=0 // pred_fallthru
    _
  // Predicated region
  $region10: #{_lambda_.145} parent=0 // pred_check
    _
  $region11: #{_lambda_.145} parent=0 // pred_check_branch
    %13 = sbr.rel (0) target = $region13
  $region12: #{_lambda_.145} parent=0 // pred_region
    _
  $region13: #{_lambda_.145} parent=0 // pred_fallthru
    _
  %p15 = scmp.eq.s32.totalorder 0, 0
  // Predicated region
  $region14: #{_lambda_.145} parent=0 // pred_check
    %p16 = pneg %p15
  $region15: #{_lambda_.145} parent=0 // pred_check_branch
    %18 = sbr.rel (%p16) target = $region17
  $region16: #{_lambda_.145} parent=0 // pred_region
    %19 = vst [vmem:[#allocation2] sm:$0xff] 0.0
    %20 = vst [vmem:[#allocation2 + $0x8] sm:$0xff] 0.0
  $region17: #{_lambda_.145} parent=0 // pred_fallthru
    _
  %v21 = vld [vmem:[#allocation2] sm:$0xff]
  %v22 = vld [vmem:[#allocation2 + $0x8] sm:$0xff]
  %v23 = vld [vmem:[%s0] sm:$0xff]
  %v24 = vld [vmem:[%s0 + $0x8] sm:$0xff]
  %v25 = vld [vmem:[%s0 + $0x10] sm:$0xf]
  %v26 = vld [vmem:[%s0 + $0x14] sm:$0xff]
  %v27 = vld [vmem:[%s0 + $0x1c] sm:$0xff]
  %v28 = vld [vmem:[%s0 + $0x24] sm:$0xf]
  %v29 = vld [vmem:[%s1] sm:$0xf]
  %v30 = vld [vmem:[%s1 + $0x4] sm:$0xf]
  %v31 = vld [vmem:[%s1 + $0x8] sm:$0xf]
  %v32 = vld [vmem:[%s1 + $0xc] sm:$0xf]
  %v33 = vld [vmem:[%s1 + $0x10] sm:$0xf]
  %v34 = vld [vmem:[%s1 + $0x14] sm:$0xf]
  %v35 = vld [vmem:[%s1 + $0x18] sm:$0xf]
  %v36 = vld [vmem:[%s1 + $0x1c] sm:$0xf]
  %v37 = vld [vmem:[%s1 + $0x20] sm:$0xf]
  %v38 = vld [vmem:[%s1 + $0x24] sm:$0xf]
  %v39 = vld [vmem:[%s1 + $0x28] sm:$0xf]
  %v40 = vld [vmem:[%s1 + $0x2c] sm:$0xf]
  %v41 = vld [vmem:[%s1 + $0x30] sm:$0xf]
  %v42 = vld [vmem:[%s1 + $0x34] sm:$0xf]
  %v43 = vld [vmem:[%s1 + $0x38] sm:$0xf]
  %v44 = vld [vmem:[%s1 + $0x3c] sm:$0xf]
  %v45 = vld [vmem:[%s1 + $0x40] sm:$0xf]
  %v46 = vld [vmem:[%s1 + $0x44] sm:$0xf]
  %v47 = vld [vmem:[%s1 + $0x48] sm:$0xf]
  %v48 = vld [vmem:[%s1 + $0x4c] sm:$0xf]
  %v49 = vld [vmem:[%s1 + $0x50] sm:$0xf]
  %v50 = vld [vmem:[%s1 + $0x54] sm:$0xf]
  %v51 = vld [vmem:[%s1 + $0x58] sm:$0xf]
  %v52 = vld [vmem:[%s1 + $0x5c] sm:$0xf]
  %v53 = vld [vmem:[%s1 + $0x60] sm:$0xf]
  %v54 = vld [vmem:[%s1 + $0x64] sm:$0xf]
  %v55 = vld [vmem:[%s1 + $0x68] sm:$0xf]
  %v56 = vld [vmem:[%s1 + $0x6c] sm:$0xf]
  %v57 = vld [vmem:[%s1 + $0x70] sm:$0xf]
  %v58 = vld [vmem:[%s1 + $0x74] sm:$0xf]
  %v59 = vld [vmem:[%s1 + $0x78] sm:$0xf]
  %v60 = vld [vmem:[%s1 + $0x7c] sm:$0xf]
  %v61 = vld [vmem:[%s1 + $0x80] sm:$0xf]
  %v62 = vld [vmem:[%s1 + $0x84] sm:$0xf]
  %v63 = vld [vmem:[%s1 + $0x88] sm:$0xf]
  %v64 = vld [vmem:[%s1 + $0x8c] sm:$0xf]
  %v65 = vld [vmem:[%s1 + $0x90] sm:$0xf]
  %v66 = vld [vmem:[%s1 + $0x94] sm:$0xf]
  %v67 = vld [vmem:[%s1 + $0x98] sm:$0xf]
  %v68 = vld [vmem:[%s1 + $0x9c] sm:$0xf]
  %v69 = vld [vmem:[%s1 + $0xa0] sm:$0xf]
  %v70 = vld [vmem:[%s1 + $0xa4] sm:$0xf]
  %v71 = vld [vmem:[%s1 + $0xa8] sm:$0xf]
  %v72 = vld [vmem:[%s1 + $0xac] sm:$0xf]
  %v73 = vld [vmem:[%s1 + $0xb0] sm:$0xf]
  %v74 = vld [vmem:[%s1 + $0xb4] sm:$0xf]
  %v75 = vld [vmem:[%s1 + $0xb8] sm:$0xf]
  %v76 = vld [vmem:[%s1 + $0xbc] sm:$0xf]
  %v77 = vld [vmem:[%s1 + $0xc0] sm:$0xf]
  %v78 = vld [vmem:[%s1 + $0xc4] sm:$0xf]
  %v79 = vld [vmem:[%s1 + $0xc8] sm:$0xf]
  %v80 = vld [vmem:[%s1 + $0xcc] sm:$0xf]
  %v81 = vld [vmem:[%s1 + $0xd0] sm:$0xf]
  %v82 = vld [vmem:[%s1 + $0xd4] sm:$0xf]
  %v83 = vld [vmem:[%s1 + $0xd8] sm:$0xf]
  %v84 = vld [vmem:[%s1 + $0xdc] sm:$0xf]
  %v85 = vld [vmem:[%s1 + $0xe0] sm:$0xf]
  %v86 = vld [vmem:[%s1 + $0xe4] sm:$0xf]
  %v87 = vld [vmem:[%s1 + $0xe8] sm:$0xf]
  %v88 = vld [vmem:[%s1 + $0xec] sm:$0xf]
  %v89 = vld [vmem:[%s1 + $0xf0] sm:$0xf]
  %v90 = vld [vmem:[%s1 + $0xf4] sm:$0xf]
  %v91 = vld [vmem:[%s1 + $0xf8] sm:$0xf]
  %v92 = vld [vmem:[%s1 + $0xfc] sm:$0xf]
  %v93 = vld [vmem:[%s1 + $0x100] sm:$0xf]
  %v94 = vld [vmem:[%s1 + $0x104] sm:$0xf]
  %v95 = vld [vmem:[%s1 + $0x108] sm:$0xf]
  %v96 = vld [vmem:[%s1 + $0x10c] sm:$0xf]
  %v97 = vld [vmem:[%s1 + $0x110] sm:$0xf]
  %v98 = vld [vmem:[%s1 + $0x114] sm:$0xf]
  %v99 = vld [vmem:[%s1 + $0x118] sm:$0xf]
  %v100 = vld [vmem:[%s1 + $0x11c] sm:$0xf]
  %v107 = vunpack.c.l.b16 %v23
  %v108 = vunpack.c.h.b16 %v23
  %v109 = vunpack.c.l.b16 %v24
  %v110 = vunpack.c.h.b16 %v24
  %v111 = vunpack.c.l.b16 %v25
  %v112 = vunpack.c.l.b16 %v26
  %v113 = vunpack.c.h.b16 %v26
  %v114 = vunpack.c.l.b16 %v27
  %v115 = vunpack.c.h.b16 %v27
  %v116 = vunpack.c.l.b16 %v28
  %v117 = vpack.c.b16 %v112, %v107
  %v118 = vpack.c.b16 %v113, %v108
  %v119 = vpack.c.b16 %v114, %v109
  %v120 = vpack.c.b16 %v115, %v110
  %v121 = vpack.c.b16 %v116, %v111
  %v198 = vunpack.c.l.b16 %v29
  %v199 = vunpack.c.l.b16 %v30
  %v200 = vunpack.c.l.b16 %v31
  %v201 = vunpack.c.l.b16 %v32
  %v202 = vunpack.c.l.b16 %v33
  %v203 = vunpack.c.l.b16 %v34
  %v204 = vunpack.c.l.b16 %v35
  %v205 = vunpack.c.l.b16 %v36
  %v206 = vunpack.c.l.b16 %v37
  %v207 = vunpack.c.l.b16 %v38
  %v208 = vunpack.c.l.b16 %v39
  %v209 = vunpack.c.l.b16 %v40
  %v210 = vunpack.c.l.b16 %v41
  %v211 = vunpack.c.l.b16 %v42
  %v212 = vunpack.c.l.b16 %v43
  %v213 = vunpack.c.l.b16 %v44
  %v214 = vunpack.c.l.b16 %v45
  %v215 = vunpack.c.l.b16 %v46
  %v216 = vunpack.c.l.b16 %v47
  %v217 = vunpack.c.l.b16 %v48
  %v218 = vunpack.c.l.b16 %v49
  %v219 = vunpack.c.l.b16 %v50
  %v220 = vunpack.c.l.b16 %v51
  %v221 = vunpack.c.l.b16 %v52
  %v222 = vunpack.c.l.b16 %v53
  %v223 = vunpack.c.l.b16 %v54
  %v224 = vunpack.c.l.b16 %v55
  %v225 = vunpack.c.l.b16 %v56
  %v226 = vunpack.c.l.b16 %v57
  %v227 = vunpack.c.l.b16 %v58
  %v228 = vunpack.c.l.b16 %v59
  %v229 = vunpack.c.l.b16 %v60
  %v230 = vunpack.c.l.b16 %v61
  %v231 = vunpack.c.l.b16 %v62
  %v232 = vunpack.c.l.b16 %v63
  %v233 = vunpack.c.l.b16 %v64
  %v234 = vunpack.c.l.b16 %v65
  %v235 = vunpack.c.l.b16 %v66
  %v236 = vunpack.c.l.b16 %v67
  %v237 = vunpack.c.l.b16 %v68
  %v238 = vunpack.c.l.b16 %v69
  %v239 = vunpack.c.l.b16 %v70
  %v240 = vunpack.c.l.b16 %v71
  %v241 = vunpack.c.l.b16 %v72
  %v242 = vunpack.c.l.b16 %v73
  %v243 = vunpack.c.l.b16 %v74
  %v244 = vunpack.c.l.b16 %v75
  %v245 = vunpack.c.l.b16 %v76
  %v246 = vunpack.c.l.b16 %v77
  %v247 = vunpack.c.l.b16 %v78
  %v248 = vunpack.c.l.b16 %v79
  %v249 = vunpack.c.l.b16 %v80
  %v250 = vunpack.c.l.b16 %v81
  %v251 = vunpack.c.l.b16 %v82
  %v252 = vunpack.c.l.b16 %v83
  %v253 = vunpack.c.l.b16 %v84
  %v254 = vunpack.c.l.b16 %v85
  %v255 = vunpack.c.l.b16 %v86
  %v256 = vunpack.c.l.b16 %v87
  %v257 = vunpack.c.l.b16 %v88
  %v258 = vunpack.c.l.b16 %v89
  %v259 = vunpack.c.l.b16 %v90
  %v260 = vunpack.c.l.b16 %v91
  %v261 = vunpack.c.l.b16 %v92
  %v262 = vunpack.c.l.b16 %v93
  %v263 = vunpack.c.l.b16 %v94
  %v264 = vunpack.c.l.b16 %v95
  %v265 = vunpack.c.l.b16 %v96
  %v266 = vunpack.c.l.b16 %v97
  %v267 = vunpack.c.l.b16 %v98
  %v268 = vunpack.c.l.b16 %v99
  %v269 = vunpack.c.l.b16 %v100
  %v270 = vpack.c.b16 %v199, %v198
  %v271 = vpack.c.b16 %v201, %v200
  %v272 = vpack.c.b16 %v203, %v202
  %v273 = vpack.c.b16 %v205, %v204
  %v274 = vpack.c.b16 %v207, %v206
  %v275 = vpack.c.b16 %v209, %v208
  %v276 = vpack.c.b16 %v211, %v210
  %v277 = vpack.c.b16 %v213, %v212
  %v278 = vpack.c.b16 %v215, %v214
  %v279 = vpack.c.b16 %v217, %v216
  %v280 = vpack.c.b16 %v219, %v218
  %v281 = vpack.c.b16 %v221, %v220
  %v282 = vpack.c.b16 %v223, %v222
  %v283 = vpack.c.b16 %v225, %v224
  %v284 = vpack.c.b16 %v227, %v226
  %v285 = vpack.c.b16 %v229, %v228
  %v286 = vpack.c.b16 %v231, %v230
  %v287 = vpack.c.b16 %v233, %v232
  %v288 = vpack.c.b16 %v235, %v234
  %v289 = vpack.c.b16 %v237, %v236
  %v290 = vpack.c.b16 %v239, %v238
  %v291 = vpack.c.b16 %v241, %v240
  %v292 = vpack.c.b16 %v243, %v242
  %v293 = vpack.c.b16 %v245, %v244
  %v294 = vpack.c.b16 %v247, %v246
  %v295 = vpack.c.b16 %v249, %v248
  %v296 = vpack.c.b16 %v251, %v250
  %v297 = vpack.c.b16 %v253, %v252
  %v298 = vpack.c.b16 %v255, %v254
  %v299 = vpack.c.b16 %v257, %v256
  %v300 = vpack.c.b16 %v259, %v258
  %v301 = vpack.c.b16 %v261, %v260
  %v302 = vpack.c.b16 %v263, %v262
  %v303 = vpack.c.b16 %v265, %v264
  %v304 = vpack.c.b16 %v267, %v266
  %v305 = vpack.c.b16 %v269, %v268
  %vm342 = vcmask 523264
  %v344 = vsel %vm342, %v121, 0
  %346 = vmatprep.subr.bf16.mxu0 0
  %347 = vmatpush1.bf16.msra.mxu0 %v270
  %348 = vmatprep.subr.bf16.mxu0 0
  %349 = vmatpush1.bf16.msra.mxu0 %v271
  %350 = vmatprep.subr.bf16.mxu0 0
  %351 = vmatpush1.bf16.msra.mxu0 %v272
  %352 = vmatprep.subr.bf16.mxu0 0
  %353 = vmatpush1.bf16.msra.mxu0 %v273
  %354 = vmatprep.subr.bf16.mxu0 0
  %355 = vmatpush1.bf16.msra.mxu0 %v274
  %356 = vmatprep.subr.bf16.mxu0 0
  %357 = vmatpush1.bf16.msra.mxu0 %v275
  %358 = vmatprep.subr.bf16.mxu0 0
  %359 = vmatpush1.bf16.msra.mxu0 %v276
  %360 = vmatprep.subr.bf16.mxu0 0
  %361 = vmatpush1.bf16.msra.mxu0 %v277
  %362 = vmatprep.subr.bf16.mxu0 0
  %363 = vmatpush1.bf16.msra.mxu0 %v278
  %364 = vmatprep.subr.bf16.mxu0 0
  %365 = vmatpush1.bf16.msra.mxu0 %v279
  %366 = vmatprep.subr.bf16.mxu0 0
  %367 = vmatpush1.bf16.msra.mxu0 %v280
  %368 = vmatprep.subr.bf16.mxu0 0
  %369 = vmatpush1.bf16.msra.mxu0 %v281
  %370 = vmatprep.subr.bf16.mxu0 0
  %371 = vmatpush1.bf16.msra.mxu0 %v282
  %372 = vmatprep.subr.bf16.mxu0 0
  %373 = vmatpush1.bf16.msra.mxu0 %v283
  %374 = vmatprep.subr.bf16.mxu0 0
  %375 = vmatpush1.bf16.msra.mxu0 %v284
  %376 = vmatprep.subr.bf16.mxu0 0
  %377 = vmatpush1.bf16.msra.mxu0 %v285
  %378 = vmatprep.mubr.bf16.mxu0 %v118
  %379 = vmatmul.mubr.bf16.gmra.mrb[0].mxu0 %v117
  %v380 = vpop.f32.mrb[0].mxu0
  %v381 = vadd.f32 0.0, %v380
  %v382 = vpop.f32.mrb[0].mxu0
  %v383 = vpop.f32.mrb[0].mxu0
  %v384 = vadd.f32 0.0, %v383
  %v385 = vpop.f32.mrb[0].mxu0
  %386 = vdwg.mxu0
  %387 = vmatprep.subr.bf16.mxu0 0
  %388 = vmatpush1.bf16.msra.mxu0 %v286
  %389 = vmatprep.subr.bf16.mxu0 0
  %390 = vmatpush1.bf16.msra.mxu0 %v287
  %391 = vmatprep.subr.bf16.mxu0 0
  %392 = vmatpush1.bf16.msra.mxu0 %v288
  %393 = vmatprep.subr.bf16.mxu0 0
  %394 = vmatpush1.bf16.msra.mxu0 %v289
  %395 = vmatprep.subr.bf16.mxu0 0
  %396 = vmatpush1.bf16.msra.mxu0 %v290
  %397 = vmatprep.subr.bf16.mxu0 0
  %398 = vmatpush1.bf16.msra.mxu0 %v291
  %399 = vmatprep.subr.bf16.mxu0 0
  %400 = vmatpush1.bf16.msra.mxu0 %v292
  %401 = vmatprep.subr.bf16.mxu0 0
  %402 = vmatpush1.bf16.msra.mxu0 %v293
  %403 = vmatprep.subr.bf16.mxu0 0
  %404 = vmatpush1.bf16.msra.mxu0 %v294
  %405 = vmatprep.subr.bf16.mxu0 0
  %406 = vmatpush1.bf16.msra.mxu0 %v295
  %407 = vmatprep.subr.bf16.mxu0 0
  %408 = vmatpush1.bf16.msra.mxu0 %v296
  %409 = vmatprep.subr.bf16.mxu0 0
  %410 = vmatpush1.bf16.msra.mxu0 %v297
  %411 = vmatprep.subr.bf16.mxu0 0
  %412 = vmatpush1.bf16.msra.mxu0 %v298
  %413 = vmatprep.subr.bf16.mxu0 0
  %414 = vmatpush1.bf16.msra.mxu0 %v299
  %415 = vmatprep.subr.bf16.mxu0 0
  %416 = vmatpush1.bf16.msra.mxu0 %v300
  %417 = vmatprep.subr.bf16.mxu0 0
  %418 = vmatpush1.bf16.msra.mxu0 %v301
  %419 = vmatprep.mubr.bf16.mxu0 %v120
  %420 = vmatmul.mubr.bf16.gmra.mrb[0].mxu0 %v119
  %v421 = vpop.f32.mrb[0].mxu0
  %v422 = vadd.f32 %v381, %v421
  %v423 = vpop.f32.mrb[0].mxu0
  %v424 = vpop.f32.mrb[0].mxu0
  %v425 = vadd.f32 %v384, %v424
  %v426 = vpop.f32.mrb[0].mxu0
  %427 = vdwg.mxu0
  %428 = vmatprep.subr.bf16.mxu0 0
  %429 = vmatpush1.bf16.msra.mxu0 %v302
  %430 = vmatprep.subr.bf16.mxu0 0
  %431 = vmatpush1.bf16.msra.mxu0 %v303
  %432 = vmatprep.subr.bf16.mxu0 0
  %433 = vmatpush1.bf16.msra.mxu0 %v304
  %434 = vmatprep.subr.bf16.mxu0 0
  %435 = vmatpush1.bf16.msra.mxu0 %v305
  %436 = vmatprep.subr.bf16.mxu0 0
  %437 = vmatpush1.bf16.msra.mxu0 0
  %438 = vmatprep.subr.bf16.mxu0 0
  %439 = vmatpush1.bf16.msra.mxu0 0
  %440 = vmatprep.subr.bf16.mxu0 0
  %441 = vmatpush1.bf16.msra.mxu0 0
  %442 = vmatprep.subr.bf16.mxu0 0
  %443 = vmatpush1.bf16.msra.mxu0 0
  %444 = vmatprep.subr.bf16.mxu0 0
  %445 = vmatpush1.bf16.msra.mxu0 0
  %446 = vmatprep.subr.bf16.mxu0 0
  %447 = vmatpush1.bf16.msra.mxu0 0
  %448 = vmatprep.subr.bf16.mxu0 0
  %449 = vmatpush1.bf16.msra.mxu0 0
  %450 = vmatprep.subr.bf16.mxu0 0
  %451 = vmatpush1.bf16.msra.mxu0 0
  %452 = vmatprep.subr.bf16.mxu0 0
  %453 = vmatpush1.bf16.msra.mxu0 0
  %454 = vmatprep.subr.bf16.mxu0 0
  %455 = vmatpush1.bf16.msra.mxu0 0
  %456 = vmatprep.subr.bf16.mxu0 0
  %457 = vmatpush1.bf16.msra.mxu0 0
  %458 = vmatprep.subr.bf16.mxu0 0
  %459 = vmatpush1.bf16.msra.mxu0 0
  %460 = vmatprep.mubr.bf16.mxu0 0
  %461 = vmatmul.mubr.bf16.gmra.mrb[0].mxu0 %v344
  %v462 = vpop.f32.mrb[0].mxu0
  %v463 = vadd.f32 %v422, %v462
  %v464 = vpop.f32.mrb[0].mxu0
  %v465 = vpop.f32.mrb[0].mxu0
  %v466 = vadd.f32 %v425, %v465
  %v467 = vpop.f32.mrb[0].mxu0
  %468 = vdwg.mxu0
  %v469 = vadd.f32 %v21, %v463
  %v470 = vadd.f32 %v22, %v466
  %471 = vst [vmem:[#allocation2] sm:$0xff] %v469
  %472 = vst [vmem:[#allocation2 + $0x8] sm:$0xff] %v470
  // Predicated region
  $region18: #{_lambda_.145} parent=0 // pred_check
    %p473 = pneg %p15
  $region19: #{_lambda_.145} parent=0 // pred_check_branch
    %475 = sbr.rel (%p473) target = $region21
  $region20: #{_lambda_.145} parent=0 // pred_region
    %v476 = vld [vmem:[#allocation2] sm:$0xff]
    %v477 = vld [vmem:[#allocation2 + $0x8] sm:$0xff]
    %v478 = vld [vmem:[%s2] sm:$0x1]
    %v480 = vlaneseq
    %v481 = vshrl.u32 %v480, 7
    %v482 = vsub.s32 0, %v481
    %v483 = vrot.slane %v478, %v482
    %v485 = vadd.f32 %v476, %v483
    %v486 = vadd.f32 %v477, %v483
    %v487 = vmax.f32 %v485, 0.0
    %v488 = vmax.f32 %v486, 0.0
    %489 = vst [vmem:[%s3] sm:$0xff] %v487
    %490 = vst [vmem:[%s3 + $0x8] sm:$0xff] %v488
  $region21: #{_lambda_.145} parent=0 // pred_fallthru
    _
  // Predicated region
  $region22: #{_lambda_.145} parent=0 // pred_check
    _
  $region23: #{_lambda_.145} parent=0 // pred_check_branch
    %492 = sbr.rel (0) target = $region25
  $region24: #{_lambda_.145} parent=0 // pred_region
    _
  $region25: #{_lambda_.145} parent=0 // pred_fallthru
    _
  // Predicated region
  $region26: #{_lambda_.145} parent=0 // pred_check
    _
  $region27: #{_lambda_.145} parent=0 // pred_check_branch
    %494 = sbr.rel (0) target = $region29
  $region28: #{_lambda_.145} parent=0 // pred_region
    _
  $region29: #{_lambda_.145} parent=0 // pred_fallthru
    _

// kernel: _lambda_.146
$region0: #{_lambda_.146}
  #allocation0 [shape = 'u32[]', space=smem, size = 0x4, offset = 0x4, fixed_abs, tag = 'smem constant byte address 0x4 - core index']
  #allocation1 [shape = 'u32[144,128]{1,0:T(1,128)}', space=vmem, size = 0x12000, scoped, tag = 'internal scratch']
  #allocation2 [shape = 'f32[16,128]{1,0:T(8,128)}', space=vmem, size = 0x2000, scoped, tag = 'scratch operand']
  %s0 = inlined_call_operand.vmem [shape: bf16[16,128], index: 0, kind: input, shape index: {}]
  %s1 = inlined_call_operand.vmem [shape: bf16[128,128], index: 1, kind: input, shape index: {}]
  %s2 = inlined_call_operand.vmem [shape: f32[1,128], index: 2, kind: input, shape index: {}]
  %s3 = inlined_call_operand.vmem [shape: f32[16,128], index: 3, kind: output, shape index: {}]
  %s4 = sld [smem:[#allocation0]]
  $region30: #{_lambda_.146} parent=0
    _
  %s6 = ssub.s32 1, %s4
  %s7 = scalar_select 0, %s6, %s4
  // Predicated region
  $region2: #{_lambda_.146} parent=0 // pred_check
    _
  $region3: #{_lambda_.146} parent=0 // pred_check_branch
    %9 = sbr.rel (0) target = $region5
  $region4: #{_lambda_.146} parent=0 // pred_region
    _
  $region5: #{_lambda_.146} parent=0 // pred_fallthru
    _
  // Predicated region
  $region6: #{_lambda_.146} parent=0 // pred_check
    _
  $region7: #{_lambda_.146} parent=0 // pred_check_branch
    %11 = sbr.rel (0) target = $region9
  $region8: #{_lambda_.146} parent=0 // pred_region
    _
  $region9: #{_lambda_.146} parent=0 // pred_fallthru
    _
  // Predicated region
  $region10: #{_lambda_.146} parent=0 // pred_check
    _
  $region11: #{_lambda_.146} parent=0 // pred_check_branch
    %13 = sbr.rel (0) target = $region13
  $region12: #{_lambda_.146} parent=0 // pred_region
    _
  $region13: #{_lambda_.146} parent=0 // pred_fallthru
    _
  %p15 = scmp.eq.s32.totalorder 0, 0
  // Predicated region
  $region14: #{_lambda_.146} parent=0 // pred_check
    %p16 = pneg %p15
  $region15: #{_lambda_.146} parent=0 // pred_check_branch
    %18 = sbr.rel (%p16) target = $region17
  $region16: #{_lambda_.146} parent=0 // pred_region
    %19 = vst [vmem:[#allocation2] sm:$0xff] 0.0
    %20 = vst [vmem:[#allocation2 + $0x8] sm:$0xff] 0.0
  $region17: #{_lambda_.146} parent=0 // pred_fallthru
    _
  %v21 = vld [vmem:[#allocation2] sm:$0xff]
  %v22 = vld [vmem:[#allocation2 + $0x8] sm:$0xff]
  %v23 = vld [vmem:[%s0] sm:$0xf]
  %v24 = vld [vmem:[%s0 + $0x4] sm:$0xf]
  %v25 = vld [vmem:[%s1] sm:$0xf]
  %v26 = vld [vmem:[%s1 + $0x4] sm:$0xf]
  %v27 = vld [vmem:[%s1 + $0x8] sm:$0xf]
  %v28 = vld [vmem:[%s1 + $0xc] sm:$0xf]
  %v29 = vld [vmem:[%s1 + $0x10] sm:$0xf]
  %v30 = vld [vmem:[%s1 + $0x14] sm:$0xf]
  %v31 = vld [vmem:[%s1 + $0x18] sm:$0xf]
  %v32 = vld [vmem:[%s1 + $0x1c] sm:$0xf]
  %v33 = vld [vmem:[%s1 + $0x20] sm:$0xf]
  %v34 = vld [vmem:[%s1 + $0x24] sm:$0xf]
  %v35 = vld [vmem:[%s1 + $0x28] sm:$0xf]
  %v36 = vld [vmem:[%s1 + $0x2c] sm:$0xf]
  %v37 = vld [vmem:[%s1 + $0x30] sm:$0xf]
  %v38 = vld [vmem:[%s1 + $0x34] sm:$0xf]
  %v39 = vld [vmem:[%s1 + $0x38] sm:$0xf]
  %v40 = vld [vmem:[%s1 + $0x3c] sm:$0xf]
  %v43 = vunpack.c.l.b16 %v23
  %v44 = vunpack.c.l.b16 %v24
  %v45 = vpack.c.b16 %v44, %v43
  %v63 = vunpack.c.l.b16 %v25
  %v64 = vunpack.c.l.b16 %v26
  %v65 = vunpack.c.l.b16 %v27
  %v66 = vunpack.c.l.b16 %v28
  %v67 = vunpack.c.l.b16 %v29
  %v68 = vunpack.c.l.b16 %v30
  %v69 = vunpack.c.l.b16 %v31
  %v70 = vunpack.c.l.b16 %v32
  %v71 = vunpack.c.l.b16 %v33
  %v72 = vunpack.c.l.b16 %v34
  %v73 = vunpack.c.l.b16 %v35
  %v74 = vunpack.c.l.b16 %v36
  %v75 = vunpack.c.l.b16 %v37
  %v76 = vunpack.c.l.b16 %v38
  %v77 = vunpack.c.l.b16 %v39
  %v78 = vunpack.c.l.b16 %v40
  %v79 = vpack.c.b16 %v64, %v63
  %v80 = vpack.c.b16 %v66, %v65
  %v81 = vpack.c.b16 %v68, %v67
  %v82 = vpack.c.b16 %v70, %v69
  %v83 = vpack.c.b16 %v72, %v71
  %v84 = vpack.c.b16 %v74, %v73
  %v85 = vpack.c.b16 %v76, %v75
  %v86 = vpack.c.b16 %v78, %v77
  %95 = vmatprep.subr.bf16.mxu0 0
  %96 = vmatpush1.bf16.msra.mxu0 %v79
  %97 = vmatprep.subr.bf16.mxu0 0
  %98 = vmatpush1.bf16.msra.mxu0 %v80
  %99 = vmatprep.subr.bf16.mxu0 0
  %100 = vmatpush1.bf16.msra.mxu0 %v81
  %101 = vmatprep.subr.bf16.mxu0 0
  %102 = vmatpush1.bf16.msra.mxu0 %v82
  %103 = vmatprep.subr.bf16.mxu0 0
  %104 = vmatpush1.bf16.msra.mxu0 %v83
  %105 = vmatprep.subr.bf16.mxu0 0
  %106 = vmatpush1.bf16.msra.mxu0 %v84
  %107 = vmatprep.subr.bf16.mxu0 0
  %108 = vmatpush1.bf16.msra.mxu0 %v85
  %109 = vmatprep.subr.bf16.mxu0 0
  %110 = vmatpush1.bf16.msra.mxu0 %v86
  %111 = vmatprep.subr.bf16.mxu0 0
  %112 = vmatpush1.bf16.msra.mxu0 0
  %113 = vmatprep.subr.bf16.mxu0 0
  %114 = vmatpush1.bf16.msra.mxu0 0
  %115 = vmatprep.subr.bf16.mxu0 0
  %116 = vmatpush1.bf16.msra.mxu0 0
  %117 = vmatprep.subr.bf16.mxu0 0
  %118 = vmatpush1.bf16.msra.mxu0 0
  %119 = vmatprep.subr.bf16.mxu0 0
  %120 = vmatpush1.bf16.msra.mxu0 0
  %121 = vmatprep.subr.bf16.mxu0 0
  %122 = vmatpush1.bf16.msra.mxu0 0
  %123 = vmatprep.subr.bf16.mxu0 0
  %124 = vmatpush1.bf16.msra.mxu0 0
  %125 = vmatprep.subr.bf16.mxu0 0
  %126 = vmatpush1.bf16.msra.mxu0 0
  %127 = vmatprep.mubr.bf16.mxu0 0
  %128 = vmatmul.mubr.bf16.gmra.mrb[0].mxu0 %v45
  %v129 = vpop.f32.mrb[0].mxu0
  %v130 = vadd.f32 0.0, %v129
  %v131 = vpop.f32.mrb[0].mxu0
  %v132 = vpop.f32.mrb[0].mxu0
  %v133 = vadd.f32 0.0, %v132
  %v134 = vpop.f32.mrb[0].mxu0
  %135 = vdwg.mxu0
  %v136 = vadd.f32 %v21, %v130
  %v137 = vadd.f32 %v22, %v133
  %138 = vst [vmem:[#allocation2] sm:$0xff] %v136
  %139 = vst [vmem:[#allocation2 + $0x8] sm:$0xff] %v137
  // Predicated region
  $region18: #{_lambda_.146} parent=0 // pred_check
    %p140 = pneg %p15
  $region19: #{_lambda_.146} parent=0 // pred_check_branch
    %142 = sbr.rel (%p140) target = $region21
  $region20: #{_lambda_.146} parent=0 // pred_region
    %v143 = vld [vmem:[#allocation2] sm:$0xff]
    %v144 = vld [vmem:[#allocation2 + $0x8] sm:$0xff]
    %v145 = vld [vmem:[%s2] sm:$0x1]
    %v147 = vlaneseq
    %v148 = vshrl.u32 %v147, 7
    %v149 = vsub.s32 0, %v148
    %v150 = vrot.slane %v145, %v149
    %v152 = vadd.f32 %v143, %v150
    %v153 = vadd.f32 %v144, %v150
    %v154 = vmax.f32 %v152, 0.0
    %v155 = vmax.f32 %v153, 0.0
    %156 = vst [vmem:[%s3] sm:$0xff] %v154
    %157 = vst [vmem:[%s3 + $0x8] sm:$0xff] %v155
  $region21: #{_lambda_.146} parent=0 // pred_fallthru
    _
  // Predicated region
  $region22: #{_lambda_.146} parent=0 // pred_check
    _
  $region23: #{_lambda_.146} parent=0 // pred_check_branch
    %159 = sbr.rel (0) target = $region25
  $region24: #{_lambda_.146} parent=0 // pred_region
    _
  $region25: #{_lambda_.146} parent=0 // pred_fallthru
    _
  // Predicated region
  $region26: #{_lambda_.146} parent=0 // pred_check
    _
  $region27: #{_lambda_.146} parent=0 // pred_check_branch
    %161 = sbr.rel (0) target = $region29
  $region28: #{_lambda_.146} parent=0 // pred_region
    _
  $region29: #{_lambda_.146} parent=0 // pred_fallthru
    _

// kernel: _lambda_.149
$region0: #{_lambda_.149}
  #allocation0 [shape = 'u32[]', space=smem, size = 0x4, offset = 0x4, fixed_abs, tag = 'smem constant byte address 0x4 - core index']
  #allocation1 [shape = 'u32[144,128]{1,0:T(1,128)}', space=vmem, size = 0x12000, scoped, tag = 'internal scratch']
  #allocation2 [shape = 'f32[16,128]{1,0:T(8,128)}', space=vmem, size = 0x2000, scoped, tag = 'scratch operand']
  %s0 = inlined_call_operand.vmem [shape: bf16[16,192], index: 0, kind: input, shape index: {}]
  %s1 = inlined_call_operand.vmem [shape: bf16[192,128], index: 1, kind: input, shape index: {}]
  %s2 = inlined_call_operand.vmem [shape: f32[1,128], index: 2, kind: input, shape index: {}]
  %s3 = inlined_call_operand.vmem [shape: f32[16,128], index: 3, kind: output, shape index: {}]
  %s4 = sld [smem:[#allocation0]]
  $region30: #{_lambda_.149} parent=0
    _
  %s6 = ssub.s32 1, %s4
  %s7 = scalar_select 0, %s6, %s4
  // Predicated region
  $region2: #{_lambda_.149} parent=0 // pred_check
    _
  $region3: #{_lambda_.149} parent=0 // pred_check_branch
    %9 = sbr.rel (0) target = $region5
  $region4: #{_lambda_.149} parent=0 // pred_region
    _
  $region5: #{_lambda_.149} parent=0 // pred_fallthru
    _
  // Predicated region
  $region6: #{_lambda_.149} parent=0 // pred_check
    _
  $region7: #{_lambda_.149} parent=0 // pred_check_branch
    %11 = sbr.rel (0) target = $region9
  $region8: #{_lambda_.149} parent=0 // pred_region
    _
  $region9: #{_lambda_.149} parent=0 // pred_fallthru
    _
  // Predicated region
  $region10: #{_lambda_.149} parent=0 // pred_check
    _
  $region11: #{_lambda_.149} parent=0 // pred_check_branch
    %13 = sbr.rel (0) target = $region13
  $region12: #{_lambda_.149} parent=0 // pred_region
    _
  $region13: #{_lambda_.149} parent=0 // pred_fallthru
    _
  %p15 = scmp.eq.s32.totalorder 0, 0
  // Predicated region
  $region14: #{_lambda_.149} parent=0 // pred_check
    %p16 = pneg %p15
  $region15: #{_lambda_.149} parent=0 // pred_check_branch
    %18 = sbr.rel (%p16) target = $region17
  $region16: #{_lambda_.149} parent=0 // pred_region
    %19 = vst [vmem:[#allocation2] sm:$0xff] 0.0
    %20 = vst [vmem:[#allocation2 + $0x8] sm:$0xff] 0.0
  $region17: #{_lambda_.149} parent=0 // pred_fallthru
    _
  %v21 = vld [vmem:[#allocation2] sm:$0xff]
  %v22 = vld [vmem:[#allocation2 + $0x8] sm:$0xff]
  %v23 = vld [vmem:[%s0] sm:$0xff]
  %v24 = vld [vmem:[%s0 + $0x8] sm:$0xff]
  %v25 = vld [vmem:[%s1] sm:$0xf]
  %v26 = vld [vmem:[%s1 + $0x4] sm:$0xf]
  %v27 = vld [vmem:[%s1 + $0x8] sm:$0xf]
  %v28 = vld [vmem:[%s1 + $0xc] sm:$0xf]
  %v29 = vld [vmem:[%s1 + $0x10] sm:$0xf]
  %v30 = vld [vmem:[%s1 + $0x14] sm:$0xf]
  %v31 = vld [vmem:[%s1 + $0x18] sm:$0xf]
  %v32 = vld [vmem:[%s1 + $0x1c] sm:$0xf]
  %v33 = vld [vmem:[%s1 + $0x20] sm:$0xf]
  %v34 = vld [vmem:[%s1 + $0x24] sm:$0xf]
  %v35 = vld [vmem:[%s1 + $0x28] sm:$0xf]
  %v36 = vld [vmem:[%s1 + $0x2c] sm:$0xf]
  %v37 = vld [vmem:[%s1 + $0x30] sm:$0xf]
  %v38 = vld [vmem:[%s1 + $0x34] sm:$0xf]
  %v39 = vld [vmem:[%s1 + $0x38] sm:$0xf]
  %v40 = vld [vmem:[%s1 + $0x3c] sm:$0xf]
  %v41 = vld [vmem:[%s1 + $0x40] sm:$0xf]
  %v42 = vld [vmem:[%s1 + $0x44] sm:$0xf]
  %v43 = vld [vmem:[%s1 + $0x48] sm:$0xf]
  %v44 = vld [vmem:[%s1 + $0x4c] sm:$0xf]
  %v45 = vld [vmem:[%s1 + $0x50] sm:$0xf]
  %v46 = vld [vmem:[%s1 + $0x54] sm:$0xf]
  %v47 = vld [vmem:[%s1 + $0x58] sm:$0xf]
  %v48 = vld [vmem:[%s1 + $0x5c] sm:$0xf]
  %v51 = vunpack.c.l.b16 %v23
  %v52 = vunpack.c.h.b16 %v23
  %v53 = vunpack.c.l.b16 %v24
  %v54 = vunpack.c.h.b16 %v24
  %v55 = vpack.c.b16 %v53, %v51
  %v56 = vpack.c.b16 %v54, %v52
  %v82 = vunpack.c.l.b16 %v25
  %v83 = vunpack.c.l.b16 %v26
  %v84 = vunpack.c.l.b16 %v27
  %v85 = vunpack.c.l.b16 %v28
  %v86 = vunpack.c.l.b16 %v29
  %v87 = vunpack.c.l.b16 %v30
  %v88 = vunpack.c.l.b16 %v31
  %v89 = vunpack.c.l.b16 %v32
  %v90 = vunpack.c.l.b16 %v33
  %v91 = vunpack.c.l.b16 %v34
  %v92 = vunpack.c.l.b16 %v35
  %v93 = vunpack.c.l.b16 %v36
  %v94 = vunpack.c.l.b16 %v37
  %v95 = vunpack.c.l.b16 %v38
  %v96 = vunpack.c.l.b16 %v39
  %v97 = vunpack.c.l.b16 %v40
  %v98 = vunpack.c.l.b16 %v41
  %v99 = vunpack.c.l.b16 %v42
  %v100 = vunpack.c.l.b16 %v43
  %v101 = vunpack.c.l.b16 %v44
  %v102 = vunpack.c.l.b16 %v45
  %v103 = vunpack.c.l.b16 %v46
  %v104 = vunpack.c.l.b16 %v47
  %v105 = vunpack.c.l.b16 %v48
  %v106 = vpack.c.b16 %v83, %v82
  %v107 = vpack.c.b16 %v85, %v84
  %v108 = vpack.c.b16 %v87, %v86
  %v109 = vpack.c.b16 %v89, %v88
  %v110 = vpack.c.b16 %v91, %v90
  %v111 = vpack.c.b16 %v93, %v92
  %v112 = vpack.c.b16 %v95, %v94
  %v113 = vpack.c.b16 %v97, %v96
  %v114 = vpack.c.b16 %v99, %v98
  %v115 = vpack.c.b16 %v101, %v100
  %v116 = vpack.c.b16 %v103, %v102
  %v117 = vpack.c.b16 %v105, %v104
  %vm130 = vcmask 523264
  %v132 = vsel %vm130, %v56, 0
  %134 = vmatprep.subr.bf16.mxu0 0
  %135 = vmatpush1.bf16.msra.mxu0 %v106
  %136 = vmatprep.subr.bf16.mxu0 0
  %137 = vmatpush1.bf16.msra.mxu0 %v107
  %138 = vmatprep.subr.bf16.mxu0 0
  %139 = vmatpush1.bf16.msra.mxu0 %v108
  %140 = vmatprep.subr.bf16.mxu0 0
  %141 = vmatpush1.bf16.msra.mxu0 %v109
  %142 = vmatprep.subr.bf16.mxu0 0
  %143 = vmatpush1.bf16.msra.mxu0 %v110
  %144 = vmatprep.subr.bf16.mxu0 0
  %145 = vmatpush1.bf16.msra.mxu0 %v111
  %146 = vmatprep.subr.bf16.mxu0 0
  %147 = vmatpush1.bf16.msra.mxu0 %v112
  %148 = vmatprep.subr.bf16.mxu0 0
  %149 = vmatpush1.bf16.msra.mxu0 %v113
  %150 = vmatprep.subr.bf16.mxu0 0
  %151 = vmatpush1.bf16.msra.mxu0 %v114
  %152 = vmatprep.subr.bf16.mxu0 0
  %153 = vmatpush1.bf16.msra.mxu0 %v115
  %154 = vmatprep.subr.bf16.mxu0 0
  %155 = vmatpush1.bf16.msra.mxu0 %v116
  %156 = vmatprep.subr.bf16.mxu0 0
  %157 = vmatpush1.bf16.msra.mxu0 %v117
  %158 = vmatprep.subr.bf16.mxu0 0
  %159 = vmatpush1.bf16.msra.mxu0 0
  %160 = vmatprep.subr.bf16.mxu0 0
  %161 = vmatpush1.bf16.msra.mxu0 0
  %162 = vmatprep.subr.bf16.mxu0 0
  %163 = vmatpush1.bf16.msra.mxu0 0
  %164 = vmatprep.subr.bf16.mxu0 0
  %165 = vmatpush1.bf16.msra.mxu0 0
  %166 = vmatprep.mubr.bf16.mxu0 %v132
  %167 = vmatmul.mubr.bf16.gmra.mrb[0].mxu0 %v55
  %v168 = vpop.f32.mrb[0].mxu0
  %v169 = vadd.f32 0.0, %v168
  %v170 = vpop.f32.mrb[0].mxu0
  %v171 = vpop.f32.mrb[0].mxu0
  %v172 = vadd.f32 0.0, %v171
  %v173 = vpop.f32.mrb[0].mxu0
  %174 = vdwg.mxu0
  %v175 = vadd.f32 %v21, %v169
  %v176 = vadd.f32 %v22, %v172
  %177 = vst [vmem:[#allocation2] sm:$0xff] %v175
  %178 = vst [vmem:[#allocation2 + $0x8] sm:$0xff] %v176
  // Predicated region
  $region18: #{_lambda_.149} parent=0 // pred_check
    %p179 = pneg %p15
  $region19: #{_lambda_.149} parent=0 // pred_check_branch
    %181 = sbr.rel (%p179) target = $region21
  $region20: #{_lambda_.149} parent=0 // pred_region
    %v182 = vld [vmem:[#allocation2] sm:$0xff]
    %v183 = vld [vmem:[#allocation2 + $0x8] sm:$0xff]
    %v184 = vld [vmem:[%s2] sm:$0x1]
    %v186 = vlaneseq
    %v187 = vshrl.u32 %v186, 7
    %v188 = vsub.s32 0, %v187
    %v189 = vrot.slane %v184, %v188
    %v191 = vadd.f32 %v182, %v189
    %v192 = vadd.f32 %v183, %v189
    %v193 = vmax.f32 %v191, 0.0
    %v194 = vmax.f32 %v192, 0.0
    %195 = vst [vmem:[%s3] sm:$0xff] %v193
    %196 = vst [vmem:[%s3 + $0x8] sm:$0xff] %v194
  $region21: #{_lambda_.149} parent=0 // pred_fallthru
    _
  // Predicated region
  $region22: #{_lambda_.149} parent=0 // pred_check
    _
  $region23: #{_lambda_.149} parent=0 // pred_check_branch
    %198 = sbr.rel (0) target = $region25
  $region24: #{_lambda_.149} parent=0 // pred_region
    _
  $region25: #{_lambda_.149} parent=0 // pred_fallthru
    _
  // Predicated region
  $region26: #{_lambda_.149} parent=0 // pred_check
    _
  $region27: #{_lambda_.149} parent=0 // pred_check_branch
    %200 = sbr.rel (0) target = $region29
  $region28: #{_lambda_.149} parent=0 // pred_region
    _
  $region29: #{_lambda_.149} parent=0 // pred_fallthru
    _

// kernel: _lambda_.150
$region0: #{_lambda_.150}
  #allocation0 [shape = 'u32[]', space=smem, size = 0x4, offset = 0x4, fixed_abs, tag = 'smem constant byte address 0x4 - core index']
  #allocation1 [shape = 'u32[144,128]{1,0:T(1,128)}', space=vmem, size = 0x12000, scoped, tag = 'internal scratch']
  #allocation2 [shape = 'f32[16,128]{1,0:T(8,128)}', space=vmem, size = 0x2000, scoped, tag = 'scratch operand']
  %s0 = inlined_call_operand.vmem [shape: bf16[16,64], index: 0, kind: input, shape index: {}]
  %s1 = inlined_call_operand.vmem [shape: bf16[64,128], index: 1, kind: input, shape index: {}]
  %s2 = inlined_call_operand.vmem [shape: f32[1,128], index: 2, kind: input, shape index: {}]
  %s3 = inlined_call_operand.vmem [shape: f32[16,128], index: 3, kind: input, shape index: {}]
  %s4 = inlined_call_operand.vmem [shape: f32[16,128], index: 4, kind: output, shape index: {}]
  %s5 = sld [smem:[#allocation0]]
  $region34: #{_lambda_.150} parent=0
    _
  %s7 = ssub.s32 1, %s5
  %s8 = scalar_select 0, %s7, %s5
  // Predicated region
  $region2: #{_lambda_.150} parent=0 // pred_check
    _
  $region3: #{_lambda_.150} parent=0 // pred_check_branch
    %10 = sbr.rel (0) target = $region5
  $region4: #{_lambda_.150} parent=0 // pred_region
    _
  $region5: #{_lambda_.150} parent=0 // pred_fallthru
    _
  // Predicated region
  $region6: #{_lambda_.150} parent=0 // pred_check
    _
  $region7: #{_lambda_.150} parent=0 // pred_check_branch
    %12 = sbr.rel (0) target = $region9
  $region8: #{_lambda_.150} parent=0 // pred_region
    _
  $region9: #{_lambda_.150} parent=0 // pred_fallthru
    _
  // Predicated region
  $region10: #{_lambda_.150} parent=0 // pred_check
    _
  $region11: #{_lambda_.150} parent=0 // pred_check_branch
    %14 = sbr.rel (0) target = $region13
  $region12: #{_lambda_.150} parent=0 // pred_region
    _
  $region13: #{_lambda_.150} parent=0 // pred_fallthru
    _
  // Predicated region
  $region14: #{_lambda_.150} parent=0 // pred_check
    _
  $region15: #{_lambda_.150} parent=0 // pred_check_branch
    %16 = sbr.rel (0) target = $region17
  $region16: #{_lambda_.150} parent=0 // pred_region
    _
  $region17: #{_lambda_.150} parent=0 // pred_fallthru
    _
  %p18 = scmp.eq.s32.totalorder 0, 0
  // Predicated region
  $region18: #{_lambda_.150} parent=0 // pred_check
    %p19 = pneg %p18
  $region19: #{_lambda_.150} parent=0 // pred_check_branch
    %21 = sbr.rel (%p19) target = $region21
  $region20: #{_lambda_.150} parent=0 // pred_region
    %22 = vst [vmem:[#allocation2] sm:$0xff] 0.0
    %23 = vst [vmem:[#allocation2 + $0x8] sm:$0xff] 0.0
  $region21: #{_lambda_.150} parent=0 // pred_fallthru
    _
  %v24 = vld [vmem:[#allocation2] sm:$0xff]
  %v25 = vld [vmem:[#allocation2 + $0x8] sm:$0xff]
  %v26 = vld [vmem:[%s0] sm:$0xf]
  %v27 = vld [vmem:[%s0 + $0x4] sm:$0xf]
  %v28 = vld [vmem:[%s1] sm:$0xf]
  %v29 = vld [vmem:[%s1 + $0x4] sm:$0xf]
  %v30 = vld [vmem:[%s1 + $0x8] sm:$0xf]
  %v31 = vld [vmem:[%s1 + $0xc] sm:$0xf]
  %v32 = vld [vmem:[%s1 + $0x10] sm:$0xf]
  %v33 = vld [vmem:[%s1 + $0x14] sm:$0xf]
  %v34 = vld [vmem:[%s1 + $0x18] sm:$0xf]
  %v35 = vld [vmem:[%s1 + $0x1c] sm:$0xf]
  %v38 = vunpack.c.l.b16 %v26
  %v39 = vunpack.c.l.b16 %v27
  %v40 = vpack.c.b16 %v39, %v38
  %v49 = vunpack.c.l.b16 %v28
  %v50 = vunpack.c.l.b16 %v29
  %v51 = vunpack.c.l.b16 %v30
  %v52 = vunpack.c.l.b16 %v31
  %v53 = vunpack.c.l.b16 %v32
  %v54 = vunpack.c.l.b16 %v33
  %v55 = vunpack.c.l.b16 %v34
  %v56 = vunpack.c.l.b16 %v35
  %v57 = vpack.c.b16 %v50, %v49
  %v58 = vpack.c.b16 %v52, %v51
  %v59 = vpack.c.b16 %v54, %v53
  %v60 = vpack.c.b16 %v56, %v55
  %vm65 = vcmask 523264
  %v67 = vsel %vm65, %v40, 0
  %69 = vmatprep.subr.bf16.mxu0 0
  %70 = vmatpush1.bf16.msra.mxu0 %v57
  %71 = vmatprep.subr.bf16.mxu0 0
  %72 = vmatpush1.bf16.msra.mxu0 %v58
  %73 = vmatprep.subr.bf16.mxu0 0
  %74 = vmatpush1.bf16.msra.mxu0 %v59
  %75 = vmatprep.subr.bf16.mxu0 0
  %76 = vmatpush1.bf16.msra.mxu0 %v60
  %77 = vmatprep.subr.bf16.mxu0 0
  %78 = vmatpush1.bf16.msra.mxu0 0
  %79 = vmatprep.subr.bf16.mxu0 0
  %80 = vmatpush1.bf16.msra.mxu0 0
  %81 = vmatprep.subr.bf16.mxu0 0
  %82 = vmatpush1.bf16.msra.mxu0 0
  %83 = vmatprep.subr.bf16.mxu0 0
  %84 = vmatpush1.bf16.msra.mxu0 0
  %85 = vmatprep.subr.bf16.mxu0 0
  %86 = vmatpush1.bf16.msra.mxu0 0
  %87 = vmatprep.subr.bf16.mxu0 0
  %88 = vmatpush1.bf16.msra.mxu0 0
  %89 = vmatprep.subr.bf16.mxu0 0
  %90 = vmatpush1.bf16.msra.mxu0 0
  %91 = vmatprep.subr.bf16.mxu0 0
  %92 = vmatpush1.bf16.msra.mxu0 0
  %93 = vmatprep.subr.bf16.mxu0 0
  %94 = vmatpush1.bf16.msra.mxu0 0
  %95 = vmatprep.subr.bf16.mxu0 0
  %96 = vmatpush1.bf16.msra.mxu0 0
  %97 = vmatprep.subr.bf16.mxu0 0
  %98 = vmatpush1.bf16.msra.mxu0 0
  %99 = vmatprep.subr.bf16.mxu0 0
  %100 = vmatpush1.bf16.msra.mxu0 0
  %101 = vmatprep.mubr.bf16.mxu0 0
  %102 = vmatmul.mubr.bf16.gmra.mrb[0].mxu0 %v67
  %v103 = vpop.f32.mrb[0].mxu0
  %v104 = vadd.f32 0.0, %v103
  %v105 = vpop.f32.mrb[0].mxu0
  %v106 = vpop.f32.mrb[0].mxu0
  %v107 = vadd.f32 0.0, %v106
  %v108 = vpop.f32.mrb[0].mxu0
  %109 = vdwg.mxu0
  %v110 = vadd.f32 %v24, %v104
  %v111 = vadd.f32 %v25, %v107
  %112 = vst [vmem:[#allocation2] sm:$0xff] %v110
  %113 = vst [vmem:[#allocation2 + $0x8] sm:$0xff] %v111
  // Predicated region
  $region22: #{_lambda_.150} parent=0 // pred_check
    %p114 = pneg %p18
  $region23: #{_lambda_.150} parent=0 // pred_check_branch
    %116 = sbr.rel (%p114) target = $region25
  $region24: #{_lambda_.150} parent=0 // pred_region
    %v117 = vld [vmem:[#allocation2] sm:$0xff]
    %v118 = vld [vmem:[#allocation2 + $0x8] sm:$0xff]
    %v119 = vld [vmem:[%s2] sm:$0x1]
    %v121 = vlaneseq
    %v122 = vshrl.u32 %v121, 7
    %v123 = vsub.s32 0, %v122
    %v124 = vrot.slane %v119, %v123
    %v126 = vadd.f32 %v117, %v124
    %v127 = vadd.f32 %v118, %v124
    %v128 = vmax.f32 %v126, 0.0
    %v129 = vmax.f32 %v127, 0.0
    %v130 = vld [vmem:[%s3] sm:$0xff]
    %v131 = vld [vmem:[%s3 + $0x8] sm:$0xff]
    %v132 = vadd.f32 %v128, %v130
    %v133 = vadd.f32 %v129, %v131
    %134 = vst [vmem:[%s4] sm:$0xff] %v132
    %135 = vst [vmem:[%s4 + $0x8] sm:$0xff] %v133
  $region25: #{_lambda_.150} parent=0 // pred_fallthru
    _
  // Predicated region
  $region26: #{_lambda_.150} parent=0 // pred_check
    _
  $region27: #{_lambda_.150} parent=0 // pred_check_branch
    %137 = sbr.rel (0) target = $region29
  $region28: #{_lambda_.150} parent=0 // pred_region
    _
  $region29: #{_lambda_.150} parent=0 // pred_fallthru
    _
  // Predicated region
  $region30: #{_lambda_.150} parent=0 // pred_check
    _
  $region31: #{_lambda_.150} parent=0 // pred_check_branch
    %139 = sbr.rel (0) target = $region33
  $region32: #{_lambda_.150} parent=0 // pred_region
    _
  $region33: #{_lambda_.150} parent=0 // pred_fallthru
    _

// kernel: _lambda_.221
$region0: #{_lambda_.221}
  #allocation0 [shape = 'u32[]', space=smem, size = 0x4, offset = 0x4, fixed_abs, tag = 'smem constant byte address 0x4 - core index']
  #allocation1 [shape = 'u32[144,128]{1,0:T(1,128)}', space=vmem, size = 0x12000, scoped, tag = 'internal scratch']
  #allocation2 [shape = 'f32[16,256]{1,0:T(8,128)}', space=vmem, size = 0x4000, scoped, tag = 'scratch operand']
  %s0 = inlined_call_operand.vmem [shape: bf16[16,128], index: 0, kind: input, shape index: {}]
  %s1 = inlined_call_operand.vmem [shape: bf16[128,256], index: 1, kind: input, shape index: {}]
  %s2 = inlined_call_operand.vmem [shape: f32[1,256], index: 2, kind: input, shape index: {}]
  %s3 = inlined_call_operand.vmem [shape: f32[16,256], index: 3, kind: input, shape index: {}]
  %s4 = inlined_call_operand.vmem [shape: f32[16,256], index: 4, kind: output, shape index: {}]
  %s5 = sld [smem:[#allocation0]]
  $region34: #{_lambda_.221} parent=0
    _
  %s7 = ssub.s32 1, %s5
  %s8 = scalar_select 0, %s7, %s5
  // Predicated region
  $region2: #{_lambda_.221} parent=0 // pred_check
    _
  $region3: #{_lambda_.221} parent=0 // pred_check_branch
    %10 = sbr.rel (0) target = $region5
  $region4: #{_lambda_.221} parent=0 // pred_region
    _
  $region5: #{_lambda_.221} parent=0 // pred_fallthru
    _
  // Predicated region
  $region6: #{_lambda_.221} parent=0 // pred_check
    _
  $region7: #{_lambda_.221} parent=0 // pred_check_branch
    %12 = sbr.rel (0) target = $region9
  $region8: #{_lambda_.221} parent=0 // pred_region
    _
  $region9: #{_lambda_.221} parent=0 // pred_fallthru
    _
  // Predicated region
  $region10: #{_lambda_.221} parent=0 // pred_check
    _
  $region11: #{_lambda_.221} parent=0 // pred_check_branch
    %14 = sbr.rel (0) target = $region13
  $region12: #{_lambda_.221} parent=0 // pred_region
    _
  $region13: #{_lambda_.221} parent=0 // pred_fallthru
    _
  // Predicated region
  $region14: #{_lambda_.221} parent=0 // pred_check
    _
  $region15: #{_lambda_.221} parent=0 // pred_check_branch
    %16 = sbr.rel (0) target = $region17
  $region16: #{_lambda_.221} parent=0 // pred_region
    _
  $region17: #{_lambda_.221} parent=0 // pred_fallthru
    _
  %p18 = scmp.eq.s32.totalorder 0, 0
  // Predicated region
  $region18: #{_lambda_.221} parent=0 // pred_check
    %p19 = pneg %p18
  $region19: #{_lambda_.221} parent=0 // pred_check_branch
    %21 = sbr.rel (%p19) target = $region21
  $region20: #{_lambda_.221} parent=0 // pred_region
    %22 = vst [vmem:[#allocation2] sm:$0xff] 0.0
    %23 = vst [vmem:[#allocation2 + $0x8] sm:$0xff] 0.0
    %24 = vst [vmem:[#allocation2 + $0x10] sm:$0xff] 0.0
    %25 = vst [vmem:[#allocation2 + $0x18] sm:$0xff] 0.0
  $region21: #{_lambda_.221} parent=0 // pred_fallthru
    _
  %v26 = vld [vmem:[#allocation2] sm:$0xff]
  %v27 = vld [vmem:[#allocation2 + $0x8] sm:$0xff]
  %v28 = vld [vmem:[#allocation2 + $0x10] sm:$0xff]
  %v29 = vld [vmem:[#allocation2 + $0x18] sm:$0xff]
  %v30 = vld [vmem:[%s0] sm:$0xf]
  %v31 = vld [vmem:[%s0 + $0x4] sm:$0xf]
  %v32 = vld [vmem:[%s1] sm:$0xff]
  %v33 = vld [vmem:[%s1 + $0x8] sm:$0xff]
  %v34 = vld [vmem:[%s1 + $0x10] sm:$0xff]
  %v35 = vld [vmem:[%s1 + $0x18] sm:$0xff]
  %v36 = vld [vmem:[%s1 + $0x20] sm:$0xff]
  %v37 = vld [vmem:[%s1 + $0x28] sm:$0xff]
  %v38 = vld [vmem:[%s1 + $0x30] sm:$0xff]
  %v39 = vld [vmem:[%s1 + $0x38] sm:$0xff]
  %v40 = vld [vmem:[%s1 + $0x40] sm:$0xff]
  %v41 = vld [vmem:[%s1 + $0x48] sm:$0xff]
  %v42 = vld [vmem:[%s1 + $0x50] sm:$0xff]
  %v43 = vld [vmem:[%s1 + $0x58] sm:$0xff]
  %v44 = vld [vmem:[%s1 + $0x60] sm:$0xff]
  %v45 = vld [vmem:[%s1 + $0x68] sm:$0xff]
  %v46 = vld [vmem:[%s1 + $0x70] sm:$0xff]
  %v47 = vld [vmem:[%s1 + $0x78] sm:$0xff]
  %v50 = vunpack.c.l.b16 %v30
  %v51 = vunpack.c.l.b16 %v31
  %v52 = vpack.c.b16 %v51, %v50
  %v70 = vunpack.c.l.b16 %v32
  %v71 = vunpack.c.h.b16 %v32
  %v72 = vunpack.c.l.b16 %v33
  %v73 = vunpack.c.h.b16 %v33
  %v74 = vunpack.c.l.b16 %v34
  %v75 = vunpack.c.h.b16 %v34
  %v76 = vunpack.c.l.b16 %v35
  %v77 = vunpack.c.h.b16 %v35
  %v78 = vunpack.c.l.b16 %v36
  %v79 = vunpack.c.h.b16 %v36
  %v80 = vunpack.c.l.b16 %v37
  %v81 = vunpack.c.h.b16 %v37
  %v82 = vunpack.c.l.b16 %v38
  %v83 = vunpack.c.h.b16 %v38
  %v84 = vunpack.c.l.b16 %v39
  %v85 = vunpack.c.h.b16 %v39
  %v86 = vunpack.c.l.b16 %v40
  %v87 = vunpack.c.h.b16 %v40
  %v88 = vunpack.c.l.b16 %v41
  %v89 = vunpack.c.h.b16 %v41
  %v90 = vunpack.c.l.b16 %v42
  %v91 = vunpack.c.h.b16 %v42
  %v92 = vunpack.c.l.b16 %v43
  %v93 = vunpack.c.h.b16 %v43
  %v94 = vunpack.c.l.b16 %v44
  %v95 = vunpack.c.h.b16 %v44
  %v96 = vunpack.c.l.b16 %v45
  %v97 = vunpack.c.h.b16 %v45
  %v98 = vunpack.c.l.b16 %v46
  %v99 = vunpack.c.h.b16 %v46
  %v100 = vunpack.c.l.b16 %v47
  %v101 = vunpack.c.h.b16 %v47
  %v102 = vpack.c.b16 %v72, %v70
  %v103 = vpack.c.b16 %v73, %v71
  %v104 = vpack.c.b16 %v76, %v74
  %v105 = vpack.c.b16 %v77, %v75
  %v106 = vpack.c.b16 %v80, %v78
  %v107 = vpack.c.b16 %v81, %v79
  %v108 = vpack.c.b16 %v84, %v82
  %v109 = vpack.c.b16 %v85, %v83
  %v110 = vpack.c.b16 %v88, %v86
  %v111 = vpack.c.b16 %v89, %v87
  %v112 = vpack.c.b16 %v92, %v90
  %v113 = vpack.c.b16 %v93, %v91
  %v114 = vpack.c.b16 %v96, %v94
  %v115 = vpack.c.b16 %v97, %v95
  %v116 = vpack.c.b16 %v100, %v98
  %v117 = vpack.c.b16 %v101, %v99
  %134 = vmatprep.subr.bf16.mxu0 %v103
  %135 = vmatpush1.bf16.msra.mxu0 %v102
  %136 = vmatprep.subr.bf16.mxu0 %v105
  %137 = vmatpush1.bf16.msra.mxu0 %v104
  %138 = vmatprep.subr.bf16.mxu0 %v107
  %139 = vmatpush1.bf16.msra.mxu0 %v106
  %140 = vmatprep.subr.bf16.mxu0 %v109
  %141 = vmatpush1.bf16.msra.mxu0 %v108
  %142 = vmatprep.subr.bf16.mxu0 %v111
  %143 = vmatpush1.bf16.msra.mxu0 %v110
  %144 = vmatprep.subr.bf16.mxu0 %v113
  %145 = vmatpush1.bf16.msra.mxu0 %v112
  %146 = vmatprep.subr.bf16.mxu0 %v115
  %147 = vmatpush1.bf16.msra.mxu0 %v114
  %148 = vmatprep.subr.bf16.mxu0 %v117
  %149 = vmatpush1.bf16.msra.mxu0 %v116
  %150 = vmatprep.subr.bf16.mxu0 0
  %151 = vmatpush1.bf16.msra.mxu0 0
  %152 = vmatprep.subr.bf16.mxu0 0
  %153 = vmatpush1.bf16.msra.mxu0 0
  %154 = vmatprep.subr.bf16.mxu0 0
  %155 = vmatpush1.bf16.msra.mxu0 0
  %156 = vmatprep.subr.bf16.mxu0 0
  %157 = vmatpush1.bf16.msra.mxu0 0
  %158 = vmatprep.subr.bf16.mxu0 0
  %159 = vmatpush1.bf16.msra.mxu0 0
  %160 = vmatprep.subr.bf16.mxu0 0
  %161 = vmatpush1.bf16.msra.mxu0 0
  %162 = vmatprep.subr.bf16.mxu0 0
  %163 = vmatpush1.bf16.msra.mxu0 0
  %164 = vmatprep.subr.bf16.mxu0 0
  %165 = vmatpush1.bf16.msra.mxu0 0
  %166 = vmatprep.mubr.bf16.mxu0 0
  %167 = vmatmul.mubr.bf16.gmra.mrb[0].mxu0 %v52
  %v168 = vpop.f32.mrb[0].mxu0
  %v169 = vadd.f32 0.0, %v168
  %v170 = vpop.f32.mrb[0].mxu0
  %v171 = vadd.f32 0.0, %v170
  %v172 = vpop.f32.mrb[0].mxu0
  %v173 = vadd.f32 0.0, %v172
  %v174 = vpop.f32.mrb[0].mxu0
  %v175 = vadd.f32 0.0, %v174
  %176 = vdwg.mxu0
  %v177 = vadd.f32 %v26, %v169
  %v178 = vadd.f32 %v27, %v171
  %v179 = vadd.f32 %v28, %v173
  %v180 = vadd.f32 %v29, %v175
  %181 = vst [vmem:[#allocation2] sm:$0xff] %v177
  %182 = vst [vmem:[#allocation2 + $0x8] sm:$0xff] %v178
  %183 = vst [vmem:[#allocation2 + $0x10] sm:$0xff] %v179
  %184 = vst [vmem:[#allocation2 + $0x18] sm:$0xff] %v180
  // Predicated region
  $region22: #{_lambda_.221} parent=0 // pred_check
    %p185 = pneg %p18
  $region23: #{_lambda_.221} parent=0 // pred_check_branch
    %187 = sbr.rel (%p185) target = $region25
  $region24: #{_lambda_.221} parent=0 // pred_region
    %v188 = vld [vmem:[#allocation2] sm:$0xff]
    %v189 = vld [vmem:[#allocation2 + $0x8] sm:$0xff]
    %v190 = vld [vmem:[#allocation2 + $0x10] sm:$0xff]
    %v191 = vld [vmem:[#allocation2 + $0x18] sm:$0xff]
    %v192 = vld [vmem:[%s2] sm:$0x3]
    %v194 = vlaneseq
    %v195 = vshrl.u32 %v194, 7
    %v196 = vsub.s32 0, %v195
    %v197 = vrot.slane %v192, %v196
    %v198 = vlaneseq
    %v199 = vshrl.u32 %v198, 7
    %v200 = vsub.s32 1, %v199
    %v201 = vrot.slane %v192, %v200
    %v204 = vadd.f32 %v188, %v197
    %v205 = vadd.f32 %v189, %v201
    %v206 = vadd.f32 %v190, %v197
    %v207 = vadd.f32 %v191, %v201
    %v208 = vmax.f32 %v204, 0.0
    %v209 = vmax.f32 %v205, 0.0
    %v210 = vmax.f32 %v206, 0.0
    %v211 = vmax.f32 %v207, 0.0
    %v212 = vld [vmem:[%s3] sm:$0xff]
    %v213 = vld [vmem:[%s3 + $0x8] sm:$0xff]
    %v214 = vld [vmem:[%s3 + $0x10] sm:$0xff]
    %v215 = vld [vmem:[%s3 + $0x18] sm:$0xff]
    %v216 = vadd.f32 %v208, %v212
    %v217 = vadd.f32 %v209, %v213
    %v218 = vadd.f32 %v210, %v214
    %v219 = vadd.f32 %v211, %v215
    %220 = vst [vmem:[%s4] sm:$0xff] %v216
    %221 = vst [vmem:[%s4 + $0x8] sm:$0xff] %v217
    %222 = vst [vmem:[%s4 + $0x10] sm:$0xff] %v218
    %223 = vst [vmem:[%s4 + $0x18] sm:$0xff] %v219
  $region25: #{_lambda_.221} parent=0 // pred_fallthru
    _
  // Predicated region
  $region26: #{_lambda_.221} parent=0 // pred_check
    _
  $region27: #{_lambda_.221} parent=0 // pred_check_branch
    %225 = sbr.rel (0) target = $region29
  $region28: #{_lambda_.221} parent=0 // pred_region
    _
  $region29: #{_lambda_.221} parent=0 // pred_fallthru
    _
  // Predicated region
  $region30: #{_lambda_.221} parent=0 // pred_check
    _
  $region31: #{_lambda_.221} parent=0 // pred_check_branch
    %227 = sbr.rel (0) target = $region33
  $region32: #{_lambda_.221} parent=0 // pred_region
    _
  $region33: #{_lambda_.221} parent=0 // pred_fallthru
    _

// kernel: _lambda_.216
$region0: #{_lambda_.216}
  #allocation0 [shape = 'u32[]', space=smem, size = 0x4, offset = 0x4, fixed_abs, tag = 'smem constant byte address 0x4 - core index']
  #allocation1 [shape = 'u32[144,128]{1,0:T(1,128)}', space=vmem, size = 0x12000, scoped, tag = 'internal scratch']
  #allocation2 [shape = 'f32[16,256]{1,0:T(8,128)}', space=vmem, size = 0x4000, scoped, tag = 'scratch operand']
  %s0 = inlined_call_operand.vmem [shape: bf16[16,1536], index: 0, kind: input, shape index: {}]
  %s1 = inlined_call_operand.vmem [shape: bf16[1536,256], index: 1, kind: input, shape index: {}]
  %s2 = inlined_call_operand.vmem [shape: f32[1,256], index: 2, kind: input, shape index: {}]
  %s3 = inlined_call_operand.vmem [shape: f32[16,256], index: 3, kind: output, shape index: {}]
  %s4 = sld [smem:[#allocation0]]
  $region76: #{_lambda_.216} parent=0
    _
  %s6 = ssub.s32 1, %s4
  %s7 = scalar_select 0, %s6, %s4
  $region1: #{_lambda_.216} parent=0
    #allocation3 [shape = 'u8[32768]{0}', space=vmem, size = 0x8000, scoped, tag = 'input window, operand 0']
    loop: start=0, step=1, limit=5
    $region2: #{_lambda_.216} parent=1 // loop_pre_header
      _
    $region3: #{_lambda_.216} parent=1 // loop_header
      %s9 = sphi 0, %s13
      %p10 = scmp.ge.s32.totalorder %s9, 5
      %s16 = sphi 0, %s35
      %s17 = sphi 0, %s31
      %s18 = sphi 0, %s27
      %s19 = sphi 0, %s16
      %s20 = sphi 0, %s17
      %s21 = sphi 0, %s18
      %s22 = sphi 0, %s19
      %s23 = sphi 0, %s20
      %s24 = sphi 0, %s21
      %s40 = sphi 0, %s42
      %s43 = sphi 0, %s40
      %s44 = sphi 0, %s43
      %s60 = sphi 0, %s44
      %s68 = sphi 0, %s70
      %s71 = sphi 0, %s68
      %s72 = sphi 0, %s71
      %s88 = sphi 0, %s72
      %s94 = sphi 0, %s96
      %s97 = sphi 0, %s94
      %s98 = sphi 0, %s97
      %s114 = sphi 0, %s98
      %s122 = sphi 0, %s124
      %s125 = sphi 0, %s122
      %s126 = sphi 0, %s125
      %s142 = sphi 0, %s126
    $region4: #{_lambda_.216} parent=1 // loop_header_branch
      %12 = sbr.rel (%p10) target = $region8
    $region5: #{_lambda_.216} parent=1 // loop_body
      %s14 = ssub.s32 %s9, 1
      %s15 = ssub.s32 %s9, 2
      %s25 = sadd.s32 1, %s18
      %p26 = scmp.ge.s32.totalorder %s25, 3
      %s27 = scalar_select %p26, 0, %s25
      %s28 = sadd.s32 1, %s17
      %s29 = scalar_select %p26, %s28, %s17
      %p30 = scmp.ge.s32.totalorder %s29, 1
      %s31 = scalar_select %p30, 0, %s29
      %s32 = sadd.s32 1, %s16
      %s33 = scalar_select %p30, %s32, %s16
      %p34 = scmp.ge.s32.totalorder %s33, 1
      %s35 = scalar_select %p34, 0, %s33
      %s36 = ssub.s32 %s16, %s35
      %s37 = ssub.s32 %s18, %s27
      %s38 = sor.u32 %s36, %s37
      %p39 = scmp.eq.s32.totalorder %s38, 0
      %s41 = sadd.s32 %s40, 1
      %s42 = scalar_select %p39, %s40, %s41
      %p45 = pneg %p39
      %p46 = scmp.eq.s32.totalorder %s9, 2
      %p47 = por %p45, %p46
      %p48 = scmp.ne.s32.totalorder %s40, %s43
      %p49 = scmp.eq.s32.totalorder %s9, 0
      %p50 = por %p48, %p49
      %p51 = scmp.ne.s32.totalorder %s40, %s43
      %p52 = scmp.eq.s32.totalorder %s14, 2
      %p53 = por %p51, %p52
      %p54 = scmp.ne.s32.totalorder %s43, %s44
      %p55 = scmp.eq.s32.totalorder %s14, 0
      %p56 = por %p54, %p55
      %p57 = scmp.ne.s32.totalorder %s43, %s44
      %p58 = scmp.eq.s32.totalorder %s15, 2
      %p59 = por %p57, %p58
      %p61 = scmp.ne.s32.totalorder %s44, %s60
      %p62 = scmp.eq.s32.totalorder %s15, 0
      %p63 = por %p61, %p62
      %s64 = ssub.s32 %s18, %s27
      %s65 = ssub.s32 %s17, %s31
      %s66 = sor.u32 %s64, %s65
      %p67 = scmp.eq.s32.totalorder %s66, 0
      %s69 = sadd.s32 %s68, 1
      %s70 = scalar_select %p67, %s68, %s69
      %p73 = pneg %p67
      %p74 = scmp.eq.s32.totalorder %s9, 2
      %p75 = por %p73, %p74
      %p76 = scmp.ne.s32.totalorder %s68, %s71
      %p77 = scmp.eq.s32.totalorder %s9, 0
      %p78 = por %p76, %p77
      %p79 = scmp.ne.s32.totalorder %s68, %s71
      %p80 = scmp.eq.s32.totalorder %s14, 2
      %p81 = por %p79, %p80
      %p82 = scmp.ne.s32.totalorder %s71, %s72
      %p83 = scmp.eq.s32.totalorder %s14, 0
      %p84 = por %p82, %p83
      %p85 = scmp.ne.s32.totalorder %s71, %s72
      %p86 = scmp.eq.s32.totalorder %s15, 2
      %p87 = por %p85, %p86
      %p89 = scmp.ne.s32.totalorder %s72, %s88
      %p90 = scmp.eq.s32.totalorder %s15, 0
      %p91 = por %p89, %p90
      %s92 = ssub.s32 %s17, %s31
      %p93 = scmp.eq.s32.totalorder %s92, 0
      %s95 = sadd.s32 %s94, 1
      %s96 = scalar_select %p93, %s94, %s95
      %p99 = pneg %p93
      %p100 = scmp.eq.s32.totalorder %s9, 2
      %p101 = por %p99, %p100
      %p102 = scmp.ne.s32.totalorder %s94, %s97
      %p103 = scmp.eq.s32.totalorder %s9, 0
      %p104 = por %p102, %p103
      %p105 = scmp.ne.s32.totalorder %s94, %s97
      %p106 = scmp.eq.s32.totalorder %s14, 2
      %p107 = por %p105, %p106
      %p108 = scmp.ne.s32.totalorder %s97, %s98
      %p109 = scmp.eq.s32.totalorder %s14, 0
      %p110 = por %p108, %p109
      %p111 = scmp.ne.s32.totalorder %s97, %s98
      %p112 = scmp.eq.s32.totalorder %s15, 2
      %p113 = por %p111, %p112
      %p115 = scmp.ne.s32.totalorder %s98, %s114
      %p116 = scmp.eq.s32.totalorder %s15, 0
      %p117 = por %p115, %p116
      %s118 = ssub.s32 %s16, %s35
      %s119 = ssub.s32 %s17, %s31
      %s120 = sor.u32 %s118, %s119
      %p121 = scmp.eq.s32.totalorder %s120, 0
      %s123 = sadd.s32 %s122, 1
      %s124 = scalar_select %p121, %s122, %s123
      %p127 = pneg %p121
      %p128 = scmp.eq.s32.totalorder %s9, 2
      %p129 = por %p127, %p128
      %p130 = scmp.ne.s32.totalorder %s122, %s125
      %p131 = scmp.eq.s32.totalorder %s9, 0
      %p132 = por %p130, %p131
      %p133 = scmp.ne.s32.totalorder %s122, %s125
      %p134 = scmp.eq.s32.totalorder %s14, 2
      %p135 = por %p133, %p134
      %p136 = scmp.ne.s32.totalorder %s125, %s126
      %p137 = scmp.eq.s32.totalorder %s14, 0
      %p138 = por %p136, %p137
      %p139 = scmp.ne.s32.totalorder %s125, %s126
      %p140 = scmp.eq.s32.totalorder %s15, 2
      %p141 = por %p139, %p140
      %p143 = scmp.ne.s32.totalorder %s126, %s142
      %p144 = scmp.eq.s32.totalorder %s15, 0
      %p145 = por %p143, %p144
      %p146 = scmp.le.s32.totalorder 1, %s9
      %p147 = scmp.lt.s32.totalorder %s9, 4
      %p148 = pnand %p146, %p147
      %p149 = pneg %p148
      // Predicated region
      $region9: #{_lambda_.216} parent=5 // pred_check
        _
      $region10: #{_lambda_.216} parent=5 // pred_check_branch
        %151 = sbr.rel (%p148) target = $region12
      $region11: #{_lambda_.216} parent=5 // pred_region
        %s152 = ssub.s32 %s9, 1
        // Predicated region
        $region13: #{_lambda_.216} parent=11 // pred_check
          %p153 = pneg %p110
        $region14: #{_lambda_.216} parent=11 // pred_check_branch
          %155 = sbr.rel (%p153) target = $region16
        $region15: #{_lambda_.216} parent=11 // pred_region
          %s156 = smul.u32 2, %s20
          %p157 = scmp.lt.s32.totalorder %s156, 1
          %s158 = scalar_select %p157, %s156, 1
          %s159 = scalar_lea.vmem %s2, %s158
          %s160 = smul.u32 2, %s20
        $region16: #{_lambda_.216} parent=11 // pred_fallthru
          _
      $region12: #{_lambda_.216} parent=5 // pred_fallthru
        _
      %p161 = scmp.lt.s32.totalorder %s9, 3
      // Predicated region
      $region17: #{_lambda_.216} parent=5 // pred_check
        %p162 = pneg %p161
      $region18: #{_lambda_.216} parent=5 // pred_check_branch
        %164 = sbr.rel (%p162) target = $region20
      $region19: #{_lambda_.216} parent=5 // pred_region
        // Predicated region
        $region21: #{_lambda_.216} parent=19 // pred_check
          %p165 = pneg %p50
        $region22: #{_lambda_.216} parent=19 // pred_check_branch
          %167 = sbr.rel (%p165) target = $region24
        $region23: #{_lambda_.216} parent=19 // pred_region
          %s168 = sand.u32 %s40, 1
          %s169 = sand.u32 %s40, 1
          %s170 = smul.addr %s169, 32
          %s171 = scalar_lea.vmem [#allocation3], %s170
          %s172 = smul.u32 2, %s16
          %s173 = smul.u32 4, %s18
          %s174 = smul.addr %s172, 12
          %s175 = sadd.s32 %s173, %s174
          %s176 = smul.addr %s175, 4
          %s177 = scalar_lea.vmem %s0, %s176
          // Predicated region
          $region25: #{_lambda_.216} parent=23 // pred_check
            _
          $region26: #{_lambda_.216} parent=23 // pred_check_branch
            %179 = sbr.rel (0) target = $region28
          $region27: #{_lambda_.216} parent=23 // pred_region
            // Predicated region
            $region29: #{_lambda_.216} parent=27 // pred_check
              _
            $region30: #{_lambda_.216} parent=27 // pred_check_branch
              %181 = sbr.rel (0) target = $region32
            $region31: #{_lambda_.216} parent=27 // pred_region
              loop: start=0, step=1, limit=1
              $region33: #{_lambda_.216} parent=31 // loop_pre_header
                _
              $region34: #{_lambda_.216} parent=31 // loop_header
                %s183 = sphi 0, %s187
                %p184 = scmp.ge.s32.totalorder %s183, 1
                %s188 = sphi %s177, %s177
                %s189 = sphi %s171, %s171
              $region35: #{_lambda_.216} parent=31 // loop_header_branch
                %186 = sbr.rel (%p184) target = $region39
              $region36: #{_lambda_.216} parent=31 // loop_body
                %v190 = vld [vmem:[%s188] sm:$0xff]
                %191 = vst [vmem:[%s189] sm:$0xff] %v190
                %v192 = vld [vmem:[%s188 + $0x8] sm:$0xff]
                %193 = vst [vmem:[%s189 + $0x8] sm:$0xff] %v192
                %v194 = vld [vmem:[%s188 + $0x30] sm:$0xff]
                %195 = vst [vmem:[%s189 + $0x10] sm:$0xff] %v194
                %v196 = vld [vmem:[%s188 + $0x38] sm:$0xff]
                %197 = vst [vmem:[%s189 + $0x18] sm:$0xff] %v196
              $region37: #{_lambda_.216} parent=31 // loop_footer
                %s187 = sadd.s32 1, %s183
              $region38: #{_lambda_.216} parent=31 // loop_footer_branch
                %182 = sbr.rel target = $region34
              $region39: #{_lambda_.216} parent=31 // loop_exit
                _
            $region32: #{_lambda_.216} parent=27 // pred_fallthru
              _
            // Predicated region
            $region40: #{_lambda_.216} parent=27 // pred_check
              _
            $region41: #{_lambda_.216} parent=27 // pred_check_branch
              %199 = sbr.rel target = $region43
            $region42: #{_lambda_.216} parent=27 // pred_region
              _
            $region43: #{_lambda_.216} parent=27 // pred_fallthru
              _
          $region28: #{_lambda_.216} parent=23 // pred_fallthru
            _
          %200 = vnop
        $region24: #{_lambda_.216} parent=19 // pred_fallthru
          _
        // Predicated region
        $region44: #{_lambda_.216} parent=19 // pred_check
          %p201 = pneg %p78
        $region45: #{_lambda_.216} parent=19 // pred_check_branch
          %203 = sbr.rel (%p201) target = $region47
        $region46: #{_lambda_.216} parent=19 // pred_region
          %s204 = smul.u32 64, %s18
          %s205 = smul.u32 2, %s17
          %p206 = scmp.lt.s32.totalorder %s204, 191
          %s207 = scalar_select %p206, %s204, 191
          %p208 = scmp.lt.s32.totalorder %s205, 1
          %s209 = scalar_select %p208, %s205, 1
          %s210 = smul.addr %s207, 2
          %s211 = sadd.s32 %s209, %s210
          %s212 = smul.addr %s211, 4
          %s213 = scalar_lea.vmem %s1, %s212
          %s214 = smul.u32 64, %s18
          %s215 = smul.u32 2, %s17
        $region47: #{_lambda_.216} parent=19 // pred_fallthru
          _
      $region20: #{_lambda_.216} parent=5 // pred_fallthru
        _
      %p216 = scmp.le.s32.totalorder 1, %s9
      %p217 = scmp.lt.s32.totalorder %s9, 4
      %p218 = pnand %p216, %p217
      %p219 = pneg %p218
      // Predicated region
      $region48: #{_lambda_.216} parent=5 // pred_check
        _
      $region49: #{_lambda_.216} parent=5 // pred_check_branch
        %221 = sbr.rel (%p218) target = $region51
      $region50: #{_lambda_.216} parent=5 // pred_region
        %s222 = ssub.s32 %s9, 1
        %s223 = sand.u32 %s43, 1
        %s224 = sand.u32 %s43, 1
        %s225 = smul.addr %s224, 32
        %s226 = scalar_lea.vmem [#allocation3], %s225
        // Predicated region
        $region52: #{_lambda_.216} parent=50 // pred_check
          %p227 = pneg %p56
        $region53: #{_lambda_.216} parent=50 // pred_check_branch
          %229 = sbr.rel (%p227) target = $region55
        $region54: #{_lambda_.216} parent=50 // pred_region
          _
        $region55: #{_lambda_.216} parent=50 // pred_fallthru
          _
        %s230 = sand.u32 %s43, 1
        %s231 = sand.u32 %s43, 1
        %s232 = smul.addr %s231, 32
        %s233 = scalar_lea.vmem [#allocation3], %s232
        %p234 = pneg %p56
        %p235 = pneg %p53
        %s236 = smul.u32 64, %s21
        %s237 = smul.u32 2, %s20
        %p238 = scmp.lt.s32.totalorder %s236, 191
        %s239 = scalar_select %p238, %s236, 191
        %p240 = scmp.lt.s32.totalorder %s237, 1
        %s241 = scalar_select %p240, %s237, 1
        %s242 = smul.addr %s239, 2
        %s243 = sadd.s32 %s241, %s242
        %s244 = smul.addr %s243, 4
        %s245 = scalar_lea.vmem %s1, %s244
        %p246 = pneg %p84
        %p247 = pneg %p81
        %s248 = smul.u32 2, %s20
        %p249 = scmp.lt.s32.totalorder %s248, 1
        %s250 = scalar_select %p249, %s248, 1
        %s251 = scalar_lea.vmem %s2, %s250
        %p252 = pneg %p110
        %p253 = pneg %p107
        %p254 = pneg %p138
        %p255 = pneg %p135
        %s256 = smul.u32 2, %s19
        %s257 = smul.u32 2, %s20
        %p258 = scmp.lt.s32.totalorder %s256, 1
        %s259 = scalar_select %p258, %s256, 1
        %p260 = scmp.lt.s32.totalorder %s257, 1
        %s261 = scalar_select %p260, %s257, 1
        %s262 = smul.addr %s259, 2
        %s263 = sadd.s32 %s261, %s262
        %s264 = smul.addr %s263, 8
        %s265 = scalar_lea.vmem %s3, %s264
        %s266 = smul.u32 2, %s19
        %s267 = smul.u32 4, %s21
        %s268 = smul.u32 64, %s21
        %s269 = smul.u32 2, %s20
        %p270 = scmp.lt.s32.totalorder %s268, 191
        %s271 = scalar_select %p270, %s268, 191
        %p272 = scmp.lt.s32.totalorder %s269, 1
        %s273 = scalar_select %p272, %s269, 1
        %s274 = smul.addr %s271, 2
        %s275 = sadd.s32 %s273, %s274
        %s276 = smul.addr %s275, 4
        %s277 = scalar_lea.vmem %s1, %s276
        %s278 = smul.u32 64, %s21
        %s279 = smul.u32 2, %s20
        %s280 = smul.u32 2, %s20
        %p281 = scmp.lt.s32.totalorder %s280, 1
        %s282 = scalar_select %p281, %s280, 1
        %s283 = scalar_lea.vmem %s2, %s282
        %s284 = smul.u32 2, %s20
        %s285 = smul.u32 2, %s19
        %s286 = smul.u32 2, %s20
        %p287 = scmp.lt.s32.totalorder %s285, 1
        %s288 = scalar_select %p287, %s285, 1
        %p289 = scmp.lt.s32.totalorder %s286, 1
        %s290 = scalar_select %p289, %s286, 1
        %s291 = smul.addr %s288, 2
        %s292 = sadd.s32 %s290, %s291
        %s293 = smul.addr %s292, 8
        %s294 = scalar_lea.vmem %s3, %s293
        %s295 = smul.u32 2, %s19
        %s296 = smul.u32 2, %s20
        %p297 = scmp.eq.s32.totalorder %s21, 0
        // Predicated region
        $region56: #{_lambda_.216} parent=50 // pred_check
          %p298 = pneg %p297
        $region57: #{_lambda_.216} parent=50 // pred_check_branch
          %300 = sbr.rel (%p298) target = $region59
        $region58: #{_lambda_.216} parent=50 // pred_region
          %301 = vst [vmem:[#allocation2] sm:$0xff] 0.0
          %302 = vst [vmem:[#allocation2 + $0x8] sm:$0xff] 0.0
          %303 = vst [vmem:[#allocation2 + $0x10] sm:$0xff] 0.0
          %304 = vst [vmem:[#allocation2 + $0x18] sm:$0xff] 0.0
        $region59: #{_lambda_.216} parent=50 // pred_fallthru
          _
        %v305 = vld [vmem:[#allocation2] sm:$0xff]
        %v306 = vld [vmem:[#allocation2 + $0x8] sm:$0xff]
        %v307 = vld [vmem:[#allocation2 + $0x10] sm:$0xff]
        %v308 = vld [vmem:[#allocation2 + $0x18] sm:$0xff]
        %v309 = vld [vmem:[%s226] sm:$0xff]
        %v310 = vld [vmem:[%s226 + $0x8] sm:$0xff]
        %v311 = vld [vmem:[%s226 + $0x10] sm:$0xff]
        %v312 = vld [vmem:[%s226 + $0x18] sm:$0xff]
        %v313 = vld [vmem:[%s277] sm:$0xff]
        %v314 = vld [vmem:[%s277 + $0x8] sm:$0xff]
        %v315 = vld [vmem:[%s277 + $0x10] sm:$0xff]
        %v316 = vld [vmem:[%s277 + $0x18] sm:$0xff]
        %v317 = vld [vmem:[%s277 + $0x20] sm:$0xff]
        %v318 = vld [vmem:[%s277 + $0x28] sm:$0xff]
        %v319 = vld [vmem:[%s277 + $0x30] sm:$0xff]
        %v320 = vld [vmem:[%s277 + $0x38] sm:$0xff]
        %v321 = vld [vmem:[%s277 + $0x40] sm:$0xff]
        %v322 = vld [vmem:[%s277 + $0x48] sm:$0xff]
        %v323 = vld [vmem:[%s277 + $0x50] sm:$0xff]
        %v324 = vld [vmem:[%s277 + $0x58] sm:$0xff]
        %v325 = vld [vmem:[%s277 + $0x60] sm:$0xff]
        %v326 = vld [vmem:[%s277 + $0x68] sm:$0xff]
        %v327 = vld [vmem:[%s277 + $0x70] sm:$0xff]
        %v328 = vld [vmem:[%s277 + $0x78] sm:$0xff]
        %v329 = vld [vmem:[%s277 + $0x80] sm:$0xff]
        %v330 = vld [vmem:[%s277 + $0x88] sm:$0xff]
        %v331 = vld [vmem:[%s277 + $0x90] sm:$0xff]
        %v332 = vld [vmem:[%s277 + $0x98] sm:$0xff]
        %v333 = vld [vmem:[%s277 + $0xa0] sm:$0xff]
        %v334 = vld [vmem:[%s277 + $0xa8] sm:$0xff]
        %v335 = vld [vmem:[%s277 + $0xb0] sm:$0xff]
        %v336 = vld [vmem:[%s277 + $0xb8] sm:$0xff]
        %v337 = vld [vmem:[%s277 + $0xc0] sm:$0xff]
        %v338 = vld [vmem:[%s277 + $0xc8] sm:$0xff]
        %v339 = vld [vmem:[%s277 + $0xd0] sm:$0xff]
        %v340 = vld [vmem:[%s277 + $0xd8] sm:$0xff]
        %v341 = vld [vmem:[%s277 + $0xe0] sm:$0xff]
        %v342 = vld [vmem:[%s277 + $0xe8] sm:$0xff]
        %v343 = vld [vmem:[%s277 + $0xf0] sm:$0xff]
        %v344 = vld [vmem:[%s277 + $0xf8] sm:$0xff]
        %v345 = vld [vmem:[%s277 + $0x100] sm:$0xff]
        %v346 = vld [vmem:[%s277 + $0x108] sm:$0xff]
        %v347 = vld [vmem:[%s277 + $0x110] sm:$0xff]
        %v348 = vld [vmem:[%s277 + $0x118] sm:$0xff]
        %v349 = vld [vmem:[%s277 + $0x120] sm:$0xff]
        %v350 = vld [vmem:[%s277 + $0x128] sm:$0xff]
        %v351 = vld [vmem:[%s277 + $0x130] sm:$0xff]
        %v352 = vld [vmem:[%s277 + $0x138] sm:$0xff]
        %v353 = vld [vmem:[%s277 + $0x140] sm:$0xff]
        %v354 = vld [vmem:[%s277 + $0x148] sm:$0xff]
        %v355 = vld [vmem:[%s277 + $0x150] sm:$0xff]
        %v356 = vld [vmem:[%s277 + $0x158] sm:$0xff]
        %v357 = vld [vmem:[%s277 + $0x160] sm:$0xff]
        %v358 = vld [vmem:[%s277 + $0x168] sm:$0xff]
        %v359 = vld [vmem:[%s277 + $0x170] sm:$0xff]
        %v360 = vld [vmem:[%s277 + $0x178] sm:$0xff]
        %v361 = vld [vmem:[%s277 + $0x180] sm:$0xff]
        %v362 = vld [vmem:[%s277 + $0x188] sm:$0xff]
        %v363 = vld [vmem:[%s277 + $0x190] sm:$0xff]
        %v364 = vld [vmem:[%s277 + $0x198] sm:$0xff]
        %v365 = vld [vmem:[%s277 + $0x1a0] sm:$0xff]
        %v366 = vld [vmem:[%s277 + $0x1a8] sm:$0xff]
        %v367 = vld [vmem:[%s277 + $0x1b0] sm:$0xff]
        %v368 = vld [vmem:[%s277 + $0x1b8] sm:$0xff]
        %v369 = vld [vmem:[%s277 + $0x1c0] sm:$0xff]
        %v370 = vld [vmem:[%s277 + $0x1c8] sm:$0xff]
        %v371 = vld [vmem:[%s277 + $0x1d0] sm:$0xff]
        %v372 = vld [vmem:[%s277 + $0x1d8] sm:$0xff]
        %v373 = vld [vmem:[%s277 + $0x1e0] sm:$0xff]
        %v374 = vld [vmem:[%s277 + $0x1e8] sm:$0xff]
        %v375 = vld [vmem:[%s277 + $0x1f0] sm:$0xff]
        %v376 = vld [vmem:[%s277 + $0x1f8] sm:$0xff]
        %v381 = vunpack.c.l.b16 %v309
        %v382 = vunpack.c.h.b16 %v309
        %v383 = vunpack.c.l.b16 %v310
        %v384 = vunpack.c.h.b16 %v310
        %v385 = vunpack.c.l.b16 %v311
        %v386 = vunpack.c.h.b16 %v311
        %v387 = vunpack.c.l.b16 %v312
        %v388 = vunpack.c.h.b16 %v312
        %v389 = vpack.c.b16 %v385, %v381
        %v390 = vpack.c.b16 %v386, %v382
        %v391 = vpack.c.b16 %v387, %v383
        %v392 = vpack.c.b16 %v388, %v384
        %v461 = vunpack.c.l.b16 %v313
        %v462 = vunpack.c.h.b16 %v313
        %v463 = vunpack.c.l.b16 %v314
        %v464 = vunpack.c.h.b16 %v314
        %v465 = vunpack.c.l.b16 %v315
        %v466 = vunpack.c.h.b16 %v315
        %v467 = vunpack.c.l.b16 %v316
        %v468 = vunpack.c.h.b16 %v316
        %v469 = vunpack.c.l.b16 %v317
        %v470 = vunpack.c.h.b16 %v317
        %v471 = vunpack.c.l.b16 %v318
        %v472 = vunpack.c.h.b16 %v318
        %v473 = vunpack.c.l.b16 %v319
        %v474 = vunpack.c.h.b16 %v319
        %v475 = vunpack.c.l.b16 %v320
        %v476 = vunpack.c.h.b16 %v320
        %v477 = vunpack.c.l.b16 %v321
        %v478 = vunpack.c.h.b16 %v321
        %v479 = vunpack.c.l.b16 %v322
        %v480 = vunpack.c.h.b16 %v322
        %v481 = vunpack.c.l.b16 %v323
        %v482 = vunpack.c.h.b16 %v323
        %v483 = vunpack.c.l.b16 %v324
        %v484 = vunpack.c.h.b16 %v324
        %v485 = vunpack.c.l.b16 %v325
        %v486 = vunpack.c.h.b16 %v325
        %v487 = vunpack.c.l.b16 %v326
        %v488 = vunpack.c.h.b16 %v326
        %v489 = vunpack.c.l.b16 %v327
        %v490 = vunpack.c.h.b16 %v327
        %v491 = vunpack.c.l.b16 %v328
        %v492 = vunpack.c.h.b16 %v328
        %v493 = vunpack.c.l.b16 %v329
        %v494 = vunpack.c.h.b16 %v329
        %v495 = vunpack.c.l.b16 %v330
        %v496 = vunpack.c.h.b16 %v330
        %v497 = vunpack.c.l.b16 %v331
        %v498 = vunpack.c.h.b16 %v331
        %v499 = vunpack.c.l.b16 %v332
        %v500 = vunpack.c.h.b16 %v332
        %v501 = vunpack.c.l.b16 %v333
        %v502 = vunpack.c.h.b16 %v333
        %v503 = vunpack.c.l.b16 %v334
        %v504 = vunpack.c.h.b16 %v334
        %v505 = vunpack.c.l.b16 %v335
        %v506 = vunpack.c.h.b16 %v335
        %v507 = vunpack.c.l.b16 %v336
        %v508 = vunpack.c.h.b16 %v336
        %v509 = vunpack.c.l.b16 %v337
        %v510 = vunpack.c.h.b16 %v337
        %v511 = vunpack.c.l.b16 %v338
        %v512 = vunpack.c.h.b16 %v338
        %v513 = vunpack.c.l.b16 %v339
        %v514 = vunpack.c.h.b16 %v339
        %v515 = vunpack.c.l.b16 %v340
        %v516 = vunpack.c.h.b16 %v340
        %v517 = vunpack.c.l.b16 %v341
        %v518 = vunpack.c.h.b16 %v341
        %v519 = vunpack.c.l.b16 %v342
        %v520 = vunpack.c.h.b16 %v342
        %v521 = vunpack.c.l.b16 %v343
        %v522 = vunpack.c.h.b16 %v343
        %v523 = vunpack.c.l.b16 %v344
        %v524 = vunpack.c.h.b16 %v344
        %v525 = vunpack.c.l.b16 %v345
        %v526 = vunpack.c.h.b16 %v345
        %v527 = vunpack.c.l.b16 %v346
        %v528 = vunpack.c.h.b16 %v346
        %v529 = vunpack.c.l.b16 %v347
        %v530 = vunpack.c.h.b16 %v347
        %v531 = vunpack.c.l.b16 %v348
        %v532 = vunpack.c.h.b16 %v348
        %v533 = vunpack.c.l.b16 %v349
        %v534 = vunpack.c.h.b16 %v349
        %v535 = vunpack.c.l.b16 %v350
        %v536 = vunpack.c.h.b16 %v350
        %v537 = vunpack.c.l.b16 %v351
        %v538 = vunpack.c.h.b16 %v351
        %v539 = vunpack.c.l.b16 %v352
        %v540 = vunpack.c.h.b16 %v352
        %v541 = vunpack.c.l.b16 %v353
        %v542 = vunpack.c.h.b16 %v353
        %v543 = vunpack.c.l.b16 %v354
        %v544 = vunpack.c.h.b16 %v354
        %v545 = vunpack.c.l.b16 %v355
        %v546 = vunpack.c.h.b16 %v355
        %v547 = vunpack.c.l.b16 %v356
        %v548 = vunpack.c.h.b16 %v356
        %v549 = vunpack.c.l.b16 %v357
        %v550 = vunpack.c.h.b16 %v357
        %v551 = vunpack.c.l.b16 %v358
        %v552 = vunpack.c.h.b16 %v358
        %v553 = vunpack.c.l.b16 %v359
        %v554 = vunpack.c.h.b16 %v359
        %v555 = vunpack.c.l.b16 %v360
        %v556 = vunpack.c.h.b16 %v360
        %v557 = vunpack.c.l.b16 %v361
        %v558 = vunpack.c.h.b16 %v361
        %v559 = vunpack.c.l.b16 %v362
        %v560 = vunpack.c.h.b16 %v362
        %v561 = vunpack.c.l.b16 %v363
        %v562 = vunpack.c.h.b16 %v363
        %v563 = vunpack.c.l.b16 %v364
        %v564 = vunpack.c.h.b16 %v364
        %v565 = vunpack.c.l.b16 %v365
        %v566 = vunpack.c.h.b16 %v365
        %v567 = vunpack.c.l.b16 %v366
        %v568 = vunpack.c.h.b16 %v366
        %v569 = vunpack.c.l.b16 %v367
        %v570 = vunpack.c.h.b16 %v367
        %v571 = vunpack.c.l.b16 %v368
        %v572 = vunpack.c.h.b16 %v368
        %v573 = vunpack.c.l.b16 %v369
        %v574 = vunpack.c.h.b16 %v369
        %v575 = vunpack.c.l.b16 %v370
        %v576 = vunpack.c.h.b16 %v370
        %v577 = vunpack.c.l.b16 %v371
        %v578 = vunpack.c.h.b16 %v371
        %v579 = vunpack.c.l.b16 %v372
        %v580 = vunpack.c.h.b16 %v372
        %v581 = vunpack.c.l.b16 %v373
        %v582 = vunpack.c.h.b16 %v373
        %v583 = vunpack.c.l.b16 %v374
        %v584 = vunpack.c.h.b16 %v374
        %v585 = vunpack.c.l.b16 %v375
        %v586 = vunpack.c.h.b16 %v375
        %v587 = vunpack.c.l.b16 %v376
        %v588 = vunpack.c.h.b16 %v376
        %v589 = vpack.c.b16 %v463, %v461
        %v590 = vpack.c.b16 %v464, %v462
        %v591 = vpack.c.b16 %v467, %v465
        %v592 = vpack.c.b16 %v468, %v466
        %v593 = vpack.c.b16 %v471, %v469
        %v594 = vpack.c.b16 %v472, %v470
        %v595 = vpack.c.b16 %v475, %v473
        %v596 = vpack.c.b16 %v476, %v474
        %v597 = vpack.c.b16 %v479, %v477
        %v598 = vpack.c.b16 %v480, %v478
        %v599 = vpack.c.b16 %v483, %v481
        %v600 = vpack.c.b16 %v484, %v482
        %v601 = vpack.c.b16 %v487, %v485
        %v602 = vpack.c.b16 %v488, %v486
        %v603 = vpack.c.b16 %v491, %v489
        %v604 = vpack.c.b16 %v492, %v490
        %v605 = vpack.c.b16 %v495, %v493
        %v606 = vpack.c.b16 %v496, %v494
        %v607 = vpack.c.b16 %v499, %v497
        %v608 = vpack.c.b16 %v500, %v498
        %v609 = vpack.c.b16 %v503, %v501
        %v610 = vpack.c.b16 %v504, %v502
        %v611 = vpack.c.b16 %v507, %v505
        %v612 = vpack.c.b16 %v508, %v506
        %v613 = vpack.c.b16 %v511, %v509
        %v614 = vpack.c.b16 %v512, %v510
        %v615 = vpack.c.b16 %v515, %v513
        %v616 = vpack.c.b16 %v516, %v514
        %v617 = vpack.c.b16 %v519, %v517
        %v618 = vpack.c.b16 %v520, %v518
        %v619 = vpack.c.b16 %v523, %v521
        %v620 = vpack.c.b16 %v524, %v522
        %v621 = vpack.c.b16 %v527, %v525
        %v622 = vpack.c.b16 %v528, %v526
        %v623 = vpack.c.b16 %v531, %v529
        %v624 = vpack.c.b16 %v532, %v530
        %v625 = vpack.c.b16 %v535, %v533
        %v626 = vpack.c.b16 %v536, %v534
        %v627 = vpack.c.b16 %v539, %v537
        %v628 = vpack.c.b16 %v540, %v538
        %v629 = vpack.c.b16 %v543, %v541
        %v630 = vpack.c.b16 %v544, %v542
        %v631 = vpack.c.b16 %v547, %v545
        %v632 = vpack.c.b16 %v548, %v546
        %v633 = vpack.c.b16 %v551, %v549
        %v634 = vpack.c.b16 %v552, %v550
        %v635 = vpack.c.b16 %v555, %v553
        %v636 = vpack.c.b16 %v556, %v554
        %v637 = vpack.c.b16 %v559, %v557
        %v638 = vpack.c.b16 %v560, %v558
        %v639 = vpack.c.b16 %v563, %v561
        %v640 = vpack.c.b16 %v564, %v562
        %v641 = vpack.c.b16 %v567, %v565
        %v642 = vpack.c.b16 %v568, %v566
        %v643 = vpack.c.b16 %v571, %v569
        %v644 = vpack.c.b16 %v572, %v570
        %v645 = vpack.c.b16 %v575, %v573
        %v646 = vpack.c.b16 %v576, %v574
        %v647 = vpack.c.b16 %v579, %v577
        %v648 = vpack.c.b16 %v580, %v578
        %v649 = vpack.c.b16 %v583, %v581
        %v650 = vpack.c.b16 %v584, %v582
        %v651 = vpack.c.b16 %v587, %v585
        %v652 = vpack.c.b16 %v588, %v586
        %717 = vmatprep.subr.bf16.mxu0 %v590
        %718 = vmatpush1.bf16.msra.mxu0 %v589
        %719 = vmatprep.subr.bf16.mxu0 %v592
        %720 = vmatpush1.bf16.msra.mxu0 %v591
        %721 = vmatprep.subr.bf16.mxu0 %v594
        %722 = vmatpush1.bf16.msra.mxu0 %v593
        %723 = vmatprep.subr.bf16.mxu0 %v596
        %724 = vmatpush1.bf16.msra.mxu0 %v595
        %725 = vmatprep.subr.bf16.mxu0 %v598
        %726 = vmatpush1.bf16.msra.mxu0 %v597
        %727 = vmatprep.subr.bf16.mxu0 %v600
        %728 = vmatpush1.bf16.msra.mxu0 %v599
        %729 = vmatprep.subr.bf16.mxu0 %v602
        %730 = vmatpush1.bf16.msra.mxu0 %v601
        %731 = vmatprep.subr.bf16.mxu0 %v604
        %732 = vmatpush1.bf16.msra.mxu0 %v603
        %733 = vmatprep.subr.bf16.mxu0 %v606
        %734 = vmatpush1.bf16.msra.mxu0 %v605
        %735 = vmatprep.subr.bf16.mxu0 %v608
        %736 = vmatpush1.bf16.msra.mxu0 %v607
        %737 = vmatprep.subr.bf16.mxu0 %v610
        %738 = vmatpush1.bf16.msra.mxu0 %v609
        %739 = vmatprep.subr.bf16.mxu0 %v612
        %740 = vmatpush1.bf16.msra.mxu0 %v611
        %741 = vmatprep.subr.bf16.mxu0 %v614
        %742 = vmatpush1.bf16.msra.mxu0 %v613
        %743 = vmatprep.subr.bf16.mxu0 %v616
        %744 = vmatpush1.bf16.msra.mxu0 %v615
        %745 = vmatprep.subr.bf16.mxu0 %v618
        %746 = vmatpush1.bf16.msra.mxu0 %v617
        %747 = vmatprep.subr.bf16.mxu0 %v620
        %748 = vmatpush1.bf16.msra.mxu0 %v619
        %749 = vmatprep.mubr.bf16.mxu0 %v390
        %750 = vmatmul.mubr.bf16.gmra.mrb[0].mxu0 %v389
        %v751 = vpop.f32.mrb[0].mxu0
        %v752 = vadd.f32 0.0, %v751
        %v753 = vpop.f32.mrb[0].mxu0
        %v754 = vadd.f32 0.0, %v753
        %v755 = vpop.f32.mrb[0].mxu0
        %v756 = vadd.f32 0.0, %v755
        %v757 = vpop.f32.mrb[0].mxu0
        %v758 = vadd.f32 0.0, %v757
        %759 = vdwg.mxu0
        %760 = vmatprep.subr.bf16.mxu0 %v622
        %761 = vmatpush1.bf16.msra.mxu0 %v621
        %762 = vmatprep.subr.bf16.mxu0 %v624
        %763 = vmatpush1.bf16.msra.mxu0 %v623
        %764 = vmatprep.subr.bf16.mxu0 %v626
        %765 = vmatpush1.bf16.msra.mxu0 %v625
        %766 = vmatprep.subr.bf16.mxu0 %v628
        %767 = vmatpush1.bf16.msra.mxu0 %v627
        %768 = vmatprep.subr.bf16.mxu0 %v630
        %769 = vmatpush1.bf16.msra.mxu0 %v629
        %770 = vmatprep.subr.bf16.mxu0 %v632
        %771 = vmatpush1.bf16.msra.mxu0 %v631
        %772 = vmatprep.subr.bf16.mxu0 %v634
        %773 = vmatpush1.bf16.msra.mxu0 %v633
        %774 = vmatprep.subr.bf16.mxu0 %v636
        %775 = vmatpush1.bf16.msra.mxu0 %v635
        %776 = vmatprep.subr.bf16.mxu0 %v638
        %777 = vmatpush1.bf16.msra.mxu0 %v637
        %778 = vmatprep.subr.bf16.mxu0 %v640
        %779 = vmatpush1.bf16.msra.mxu0 %v639
        %780 = vmatprep.subr.bf16.mxu0 %v642
        %781 = vmatpush1.bf16.msra.mxu0 %v641
        %782 = vmatprep.subr.bf16.mxu0 %v644
        %783 = vmatpush1.bf16.msra.mxu0 %v643
        %784 = vmatprep.subr.bf16.mxu0 %v646
        %785 = vmatpush1.bf16.msra.mxu0 %v645
        %786 = vmatprep.subr.bf16.mxu0 %v648
        %787 = vmatpush1.bf16.msra.mxu0 %v647
        %788 = vmatprep.subr.bf16.mxu0 %v650
        %789 = vmatpush1.bf16.msra.mxu0 %v649
        %790 = vmatprep.subr.bf16.mxu0 %v652
        %791 = vmatpush1.bf16.msra.mxu0 %v651
        %792 = vmatprep.mubr.bf16.mxu0 %v392
        %793 = vmatmul.mubr.bf16.gmra.mrb[0].mxu0 %v391
        %v794 = vpop.f32.mrb[0].mxu0
        %v795 = vadd.f32 %v752, %v794
        %v796 = vpop.f32.mrb[0].mxu0
        %v797 = vadd.f32 %v754, %v796
        %v798 = vpop.f32.mrb[0].mxu0
        %v799 = vadd.f32 %v756, %v798
        %v800 = vpop.f32.mrb[0].mxu0
        %v801 = vadd.f32 %v758, %v800
        %802 = vdwg.mxu0
        %v803 = vadd.f32 %v305, %v795
        %v804 = vadd.f32 %v306, %v797
        %v805 = vadd.f32 %v307, %v799
        %v806 = vadd.f32 %v308, %v801
        %807 = vst [vmem:[#allocation2] sm:$0xff] %v803
        %808 = vst [vmem:[#allocation2 + $0x8] sm:$0xff] %v804
        %809 = vst [vmem:[#allocation2 + $0x10] sm:$0xff] %v805
        %810 = vst [vmem:[#allocation2 + $0x18] sm:$0xff] %v806
        %p811 = scmp.eq.s32.totalorder %s21, 2
        // Predicated region
        $region60: #{_lambda_.216} parent=50 // pred_check
          %p812 = pneg %p811
        $region61: #{_lambda_.216} parent=50 // pred_check_branch
          %814 = sbr.rel (%p812) target = $region63
        $region62: #{_lambda_.216} parent=50 // pred_region
          %v815 = vld [vmem:[#allocation2] sm:$0xff]
          %v816 = vld [vmem:[#allocation2 + $0x8] sm:$0xff]
          %v817 = vld [vmem:[#allocation2 + $0x10] sm:$0xff]
          %v818 = vld [vmem:[#allocation2 + $0x18] sm:$0xff]
          %v819 = vld [vmem:[%s283] sm:$0x3]
          %v821 = vlaneseq
          %v822 = vshrl.u32 %v821, 7
          %v823 = vsub.s32 0, %v822
          %v824 = vrot.slane %v819, %v823
          %v825 = vlaneseq
          %v826 = vshrl.u32 %v825, 7
          %v827 = vsub.s32 1, %v826
          %v828 = vrot.slane %v819, %v827
          %v831 = vadd.f32 %v815, %v824
          %v832 = vadd.f32 %v816, %v828
          %v833 = vadd.f32 %v817, %v824
          %v834 = vadd.f32 %v818, %v828
          %v835 = vmax.f32 %v831, 0.0
          %v836 = vmax.f32 %v832, 0.0
          %v837 = vmax.f32 %v833, 0.0
          %v838 = vmax.f32 %v834, 0.0
          %839 = vst [vmem:[%s294] sm:$0xff] %v835
          %840 = vst [vmem:[%s294 + $0x8] sm:$0xff] %v836
          %841 = vst [vmem:[%s294 + $0x10] sm:$0xff] %v837
          %842 = vst [vmem:[%s294 + $0x18] sm:$0xff] %v838
        $region63: #{_lambda_.216} parent=50 // pred_fallthru
          _
        %s843 = smul.u32 2, %s19
        %s844 = smul.u32 2, %s20
        %p845 = scmp.lt.s32.totalorder %s843, 1
        %s846 = scalar_select %p845, %s843, 1
        %p847 = scmp.lt.s32.totalorder %s844, 1
        %s848 = scalar_select %p847, %s844, 1
        %s849 = smul.addr %s846, 2
        %s850 = sadd.s32 %s848, %s849
        %s851 = smul.addr %s850, 8
        %s852 = scalar_lea.vmem %s3, %s851
        // Predicated region
        $region64: #{_lambda_.216} parent=50 // pred_check
          %p853 = pneg %p135
        $region65: #{_lambda_.216} parent=50 // pred_check_branch
          %855 = sbr.rel (%p853) target = $region67
        $region66: #{_lambda_.216} parent=50 // pred_region
          %s856 = smul.u32 2, %s19
          %s857 = smul.u32 2, %s20
        $region67: #{_lambda_.216} parent=50 // pred_fallthru
          _
        // Predicated region
        $region68: #{_lambda_.216} parent=50 // pred_check
          %p858 = pneg %p135
        $region69: #{_lambda_.216} parent=50 // pred_check_branch
          %860 = sbr.rel (%p858) target = $region71
        $region70: #{_lambda_.216} parent=50 // pred_region
          %s861 = smul.u32 2, %s19
          %s862 = smul.u32 2, %s20
          %p863 = scmp.lt.s32.totalorder %s861, 1
          %s864 = scalar_select %p863, %s861, 1
          %p865 = scmp.lt.s32.totalorder %s862, 1
          %s866 = scalar_select %p865, %s862, 1
          %s867 = smul.addr %s864, 2
          %s868 = sadd.s32 %s866, %s867
          %s869 = smul.addr %s868, 8
          %s870 = scalar_lea.vmem %s3, %s869
        $region71: #{_lambda_.216} parent=50 // pred_fallthru
          _
      $region51: #{_lambda_.216} parent=5 // pred_fallthru
        _
      %p871 = scmp.le.s32.totalorder 2, %s9
      // Predicated region
      $region72: #{_lambda_.216} parent=5 // pred_check
        %p872 = pneg %p871
      $region73: #{_lambda_.216} parent=5 // pred_check_branch
        %874 = sbr.rel (%p872) target = $region75
      $region74: #{_lambda_.216} parent=5 // pred_region
        %s875 = ssub.s32 %s9, 2
      $region75: #{_lambda_.216} parent=5 // pred_fallthru
        _
    $region6: #{_lambda_.216} parent=1 // loop_footer
      %s13 = sadd.s32 1, %s9
    $region7: #{_lambda_.216} parent=1 // loop_footer_branch
      %8 = sbr.rel target = $region3
    $region8: #{_lambda_.216} parent=1 // loop_exit
      _

// kernel: _lambda_.217
$region0: #{_lambda_.217}
  #allocation0 [shape = 'u32[]', space=smem, size = 0x4, offset = 0x4, fixed_abs, tag = 'smem constant byte address 0x4 - core index']
  #allocation1 [shape = 'u32[144,128]{1,0:T(1,128)}', space=vmem, size = 0x12000, scoped, tag = 'internal scratch']
  #allocation2 [shape = 'f32[16,128]{1,0:T(8,128)}', space=vmem, size = 0x2000, scoped, tag = 'scratch operand']
  %s0 = inlined_call_operand.vmem [shape: bf16[16,256], index: 0, kind: input, shape index: {}]
  %s1 = inlined_call_operand.vmem [shape: bf16[256,128], index: 1, kind: input, shape index: {}]
  %s2 = inlined_call_operand.vmem [shape: f32[1,128], index: 2, kind: input, shape index: {}]
  %s3 = inlined_call_operand.vmem [shape: f32[16,128], index: 3, kind: output, shape index: {}]
  %s4 = sld [smem:[#allocation0]]
  $region30: #{_lambda_.217} parent=0
    _
  %s6 = ssub.s32 1, %s4
  %s7 = scalar_select 0, %s6, %s4
  // Predicated region
  $region2: #{_lambda_.217} parent=0 // pred_check
    _
  $region3: #{_lambda_.217} parent=0 // pred_check_branch
    %9 = sbr.rel (0) target = $region5
  $region4: #{_lambda_.217} parent=0 // pred_region
    _
  $region5: #{_lambda_.217} parent=0 // pred_fallthru
    _
  // Predicated region
  $region6: #{_lambda_.217} parent=0 // pred_check
    _
  $region7: #{_lambda_.217} parent=0 // pred_check_branch
    %11 = sbr.rel (0) target = $region9
  $region8: #{_lambda_.217} parent=0 // pred_region
    _
  $region9: #{_lambda_.217} parent=0 // pred_fallthru
    _
  // Predicated region
  $region10: #{_lambda_.217} parent=0 // pred_check
    _
  $region11: #{_lambda_.217} parent=0 // pred_check_branch
    %13 = sbr.rel (0) target = $region13
  $region12: #{_lambda_.217} parent=0 // pred_region
    _
  $region13: #{_lambda_.217} parent=0 // pred_fallthru
    _
  %p15 = scmp.eq.s32.totalorder 0, 0
  // Predicated region
  $region14: #{_lambda_.217} parent=0 // pred_check
    %p16 = pneg %p15
  $region15: #{_lambda_.217} parent=0 // pred_check_branch
    %18 = sbr.rel (%p16) target = $region17
  $region16: #{_lambda_.217} parent=0 // pred_region
    %19 = vst [vmem:[#allocation2] sm:$0xff] 0.0
    %20 = vst [vmem:[#allocation2 + $0x8] sm:$0xff] 0.0
  $region17: #{_lambda_.217} parent=0 // pred_fallthru
    _
  %v21 = vld [vmem:[#allocation2] sm:$0xff]
  %v22 = vld [vmem:[#allocation2 + $0x8] sm:$0xff]
  %v23 = vld [vmem:[%s0] sm:$0xff]
  %v24 = vld [vmem:[%s0 + $0x8] sm:$0xff]
  %v25 = vld [vmem:[%s1] sm:$0xf]
  %v26 = vld [vmem:[%s1 + $0x4] sm:$0xf]
  %v27 = vld [vmem:[%s1 + $0x8] sm:$0xf]
  %v28 = vld [vmem:[%s1 + $0xc] sm:$0xf]
  %v29 = vld [vmem:[%s1 + $0x10] sm:$0xf]
  %v30 = vld [vmem:[%s1 + $0x14] sm:$0xf]
  %v31 = vld [vmem:[%s1 + $0x18] sm:$0xf]
  %v32 = vld [vmem:[%s1 + $0x1c] sm:$0xf]
  %v33 = vld [vmem:[%s1 + $0x20] sm:$0xf]
  %v34 = vld [vmem:[%s1 + $0x24] sm:$0xf]
  %v35 = vld [vmem:[%s1 + $0x28] sm:$0xf]
  %v36 = vld [vmem:[%s1 + $0x2c] sm:$0xf]
  %v37 = vld [vmem:[%s1 + $0x30] sm:$0xf]
  %v38 = vld [vmem:[%s1 + $0x34] sm:$0xf]
  %v39 = vld [vmem:[%s1 + $0x38] sm:$0xf]
  %v40 = vld [vmem:[%s1 + $0x3c] sm:$0xf]
  %v41 = vld [vmem:[%s1 + $0x40] sm:$0xf]
  %v42 = vld [vmem:[%s1 + $0x44] sm:$0xf]
  %v43 = vld [vmem:[%s1 + $0x48] sm:$0xf]
  %v44 = vld [vmem:[%s1 + $0x4c] sm:$0xf]
  %v45 = vld [vmem:[%s1 + $0x50] sm:$0xf]
  %v46 = vld [vmem:[%s1 + $0x54] sm:$0xf]
  %v47 = vld [vmem:[%s1 + $0x58] sm:$0xf]
  %v48 = vld [vmem:[%s1 + $0x5c] sm:$0xf]
  %v49 = vld [vmem:[%s1 + $0x60] sm:$0xf]
  %v50 = vld [vmem:[%s1 + $0x64] sm:$0xf]
  %v51 = vld [vmem:[%s1 + $0x68] sm:$0xf]
  %v52 = vld [vmem:[%s1 + $0x6c] sm:$0xf]
  %v53 = vld [vmem:[%s1 + $0x70] sm:$0xf]
  %v54 = vld [vmem:[%s1 + $0x74] sm:$0xf]
  %v55 = vld [vmem:[%s1 + $0x78] sm:$0xf]
  %v56 = vld [vmem:[%s1 + $0x7c] sm:$0xf]
  %v59 = vunpack.c.l.b16 %v23
  %v60 = vunpack.c.h.b16 %v23
  %v61 = vunpack.c.l.b16 %v24
  %v62 = vunpack.c.h.b16 %v24
  %v63 = vpack.c.b16 %v61, %v59
  %v64 = vpack.c.b16 %v62, %v60
  %v99 = vunpack.c.l.b16 %v25
  %v100 = vunpack.c.l.b16 %v26
  %v101 = vunpack.c.l.b16 %v27
  %v102 = vunpack.c.l.b16 %v28
  %v103 = vunpack.c.l.b16 %v29
  %v104 = vunpack.c.l.b16 %v30
  %v105 = vunpack.c.l.b16 %v31
  %v106 = vunpack.c.l.b16 %v32
  %v107 = vunpack.c.l.b16 %v33
  %v108 = vunpack.c.l.b16 %v34
  %v109 = vunpack.c.l.b16 %v35
  %v110 = vunpack.c.l.b16 %v36
  %v111 = vunpack.c.l.b16 %v37
  %v112 = vunpack.c.l.b16 %v38
  %v113 = vunpack.c.l.b16 %v39
  %v114 = vunpack.c.l.b16 %v40
  %v115 = vunpack.c.l.b16 %v41
  %v116 = vunpack.c.l.b16 %v42
  %v117 = vunpack.c.l.b16 %v43
  %v118 = vunpack.c.l.b16 %v44
  %v119 = vunpack.c.l.b16 %v45
  %v120 = vunpack.c.l.b16 %v46
  %v121 = vunpack.c.l.b16 %v47
  %v122 = vunpack.c.l.b16 %v48
  %v123 = vunpack.c.l.b16 %v49
  %v124 = vunpack.c.l.b16 %v50
  %v125 = vunpack.c.l.b16 %v51
  %v126 = vunpack.c.l.b16 %v52
  %v127 = vunpack.c.l.b16 %v53
  %v128 = vunpack.c.l.b16 %v54
  %v129 = vunpack.c.l.b16 %v55
  %v130 = vunpack.c.l.b16 %v56
  %v131 = vpack.c.b16 %v100, %v99
  %v132 = vpack.c.b16 %v102, %v101
  %v133 = vpack.c.b16 %v104, %v103
  %v134 = vpack.c.b16 %v106, %v105
  %v135 = vpack.c.b16 %v108, %v107
  %v136 = vpack.c.b16 %v110, %v109
  %v137 = vpack.c.b16 %v112, %v111
  %v138 = vpack.c.b16 %v114, %v113
  %v139 = vpack.c.b16 %v116, %v115
  %v140 = vpack.c.b16 %v118, %v117
  %v141 = vpack.c.b16 %v120, %v119
  %v142 = vpack.c.b16 %v122, %v121
  %v143 = vpack.c.b16 %v124, %v123
  %v144 = vpack.c.b16 %v126, %v125
  %v145 = vpack.c.b16 %v128, %v127
  %v146 = vpack.c.b16 %v130, %v129
  %163 = vmatprep.subr.bf16.mxu0 0
  %164 = vmatpush1.bf16.msra.mxu0 %v131
  %165 = vmatprep.subr.bf16.mxu0 0
  %166 = vmatpush1.bf16.msra.mxu0 %v132
  %167 = vmatprep.subr.bf16.mxu0 0
  %168 = vmatpush1.bf16.msra.mxu0 %v133
  %169 = vmatprep.subr.bf16.mxu0 0
  %170 = vmatpush1.bf16.msra.mxu0 %v134
  %171 = vmatprep.subr.bf16.mxu0 0
  %172 = vmatpush1.bf16.msra.mxu0 %v135
  %173 = vmatprep.subr.bf16.mxu0 0
  %174 = vmatpush1.bf16.msra.mxu0 %v136
  %175 = vmatprep.subr.bf16.mxu0 0
  %176 = vmatpush1.bf16.msra.mxu0 %v137
  %177 = vmatprep.subr.bf16.mxu0 0
  %178 = vmatpush1.bf16.msra.mxu0 %v138
  %179 = vmatprep.subr.bf16.mxu0 0
  %180 = vmatpush1.bf16.msra.mxu0 %v139
  %181 = vmatprep.subr.bf16.mxu0 0
  %182 = vmatpush1.bf16.msra.mxu0 %v140
  %183 = vmatprep.subr.bf16.mxu0 0
  %184 = vmatpush1.bf16.msra.mxu0 %v141
  %185 = vmatprep.subr.bf16.mxu0 0
  %186 = vmatpush1.bf16.msra.mxu0 %v142
  %187 = vmatprep.subr.bf16.mxu0 0
  %188 = vmatpush1.bf16.msra.mxu0 %v143
  %189 = vmatprep.subr.bf16.mxu0 0
  %190 = vmatpush1.bf16.msra.mxu0 %v144
  %191 = vmatprep.subr.bf16.mxu0 0
  %192 = vmatpush1.bf16.msra.mxu0 %v145
  %193 = vmatprep.subr.bf16.mxu0 0
  %194 = vmatpush1.bf16.msra.mxu0 %v146
  %195 = vmatprep.mubr.bf16.mxu0 %v64
  %196 = vmatmul.mubr.bf16.gmra.mrb[0].mxu0 %v63
  %v197 = vpop.f32.mrb[0].mxu0
  %v198 = vadd.f32 0.0, %v197
  %v199 = vpop.f32.mrb[0].mxu0
  %v200 = vpop.f32.mrb[0].mxu0
  %v201 = vadd.f32 0.0, %v200
  %v202 = vpop.f32.mrb[0].mxu0
  %203 = vdwg.mxu0
  %v204 = vadd.f32 %v21, %v198
  %v205 = vadd.f32 %v22, %v201
  %206 = vst [vmem:[#allocation2] sm:$0xff] %v204
  %207 = vst [vmem:[#allocation2 + $0x8] sm:$0xff] %v205
  // Predicated region
  $region18: #{_lambda_.217} parent=0 // pred_check
    %p208 = pneg %p15
  $region19: #{_lambda_.217} parent=0 // pred_check_branch
    %210 = sbr.rel (%p208) target = $region21
  $region20: #{_lambda_.217} parent=0 // pred_region
    %v211 = vld [vmem:[#allocation2] sm:$0xff]
    %v212 = vld [vmem:[#allocation2 + $0x8] sm:$0xff]
    %v213 = vld [vmem:[%s2] sm:$0x1]
    %v215 = vlaneseq
    %v216 = vshrl.u32 %v215, 7
    %v217 = vsub.s32 0, %v216
    %v218 = vrot.slane %v213, %v217
    %v220 = vadd.f32 %v211, %v218
    %v221 = vadd.f32 %v212, %v218
    %v222 = vmax.f32 %v220, 0.0
    %v223 = vmax.f32 %v221, 0.0
    %224 = vst [vmem:[%s3] sm:$0xff] %v222
    %225 = vst [vmem:[%s3 + $0x8] sm:$0xff] %v223
  $region21: #{_lambda_.217} parent=0 // pred_fallthru
    _
  // Predicated region
  $region22: #{_lambda_.217} parent=0 // pred_check
    _
  $region23: #{_lambda_.217} parent=0 // pred_check_branch
    %227 = sbr.rel (0) target = $region25
  $region24: #{_lambda_.217} parent=0 // pred_region
    _
  $region25: #{_lambda_.217} parent=0 // pred_fallthru
    _
  // Predicated region
  $region26: #{_lambda_.217} parent=0 // pred_check
    _
  $region27: #{_lambda_.217} parent=0 // pred_check_branch
    %229 = sbr.rel (0) target = $region29
  $region28: #{_lambda_.217} parent=0 // pred_region
    _
  $region29: #{_lambda_.217} parent=0 // pred_fallthru
    _

// kernel: _lambda_.220
$region0: #{_lambda_.220}
  #allocation0 [shape = 'u32[]', space=smem, size = 0x4, offset = 0x4, fixed_abs, tag = 'smem constant byte address 0x4 - core index']
  #allocation1 [shape = 'u32[144,128]{1,0:T(1,128)}', space=vmem, size = 0x12000, scoped, tag = 'internal scratch']
  #allocation2 [shape = 'f32[16,128]{1,0:T(8,128)}', space=vmem, size = 0x2000, scoped, tag = 'scratch operand']
  %s0 = inlined_call_operand.vmem [shape: bf16[16,384], index: 0, kind: input, shape index: {}]
  %s1 = inlined_call_operand.vmem [shape: bf16[384,128], index: 1, kind: input, shape index: {}]
  %s2 = inlined_call_operand.vmem [shape: f32[1,128], index: 2, kind: input, shape index: {}]
  %s3 = inlined_call_operand.vmem [shape: f32[16,128], index: 3, kind: output, shape index: {}]
  %s4 = sld [smem:[#allocation0]]
  $region30: #{_lambda_.220} parent=0
    _
  %s6 = ssub.s32 1, %s4
  %s7 = scalar_select 0, %s6, %s4
  // Predicated region
  $region2: #{_lambda_.220} parent=0 // pred_check
    _
  $region3: #{_lambda_.220} parent=0 // pred_check_branch
    %9 = sbr.rel (0) target = $region5
  $region4: #{_lambda_.220} parent=0 // pred_region
    _
  $region5: #{_lambda_.220} parent=0 // pred_fallthru
    _
  // Predicated region
  $region6: #{_lambda_.220} parent=0 // pred_check
    _
  $region7: #{_lambda_.220} parent=0 // pred_check_branch
    %11 = sbr.rel (0) target = $region9
  $region8: #{_lambda_.220} parent=0 // pred_region
    _
  $region9: #{_lambda_.220} parent=0 // pred_fallthru
    _
  // Predicated region
  $region10: #{_lambda_.220} parent=0 // pred_check
    _
  $region11: #{_lambda_.220} parent=0 // pred_check_branch
    %13 = sbr.rel (0) target = $region13
  $region12: #{_lambda_.220} parent=0 // pred_region
    _
  $region13: #{_lambda_.220} parent=0 // pred_fallthru
    _
  %p15 = scmp.eq.s32.totalorder 0, 0
  // Predicated region
  $region14: #{_lambda_.220} parent=0 // pred_check
    %p16 = pneg %p15
  $region15: #{_lambda_.220} parent=0 // pred_check_branch
    %18 = sbr.rel (%p16) target = $region17
  $region16: #{_lambda_.220} parent=0 // pred_region
    %19 = vst [vmem:[#allocation2] sm:$0xff] 0.0
    %20 = vst [vmem:[#allocation2 + $0x8] sm:$0xff] 0.0
  $region17: #{_lambda_.220} parent=0 // pred_fallthru
    _
  %v21 = vld [vmem:[#allocation2] sm:$0xff]
  %v22 = vld [vmem:[#allocation2 + $0x8] sm:$0xff]
  %v23 = vld [vmem:[%s0] sm:$0xff]
  %v24 = vld [vmem:[%s0 + $0x8] sm:$0xf]
  %v25 = vld [vmem:[%s0 + $0xc] sm:$0xff]
  %v26 = vld [vmem:[%s0 + $0x14] sm:$0xf]
  %v27 = vld [vmem:[%s1] sm:$0xf]
  %v28 = vld [vmem:[%s1 + $0x4] sm:$0xf]
  %v29 = vld [vmem:[%s1 + $0x8] sm:$0xf]
  %v30 = vld [vmem:[%s1 + $0xc] sm:$0xf]
  %v31 = vld [vmem:[%s1 + $0x10] sm:$0xf]
  %v32 = vld [vmem:[%s1 + $0x14] sm:$0xf]
  %v33 = vld [vmem:[%s1 + $0x18] sm:$0xf]
  %v34 = vld [vmem:[%s1 + $0x1c] sm:$0xf]
  %v35 = vld [vmem:[%s1 + $0x20] sm:$0xf]
  %v36 = vld [vmem:[%s1 + $0x24] sm:$0xf]
  %v37 = vld [vmem:[%s1 + $0x28] sm:$0xf]
  %v38 = vld [vmem:[%s1 + $0x2c] sm:$0xf]
  %v39 = vld [vmem:[%s1 + $0x30] sm:$0xf]
  %v40 = vld [vmem:[%s1 + $0x34] sm:$0xf]
  %v41 = vld [vmem:[%s1 + $0x38] sm:$0xf]
  %v42 = vld [vmem:[%s1 + $0x3c] sm:$0xf]
  %v43 = vld [vmem:[%s1 + $0x40] sm:$0xf]
  %v44 = vld [vmem:[%s1 + $0x44] sm:$0xf]
  %v45 = vld [vmem:[%s1 + $0x48] sm:$0xf]
  %v46 = vld [vmem:[%s1 + $0x4c] sm:$0xf]
  %v47 = vld [vmem:[%s1 + $0x50] sm:$0xf]
  %v48 = vld [vmem:[%s1 + $0x54] sm:$0xf]
  %v49 = vld [vmem:[%s1 + $0x58] sm:$0xf]
  %v50 = vld [vmem:[%s1 + $0x5c] sm:$0xf]
  %v51 = vld [vmem:[%s1 + $0x60] sm:$0xf]
  %v52 = vld [vmem:[%s1 + $0x64] sm:$0xf]
  %v53 = vld [vmem:[%s1 + $0x68] sm:$0xf]
  %v54 = vld [vmem:[%s1 + $0x6c] sm:$0xf]
  %v55 = vld [vmem:[%s1 + $0x70] sm:$0xf]
  %v56 = vld [vmem:[%s1 + $0x74] sm:$0xf]
  %v57 = vld [vmem:[%s1 + $0x78] sm:$0xf]
  %v58 = vld [vmem:[%s1 + $0x7c] sm:$0xf]
  %v59 = vld [vmem:[%s1 + $0x80] sm:$0xf]
  %v60 = vld [vmem:[%s1 + $0x84] sm:$0xf]
  %v61 = vld [vmem:[%s1 + $0x88] sm:$0xf]
  %v62 = vld [vmem:[%s1 + $0x8c] sm:$0xf]
  %v63 = vld [vmem:[%s1 + $0x90] sm:$0xf]
  %v64 = vld [vmem:[%s1 + $0x94] sm:$0xf]
  %v65 = vld [vmem:[%s1 + $0x98] sm:$0xf]
  %v66 = vld [vmem:[%s1 + $0x9c] sm:$0xf]
  %v67 = vld [vmem:[%s1 + $0xa0] sm:$0xf]
  %v68 = vld [vmem:[%s1 + $0xa4] sm:$0xf]
  %v69 = vld [vmem:[%s1 + $0xa8] sm:$0xf]
  %v70 = vld [vmem:[%s1 + $0xac] sm:$0xf]
  %v71 = vld [vmem:[%s1 + $0xb0] sm:$0xf]
  %v72 = vld [vmem:[%s1 + $0xb4] sm:$0xf]
  %v73 = vld [vmem:[%s1 + $0xb8] sm:$0xf]
  %v74 = vld [vmem:[%s1 + $0xbc] sm:$0xf]
  %v79 = vunpack.c.l.b16 %v23
  %v80 = vunpack.c.h.b16 %v23
  %v81 = vunpack.c.l.b16 %v24
  %v82 = vunpack.c.l.b16 %v25
  %v83 = vunpack.c.h.b16 %v25
  %v84 = vunpack.c.l.b16 %v26
  %v85 = vpack.c.b16 %v82, %v79
  %v86 = vpack.c.b16 %v83, %v80
  %v87 = vpack.c.b16 %v84, %v81
  %v139 = vunpack.c.l.b16 %v27
  %v140 = vunpack.c.l.b16 %v28
  %v141 = vunpack.c.l.b16 %v29
  %v142 = vunpack.c.l.b16 %v30
  %v143 = vunpack.c.l.b16 %v31
  %v144 = vunpack.c.l.b16 %v32
  %v145 = vunpack.c.l.b16 %v33
  %v146 = vunpack.c.l.b16 %v34
  %v147 = vunpack.c.l.b16 %v35
  %v148 = vunpack.c.l.b16 %v36
  %v149 = vunpack.c.l.b16 %v37
  %v150 = vunpack.c.l.b16 %v38
  %v151 = vunpack.c.l.b16 %v39
  %v152 = vunpack.c.l.b16 %v40
  %v153 = vunpack.c.l.b16 %v41
  %v154 = vunpack.c.l.b16 %v42
  %v155 = vunpack.c.l.b16 %v43
  %v156 = vunpack.c.l.b16 %v44
  %v157 = vunpack.c.l.b16 %v45
  %v158 = vunpack.c.l.b16 %v46
  %v159 = vunpack.c.l.b16 %v47
  %v160 = vunpack.c.l.b16 %v48
  %v161 = vunpack.c.l.b16 %v49
  %v162 = vunpack.c.l.b16 %v50
  %v163 = vunpack.c.l.b16 %v51
  %v164 = vunpack.c.l.b16 %v52
  %v165 = vunpack.c.l.b16 %v53
  %v166 = vunpack.c.l.b16 %v54
  %v167 = vunpack.c.l.b16 %v55
  %v168 = vunpack.c.l.b16 %v56
  %v169 = vunpack.c.l.b16 %v57
  %v170 = vunpack.c.l.b16 %v58
  %v171 = vunpack.c.l.b16 %v59
  %v172 = vunpack.c.l.b16 %v60
  %v173 = vunpack.c.l.b16 %v61
  %v174 = vunpack.c.l.b16 %v62
  %v175 = vunpack.c.l.b16 %v63
  %v176 = vunpack.c.l.b16 %v64
  %v177 = vunpack.c.l.b16 %v65
  %v178 = vunpack.c.l.b16 %v66
  %v179 = vunpack.c.l.b16 %v67
  %v180 = vunpack.c.l.b16 %v68
  %v181 = vunpack.c.l.b16 %v69
  %v182 = vunpack.c.l.b16 %v70
  %v183 = vunpack.c.l.b16 %v71
  %v184 = vunpack.c.l.b16 %v72
  %v185 = vunpack.c.l.b16 %v73
  %v186 = vunpack.c.l.b16 %v74
  %v187 = vpack.c.b16 %v140, %v139
  %v188 = vpack.c.b16 %v142, %v141
  %v189 = vpack.c.b16 %v144, %v143
  %v190 = vpack.c.b16 %v146, %v145
  %v191 = vpack.c.b16 %v148, %v147
  %v192 = vpack.c.b16 %v150, %v149
  %v193 = vpack.c.b16 %v152, %v151
  %v194 = vpack.c.b16 %v154, %v153
  %v195 = vpack.c.b16 %v156, %v155
  %v196 = vpack.c.b16 %v158, %v157
  %v197 = vpack.c.b16 %v160, %v159
  %v198 = vpack.c.b16 %v162, %v161
  %v199 = vpack.c.b16 %v164, %v163
  %v200 = vpack.c.b16 %v166, %v165
  %v201 = vpack.c.b16 %v168, %v167
  %v202 = vpack.c.b16 %v170, %v169
  %v203 = vpack.c.b16 %v172, %v171
  %v204 = vpack.c.b16 %v174, %v173
  %v205 = vpack.c.b16 %v176, %v175
  %v206 = vpack.c.b16 %v178, %v177
  %v207 = vpack.c.b16 %v180, %v179
  %v208 = vpack.c.b16 %v182, %v181
  %v209 = vpack.c.b16 %v184, %v183
  %v210 = vpack.c.b16 %v186, %v185
  %235 = vmatprep.subr.bf16.mxu0 0
  %236 = vmatpush1.bf16.msra.mxu0 %v187
  %237 = vmatprep.subr.bf16.mxu0 0
  %238 = vmatpush1.bf16.msra.mxu0 %v188
  %239 = vmatprep.subr.bf16.mxu0 0
  %240 = vmatpush1.bf16.msra.mxu0 %v189
  %241 = vmatprep.subr.bf16.mxu0 0
  %242 = vmatpush1.bf16.msra.mxu0 %v190
  %243 = vmatprep.subr.bf16.mxu0 0
  %244 = vmatpush1.bf16.msra.mxu0 %v191
  %245 = vmatprep.subr.bf16.mxu0 0
  %246 = vmatpush1.bf16.msra.mxu0 %v192
  %247 = vmatprep.subr.bf16.mxu0 0
  %248 = vmatpush1.bf16.msra.mxu0 %v193
  %249 = vmatprep.subr.bf16.mxu0 0
  %250 = vmatpush1.bf16.msra.mxu0 %v194
  %251 = vmatprep.subr.bf16.mxu0 0
  %252 = vmatpush1.bf16.msra.mxu0 %v195
  %253 = vmatprep.subr.bf16.mxu0 0
  %254 = vmatpush1.bf16.msra.mxu0 %v196
  %255 = vmatprep.subr.bf16.mxu0 0
  %256 = vmatpush1.bf16.msra.mxu0 %v197
  %257 = vmatprep.subr.bf16.mxu0 0
  %258 = vmatpush1.bf16.msra.mxu0 %v198
  %259 = vmatprep.subr.bf16.mxu0 0
  %260 = vmatpush1.bf16.msra.mxu0 %v199
  %261 = vmatprep.subr.bf16.mxu0 0
  %262 = vmatpush1.bf16.msra.mxu0 %v200
  %263 = vmatprep.subr.bf16.mxu0 0
  %264 = vmatpush1.bf16.msra.mxu0 %v201
  %265 = vmatprep.subr.bf16.mxu0 0
  %266 = vmatpush1.bf16.msra.mxu0 %v202
  %267 = vmatprep.mubr.bf16.mxu0 %v86
  %268 = vmatmul.mubr.bf16.gmra.mrb[0].mxu0 %v85
  %v269 = vpop.f32.mrb[0].mxu0
  %v270 = vadd.f32 0.0, %v269
  %v271 = vpop.f32.mrb[0].mxu0
  %v272 = vpop.f32.mrb[0].mxu0
  %v273 = vadd.f32 0.0, %v272
  %v274 = vpop.f32.mrb[0].mxu0
  %275 = vdwg.mxu0
  %276 = vmatprep.subr.bf16.mxu0 0
  %277 = vmatpush1.bf16.msra.mxu0 %v203
  %278 = vmatprep.subr.bf16.mxu0 0
  %279 = vmatpush1.bf16.msra.mxu0 %v204
  %280 = vmatprep.subr.bf16.mxu0 0
  %281 = vmatpush1.bf16.msra.mxu0 %v205
  %282 = vmatprep.subr.bf16.mxu0 0
  %283 = vmatpush1.bf16.msra.mxu0 %v206
  %284 = vmatprep.subr.bf16.mxu0 0
  %285 = vmatpush1.bf16.msra.mxu0 %v207
  %286 = vmatprep.subr.bf16.mxu0 0
  %287 = vmatpush1.bf16.msra.mxu0 %v208
  %288 = vmatprep.subr.bf16.mxu0 0
  %289 = vmatpush1.bf16.msra.mxu0 %v209
  %290 = vmatprep.subr.bf16.mxu0 0
  %291 = vmatpush1.bf16.msra.mxu0 %v210
  %292 = vmatprep.subr.bf16.mxu0 0
  %293 = vmatpush1.bf16.msra.mxu0 0
  %294 = vmatprep.subr.bf16.mxu0 0
  %295 = vmatpush1.bf16.msra.mxu0 0
  %296 = vmatprep.subr.bf16.mxu0 0
  %297 = vmatpush1.bf16.msra.mxu0 0
  %298 = vmatprep.subr.bf16.mxu0 0
  %299 = vmatpush1.bf16.msra.mxu0 0
  %300 = vmatprep.subr.bf16.mxu0 0
  %301 = vmatpush1.bf16.msra.mxu0 0
  %302 = vmatprep.subr.bf16.mxu0 0
  %303 = vmatpush1.bf16.msra.mxu0 0
  %304 = vmatprep.subr.bf16.mxu0 0
  %305 = vmatpush1.bf16.msra.mxu0 0
  %306 = vmatprep.subr.bf16.mxu0 0
  %307 = vmatpush1.bf16.msra.mxu0 0
  %308 = vmatprep.mubr.bf16.mxu0 0
  %309 = vmatmul.mubr.bf16.gmra.mrb[0].mxu0 %v87
  %v310 = vpop.f32.mrb[0].mxu0
  %v311 = vadd.f32 %v270, %v310
  %v312 = vpop.f32.mrb[0].mxu0
  %v313 = vpop.f32.mrb[0].mxu0
  %v314 = vadd.f32 %v273, %v313
  %v315 = vpop.f32.mrb[0].mxu0
  %316 = vdwg.mxu0
  %v317 = vadd.f32 %v21, %v311
  %v318 = vadd.f32 %v22, %v314
  %319 = vst [vmem:[#allocation2] sm:$0xff] %v317
  %320 = vst [vmem:[#allocation2 + $0x8] sm:$0xff] %v318
  // Predicated region
  $region18: #{_lambda_.220} parent=0 // pred_check
    %p321 = pneg %p15
  $region19: #{_lambda_.220} parent=0 // pred_check_branch
    %323 = sbr.rel (%p321) target = $region21
  $region20: #{_lambda_.220} parent=0 // pred_region
    %v324 = vld [vmem:[#allocation2] sm:$0xff]
    %v325 = vld [vmem:[#allocation2 + $0x8] sm:$0xff]
    %v326 = vld [vmem:[%s2] sm:$0x1]
    %v328 = vlaneseq
    %v329 = vshrl.u32 %v328, 7
    %v330 = vsub.s32 0, %v329
    %v331 = vrot.slane %v326, %v330
    %v333 = vadd.f32 %v324, %v331
    %v334 = vadd.f32 %v325, %v331
    %v335 = vmax.f32 %v333, 0.0
    %v336 = vmax.f32 %v334, 0.0
    %337 = vst [vmem:[%s3] sm:$0xff] %v335
    %338 = vst [vmem:[%s3 + $0x8] sm:$0xff] %v336
  $region21: #{_lambda_.220} parent=0 // pred_fallthru
    _
  // Predicated region
  $region22: #{_lambda_.220} parent=0 // pred_check
    _
  $region23: #{_lambda_.220} parent=0 // pred_check_branch
    %340 = sbr.rel (0) target = $region25
  $region24: #{_lambda_.220} parent=0 // pred_region
    _
  $region25: #{_lambda_.220} parent=0 // pred_fallthru
    _
  // Predicated region
  $region26: #{_lambda_.220} parent=0 // pred_check
    _
  $region27: #{_lambda_.220} parent=0 // pred_check_branch
    %342 = sbr.rel (0) target = $region29
  $region28: #{_lambda_.220} parent=0 // pred_region
    _
  $region29: #{_lambda_.220} parent=0 // pred_fallthru
    _

</llo_original>
